<compile_context>
chip_gen: v6e
topology: v6e:2x2x1
jax: 0.10.0
libtpu: 0.0.40
codegen_flags: <defaults>
</compile_context>

<pallas_src>
import functools

import jax
import jax.numpy as jnp
from jax.experimental import pallas as pl
from jax.experimental.pallas import tpu as pltpu


def transformer_layer_kernel(
    seq_ref,
    wq_ref, bq_ref, wk_ref, bk_ref, wv_ref, bv_ref,
    g1_ref, be1_ref,
    w1_ref, b1_ref, w2_ref, b2_ref,
    g2_ref, be2_ref,
    o_ref,
    attn_ref,
    *, batch_tile, seq_len, n_heads, d_k, ln_eps):
    """Bt batch elements per grid step: fused MHA + LN + FFN + LN, on-chip."""
    Bt, L = batch_tile, seq_len
    M = Bt * L
    D = seq_ref.shape[-1]

    x = seq_ref[...].reshape(M, D)  # (Bt*L, D) float32, fills MXU M dimension

    # ---------------- multi-head self-attention (mask=None path) -----------
    # TODO(synk): attention mask / NaN-row masked_fill not implemented
    # (only the mask=None, dropout=0 inference path of the PyTorch module).
    q = jnp.dot(x, wq_ref[...], preferred_element_type=jnp.float32) + bq_ref[...]
    k = jnp.dot(x, wk_ref[...], preferred_element_type=jnp.float32) + bk_ref[...]
    v = jnp.dot(x, wv_ref[...], preferred_element_type=jnp.float32) + bv_ref[...]

    q = q * (1.0 / float(d_k) ** 0.5)  # fold 1/sqrt(d_k) into q once

    for h in range(n_heads):  # static loop, n_heads is small; batched over Bt
        sl = slice(h * d_k, (h + 1) * d_k)
        qh = q[:, sl].reshape(Bt, L, d_k)
        kh = k[:, sl].reshape(Bt, L, d_k)
        vh = v[:, sl].reshape(Bt, L, d_k)
        # scores = qh @ kh^T (already scaled); batched over Bt
        s = jnp.einsum('bqd,bkd->bqk', qh, kh,
                       preferred_element_type=jnp.float32)
        # softmax is shift-invariant: per-row max == PyTorch's global-max shift
        s = s - jnp.max(s, axis=-1, keepdims=True)
        p = jnp.exp(s)
        p = p * pl.reciprocal(jnp.sum(p, axis=-1, keepdims=True), approx=True)
        ho = jnp.einsum('bqk,bkd->bqd', p, vh,
                        preferred_element_type=jnp.float32)
        attn_ref[:, sl] = ho.reshape(M, d_k)  # scratch write, no concatenate

    attn = attn_ref[...]  # (Bt*L, A)

    # ---------------- residual + LayerNorm1 (f32 elementwise) --------------
    def layer_norm(y, gamma, beta):
        mu = jnp.mean(y, axis=-1, keepdims=True)
        var = jnp.mean(jnp.square(y - mu), axis=-1, keepdims=True)
        return (y - mu) * jax.lax.rsqrt(var + ln_eps) * gamma + beta

    ctx = layer_norm(attn + x, g1_ref[...], be1_ref[...])

    # ---------------- position-wise feed-forward ----------------------------
    hidden = jnp.dot(ctx, w1_ref[...],
                     preferred_element_type=jnp.float32) + b1_ref[...]
    hidden = jnp.maximum(hidden, 0.0)
    ffn = jnp.dot(hidden, w2_ref[...],
                  preferred_element_type=jnp.float32) + b2_ref[...]

    # ---------------- residual + LayerNorm2 ---------------------------------
    out = layer_norm(ffn + ctx, g2_ref[...], be2_ref[...])
    o_ref[...] = out.reshape(Bt, L, D).astype(o_ref.dtype)


def transformer_layer_forward(seq, params, *, n_heads, ln_eps=1e-5,
                              batch_tile=None):
    """seq: [B, L, d_model] float32. One grid step per Bt batch elements."""
    (wq, bq), (wk, bk), (wv, bv), (g1, be1), (w1, b1), (w2, b2), (g2, be2) = params
    B, L, D = seq.shape
    A = wq.shape[1]           # attention_d (== d_model here)
    d_ff = w1.shape[1]
    d_k = A // n_heads

    if batch_tile is None:
        # largest divisor of B that still leaves >=2 grid steps (v7x megacore)
        batch_tile = next(bt for bt in range(max(1, B // 2), 0, -1)
                          if B % bt == 0)
    assert B % batch_tile == 0

    # Weights/biases: constant block index -> DMA'd once, stay VMEM-resident.
    const = lambda shape: pl.BlockSpec(shape, lambda b: (0, 0))

    kernel = functools.partial(
        transformer_layer_kernel, batch_tile=batch_tile, seq_len=L,
        n_heads=n_heads, d_k=d_k, ln_eps=ln_eps)

    return pl.pallas_call(
        kernel,
        out_shape=jax.ShapeDtypeStruct((B, L, D), seq.dtype),
        grid=(B // batch_tile,),
        in_specs=[
            pl.BlockSpec((batch_tile, L, D), lambda b: (b, 0, 0)),  # seq tile
            const((D, A)), const((1, A)),                   # Wq, bq
            const((D, A)), const((1, A)),                   # Wk, bk
            const((D, A)), const((1, A)),                   # Wv, bv
            const((1, D)), const((1, D)),                   # LN1 gamma/beta
            const((D, d_ff)), const((1, d_ff)),             # W1, b1
            const((d_ff, D)), const((1, D)),                # W2, b2
            const((1, D)), const((1, D)),                   # LN2 gamma/beta
        ],
        out_specs=pl.BlockSpec((batch_tile, L, D), lambda b: (b, 0, 0)),
        scratch_shapes=[pltpu.VMEM((batch_tile * L, A), jnp.float32)],
        compiler_params=pltpu.CompilerParams(
            dimension_semantics=("parallel",)),             # megacore on v7x
    )(seq, wq, bq, wk, bk, wv, bv, g1, be1, w1, b1, w2, b2, g2, be2)


def init_params(key, d_model, n_heads, d_ff):
    """Deterministic init mimicking nn.Linear / nn.LayerNorm defaults."""
    attention_d = d_model

    def linear(k, fan_in, fan_out):
        kw, kb = jax.random.split(k)
        bound = fan_in ** -0.5
        w = jax.random.uniform(kw, (fan_in, fan_out), jnp.float32,
                               minval=-bound, maxval=bound)
        b = jax.random.uniform(kb, (1, fan_out), jnp.float32,
                               minval=-bound, maxval=bound)
        return w, b

    keys = jax.random.split(key, 5)
    wq, bq = linear(keys[0], d_model, attention_d)
    wk, bk = linear(keys[1], d_model, attention_d)
    wv, bv = linear(keys[2], d_model, attention_d)
    w1, b1 = linear(keys[3], d_model, d_ff)
    w2, b2 = linear(keys[4], d_ff, d_model)
    g1 = jnp.ones((1, d_model), jnp.float32)
    be1 = jnp.zeros((1, d_model), jnp.float32)
    g2 = jnp.ones((1, d_model), jnp.float32)
    be2 = jnp.zeros((1, d_model), jnp.float32)
    return ((wq, bq), (wk, bk), (wv, bv), (g1, be1),
            (w1, b1), (w2, b2), (g2, be2))


def transformer_layer_reference(seq, params, *, n_heads, ln_eps=1e-5):
    """Plain-JAX mirror of the PyTorch forward (mask=None, dropout=0),
    computed at HIGHEST matmul precision as the numeric ground truth."""
    (wq, bq), (wk, bk), (wv, bv), (g1, be1), (w1, b1), (w2, b2), (g2, be2) = params
    B, L, D = seq.shape
    A = wq.shape[1]
    d_k = A // n_heads
    hi = jax.lax.Precision.HIGHEST

    def split(x):  # (B, L, A) -> (B, H, L, d_k)
        return x.reshape(B, L, n_heads, d_k).transpose(0, 2, 1, 3)

    dot = functools.partial(jnp.matmul, precision=hi)
    q = split(dot(seq, wq) + bq)
    k = split(dot(seq, wk) + bk)
    v = split(dot(seq, wv) + bv)
    scores = jnp.einsum('bhqd,bhkd->bhqk', q, k, precision=hi) / (d_k ** 0.5)
    scores = scores - jnp.max(scores)          # global max, as in PyTorch code
    p = jax.nn.softmax(scores, axis=-1)
    attn = jnp.einsum('bhqk,bhkd->bhqd', p, v, precision=hi)
    attn = attn.transpose(0, 2, 1, 3).reshape(B, L, D)

    def ln(y, g, b):
        mu = jnp.mean(y, -1, keepdims=True)
        var = jnp.mean((y - mu) ** 2, -1, keepdims=True)
        return (y - mu) / jnp.sqrt(var + ln_eps) * g + b

    ctx = ln(attn + seq, g1, be1)
    ffn = dot(jnp.maximum(dot(ctx, w1) + b1, 0.0), w2) + b2
    return ln(ffn + ctx, g2, be2)


if __name__ == "__main__":
    B, L = 8, 64                              # Bt=4 -> M=256 rows/step, 2 steps
    D_MODEL, N_HEADS, D_FF = 128, 4, 256      # lane-dense d_model, MXU-aligned

    key = jax.random.PRNGKey(0)
    key, kx = jax.random.split(key)
    seq = jax.random.normal(kx, (B, L, D_MODEL), jnp.float32)

    params = init_params(key, D_MODEL, N_HEADS, D_FF)

    out = transformer_layer_forward(seq, params, n_heads=N_HEADS, batch_tile=4)
    out = jax.block_until_ready(out)

    ref = transformer_layer_reference(seq, params, n_heads=N_HEADS)
    assert out.shape == (B, L, D_MODEL)
    max_err = float(jnp.max(jnp.abs(out - ref)))
    # Kernel matmuls use default MXU precision (bf16-level) vs the HIGHEST-
    # precision reference, so tolerance is relaxed relative to the old 1e-4.
    assert jnp.allclose(out, ref, atol=5e-2, rtol=5e-2), (
        f"mismatch vs reference: max abs err = {max_err}")

    print("KERNEL_OK")
</pallas_src>

<mosaic_0001>
module attributes {stable_mosaic.version = 11 : i64} {
  func.func @transformer_layer_kernel(%arg0: i32, %arg1: memref<4x64x128xf32, #tpu.memory_space<vmem>>, %arg2: memref<128x128xf32, #tpu.memory_space<vmem>>, %arg3: memref<1x128xf32, #tpu.memory_space<vmem>>, %arg4: memref<128x128xf32, #tpu.memory_space<vmem>>, %arg5: memref<1x128xf32, #tpu.memory_space<vmem>>, %arg6: memref<128x128xf32, #tpu.memory_space<vmem>>, %arg7: memref<1x128xf32, #tpu.memory_space<vmem>>, %arg8: memref<1x128xf32, #tpu.memory_space<vmem>>, %arg9: memref<1x128xf32, #tpu.memory_space<vmem>>, %arg10: memref<128x256xf32, #tpu.memory_space<vmem>>, %arg11: memref<1x256xf32, #tpu.memory_space<vmem>>, %arg12: memref<256x128xf32, #tpu.memory_space<vmem>>, %arg13: memref<1x128xf32, #tpu.memory_space<vmem>>, %arg14: memref<1x128xf32, #tpu.memory_space<vmem>>, %arg15: memref<1x128xf32, #tpu.memory_space<vmem>>, %arg16: memref<4x64x128xf32, #tpu.memory_space<vmem>>, %arg17: memref<256x128xf32, #tpu.memory_space<vmem>>) attributes {dimension_semantics = [#tpu.dimension_semantics<parallel>], iteration_bounds = array<i64: 2>, scalar_prefetch = 0 : i64, scratch_operands = 1 : i64, tpu.core_type = #tpu.core_type<tc>, window_params = [{transform_indices = @transform_0, window_bounds = array<i64: 4, 64, 128>}, {pipeline_mode = #tpu.pipeline_mode<synchronous>, transform_indices = @transform_1, window_bounds = array<i64: 128, 128>}, {pipeline_mode = #tpu.pipeline_mode<synchronous>, transform_indices = @transform_2, window_bounds = array<i64: 1, 128>}, {pipeline_mode = #tpu.pipeline_mode<synchronous>, transform_indices = @transform_3, window_bounds = array<i64: 128, 128>}, {pipeline_mode = #tpu.pipeline_mode<synchronous>, transform_indices = @transform_4, window_bounds = array<i64: 1, 128>}, {pipeline_mode = #tpu.pipeline_mode<synchronous>, transform_indices = @transform_5, window_bounds = array<i64: 128, 128>}, {pipeline_mode = #tpu.pipeline_mode<synchronous>, transform_indices = @transform_6, window_bounds = array<i64: 1, 128>}, {pipeline_mode = #tpu.pipeline_mode<synchronous>, transform_indices = @transform_7, window_bounds = array<i64: 1, 128>}, {pipeline_mode = #tpu.pipeline_mode<synchronous>, transform_indices = @transform_8, window_bounds = array<i64: 1, 128>}, {pipeline_mode = #tpu.pipeline_mode<synchronous>, transform_indices = @transform_9, window_bounds = array<i64: 128, 256>}, {pipeline_mode = #tpu.pipeline_mode<synchronous>, transform_indices = @transform_10, window_bounds = array<i64: 1, 256>}, {pipeline_mode = #tpu.pipeline_mode<synchronous>, transform_indices = @transform_11, window_bounds = array<i64: 256, 128>}, {pipeline_mode = #tpu.pipeline_mode<synchronous>, transform_indices = @transform_12, window_bounds = array<i64: 1, 128>}, {pipeline_mode = #tpu.pipeline_mode<synchronous>, transform_indices = @transform_13, window_bounds = array<i64: 1, 128>}, {pipeline_mode = #tpu.pipeline_mode<synchronous>, transform_indices = @transform_14, window_bounds = array<i64: 1, 128>}, {transform_indices = @transform_15, window_bounds = array<i64: 4, 64, 128>}]} {
    %c0 = arith.constant 0 : index
    %c0_0 = arith.constant 0 : index
    %c0_1 = arith.constant 0 : index
    %0 = vector.load %arg1[%c0, %c0_0, %c0_1] : memref<4x64x128xf32, #tpu.memory_space<vmem>>, vector<4x64x128xf32>
    %1 = vector.shape_cast %0 : vector<4x64x128xf32> to vector<256x128xf32>
    %c0_2 = arith.constant 0 : index
    %c0_3 = arith.constant 0 : index
    %2 = vector.load %arg2[%c0_2, %c0_3] : memref<128x128xf32, #tpu.memory_space<vmem>>, vector<128x128xf32>
    %cst = arith.constant dense<0.000000e+00> : vector<256x128xf32>
    %3 = tpu.matmul %1, %2, %cst {dimension_numbers = #tpu.dot_dimension_numbers<[1], [0], [0], [1], [0, 0, 1, 1], [], []>} : vector<256x128xf32>, vector<128x128xf32>, vector<256x128xf32> -> vector<256x128xf32>
    %c0_4 = arith.constant 0 : index
    %c0_5 = arith.constant 0 : index
    %4 = vector.load %arg3[%c0_4, %c0_5] : memref<1x128xf32, #tpu.memory_space<vmem>>, vector<1x128xf32>
    %5 = vector.broadcast %4 : vector<1x128xf32> to vector<256x128xf32>
    %6 = arith.addf %3, %5 : vector<256x128xf32>
    %c0_6 = arith.constant 0 : index
    %c0_7 = arith.constant 0 : index
    %7 = vector.load %arg4[%c0_6, %c0_7] : memref<128x128xf32, #tpu.memory_space<vmem>>, vector<128x128xf32>
    %cst_8 = arith.constant dense<0.000000e+00> : vector<256x128xf32>
    %8 = tpu.matmul %1, %7, %cst_8 {dimension_numbers = #tpu.dot_dimension_numbers<[1], [0], [0], [1], [0, 0, 1, 1], [], []>} : vector<256x128xf32>, vector<128x128xf32>, vector<256x128xf32> -> vector<256x128xf32>
    %c0_9 = arith.constant 0 : index
    %c0_10 = arith.constant 0 : index
    %9 = vector.load %arg5[%c0_9, %c0_10] : memref<1x128xf32, #tpu.memory_space<vmem>>, vector<1x128xf32>
    %10 = vector.broadcast %9 : vector<1x128xf32> to vector<256x128xf32>
    %11 = arith.addf %8, %10 : vector<256x128xf32>
    %c0_11 = arith.constant 0 : index
    %c0_12 = arith.constant 0 : index
    %12 = vector.load %arg6[%c0_11, %c0_12] : memref<128x128xf32, #tpu.memory_space<vmem>>, vector<128x128xf32>
    %cst_13 = arith.constant dense<0.000000e+00> : vector<256x128xf32>
    %13 = tpu.matmul %1, %12, %cst_13 {dimension_numbers = #tpu.dot_dimension_numbers<[1], [0], [0], [1], [0, 0, 1, 1], [], []>} : vector<256x128xf32>, vector<128x128xf32>, vector<256x128xf32> -> vector<256x128xf32>
    %c0_14 = arith.constant 0 : index
    %c0_15 = arith.constant 0 : index
    %14 = vector.load %arg7[%c0_14, %c0_15] : memref<1x128xf32, #tpu.memory_space<vmem>>, vector<1x128xf32>
    %15 = vector.broadcast %14 : vector<1x128xf32> to vector<256x128xf32>
    %16 = arith.addf %13, %15 : vector<256x128xf32>
    %cst_16 = arith.constant 0.176776692 : f32
    %17 = vector.broadcast %cst_16 : f32 to vector<256x128xf32>
    %18 = arith.mulf %6, %17 : vector<256x128xf32>
    %19 = vector.extract_strided_slice %18 {offsets = [0, 0], sizes = [256, 32], strides = [1, 1]} : vector<256x128xf32> to vector<256x32xf32>
    %20 = vector.shape_cast %19 : vector<256x32xf32> to vector<4x64x32xf32>
    %21 = vector.extract_strided_slice %11 {offsets = [0, 0], sizes = [256, 32], strides = [1, 1]} : vector<256x128xf32> to vector<256x32xf32>
    %22 = vector.shape_cast %21 : vector<256x32xf32> to vector<4x64x32xf32>
    %23 = vector.extract_strided_slice %16 {offsets = [0, 0], sizes = [256, 32], strides = [1, 1]} : vector<256x128xf32> to vector<256x32xf32>
    %24 = vector.shape_cast %23 : vector<256x32xf32> to vector<4x64x32xf32>
    "tpu.trace_start"() <{level = 10 : i32, message = "bqd,bkd->bqk"}> : () -> ()
    %cst_17 = arith.constant dense<0.000000e+00> : vector<4x64x64xf32>
    %25 = tpu.matmul %20, %22, %cst_17 {dimension_numbers = #tpu.dot_dimension_numbers<[2], [2], [1], [1], [0, 0, 0, 1, 1, 1], [0], [0]>} : vector<4x64x32xf32>, vector<4x64x32xf32>, vector<4x64x64xf32> -> vector<4x64x64xf32>
    "tpu.trace_stop"() : () -> ()
    %cst_18 = arith.constant dense<0xFF800000> : vector<4x64xf32>
    %26 = vector.multi_reduction <maximumf>, %25, %cst_18 [2] : vector<4x64x64xf32> to vector<4x64xf32>
    %27 = vector.shape_cast %26 : vector<4x64xf32> to vector<4x64x1xf32>
    %28 = vector.broadcast %27 : vector<4x64x1xf32> to vector<4x64x64xf32>
    %29 = arith.subf %25, %28 : vector<4x64x64xf32>
    %30 = math.exp %29 : vector<4x64x64xf32>
    %cst_19 = arith.constant dense<0.000000e+00> : vector<4x64xf32>
    %31 = vector.multi_reduction <add>, %30, %cst_19 [2] : vector<4x64x64xf32> to vector<4x64xf32>
    %32 = vector.shape_cast %31 : vector<4x64xf32> to vector<4x64x1xf32>
    %33 = tpu.reciprocal %32 {approx = true} : vector<4x64x1xf32> -> vector<4x64x1xf32>
    %34 = vector.broadcast %33 : vector<4x64x1xf32> to vector<4x64x64xf32>
    %35 = arith.mulf %30, %34 : vector<4x64x64xf32>
    "tpu.trace_start"() <{level = 10 : i32, message = "bqk,bkd->bqd"}> : () -> ()
    %cst_20 = arith.constant dense<0.000000e+00> : vector<4x64x32xf32>
    %36 = tpu.matmul %35, %24, %cst_20 {dimension_numbers = #tpu.dot_dimension_numbers<[2], [1], [1], [2], [0, 0, 0, 1, 1, 2], [0], [0]>} : vector<4x64x64xf32>, vector<4x64x32xf32>, vector<4x64x32xf32> -> vector<4x64x32xf32>
    "tpu.trace_stop"() : () -> ()
    %37 = vector.shape_cast %36 : vector<4x64x32xf32> to vector<256x32xf32>
    %c0_21 = arith.constant 0 : index
    %c0_22 = arith.constant 0 : index
    %38 = vector.load %arg17[%c0_21, %c0_22] : memref<256x128xf32, #tpu.memory_space<vmem>>, vector<256x32xf32>
    tpu.vector_store %arg17[%c0_21, %c0_22], %37 {strides = array<i32>} : memref<256x128xf32, #tpu.memory_space<vmem>>, vector<256x32xf32>,
    %39 = vector.extract_strided_slice %18 {offsets = [0, 32], sizes = [256, 32], strides = [1, 1]} : vector<256x128xf32> to vector<256x32xf32>
    %40 = vector.shape_cast %39 : vector<256x32xf32> to vector<4x64x32xf32>
    %41 = vector.extract_strided_slice %11 {offsets = [0, 32], sizes = [256, 32], strides = [1, 1]} : vector<256x128xf32> to vector<256x32xf32>
    %42 = vector.shape_cast %41 : vector<256x32xf32> to vector<4x64x32xf32>
    %43 = vector.extract_strided_slice %16 {offsets = [0, 32], sizes = [256, 32], strides = [1, 1]} : vector<256x128xf32> to vector<256x32xf32>
    %44 = vector.shape_cast %43 : vector<256x32xf32> to vector<4x64x32xf32>
    "tpu.trace_start"() <{level = 10 : i32, message = "bqd,bkd->bqk"}> : () -> ()
    %cst_23 = arith.constant dense<0.000000e+00> : vector<4x64x64xf32>
    %45 = tpu.matmul %40, %42, %cst_23 {dimension_numbers = #tpu.dot_dimension_numbers<[2], [2], [1], [1], [0, 0, 0, 1, 1, 1], [0], [0]>} : vector<4x64x32xf32>, vector<4x64x32xf32>, vector<4x64x64xf32> -> vector<4x64x64xf32>
    "tpu.trace_stop"() : () -> ()
    %cst_24 = arith.constant dense<0xFF800000> : vector<4x64xf32>
    %46 = vector.multi_reduction <maximumf>, %45, %cst_24 [2] : vector<4x64x64xf32> to vector<4x64xf32>
    %47 = vector.shape_cast %46 : vector<4x64xf32> to vector<4x64x1xf32>
    %48 = vector.broadcast %47 : vector<4x64x1xf32> to vector<4x64x64xf32>
    %49 = arith.subf %45, %48 : vector<4x64x64xf32>
    %50 = math.exp %49 : vector<4x64x64xf32>
    %cst_25 = arith.constant dense<0.000000e+00> : vector<4x64xf32>
    %51 = vector.multi_reduction <add>, %50, %cst_25 [2] : vector<4x64x64xf32> to vector<4x64xf32>
    %52 = vector.shape_cast %51 : vector<4x64xf32> to vector<4x64x1xf32>
    %53 = tpu.reciprocal %52 {approx = true} : vector<4x64x1xf32> -> vector<4x64x1xf32>
    %54 = vector.broadcast %53 : vector<4x64x1xf32> to vector<4x64x64xf32>
    %55 = arith.mulf %50, %54 : vector<4x64x64xf32>
    "tpu.trace_start"() <{level = 10 : i32, message = "bqk,bkd->bqd"}> : () -> ()
    %cst_26 = arith.constant dense<0.000000e+00> : vector<4x64x32xf32>
    %56 = tpu.matmul %55, %44, %cst_26 {dimension_numbers = #tpu.dot_dimension_numbers<[2], [1], [1], [2], [0, 0, 0, 1, 1, 2], [0], [0]>} : vector<4x64x64xf32>, vector<4x64x32xf32>, vector<4x64x32xf32> -> vector<4x64x32xf32>
    "tpu.trace_stop"() : () -> ()
    %57 = vector.shape_cast %56 : vector<4x64x32xf32> to vector<256x32xf32>
    %c0_27 = arith.constant 0 : index
    %c32 = arith.constant 32 : index
    %58 = vector.load %arg17[%c0_27, %c32] : memref<256x128xf32, #tpu.memory_space<vmem>>, vector<256x32xf32>
    tpu.vector_store %arg17[%c0_27, %c32], %57 {strides = array<i32>} : memref<256x128xf32, #tpu.memory_space<vmem>>, vector<256x32xf32>,
    %59 = vector.extract_strided_slice %18 {offsets = [0, 64], sizes = [256, 32], strides = [1, 1]} : vector<256x128xf32> to vector<256x32xf32>
    %60 = vector.shape_cast %59 : vector<256x32xf32> to vector<4x64x32xf32>
    %61 = vector.extract_strided_slice %11 {offsets = [0, 64], sizes = [256, 32], strides = [1, 1]} : vector<256x128xf32> to vector<256x32xf32>
    %62 = vector.shape_cast %61 : vector<256x32xf32> to vector<4x64x32xf32>
    %63 = vector.extract_strided_slice %16 {offsets = [0, 64], sizes = [256, 32], strides = [1, 1]} : vector<256x128xf32> to vector<256x32xf32>
    %64 = vector.shape_cast %63 : vector<256x32xf32> to vector<4x64x32xf32>
    "tpu.trace_start"() <{level = 10 : i32, message = "bqd,bkd->bqk"}> : () -> ()
    %cst_28 = arith.constant dense<0.000000e+00> : vector<4x64x64xf32>
    %65 = tpu.matmul %60, %62, %cst_28 {dimension_numbers = #tpu.dot_dimension_numbers<[2], [2], [1], [1], [0, 0, 0, 1, 1, 1], [0], [0]>} : vector<4x64x32xf32>, vector<4x64x32xf32>, vector<4x64x64xf32> -> vector<4x64x64xf32>
    "tpu.trace_stop"() : () -> ()
    %cst_29 = arith.constant dense<0xFF800000> : vector<4x64xf32>
    %66 = vector.multi_reduction <maximumf>, %65, %cst_29 [2] : vector<4x64x64xf32> to vector<4x64xf32>
    %67 = vector.shape_cast %66 : vector<4x64xf32> to vector<4x64x1xf32>
    %68 = vector.broadcast %67 : vector<4x64x1xf32> to vector<4x64x64xf32>
    %69 = arith.subf %65, %68 : vector<4x64x64xf32>
    %70 = math.exp %69 : vector<4x64x64xf32>
    %cst_30 = arith.constant dense<0.000000e+00> : vector<4x64xf32>
    %71 = vector.multi_reduction <add>, %70, %cst_30 [2] : vector<4x64x64xf32> to vector<4x64xf32>
    %72 = vector.shape_cast %71 : vector<4x64xf32> to vector<4x64x1xf32>
    %73 = tpu.reciprocal %72 {approx = true} : vector<4x64x1xf32> -> vector<4x64x1xf32>
    %74 = vector.broadcast %73 : vector<4x64x1xf32> to vector<4x64x64xf32>
    %75 = arith.mulf %70, %74 : vector<4x64x64xf32>
    "tpu.trace_start"() <{level = 10 : i32, message = "bqk,bkd->bqd"}> : () -> ()
    %cst_31 = arith.constant dense<0.000000e+00> : vector<4x64x32xf32>
    %76 = tpu.matmul %75, %64, %cst_31 {dimension_numbers = #tpu.dot_dimension_numbers<[2], [1], [1], [2], [0, 0, 0, 1, 1, 2], [0], [0]>} : vector<4x64x64xf32>, vector<4x64x32xf32>, vector<4x64x32xf32> -> vector<4x64x32xf32>
    "tpu.trace_stop"() : () -> ()
    %77 = vector.shape_cast %76 : vector<4x64x32xf32> to vector<256x32xf32>
    %c0_32 = arith.constant 0 : index
    %c64 = arith.constant 64 : index
    %78 = vector.load %arg17[%c0_32, %c64] : memref<256x128xf32, #tpu.memory_space<vmem>>, vector<256x32xf32>
    tpu.vector_store %arg17[%c0_32, %c64], %77 {strides = array<i32>} : memref<256x128xf32, #tpu.memory_space<vmem>>, vector<256x32xf32>,
    %79 = vector.extract_strided_slice %18 {offsets = [0, 96], sizes = [256, 32], strides = [1, 1]} : vector<256x128xf32> to vector<256x32xf32>
    %80 = vector.shape_cast %79 : vector<256x32xf32> to vector<4x64x32xf32>
    %81 = vector.extract_strided_slice %11 {offsets = [0, 96], sizes = [256, 32], strides = [1, 1]} : vector<256x128xf32> to vector<256x32xf32>
    %82 = vector.shape_cast %81 : vector<256x32xf32> to vector<4x64x32xf32>
    %83 = vector.extract_strided_slice %16 {offsets = [0, 96], sizes = [256, 32], strides = [1, 1]} : vector<256x128xf32> to vector<256x32xf32>
    %84 = vector.shape_cast %83 : vector<256x32xf32> to vector<4x64x32xf32>
    "tpu.trace_start"() <{level = 10 : i32, message = "bqd,bkd->bqk"}> : () -> ()
    %cst_33 = arith.constant dense<0.000000e+00> : vector<4x64x64xf32>
    %85 = tpu.matmul %80, %82, %cst_33 {dimension_numbers = #tpu.dot_dimension_numbers<[2], [2], [1], [1], [0, 0, 0, 1, 1, 1], [0], [0]>} : vector<4x64x32xf32>, vector<4x64x32xf32>, vector<4x64x64xf32> -> vector<4x64x64xf32>
    "tpu.trace_stop"() : () -> ()
    %cst_34 = arith.constant dense<0xFF800000> : vector<4x64xf32>
    %86 = vector.multi_reduction <maximumf>, %85, %cst_34 [2] : vector<4x64x64xf32> to vector<4x64xf32>
    %87 = vector.shape_cast %86 : vector<4x64xf32> to vector<4x64x1xf32>
    %88 = vector.broadcast %87 : vector<4x64x1xf32> to vector<4x64x64xf32>
    %89 = arith.subf %85, %88 : vector<4x64x64xf32>
    %90 = math.exp %89 : vector<4x64x64xf32>
    %cst_35 = arith.constant dense<0.000000e+00> : vector<4x64xf32>
    %91 = vector.multi_reduction <add>, %90, %cst_35 [2] : vector<4x64x64xf32> to vector<4x64xf32>
    %92 = vector.shape_cast %91 : vector<4x64xf32> to vector<4x64x1xf32>
    %93 = tpu.reciprocal %92 {approx = true} : vector<4x64x1xf32> -> vector<4x64x1xf32>
    %94 = vector.broadcast %93 : vector<4x64x1xf32> to vector<4x64x64xf32>
    %95 = arith.mulf %90, %94 : vector<4x64x64xf32>
    "tpu.trace_start"() <{level = 10 : i32, message = "bqk,bkd->bqd"}> : () -> ()
    %cst_36 = arith.constant dense<0.000000e+00> : vector<4x64x32xf32>
    %96 = tpu.matmul %95, %84, %cst_36 {dimension_numbers = #tpu.dot_dimension_numbers<[2], [1], [1], [2], [0, 0, 0, 1, 1, 2], [0], [0]>} : vector<4x64x64xf32>, vector<4x64x32xf32>, vector<4x64x32xf32> -> vector<4x64x32xf32>
    "tpu.trace_stop"() : () -> ()
    %97 = vector.shape_cast %96 : vector<4x64x32xf32> to vector<256x32xf32>
    %c0_37 = arith.constant 0 : index
    %c96 = arith.constant 96 : index
    %98 = vector.load %arg17[%c0_37, %c96] : memref<256x128xf32, #tpu.memory_space<vmem>>, vector<256x32xf32>
    tpu.vector_store %arg17[%c0_37, %c96], %97 {strides = array<i32>} : memref<256x128xf32, #tpu.memory_space<vmem>>, vector<256x32xf32>,
    %c0_38 = arith.constant 0 : index
    %c0_39 = arith.constant 0 : index
    %99 = vector.load %arg17[%c0_38, %c0_39] : memref<256x128xf32, #tpu.memory_space<vmem>>, vector<256x128xf32>
    %100 = arith.addf %99, %1 : vector<256x128xf32>
    %c0_40 = arith.constant 0 : index
    %c0_41 = arith.constant 0 : index
    %101 = vector.load %arg8[%c0_40, %c0_41] : memref<1x128xf32, #tpu.memory_space<vmem>>, vector<1x128xf32>
    %c0_42 = arith.constant 0 : index
    %c0_43 = arith.constant 0 : index
    %102 = vector.load %arg9[%c0_42, %c0_43] : memref<1x128xf32, #tpu.memory_space<vmem>>, vector<1x128xf32>
    %cst_44 = arith.constant dense<0.000000e+00> : vector<256xf32>
    %103 = vector.multi_reduction <add>, %100, %cst_44 [1] : vector<256x128xf32> to vector<256xf32>
    %104 = vector.shape_cast %103 : vector<256xf32> to vector<256x1xf32>
    %cst_45 = arith.constant 1.280000e+02 : f32
    %105 = vector.broadcast %cst_45 : f32 to vector<256x1xf32>
    %106 = arith.divf %104, %105 : vector<256x1xf32>
    %107 = vector.broadcast %106 : vector<256x1xf32> to vector<256x128xf32>
    %108 = arith.subf %100, %107 : vector<256x128xf32>
    %109 = arith.mulf %108, %108 : vector<256x128xf32>
    %cst_46 = arith.constant dense<0.000000e+00> : vector<256xf32>
    %110 = vector.multi_reduction <add>, %109, %cst_46 [1] : vector<256x128xf32> to vector<256xf32>
    %111 = vector.shape_cast %110 : vector<256xf32> to vector<256x1xf32>
    %cst_47 = arith.constant 1.280000e+02 : f32
    %112 = vector.broadcast %cst_47 : f32 to vector<256x1xf32>
    %113 = arith.divf %111, %112 : vector<256x1xf32>
    %114 = vector.broadcast %106 : vector<256x1xf32> to vector<256x128xf32>
    %115 = arith.subf %100, %114 : vector<256x128xf32>
    %cst_48 = arith.constant 9.99999974E-6 : f32
    %116 = vector.broadcast %cst_48 : f32 to vector<256x1xf32>
    %117 = arith.addf %113, %116 : vector<256x1xf32>
    %118 = math.rsqrt %117 : vector<256x1xf32>
    %119 = vector.broadcast %118 : vector<256x1xf32> to vector<256x128xf32>
    %120 = arith.mulf %115, %119 : vector<256x128xf32>
    %121 = vector.broadcast %101 : vector<1x128xf32> to vector<256x128xf32>
    %122 = arith.mulf %120, %121 : vector<256x128xf32>
    %123 = vector.broadcast %102 : vector<1x128xf32> to vector<256x128xf32>
    %124 = arith.addf %122, %123 : vector<256x128xf32>
    %c0_49 = arith.constant 0 : index
    %c0_50 = arith.constant 0 : index
    %125 = vector.load %arg10[%c0_49, %c0_50] : memref<128x256xf32, #tpu.memory_space<vmem>>, vector<128x256xf32>
    %cst_51 = arith.constant dense<0.000000e+00> : vector<256x256xf32>
    %126 = tpu.matmul %124, %125, %cst_51 {dimension_numbers = #tpu.dot_dimension_numbers<[1], [0], [0], [1], [0, 0, 1, 1], [], []>} : vector<256x128xf32>, vector<128x256xf32>, vector<256x256xf32> -> vector<256x256xf32>
    %c0_52 = arith.constant 0 : index
    %c0_53 = arith.constant 0 : index
    %127 = vector.load %arg11[%c0_52, %c0_53] : memref<1x256xf32, #tpu.memory_space<vmem>>, vector<1x256xf32>
    %128 = vector.broadcast %127 : vector<1x256xf32> to vector<256x256xf32>
    %129 = arith.addf %126, %128 : vector<256x256xf32>
    %cst_54 = arith.constant 0.000000e+00 : f32
    %130 = vector.broadcast %cst_54 : f32 to vector<256x256xf32>
    %131 = arith.maximumf %129, %130 : vector<256x256xf32>
    %c0_55 = arith.constant 0 : index
    %c0_56 = arith.constant 0 : index
    %132 = vector.load %arg12[%c0_55, %c0_56] : memref<256x128xf32, #tpu.memory_space<vmem>>, vector<256x128xf32>
    %cst_57 = arith.constant dense<0.000000e+00> : vector<256x128xf32>
    %133 = tpu.matmul %131, %132, %cst_57 {dimension_numbers = #tpu.dot_dimension_numbers<[1], [0], [0], [1], [0, 0, 1, 1], [], []>} : vector<256x256xf32>, vector<256x128xf32>, vector<256x128xf32> -> vector<256x128xf32>
    %c0_58 = arith.constant 0 : index
    %c0_59 = arith.constant 0 : index
    %134 = vector.load %arg13[%c0_58, %c0_59] : memref<1x128xf32, #tpu.memory_space<vmem>>, vector<1x128xf32>
    %135 = vector.broadcast %134 : vector<1x128xf32> to vector<256x128xf32>
    %136 = arith.addf %133, %135 : vector<256x128xf32>
    %137 = arith.addf %136, %124 : vector<256x128xf32>
    %c0_60 = arith.constant 0 : index
    %c0_61 = arith.constant 0 : index
    %138 = vector.load %arg14[%c0_60, %c0_61] : memref<1x128xf32, #tpu.memory_space<vmem>>, vector<1x128xf32>
    %c0_62 = arith.constant 0 : index
    %c0_63 = arith.constant 0 : index
    %139 = vector.load %arg15[%c0_62, %c0_63] : memref<1x128xf32, #tpu.memory_space<vmem>>, vector<1x128xf32>
    %cst_64 = arith.constant dense<0.000000e+00> : vector<256xf32>
    %140 = vector.multi_reduction <add>, %137, %cst_64 [1] : vector<256x128xf32> to vector<256xf32>
    %141 = vector.shape_cast %140 : vector<256xf32> to vector<256x1xf32>
    %cst_65 = arith.constant 1.280000e+02 : f32
    %142 = vector.broadcast %cst_65 : f32 to vector<256x1xf32>
    %143 = arith.divf %141, %142 : vector<256x1xf32>
    %144 = vector.broadcast %143 : vector<256x1xf32> to vector<256x128xf32>
    %145 = arith.subf %137, %144 : vector<256x128xf32>
    %146 = arith.mulf %145, %145 : vector<256x128xf32>
    %cst_66 = arith.constant dense<0.000000e+00> : vector<256xf32>
    %147 = vector.multi_reduction <add>, %146, %cst_66 [1] : vector<256x128xf32> to vector<256xf32>
    %148 = vector.shape_cast %147 : vector<256xf32> to vector<256x1xf32>
    %cst_67 = arith.constant 1.280000e+02 : f32
    %149 = vector.broadcast %cst_67 : f32 to vector<256x1xf32>
    %150 = arith.divf %148, %149 : vector<256x1xf32>
    %151 = vector.broadcast %143 : vector<256x1xf32> to vector<256x128xf32>
    %152 = arith.subf %137, %151 : vector<256x128xf32>
    %cst_68 = arith.constant 9.99999974E-6 : f32
    %153 = vector.broadcast %cst_68 : f32 to vector<256x1xf32>
    %154 = arith.addf %150, %153 : vector<256x1xf32>
    %155 = math.rsqrt %154 : vector<256x1xf32>
    %156 = vector.broadcast %155 : vector<256x1xf32> to vector<256x128xf32>
    %157 = arith.mulf %152, %156 : vector<256x128xf32>
    %158 = vector.broadcast %138 : vector<1x128xf32> to vector<256x128xf32>
    %159 = arith.mulf %157, %158 : vector<256x128xf32>
    %160 = vector.broadcast %139 : vector<1x128xf32> to vector<256x128xf32>
    %161 = arith.addf %159, %160 : vector<256x128xf32>
    %162 = vector.shape_cast %161 : vector<256x128xf32> to vector<4x64x128xf32>
    %c0_69 = arith.constant 0 : index
    %c0_70 = arith.constant 0 : index
    %c0_71 = arith.constant 0 : index
    %163 = vector.load %arg16[%c0_69, %c0_70, %c0_71] : memref<4x64x128xf32, #tpu.memory_space<vmem>>, vector<4x64x128xf32>
    tpu.vector_store %arg16[%c0_69, %c0_70, %c0_71], %162 {strides = array<i32>} : memref<4x64x128xf32, #tpu.memory_space<vmem>>, vector<4x64x128xf32>,
    return
  }
  func.func @transform_0(%arg0: i32) -> (i32, i32, i32) {
    %c0_i32 = arith.constant 0 : i32
    %c0_i32_0 = arith.constant 0 : i32
    %c0_i32_1 = arith.constant 0 : i32
    return %arg0, %c0_i32, %c0_i32_0 : i32, i32, i32
  }
  func.func @transform_1(%arg0: i32) -> (i32, i32) {
    %c0_i32 = arith.constant 0 : i32
    %c0_i32_0 = arith.constant 0 : i32
    %c0_i32_1 = arith.constant 0 : i32
    return %c0_i32, %c0_i32_0 : i32, i32
  }
  func.func @transform_2(%arg0: i32) -> (i32, i32) {
    %c0_i32 = arith.constant 0 : i32
    %c0_i32_0 = arith.constant 0 : i32
    %c0_i32_1 = arith.constant 0 : i32
    return %c0_i32, %c0_i32_0 : i32, i32
  }
  func.func @transform_3(%arg0: i32) -> (i32, i32) {
    %c0_i32 = arith.constant 0 : i32
    %c0_i32_0 = arith.constant 0 : i32
    %c0_i32_1 = arith.constant 0 : i32
    return %c0_i32, %c0_i32_0 : i32, i32
  }
  func.func @transform_4(%arg0: i32) -> (i32, i32) {
    %c0_i32 = arith.constant 0 : i32
    %c0_i32_0 = arith.constant 0 : i32
    %c0_i32_1 = arith.constant 0 : i32
    return %c0_i32, %c0_i32_0 : i32, i32
  }
  func.func @transform_5(%arg0: i32) -> (i32, i32) {
    %c0_i32 = arith.constant 0 : i32
    %c0_i32_0 = arith.constant 0 : i32
    %c0_i32_1 = arith.constant 0 : i32
    return %c0_i32, %c0_i32_0 : i32, i32
  }
  func.func @transform_6(%arg0: i32) -> (i32, i32) {
    %c0_i32 = arith.constant 0 : i32
    %c0_i32_0 = arith.constant 0 : i32
    %c0_i32_1 = arith.constant 0 : i32
    return %c0_i32, %c0_i32_0 : i32, i32
  }
  func.func @transform_7(%arg0: i32) -> (i32, i32) {
    %c0_i32 = arith.constant 0 : i32
    %c0_i32_0 = arith.constant 0 : i32
    %c0_i32_1 = arith.constant 0 : i32
    return %c0_i32, %c0_i32_0 : i32, i32
  }
  func.func @transform_8(%arg0: i32) -> (i32, i32) {
    %c0_i32 = arith.constant 0 : i32
    %c0_i32_0 = arith.constant 0 : i32
    %c0_i32_1 = arith.constant 0 : i32
    return %c0_i32, %c0_i32_0 : i32, i32
  }
  func.func @transform_9(%arg0: i32) -> (i32, i32) {
    %c0_i32 = arith.constant 0 : i32
    %c0_i32_0 = arith.constant 0 : i32
    %c0_i32_1 = arith.constant 0 : i32
    return %c0_i32, %c0_i32_0 : i32, i32
  }
  func.func @transform_10(%arg0: i32) -> (i32, i32) {
    %c0_i32 = arith.constant 0 : i32
    %c0_i32_0 = arith.constant 0 : i32
    %c0_i32_1 = arith.constant 0 : i32
    return %c0_i32, %c0_i32_0 : i32, i32
  }
  func.func @transform_11(%arg0: i32) -> (i32, i32) {
    %c0_i32 = arith.constant 0 : i32
    %c0_i32_0 = arith.constant 0 : i32
    %c0_i32_1 = arith.constant 0 : i32
    return %c0_i32, %c0_i32_0 : i32, i32
  }
  func.func @transform_12(%arg0: i32) -> (i32, i32) {
    %c0_i32 = arith.constant 0 : i32
    %c0_i32_0 = arith.constant 0 : i32
    %c0_i32_1 = arith.constant 0 : i32
    return %c0_i32, %c0_i32_0 : i32, i32
  }
  func.func @transform_13(%arg0: i32) -> (i32, i32) {
    %c0_i32 = arith.constant 0 : i32
    %c0_i32_0 = arith.constant 0 : i32
    %c0_i32_1 = arith.constant 0 : i32
    return %c0_i32, %c0_i32_0 : i32, i32
  }
  func.func @transform_14(%arg0: i32) -> (i32, i32) {
    %c0_i32 = arith.constant 0 : i32
    %c0_i32_0 = arith.constant 0 : i32
    %c0_i32_1 = arith.constant 0 : i32
    return %c0_i32, %c0_i32_0 : i32, i32
  }
  func.func @transform_15(%arg0: i32) -> (i32, i32, i32) {
    %c0_i32 = arith.constant 0 : i32
    %c0_i32_0 = arith.constant 0 : i32
    %c0_i32_1 = arith.constant 0 : i32
    return %arg0, %c0_i32, %c0_i32_0 : i32, i32, i32
  }
}

</mosaic_0001>

<llo_original>
// kernel: tpu_custom_call.1
$region0: #{tpu_custom_call.1}
  #allocation0 [shape = 'u32[]', space=smem, size = 0x4, offset = 0x4, fixed_abs, tag = 'smem constant byte address 0x4 - core index']
  #allocation1 [shape = 'u32[144,128]{1,0:T(1,128)}', space=vmem, size = 0x12000, scoped, tag = 'internal scratch']
  #allocation2 [shape = 'f32[256,128]{1,0:T(8,128)}', space=vmem, size = 0x20000, scoped, tag = 'scratch operand']
  %s0 = inlined_call_operand.hbm [shape: f32[8,64,128], index: 0, kind: input, shape index: {}]
  %s1 = inlined_call_operand.hbm [shape: f32[128,128], index: 1, kind: input, shape index: {}]
  %s2 = inlined_call_operand.vmem [shape: f32[1,128], index: 2, kind: input, shape index: {}]
  %s3 = inlined_call_operand.hbm [shape: f32[128,128], index: 3, kind: input, shape index: {}]
  %s4 = inlined_call_operand.vmem [shape: f32[1,128], index: 4, kind: input, shape index: {}]
  %s5 = inlined_call_operand.hbm [shape: f32[128,128], index: 5, kind: input, shape index: {}]
  %s6 = inlined_call_operand.vmem [shape: f32[1,128], index: 6, kind: input, shape index: {}]
  %s7 = inlined_call_operand.vmem [shape: f32[1,128], index: 7, kind: input, shape index: {}]
  %s8 = inlined_call_operand.vmem [shape: f32[1,128], index: 8, kind: input, shape index: {}]
  %s9 = inlined_call_operand.hbm [shape: f32[128,256], index: 9, kind: input, shape index: {}]
  %s10 = inlined_call_operand.vmem [shape: f32[1,256], index: 10, kind: input, shape index: {}]
  %s11 = inlined_call_operand.hbm [shape: f32[256,128], index: 11, kind: input, shape index: {}]
  %s12 = inlined_call_operand.vmem [shape: f32[1,128], index: 12, kind: input, shape index: {}]
  %s13 = inlined_call_operand.vmem [shape: f32[1,128], index: 13, kind: input, shape index: {}]
  %s14 = inlined_call_operand.vmem [shape: f32[1,128], index: 14, kind: input, shape index: {}]
  %s15 = inlined_call_operand.hbm [shape: f32[8,64,128], index: 15, kind: output, shape index: {}]
  %s16 = sld [smem:[#allocation0]]
  $region117: #{tpu_custom_call.1} parent=0
    _
  %s18 = ssub.s32 1, %s16
  %s19 = scalar_select 0, %s18, %s16
  $region1: #{tpu_custom_call.1} parent=0
    #allocation3 [shape = 'u8[262144]{0}', space=vmem, size = 0x40000, scoped, tag = 'input window, operand 0']
    #allocation4 [shape = 's32[2]{0}', space=sflag, size = 0x8, scoped, tag = 'scoped memory for tpu_custom_call.1']
    #allocation5 [shape = 's32[2]{0}', space=sflag, size = 0x8, scoped, tag = 'scoped memory for tpu_custom_call.1']
    #allocation6 [shape = 'u8[65536]{0}', space=vmem, size = 0x10000, scoped, tag = 'input window, operand 1, single buffered']
    #allocation7 [shape = 's32[1]{0}', space=sflag, size = 0x4, scoped, tag = 'scoped memory for tpu_custom_call.1']
    #allocation8 [shape = 'u8[65536]{0}', space=vmem, size = 0x10000, scoped, tag = 'input window, operand 3, single buffered']
    #allocation9 [shape = 'u8[65536]{0}', space=vmem, size = 0x10000, scoped, tag = 'input window, operand 5, single buffered']
    #allocation10 [shape = 's32[1]{0}', space=sflag, size = 0x4, scoped, tag = 'scoped memory for tpu_custom_call.1']
    #allocation11 [shape = 'u8[131072]{0}', space=vmem, size = 0x20000, scoped, tag = 'input window, operand 9, single buffered']
    #allocation12 [shape = 'u8[131072]{0}', space=vmem, size = 0x20000, scoped, tag = 'input window, operand 11, single buffered']
    #allocation13 [shape = 's32[1]{0}', space=sflag, size = 0x4, scoped, tag = 'scoped memory for tpu_custom_call.1']
    #allocation14 [shape = 'u8[262144]{0}', space=vmem, size = 0x40000, scoped, tag = 'output window, operand 0']
    %20 = vsyncpa [#allocation4], 0
    %s21 = scalar_lea.sflag [#allocation4], 1
    %22 = vsyncpa %s21, 0
    %23 = vsyncpa [#allocation7], 0
    %24 = vsyncpa [#allocation10], 0
    %25 = vsyncpa [#allocation13], 0
    %26 = vsyncpa [#allocation5], 0
    %s27 = scalar_lea.sflag [#allocation5], 1
    %28 = vsyncpa %s27, 0
    loop: start=0, step=1, limit=4
    $region2: #{tpu_custom_call.1} parent=1 // loop_pre_header
      _
    $region3: #{tpu_custom_call.1} parent=1 // loop_header
      %s30 = sphi 0, %s34
      %p31 = scmp.ge.s32.totalorder %s30, 4
      %s40 = sphi 0, %s42
      %s43 = sphi 0, %s40
      %s44 = sphi 0, %s43
      %s60 = sphi 0, %s44
      %s64 = sphi 0, %s64
      %s66 = sphi 0, %s64
      %s67 = sphi 0, %s66
      %s81 = sphi 0, %s67
      %s85 = sphi 0, %s85
      %s87 = sphi 0, %s85
      %s88 = sphi 0, %s87
      %s102 = sphi 0, %s88
      %s106 = sphi 0, %s106
      %s108 = sphi 0, %s106
      %s109 = sphi 0, %s108
      %s123 = sphi 0, %s109
      %s127 = sphi 0, %s127
      %s129 = sphi 0, %s127
      %s130 = sphi 0, %s129
      %s144 = sphi 0, %s130
      %s148 = sphi 0, %s148
      %s150 = sphi 0, %s148
      %s151 = sphi 0, %s150
      %s165 = sphi 0, %s151
      %s169 = sphi 0, %s169
      %s171 = sphi 0, %s169
      %s172 = sphi 0, %s171
      %s186 = sphi 0, %s172
      %s190 = sphi 0, %s190
      %s192 = sphi 0, %s190
      %s193 = sphi 0, %s192
      %s207 = sphi 0, %s193
      %s211 = sphi 0, %s211
      %s213 = sphi 0, %s211
      %s214 = sphi 0, %s213
      %s228 = sphi 0, %s214
      %s232 = sphi 0, %s232
      %s234 = sphi 0, %s232
      %s235 = sphi 0, %s234
      %s249 = sphi 0, %s235
      %s253 = sphi 0, %s253
      %s255 = sphi 0, %s253
      %s256 = sphi 0, %s255
      %s270 = sphi 0, %s256
      %s274 = sphi 0, %s274
      %s276 = sphi 0, %s274
      %s277 = sphi 0, %s276
      %s291 = sphi 0, %s277
      %s295 = sphi 0, %s295
      %s297 = sphi 0, %s295
      %s298 = sphi 0, %s297
      %s312 = sphi 0, %s298
      %s316 = sphi 0, %s316
      %s318 = sphi 0, %s316
      %s319 = sphi 0, %s318
      %s333 = sphi 0, %s319
      %s337 = sphi 0, %s337
      %s339 = sphi 0, %s337
      %s340 = sphi 0, %s339
      %s354 = sphi 0, %s340
      %s360 = sphi 0, %s362
      %s363 = sphi 0, %s360
      %s364 = sphi 0, %s363
      %s380 = sphi 0, %s364
    $region4: #{tpu_custom_call.1} parent=1 // loop_header_branch
      %33 = sbr.rel (%p31) target = $region8
    $region5: #{tpu_custom_call.1} parent=1 // loop_body
      %s35 = ssub.s32 %s30, 1
      %s36 = ssub.s32 %s30, 2
      %s37 = sadd.s32 %s30, 1
      %s38 = ssub.s32 %s30, %s37
      %p39 = scmp.eq.s32.totalorder %s38, 0
      %s41 = sadd.s32 %s40, 1
      %s42 = scalar_select %p39, %s40, %s41
      %p45 = pneg %p39
      %p46 = scmp.eq.s32.totalorder %s30, 1
      %p47 = por %p45, %p46
      %p48 = scmp.ne.s32.totalorder %s40, %s43
      %p49 = scmp.eq.s32.totalorder %s30, 0
      %p50 = por %p48, %p49
      %p51 = scmp.ne.s32.totalorder %s40, %s43
      %p52 = scmp.eq.s32.totalorder %s35, 1
      %p53 = por %p51, %p52
      %p54 = scmp.ne.s32.totalorder %s43, %s44
      %p55 = scmp.eq.s32.totalorder %s35, 0
      %p56 = por %p54, %p55
      %p57 = scmp.ne.s32.totalorder %s43, %s44
      %p58 = scmp.eq.s32.totalorder %s36, 1
      %p59 = por %p57, %p58
      %p61 = scmp.ne.s32.totalorder %s44, %s60
      %p62 = scmp.eq.s32.totalorder %s36, 0
      %p63 = por %p61, %p62
      %s65 = sadd.s32 %s64, 1
      %p68 = scmp.eq.s32.totalorder %s30, 1
      %p69 = scmp.ne.s32.totalorder %s64, %s66
      %p70 = scmp.eq.s32.totalorder %s30, 0
      %p71 = por %p69, %p70
      %p72 = scmp.ne.s32.totalorder %s64, %s66
      %p73 = scmp.eq.s32.totalorder %s35, 1
      %p74 = por %p72, %p73
      %p75 = scmp.ne.s32.totalorder %s66, %s67
      %p76 = scmp.eq.s32.totalorder %s35, 0
      %p77 = por %p75, %p76
      %p78 = scmp.ne.s32.totalorder %s66, %s67
      %p79 = scmp.eq.s32.totalorder %s36, 1
      %p80 = por %p78, %p79
      %p82 = scmp.ne.s32.totalorder %s67, %s81
      %p83 = scmp.eq.s32.totalorder %s36, 0
      %p84 = por %p82, %p83
      %s86 = sadd.s32 %s85, 1
      %p89 = scmp.eq.s32.totalorder %s30, 1
      %p90 = scmp.ne.s32.totalorder %s85, %s87
      %p91 = scmp.eq.s32.totalorder %s30, 0
      %p92 = por %p90, %p91
      %p93 = scmp.ne.s32.totalorder %s85, %s87
      %p94 = scmp.eq.s32.totalorder %s35, 1
      %p95 = por %p93, %p94
      %p96 = scmp.ne.s32.totalorder %s87, %s88
      %p97 = scmp.eq.s32.totalorder %s35, 0
      %p98 = por %p96, %p97
      %p99 = scmp.ne.s32.totalorder %s87, %s88
      %p100 = scmp.eq.s32.totalorder %s36, 1
      %p101 = por %p99, %p100
      %p103 = scmp.ne.s32.totalorder %s88, %s102
      %p104 = scmp.eq.s32.totalorder %s36, 0
      %p105 = por %p103, %p104
      %s107 = sadd.s32 %s106, 1
      %p110 = scmp.eq.s32.totalorder %s30, 1
      %p111 = scmp.ne.s32.totalorder %s106, %s108
      %p112 = scmp.eq.s32.totalorder %s30, 0
      %p113 = por %p111, %p112
      %p114 = scmp.ne.s32.totalorder %s106, %s108
      %p115 = scmp.eq.s32.totalorder %s35, 1
      %p116 = por %p114, %p115
      %p117 = scmp.ne.s32.totalorder %s108, %s109
      %p118 = scmp.eq.s32.totalorder %s35, 0
      %p119 = por %p117, %p118
      %p120 = scmp.ne.s32.totalorder %s108, %s109
      %p121 = scmp.eq.s32.totalorder %s36, 1
      %p122 = por %p120, %p121
      %p124 = scmp.ne.s32.totalorder %s109, %s123
      %p125 = scmp.eq.s32.totalorder %s36, 0
      %p126 = por %p124, %p125
      %s128 = sadd.s32 %s127, 1
      %p131 = scmp.eq.s32.totalorder %s30, 1
      %p132 = scmp.ne.s32.totalorder %s127, %s129
      %p133 = scmp.eq.s32.totalorder %s30, 0
      %p134 = por %p132, %p133
      %p135 = scmp.ne.s32.totalorder %s127, %s129
      %p136 = scmp.eq.s32.totalorder %s35, 1
      %p137 = por %p135, %p136
      %p138 = scmp.ne.s32.totalorder %s129, %s130
      %p139 = scmp.eq.s32.totalorder %s35, 0
      %p140 = por %p138, %p139
      %p141 = scmp.ne.s32.totalorder %s129, %s130
      %p142 = scmp.eq.s32.totalorder %s36, 1
      %p143 = por %p141, %p142
      %p145 = scmp.ne.s32.totalorder %s130, %s144
      %p146 = scmp.eq.s32.totalorder %s36, 0
      %p147 = por %p145, %p146
      %s149 = sadd.s32 %s148, 1
      %p152 = scmp.eq.s32.totalorder %s30, 1
      %p153 = scmp.ne.s32.totalorder %s148, %s150
      %p154 = scmp.eq.s32.totalorder %s30, 0
      %p155 = por %p153, %p154
      %p156 = scmp.ne.s32.totalorder %s148, %s150
      %p157 = scmp.eq.s32.totalorder %s35, 1
      %p158 = por %p156, %p157
      %p159 = scmp.ne.s32.totalorder %s150, %s151
      %p160 = scmp.eq.s32.totalorder %s35, 0
      %p161 = por %p159, %p160
      %p162 = scmp.ne.s32.totalorder %s150, %s151
      %p163 = scmp.eq.s32.totalorder %s36, 1
      %p164 = por %p162, %p163
      %p166 = scmp.ne.s32.totalorder %s151, %s165
      %p167 = scmp.eq.s32.totalorder %s36, 0
      %p168 = por %p166, %p167
      %s170 = sadd.s32 %s169, 1
      %p173 = scmp.eq.s32.totalorder %s30, 1
      %p174 = scmp.ne.s32.totalorder %s169, %s171
      %p175 = scmp.eq.s32.totalorder %s30, 0
      %p176 = por %p174, %p175
      %p177 = scmp.ne.s32.totalorder %s169, %s171
      %p178 = scmp.eq.s32.totalorder %s35, 1
      %p179 = por %p177, %p178
      %p180 = scmp.ne.s32.totalorder %s171, %s172
      %p181 = scmp.eq.s32.totalorder %s35, 0
      %p182 = por %p180, %p181
      %p183 = scmp.ne.s32.totalorder %s171, %s172
      %p184 = scmp.eq.s32.totalorder %s36, 1
      %p185 = por %p183, %p184
      %p187 = scmp.ne.s32.totalorder %s172, %s186
      %p188 = scmp.eq.s32.totalorder %s36, 0
      %p189 = por %p187, %p188
      %s191 = sadd.s32 %s190, 1
      %p194 = scmp.eq.s32.totalorder %s30, 1
      %p195 = scmp.ne.s32.totalorder %s190, %s192
      %p196 = scmp.eq.s32.totalorder %s30, 0
      %p197 = por %p195, %p196
      %p198 = scmp.ne.s32.totalorder %s190, %s192
      %p199 = scmp.eq.s32.totalorder %s35, 1
      %p200 = por %p198, %p199
      %p201 = scmp.ne.s32.totalorder %s192, %s193
      %p202 = scmp.eq.s32.totalorder %s35, 0
      %p203 = por %p201, %p202
      %p204 = scmp.ne.s32.totalorder %s192, %s193
      %p205 = scmp.eq.s32.totalorder %s36, 1
      %p206 = por %p204, %p205
      %p208 = scmp.ne.s32.totalorder %s193, %s207
      %p209 = scmp.eq.s32.totalorder %s36, 0
      %p210 = por %p208, %p209
      %s212 = sadd.s32 %s211, 1
      %p215 = scmp.eq.s32.totalorder %s30, 1
      %p216 = scmp.ne.s32.totalorder %s211, %s213
      %p217 = scmp.eq.s32.totalorder %s30, 0
      %p218 = por %p216, %p217
      %p219 = scmp.ne.s32.totalorder %s211, %s213
      %p220 = scmp.eq.s32.totalorder %s35, 1
      %p221 = por %p219, %p220
      %p222 = scmp.ne.s32.totalorder %s213, %s214
      %p223 = scmp.eq.s32.totalorder %s35, 0
      %p224 = por %p222, %p223
      %p225 = scmp.ne.s32.totalorder %s213, %s214
      %p226 = scmp.eq.s32.totalorder %s36, 1
      %p227 = por %p225, %p226
      %p229 = scmp.ne.s32.totalorder %s214, %s228
      %p230 = scmp.eq.s32.totalorder %s36, 0
      %p231 = por %p229, %p230
      %s233 = sadd.s32 %s232, 1
      %p236 = scmp.eq.s32.totalorder %s30, 1
      %p237 = scmp.ne.s32.totalorder %s232, %s234
      %p238 = scmp.eq.s32.totalorder %s30, 0
      %p239 = por %p237, %p238
      %p240 = scmp.ne.s32.totalorder %s232, %s234
      %p241 = scmp.eq.s32.totalorder %s35, 1
      %p242 = por %p240, %p241
      %p243 = scmp.ne.s32.totalorder %s234, %s235
      %p244 = scmp.eq.s32.totalorder %s35, 0
      %p245 = por %p243, %p244
      %p246 = scmp.ne.s32.totalorder %s234, %s235
      %p247 = scmp.eq.s32.totalorder %s36, 1
      %p248 = por %p246, %p247
      %p250 = scmp.ne.s32.totalorder %s235, %s249
      %p251 = scmp.eq.s32.totalorder %s36, 0
      %p252 = por %p250, %p251
      %s254 = sadd.s32 %s253, 1
      %p257 = scmp.eq.s32.totalorder %s30, 1
      %p258 = scmp.ne.s32.totalorder %s253, %s255
      %p259 = scmp.eq.s32.totalorder %s30, 0
      %p260 = por %p258, %p259
      %p261 = scmp.ne.s32.totalorder %s253, %s255
      %p262 = scmp.eq.s32.totalorder %s35, 1
      %p263 = por %p261, %p262
      %p264 = scmp.ne.s32.totalorder %s255, %s256
      %p265 = scmp.eq.s32.totalorder %s35, 0
      %p266 = por %p264, %p265
      %p267 = scmp.ne.s32.totalorder %s255, %s256
      %p268 = scmp.eq.s32.totalorder %s36, 1
      %p269 = por %p267, %p268
      %p271 = scmp.ne.s32.totalorder %s256, %s270
      %p272 = scmp.eq.s32.totalorder %s36, 0
      %p273 = por %p271, %p272
      %s275 = sadd.s32 %s274, 1
      %p278 = scmp.eq.s32.totalorder %s30, 1
      %p279 = scmp.ne.s32.totalorder %s274, %s276
      %p280 = scmp.eq.s32.totalorder %s30, 0
      %p281 = por %p279, %p280
      %p282 = scmp.ne.s32.totalorder %s274, %s276
      %p283 = scmp.eq.s32.totalorder %s35, 1
      %p284 = por %p282, %p283
      %p285 = scmp.ne.s32.totalorder %s276, %s277
      %p286 = scmp.eq.s32.totalorder %s35, 0
      %p287 = por %p285, %p286
      %p288 = scmp.ne.s32.totalorder %s276, %s277
      %p289 = scmp.eq.s32.totalorder %s36, 1
      %p290 = por %p288, %p289
      %p292 = scmp.ne.s32.totalorder %s277, %s291
      %p293 = scmp.eq.s32.totalorder %s36, 0
      %p294 = por %p292, %p293
      %s296 = sadd.s32 %s295, 1
      %p299 = scmp.eq.s32.totalorder %s30, 1
      %p300 = scmp.ne.s32.totalorder %s295, %s297
      %p301 = scmp.eq.s32.totalorder %s30, 0
      %p302 = por %p300, %p301
      %p303 = scmp.ne.s32.totalorder %s295, %s297
      %p304 = scmp.eq.s32.totalorder %s35, 1
      %p305 = por %p303, %p304
      %p306 = scmp.ne.s32.totalorder %s297, %s298
      %p307 = scmp.eq.s32.totalorder %s35, 0
      %p308 = por %p306, %p307
      %p309 = scmp.ne.s32.totalorder %s297, %s298
      %p310 = scmp.eq.s32.totalorder %s36, 1
      %p311 = por %p309, %p310
      %p313 = scmp.ne.s32.totalorder %s298, %s312
      %p314 = scmp.eq.s32.totalorder %s36, 0
      %p315 = por %p313, %p314
      %s317 = sadd.s32 %s316, 1
      %p320 = scmp.eq.s32.totalorder %s30, 1
      %p321 = scmp.ne.s32.totalorder %s316, %s318
      %p322 = scmp.eq.s32.totalorder %s30, 0
      %p323 = por %p321, %p322
      %p324 = scmp.ne.s32.totalorder %s316, %s318
      %p325 = scmp.eq.s32.totalorder %s35, 1
      %p326 = por %p324, %p325
      %p327 = scmp.ne.s32.totalorder %s318, %s319
      %p328 = scmp.eq.s32.totalorder %s35, 0
      %p329 = por %p327, %p328
      %p330 = scmp.ne.s32.totalorder %s318, %s319
      %p331 = scmp.eq.s32.totalorder %s36, 1
      %p332 = por %p330, %p331
      %p334 = scmp.ne.s32.totalorder %s319, %s333
      %p335 = scmp.eq.s32.totalorder %s36, 0
      %p336 = por %p334, %p335
      %s338 = sadd.s32 %s337, 1
      %p341 = scmp.eq.s32.totalorder %s30, 1
      %p342 = scmp.ne.s32.totalorder %s337, %s339
      %p343 = scmp.eq.s32.totalorder %s30, 0
      %p344 = por %p342, %p343
      %p345 = scmp.ne.s32.totalorder %s337, %s339
      %p346 = scmp.eq.s32.totalorder %s35, 1
      %p347 = por %p345, %p346
      %p348 = scmp.ne.s32.totalorder %s339, %s340
      %p349 = scmp.eq.s32.totalorder %s35, 0
      %p350 = por %p348, %p349
      %p351 = scmp.ne.s32.totalorder %s339, %s340
      %p352 = scmp.eq.s32.totalorder %s36, 1
      %p353 = por %p351, %p352
      %p355 = scmp.ne.s32.totalorder %s340, %s354
      %p356 = scmp.eq.s32.totalorder %s36, 0
      %p357 = por %p355, %p356
      %s358 = ssub.s32 %s30, %s37
      %p359 = scmp.eq.s32.totalorder %s358, 0
      %s361 = sadd.s32 %s360, 1
      %s362 = scalar_select %p359, %s360, %s361
      %p365 = pneg %p359
      %p366 = scmp.eq.s32.totalorder %s30, 1
      %p367 = por %p365, %p366
      %p368 = scmp.ne.s32.totalorder %s360, %s363
      %p369 = scmp.eq.s32.totalorder %s30, 0
      %p370 = por %p368, %p369
      %p371 = scmp.ne.s32.totalorder %s360, %s363
      %p372 = scmp.eq.s32.totalorder %s35, 1
      %p373 = por %p371, %p372
      %p374 = scmp.ne.s32.totalorder %s363, %s364
      %p375 = scmp.eq.s32.totalorder %s35, 0
      %p376 = por %p374, %p375
      %p377 = scmp.ne.s32.totalorder %s363, %s364
      %p378 = scmp.eq.s32.totalorder %s36, 1
      %p379 = por %p377, %p378
      %p381 = scmp.ne.s32.totalorder %s364, %s380
      %p382 = scmp.eq.s32.totalorder %s36, 0
      %p383 = por %p381, %p382
      %p384 = scmp.le.s32.totalorder 1, %s30
      %p385 = scmp.lt.s32.totalorder %s30, 3
      %p386 = pnand %p384, %p385
      %p387 = pneg %p386
      // Predicated region
      $region9: #{tpu_custom_call.1} parent=5 // pred_check
        _
      $region10: #{tpu_custom_call.1} parent=5 // pred_check_branch
        %389 = sbr.rel (%p386) target = $region12
      $region11: #{tpu_custom_call.1} parent=5 // pred_region
        %s390 = ssub.s32 %s30, 1
        // Predicated region
        $region13: #{tpu_custom_call.1} parent=11 // pred_check
          %p391 = pneg %p77
        $region14: #{tpu_custom_call.1} parent=11 // pred_check_branch
          %393 = sbr.rel (%p391) target = $region16
        $region15: #{tpu_custom_call.1} parent=11 // pred_region
          %s395 = ssub.s32 2048, 2048
          %396 = vsyncadd [#allocation7], %s395
          %s397 = sshll.u32 [#allocation6], 4
          %s398 = int_to_ptr.vmem [resolvable:$true] %s397
          %403 = dma.hbm_to_vmem [thread:$0]  %s1, 2048, %s398, [#allocation7], 128, 128, 8
        $region16: #{tpu_custom_call.1} parent=11 // pred_fallthru
          _
        // Predicated region
        $region17: #{tpu_custom_call.1} parent=11 // pred_check
          %p404 = pneg %p98
        $region18: #{tpu_custom_call.1} parent=11 // pred_check_branch
          %406 = sbr.rel (%p404) target = $region20
        $region19: #{tpu_custom_call.1} parent=11 // pred_region
          _
        $region20: #{tpu_custom_call.1} parent=11 // pred_fallthru
          _
        // Predicated region
        $region21: #{tpu_custom_call.1} parent=11 // pred_check
          %p407 = pneg %p119
        $region22: #{tpu_custom_call.1} parent=11 // pred_check_branch
          %409 = sbr.rel (%p407) target = $region24
        $region23: #{tpu_custom_call.1} parent=11 // pred_region
          %s411 = ssub.s32 2048, 2048
          %412 = vsyncadd [#allocation7], %s411
          %s413 = sshll.u32 [#allocation8], 4
          %s414 = int_to_ptr.vmem [resolvable:$true] %s413
          %419 = dma.hbm_to_vmem [thread:$0]  %s3, 2048, %s414, [#allocation7], 128, 128, 8
        $region24: #{tpu_custom_call.1} parent=11 // pred_fallthru
          _
        // Predicated region
        $region25: #{tpu_custom_call.1} parent=11 // pred_check
          %p420 = pneg %p140
        $region26: #{tpu_custom_call.1} parent=11 // pred_check_branch
          %422 = sbr.rel (%p420) target = $region28
        $region27: #{tpu_custom_call.1} parent=11 // pred_region
          _
        $region28: #{tpu_custom_call.1} parent=11 // pred_fallthru
          _
        // Predicated region
        $region29: #{tpu_custom_call.1} parent=11 // pred_check
          %p423 = pneg %p161
        $region30: #{tpu_custom_call.1} parent=11 // pred_check_branch
          %425 = sbr.rel (%p423) target = $region32
        $region31: #{tpu_custom_call.1} parent=11 // pred_region
          %s427 = ssub.s32 2048, 2048
          %428 = vsyncadd [#allocation10], %s427
          %s429 = sshll.u32 [#allocation9], 4
          %s430 = int_to_ptr.vmem [resolvable:$true] %s429
          %435 = dma.hbm_to_vmem [thread:$0]  %s5, 2048, %s430, [#allocation10], 128, 128, 8
        $region32: #{tpu_custom_call.1} parent=11 // pred_fallthru
          _
        // Predicated region
        $region33: #{tpu_custom_call.1} parent=11 // pred_check
          %p436 = pneg %p182
        $region34: #{tpu_custom_call.1} parent=11 // pred_check_branch
          %438 = sbr.rel (%p436) target = $region36
        $region35: #{tpu_custom_call.1} parent=11 // pred_region
          _
        $region36: #{tpu_custom_call.1} parent=11 // pred_fallthru
          _
        // Predicated region
        $region37: #{tpu_custom_call.1} parent=11 // pred_check
          %p439 = pneg %p203
        $region38: #{tpu_custom_call.1} parent=11 // pred_check_branch
          %441 = sbr.rel (%p439) target = $region40
        $region39: #{tpu_custom_call.1} parent=11 // pred_region
          _
        $region40: #{tpu_custom_call.1} parent=11 // pred_fallthru
          _
        // Predicated region
        $region41: #{tpu_custom_call.1} parent=11 // pred_check
          %p442 = pneg %p224
        $region42: #{tpu_custom_call.1} parent=11 // pred_check_branch
          %444 = sbr.rel (%p442) target = $region44
        $region43: #{tpu_custom_call.1} parent=11 // pred_region
          _
        $region44: #{tpu_custom_call.1} parent=11 // pred_fallthru
          _
        // Predicated region
        $region45: #{tpu_custom_call.1} parent=11 // pred_check
          %p445 = pneg %p245
        $region46: #{tpu_custom_call.1} parent=11 // pred_check_branch
          %447 = sbr.rel (%p445) target = $region48
        $region47: #{tpu_custom_call.1} parent=11 // pred_region
          %s449 = ssub.s32 4096, 4096
          %450 = vsyncadd [#allocation10], %s449
          %s451 = sshll.u32 [#allocation11], 4
          %s452 = int_to_ptr.vmem [resolvable:$true] %s451
          %457 = dma.hbm_to_vmem [thread:$0]  %s9, 4096, %s452, [#allocation10], 256, 256, 16
        $region48: #{tpu_custom_call.1} parent=11 // pred_fallthru
          _
        // Predicated region
        $region49: #{tpu_custom_call.1} parent=11 // pred_check
          %p458 = pneg %p266
        $region50: #{tpu_custom_call.1} parent=11 // pred_check_branch
          %460 = sbr.rel (%p458) target = $region52
        $region51: #{tpu_custom_call.1} parent=11 // pred_region
          _
        $region52: #{tpu_custom_call.1} parent=11 // pred_fallthru
          _
        // Predicated region
        $region53: #{tpu_custom_call.1} parent=11 // pred_check
          %p461 = pneg %p287
        $region54: #{tpu_custom_call.1} parent=11 // pred_check_branch
          %463 = sbr.rel (%p461) target = $region56
        $region55: #{tpu_custom_call.1} parent=11 // pred_region
          %s465 = ssub.s32 4096, 4096
          %466 = vsyncadd [#allocation13], %s465
          %s467 = sshll.u32 [#allocation12], 4
          %s468 = int_to_ptr.vmem [resolvable:$true] %s467
          %473 = dma.hbm_to_vmem [thread:$0]  %s11, 4096, %s468, [#allocation13], 128, 128, 8
        $region56: #{tpu_custom_call.1} parent=11 // pred_fallthru
          _
        // Predicated region
        $region57: #{tpu_custom_call.1} parent=11 // pred_check
          %p474 = pneg %p308
        $region58: #{tpu_custom_call.1} parent=11 // pred_check_branch
          %476 = sbr.rel (%p474) target = $region60
        $region59: #{tpu_custom_call.1} parent=11 // pred_region
          _
        $region60: #{tpu_custom_call.1} parent=11 // pred_fallthru
          _
        // Predicated region
        $region61: #{tpu_custom_call.1} parent=11 // pred_check
          %p477 = pneg %p329
        $region62: #{tpu_custom_call.1} parent=11 // pred_check_branch
          %479 = sbr.rel (%p477) target = $region64
        $region63: #{tpu_custom_call.1} parent=11 // pred_region
          _
        $region64: #{tpu_custom_call.1} parent=11 // pred_fallthru
          _
        // Predicated region
        $region65: #{tpu_custom_call.1} parent=11 // pred_check
          %p480 = pneg %p350
        $region66: #{tpu_custom_call.1} parent=11 // pred_check_branch
          %482 = sbr.rel (%p480) target = $region68
        $region67: #{tpu_custom_call.1} parent=11 // pred_region
          _
        $region68: #{tpu_custom_call.1} parent=11 // pred_fallthru
          _
      $region12: #{tpu_custom_call.1} parent=5 // pred_fallthru
        _
      %p483 = scmp.lt.s32.totalorder %s30, 2
      // Predicated region
      $region69: #{tpu_custom_call.1} parent=5 // pred_check
        %p484 = pneg %p483
      $region70: #{tpu_custom_call.1} parent=5 // pred_check_branch
        %486 = sbr.rel (%p484) target = $region72
      $region71: #{tpu_custom_call.1} parent=5 // pred_region
        // Predicated region
        $region73: #{tpu_custom_call.1} parent=71 // pred_check
          %p487 = pneg %p50
        $region74: #{tpu_custom_call.1} parent=71 // pred_check_branch
          %489 = sbr.rel (%p487) target = $region76
        $region75: #{tpu_custom_call.1} parent=71 // pred_region
          %s490 = sand.u32 %s40, 1
          %s491 = scalar_lea.sflag [#allocation4], %s490
          %s492 = sand.u32 %s40, 1
          %s493 = smul.addr %s492, 256
          %s494 = scalar_lea.vmem [#allocation3], %s493
          %s495 = smul.u32 4, %s30
          %s497 = ssub.s32 4096, 4096
          %498 = vsyncadd %s491, %s497
          %s499 = smul.addr %s495, 8
          %s500 = smul.addr %s499, 128
          %s501 = scalar_lea.hbm %s0, %s500
          %s502 = sshll.u32 %s494, 4
          %s503 = int_to_ptr.vmem [resolvable:$true] %s502
          %508 = dma.hbm_to_vmem [thread:$0]  %s501, 4096, %s503, %s491, 128, 128, 8
        $region76: #{tpu_custom_call.1} parent=71 // pred_fallthru
          _
      $region72: #{tpu_custom_call.1} parent=5 // pred_fallthru
        _
      %p509 = scmp.le.s32.totalorder 1, %s30
      %p510 = scmp.lt.s32.totalorder %s30, 3
      %p511 = pnand %p509, %p510
      %p512 = pneg %p511
      // Predicated region
      $region77: #{tpu_custom_call.1} parent=5 // pred_check
        _
      $region78: #{tpu_custom_call.1} parent=5 // pred_check_branch
        %514 = sbr.rel (%p511) target = $region80
      $region79: #{tpu_custom_call.1} parent=5 // pred_region
        %s515 = ssub.s32 %s30, 1
        %s516 = sand.u32 %s43, 1
        %s517 = scalar_lea.sflag [#allocation4], %s516
        %s518 = sand.u32 %s43, 1
        %s519 = smul.addr %s518, 256
        %s520 = scalar_lea.vmem [#allocation3], %s519
        // Predicated region
        $region81: #{tpu_custom_call.1} parent=79 // pred_check
          %p521 = pneg %p56
        $region82: #{tpu_custom_call.1} parent=79 // pred_check_branch
          %523 = sbr.rel (%p521) target = $region84
        $region83: #{tpu_custom_call.1} parent=79 // pred_region
          %524 = dma.done %s517, 4096
        $region84: #{tpu_custom_call.1} parent=79 // pred_fallthru
          _
        // Predicated region
        $region85: #{tpu_custom_call.1} parent=79 // pred_check
          %p525 = pneg %p77
        $region86: #{tpu_custom_call.1} parent=79 // pred_check_branch
          %527 = sbr.rel (%p525) target = $region88
        $region87: #{tpu_custom_call.1} parent=79 // pred_region
          %528 = dma.done [#allocation7], 2048
        $region88: #{tpu_custom_call.1} parent=79 // pred_fallthru
          _
        // Predicated region
        $region89: #{tpu_custom_call.1} parent=79 // pred_check
          %p529 = pneg %p119
        $region90: #{tpu_custom_call.1} parent=79 // pred_check_branch
          %531 = sbr.rel (%p529) target = $region92
        $region91: #{tpu_custom_call.1} parent=79 // pred_region
          %532 = dma.done [#allocation7], 2048
        $region92: #{tpu_custom_call.1} parent=79 // pred_fallthru
          _
        // Predicated region
        $region93: #{tpu_custom_call.1} parent=79 // pred_check
          %p533 = pneg %p161
        $region94: #{tpu_custom_call.1} parent=79 // pred_check_branch
          %535 = sbr.rel (%p533) target = $region96
        $region95: #{tpu_custom_call.1} parent=79 // pred_region
          %536 = dma.done [#allocation10], 2048
        $region96: #{tpu_custom_call.1} parent=79 // pred_fallthru
          _
        // Predicated region
        $region97: #{tpu_custom_call.1} parent=79 // pred_check
          %p537 = pneg %p245
        $region98: #{tpu_custom_call.1} parent=79 // pred_check_branch
          %539 = sbr.rel (%p537) target = $region100
        $region99: #{tpu_custom_call.1} parent=79 // pred_region
          %540 = dma.done [#allocation10], 4096
        $region100: #{tpu_custom_call.1} parent=79 // pred_fallthru
          _
        // Predicated region
        $region101: #{tpu_custom_call.1} parent=79 // pred_check
          %p541 = pneg %p287
        $region102: #{tpu_custom_call.1} parent=79 // pred_check_branch
          %543 = sbr.rel (%p541) target = $region104
        $region103: #{tpu_custom_call.1} parent=79 // pred_region
          %544 = dma.done [#allocation13], 4096
        $region104: #{tpu_custom_call.1} parent=79 // pred_fallthru
          _
        %s545 = sand.u32 %s43, 1
        %s546 = scalar_lea.sflag [#allocation4], %s545
        %s547 = sand.u32 %s43, 1
        %s548 = smul.addr %s547, 256
        %s549 = scalar_lea.vmem [#allocation3], %s548
        %p550 = pneg %p56
        %p551 = pneg %p53
        %p552 = pneg %p77
        %p553 = pneg %p74
        %p554 = pneg %p98
        %p555 = pneg %p95
        %p556 = pneg %p119
        %p557 = pneg %p116
        %p558 = pneg %p140
        %p559 = pneg %p137
        %p560 = pneg %p161
        %p561 = pneg %p158
        %p562 = pneg %p182
        %p563 = pneg %p179
        %p564 = pneg %p203
        %p565 = pneg %p200
        %p566 = pneg %p224
        %p567 = pneg %p221
        %p568 = pneg %p245
        %p569 = pneg %p242
        %p570 = pneg %p266
        %p571 = pneg %p263
        %p572 = pneg %p287
        %p573 = pneg %p284
        %p574 = pneg %p308
        %p575 = pneg %p305
        %p576 = pneg %p329
        %p577 = pneg %p326
        %p578 = pneg %p350
        %p579 = pneg %p347
        %p580 = pneg %p376
        %p581 = pneg %p373
        %s582 = sand.u32 %s363, 1
        %s583 = scalar_lea.sflag [#allocation5], %s582
        %s584 = sand.u32 %s363, 1
        %s585 = smul.addr %s584, 256
        %s586 = scalar_lea.vmem [#allocation14], %s585
        %s587 = smul.u32 4, %s35
        %s588 = smul.u32 4, %s35
        %v589 = vld [vmem:[%s520] sm:$0xff]
        %v590 = vld [vmem:[%s520 + $0x8] sm:$0xff]
        %v591 = vld [vmem:[%s520 + $0x10] sm:$0xff]
        %v592 = vld [vmem:[%s520 + $0x18] sm:$0xff]
        %v593 = vld [vmem:[%s520 + $0x20] sm:$0xff]
        %v594 = vld [vmem:[%s520 + $0x28] sm:$0xff]
        %v595 = vld [vmem:[%s520 + $0x30] sm:$0xff]
        %v596 = vld [vmem:[%s520 + $0x38] sm:$0xff]
        %v597 = vld [vmem:[%s520 + $0x40] sm:$0xff]
        %v598 = vld [vmem:[%s520 + $0x48] sm:$0xff]
        %v599 = vld [vmem:[%s520 + $0x50] sm:$0xff]
        %v600 = vld [vmem:[%s520 + $0x58] sm:$0xff]
        %v601 = vld [vmem:[%s520 + $0x60] sm:$0xff]
        %v602 = vld [vmem:[%s520 + $0x68] sm:$0xff]
        %v603 = vld [vmem:[%s520 + $0x70] sm:$0xff]
        %v604 = vld [vmem:[%s520 + $0x78] sm:$0xff]
        %v605 = vld [vmem:[%s520 + $0x80] sm:$0xff]
        %v606 = vld [vmem:[%s520 + $0x88] sm:$0xff]
        %v607 = vld [vmem:[%s520 + $0x90] sm:$0xff]
        %v608 = vld [vmem:[%s520 + $0x98] sm:$0xff]
        %v609 = vld [vmem:[%s520 + $0xa0] sm:$0xff]
        %v610 = vld [vmem:[%s520 + $0xa8] sm:$0xff]
        %v611 = vld [vmem:[%s520 + $0xb0] sm:$0xff]
        %v612 = vld [vmem:[%s520 + $0xb8] sm:$0xff]
        %v613 = vld [vmem:[%s520 + $0xc0] sm:$0xff]
        %v614 = vld [vmem:[%s520 + $0xc8] sm:$0xff]
        %v615 = vld [vmem:[%s520 + $0xd0] sm:$0xff]
        %v616 = vld [vmem:[%s520 + $0xd8] sm:$0xff]
        %v617 = vld [vmem:[%s520 + $0xe0] sm:$0xff]
        %v618 = vld [vmem:[%s520 + $0xe8] sm:$0xff]
        %v619 = vld [vmem:[%s520 + $0xf0] sm:$0xff]
        %v620 = vld [vmem:[%s520 + $0xf8] sm:$0xff]
        %v621 = vld [vmem:[#allocation6] sm:$0xff]
        %v622 = vld [vmem:[#allocation6 + $0x8] sm:$0xff]
        %v623 = vld [vmem:[#allocation6 + $0x10] sm:$0xff]
        %v624 = vld [vmem:[#allocation6 + $0x18] sm:$0xff]
        %v625 = vld [vmem:[#allocation6 + $0x20] sm:$0xff]
        %v626 = vld [vmem:[#allocation6 + $0x28] sm:$0xff]
        %v627 = vld [vmem:[#allocation6 + $0x30] sm:$0xff]
        %v628 = vld [vmem:[#allocation6 + $0x38] sm:$0xff]
        %v629 = vld [vmem:[#allocation6 + $0x40] sm:$0xff]
        %v630 = vld [vmem:[#allocation6 + $0x48] sm:$0xff]
        %v631 = vld [vmem:[#allocation6 + $0x50] sm:$0xff]
        %v632 = vld [vmem:[#allocation6 + $0x58] sm:$0xff]
        %v633 = vld [vmem:[#allocation6 + $0x60] sm:$0xff]
        %v634 = vld [vmem:[#allocation6 + $0x68] sm:$0xff]
        %v635 = vld [vmem:[#allocation6 + $0x70] sm:$0xff]
        %v636 = vld [vmem:[#allocation6 + $0x78] sm:$0xff]
        %v637 = vld [vmem:[%s2] sm:$0x1]
        %v639 = vlaneseq
        %v640 = vshrl.u32 %v639, 7
        %v641 = vsub.s32 0, %v640
        %v642 = vrot.slane %v637, %v641
        %644 = vmatprep.subr.mxu0 0.0
        %645 = vmatpush1.msra.mxu0 %v636
        %646 = vmatprep.subr.mxu0 0.0
        %647 = vmatpush1.msra.mxu0 %v635
        %648 = vmatprep.subr.mxu0 0.0
        %649 = vmatpush1.msra.mxu0 %v634
        %650 = vmatprep.subr.mxu0 0.0
        %651 = vmatpush1.msra.mxu0 %v633
        %652 = vmatprep.subr.mxu0 0.0
        %653 = vmatpush1.msra.mxu0 %v632
        %654 = vmatprep.subr.mxu0 0.0
        %655 = vmatpush1.msra.mxu0 %v631
        %656 = vmatprep.subr.mxu0 0.0
        %657 = vmatpush1.msra.mxu0 %v630
        %658 = vmatprep.subr.mxu0 0.0
        %659 = vmatpush1.msra.mxu0 %v629
        %660 = vmatprep.subr.mxu0 0.0
        %661 = vmatpush1.msra.mxu0 %v628
        %662 = vmatprep.subr.mxu0 0.0
        %663 = vmatpush1.msra.mxu0 %v627
        %664 = vmatprep.subr.mxu0 0.0
        %665 = vmatpush1.msra.mxu0 %v626
        %666 = vmatprep.subr.mxu0 0.0
        %667 = vmatpush1.msra.mxu0 %v625
        %668 = vmatprep.subr.mxu0 0.0
        %669 = vmatpush1.msra.mxu0 %v624
        %670 = vmatprep.subr.mxu0 0.0
        %671 = vmatpush1.msra.mxu0 %v623
        %672 = vmatprep.subr.mxu0 0.0
        %673 = vmatpush1.msra.mxu0 %v622
        %674 = vmatprep.subr.mxu0 0.0
        %675 = vmatpush1.msra.mxu0 %v621
        %676 = vmatprep.subr.mxu0 0.0
        %677 = vmatpush2.msra.mxu0 0.0
        %678 = vmatprep.subr.mxu0 0.0
        %679 = vmatpush2.msra.mxu0 0.0
        %680 = vmatprep.subr.mxu0 0.0
        %681 = vmatpush2.msra.mxu0 0.0
        %682 = vmatprep.subr.mxu0 0.0
        %683 = vmatpush2.msra.mxu0 0.0
        %684 = vmatprep.subr.mxu0 0.0
        %685 = vmatpush2.msra.mxu0 0.0
        %686 = vmatprep.subr.mxu0 0.0
        %687 = vmatpush2.msra.mxu0 0.0
        %688 = vmatprep.subr.mxu0 0.0
        %689 = vmatpush2.msra.mxu0 0.0
        %690 = vmatprep.subr.mxu0 0.0
        %691 = vmatpush2.msra.mxu0 0.0
        %692 = vmatprep.subr.mxu0 0.0
        %693 = vmatpush2.msra.mxu0 0.0
        %694 = vmatprep.subr.mxu0 0.0
        %695 = vmatpush2.msra.mxu0 0.0
        %696 = vmatprep.subr.mxu0 0.0
        %697 = vmatpush2.msra.mxu0 0.0
        %698 = vmatprep.subr.mxu0 0.0
        %699 = vmatpush2.msra.mxu0 0.0
        %700 = vmatprep.subr.mxu0 0.0
        %701 = vmatpush2.msra.mxu0 0.0
        %702 = vmatprep.subr.mxu0 0.0
        %703 = vmatpush2.msra.mxu0 0.0
        %704 = vmatprep.subr.mxu0 0.0
        %705 = vmatpush2.msra.mxu0 0.0
        %706 = vmatprep.subr.mxu0 0.0
        %707 = vmatpush2.msra.mxu0 0.0
        %708 = vmatprep.mubr.f32.mxu0 0.0
        %709 = vmatmul.mubr.f32.gmra.mxu0 %v589
        %v710 = vpop.f32.mrf.mxu0
        %v711 = vadd.f32 %v642, %v710
        %v712 = vpop.f32.mrf.mxu0
        %713 = vmatprep.mubr.f32.mxu0 0.0
        %714 = vmatmul.mubr.f32.gmra.mxu0 %v590
        %v715 = vpop.f32.mrf.mxu0
        %v716 = vadd.f32 %v642, %v715
        %v717 = vpop.f32.mrf.mxu0
        %718 = vmatprep.mubr.f32.mxu0 0.0
        %719 = vmatmul.mubr.f32.gmra.mxu0 %v591
        %v720 = vpop.f32.mrf.mxu0
        %v721 = vadd.f32 %v642, %v720
        %v722 = vpop.f32.mrf.mxu0
        %723 = vmatprep.mubr.f32.mxu0 0.0
        %724 = vmatmul.mubr.f32.gmra.mxu0 %v592
        %v725 = vpop.f32.mrf.mxu0
        %v726 = vadd.f32 %v642, %v725
        %v727 = vpop.f32.mrf.mxu0
        %728 = vmatprep.mubr.f32.mxu0 0.0
        %729 = vmatmul.mubr.f32.gmra.mxu0 %v593
        %v730 = vpop.f32.mrf.mxu0
        %v731 = vadd.f32 %v642, %v730
        %v732 = vpop.f32.mrf.mxu0
        %733 = vmatprep.mubr.f32.mxu0 0.0
        %734 = vmatmul.mubr.f32.gmra.mxu0 %v594
        %v735 = vpop.f32.mrf.mxu0
        %v736 = vadd.f32 %v642, %v735
        %v737 = vpop.f32.mrf.mxu0
        %738 = vmatprep.mubr.f32.mxu0 0.0
        %739 = vmatmul.mubr.f32.gmra.mxu0 %v595
        %v740 = vpop.f32.mrf.mxu0
        %v741 = vadd.f32 %v642, %v740
        %v742 = vpop.f32.mrf.mxu0
        %743 = vmatprep.mubr.f32.mxu0 0.0
        %744 = vmatmul.mubr.f32.gmra.mxu0 %v596
        %v745 = vpop.f32.mrf.mxu0
        %v746 = vadd.f32 %v642, %v745
        %v747 = vpop.f32.mrf.mxu0
        %748 = vmatprep.mubr.f32.mxu0 0.0
        %749 = vmatmul.mubr.f32.gmra.mxu0 %v597
        %v750 = vpop.f32.mrf.mxu0
        %v751 = vadd.f32 %v642, %v750
        %v752 = vpop.f32.mrf.mxu0
        %753 = vmatprep.mubr.f32.mxu0 0.0
        %754 = vmatmul.mubr.f32.gmra.mxu0 %v598
        %v755 = vpop.f32.mrf.mxu0
        %v756 = vadd.f32 %v642, %v755
        %v757 = vpop.f32.mrf.mxu0
        %758 = vmatprep.mubr.f32.mxu0 0.0
        %759 = vmatmul.mubr.f32.gmra.mxu0 %v599
        %v760 = vpop.f32.mrf.mxu0
        %v761 = vadd.f32 %v642, %v760
        %v762 = vpop.f32.mrf.mxu0
        %763 = vmatprep.mubr.f32.mxu0 0.0
        %764 = vmatmul.mubr.f32.gmra.mxu0 %v600
        %v765 = vpop.f32.mrf.mxu0
        %v766 = vadd.f32 %v642, %v765
        %v767 = vpop.f32.mrf.mxu0
        %768 = vmatprep.mubr.f32.mxu0 0.0
        %769 = vmatmul.mubr.f32.gmra.mxu0 %v601
        %v770 = vpop.f32.mrf.mxu0
        %v771 = vadd.f32 %v642, %v770
        %v772 = vpop.f32.mrf.mxu0
        %773 = vmatprep.mubr.f32.mxu0 0.0
        %774 = vmatmul.mubr.f32.gmra.mxu0 %v602
        %v775 = vpop.f32.mrf.mxu0
        %v776 = vadd.f32 %v642, %v775
        %v777 = vpop.f32.mrf.mxu0
        %778 = vmatprep.mubr.f32.mxu0 0.0
        %779 = vmatmul.mubr.f32.gmra.mxu0 %v603
        %v780 = vpop.f32.mrf.mxu0
        %v781 = vadd.f32 %v642, %v780
        %v782 = vpop.f32.mrf.mxu0
        %783 = vmatprep.mubr.f32.mxu0 0.0
        %784 = vmatmul.mubr.f32.gmra.mxu0 %v604
        %v785 = vpop.f32.mrf.mxu0
        %v786 = vadd.f32 %v642, %v785
        %v787 = vpop.f32.mrf.mxu0
        %788 = vmatprep.mubr.f32.mxu0 0.0
        %789 = vmatmul.mubr.f32.gmra.mxu0 %v605
        %v790 = vpop.f32.mrf.mxu0
        %v791 = vadd.f32 %v642, %v790
        %v792 = vpop.f32.mrf.mxu0
        %793 = vmatprep.mubr.f32.mxu0 0.0
        %794 = vmatmul.mubr.f32.gmra.mxu0 %v606
        %v795 = vpop.f32.mrf.mxu0
        %v796 = vadd.f32 %v642, %v795
        %v797 = vpop.f32.mrf.mxu0
        %798 = vmatprep.mubr.f32.mxu0 0.0
        %799 = vmatmul.mubr.f32.gmra.mxu0 %v607
        %v800 = vpop.f32.mrf.mxu0
        %v801 = vadd.f32 %v642, %v800
        %v802 = vpop.f32.mrf.mxu0
        %803 = vmatprep.mubr.f32.mxu0 0.0
        %804 = vmatmul.mubr.f32.gmra.mxu0 %v608
        %v805 = vpop.f32.mrf.mxu0
        %v806 = vadd.f32 %v642, %v805
        %v807 = vpop.f32.mrf.mxu0
        %808 = vmatprep.mubr.f32.mxu0 0.0
        %809 = vmatmul.mubr.f32.gmra.mxu0 %v609
        %v810 = vpop.f32.mrf.mxu0
        %v811 = vadd.f32 %v642, %v810
        %v812 = vpop.f32.mrf.mxu0
        %813 = vmatprep.mubr.f32.mxu0 0.0
        %814 = vmatmul.mubr.f32.gmra.mxu0 %v610
        %v815 = vpop.f32.mrf.mxu0
        %v816 = vadd.f32 %v642, %v815
        %v817 = vpop.f32.mrf.mxu0
        %818 = vmatprep.mubr.f32.mxu0 0.0
        %819 = vmatmul.mubr.f32.gmra.mxu0 %v611
        %v820 = vpop.f32.mrf.mxu0
        %v821 = vadd.f32 %v642, %v820
        %v822 = vpop.f32.mrf.mxu0
        %823 = vmatprep.mubr.f32.mxu0 0.0
        %824 = vmatmul.mubr.f32.gmra.mxu0 %v612
        %v825 = vpop.f32.mrf.mxu0
        %v826 = vadd.f32 %v642, %v825
        %v827 = vpop.f32.mrf.mxu0
        %828 = vmatprep.mubr.f32.mxu0 0.0
        %829 = vmatmul.mubr.f32.gmra.mxu0 %v613
        %v830 = vpop.f32.mrf.mxu0
        %v831 = vadd.f32 %v642, %v830
        %v832 = vpop.f32.mrf.mxu0
        %833 = vmatprep.mubr.f32.mxu0 0.0
        %834 = vmatmul.mubr.f32.gmra.mxu0 %v614
        %v835 = vpop.f32.mrf.mxu0
        %v836 = vadd.f32 %v642, %v835
        %v837 = vpop.f32.mrf.mxu0
        %838 = vmatprep.mubr.f32.mxu0 0.0
        %839 = vmatmul.mubr.f32.gmra.mxu0 %v615
        %v840 = vpop.f32.mrf.mxu0
        %v841 = vadd.f32 %v642, %v840
        %v842 = vpop.f32.mrf.mxu0
        %843 = vmatprep.mubr.f32.mxu0 0.0
        %844 = vmatmul.mubr.f32.gmra.mxu0 %v616
        %v845 = vpop.f32.mrf.mxu0
        %v846 = vadd.f32 %v642, %v845
        %v847 = vpop.f32.mrf.mxu0
        %848 = vmatprep.mubr.f32.mxu0 0.0
        %849 = vmatmul.mubr.f32.gmra.mxu0 %v617
        %v850 = vpop.f32.mrf.mxu0
        %v851 = vadd.f32 %v642, %v850
        %v852 = vpop.f32.mrf.mxu0
        %853 = vmatprep.mubr.f32.mxu0 0.0
        %854 = vmatmul.mubr.f32.gmra.mxu0 %v618
        %v855 = vpop.f32.mrf.mxu0
        %v856 = vadd.f32 %v642, %v855
        %v857 = vpop.f32.mrf.mxu0
        %858 = vmatprep.mubr.f32.mxu0 0.0
        %859 = vmatmul.mubr.f32.gmra.mxu0 %v619
        %v860 = vpop.f32.mrf.mxu0
        %v861 = vadd.f32 %v642, %v860
        %v862 = vpop.f32.mrf.mxu0
        %863 = vmatprep.mubr.f32.mxu0 0.0
        %864 = vmatmul.mubr.f32.gmra.mxu0 %v620
        %v865 = vpop.f32.mrf.mxu0
        %v866 = vadd.f32 %v642, %v865
        %v867 = vpop.f32.mrf.mxu0
        %868 = vdwg.mxu0
        %v869 = vld [vmem:[#allocation8] sm:$0xff]
        %v870 = vld [vmem:[#allocation8 + $0x8] sm:$0xff]
        %v871 = vld [vmem:[#allocation8 + $0x10] sm:$0xff]
        %v872 = vld [vmem:[#allocation8 + $0x18] sm:$0xff]
        %v873 = vld [vmem:[#allocation8 + $0x20] sm:$0xff]
        %v874 = vld [vmem:[#allocation8 + $0x28] sm:$0xff]
        %v875 = vld [vmem:[#allocation8 + $0x30] sm:$0xff]
        %v876 = vld [vmem:[#allocation8 + $0x38] sm:$0xff]
        %v877 = vld [vmem:[#allocation8 + $0x40] sm:$0xff]
        %v878 = vld [vmem:[#allocation8 + $0x48] sm:$0xff]
        %v879 = vld [vmem:[#allocation8 + $0x50] sm:$0xff]
        %v880 = vld [vmem:[#allocation8 + $0x58] sm:$0xff]
        %v881 = vld [vmem:[#allocation8 + $0x60] sm:$0xff]
        %v882 = vld [vmem:[#allocation8 + $0x68] sm:$0xff]
        %v883 = vld [vmem:[#allocation8 + $0x70] sm:$0xff]
        %v884 = vld [vmem:[#allocation8 + $0x78] sm:$0xff]
        %v885 = vld [vmem:[%s4] sm:$0x1]
        %v887 = vlaneseq
        %v888 = vshrl.u32 %v887, 7
        %v889 = vsub.s32 0, %v888
        %v890 = vrot.slane %v885, %v889
        %892 = vmatprep.subr.mxu0 0.0
        %893 = vmatpush1.msra.mxu0 %v884
        %894 = vmatprep.subr.mxu0 0.0
        %895 = vmatpush1.msra.mxu0 %v883
        %896 = vmatprep.subr.mxu0 0.0
        %897 = vmatpush1.msra.mxu0 %v882
        %898 = vmatprep.subr.mxu0 0.0
        %899 = vmatpush1.msra.mxu0 %v881
        %900 = vmatprep.subr.mxu0 0.0
        %901 = vmatpush1.msra.mxu0 %v880
        %902 = vmatprep.subr.mxu0 0.0
        %903 = vmatpush1.msra.mxu0 %v879
        %904 = vmatprep.subr.mxu0 0.0
        %905 = vmatpush1.msra.mxu0 %v878
        %906 = vmatprep.subr.mxu0 0.0
        %907 = vmatpush1.msra.mxu0 %v877
        %908 = vmatprep.subr.mxu0 0.0
        %909 = vmatpush1.msra.mxu0 %v876
        %910 = vmatprep.subr.mxu0 0.0
        %911 = vmatpush1.msra.mxu0 %v875
        %912 = vmatprep.subr.mxu0 0.0
        %913 = vmatpush1.msra.mxu0 %v874
        %914 = vmatprep.subr.mxu0 0.0
        %915 = vmatpush1.msra.mxu0 %v873
        %916 = vmatprep.subr.mxu0 0.0
        %917 = vmatpush1.msra.mxu0 %v872
        %918 = vmatprep.subr.mxu0 0.0
        %919 = vmatpush1.msra.mxu0 %v871
        %920 = vmatprep.subr.mxu0 0.0
        %921 = vmatpush1.msra.mxu0 %v870
        %922 = vmatprep.subr.mxu0 0.0
        %923 = vmatpush1.msra.mxu0 %v869
        %924 = vmatprep.subr.mxu0 0.0
        %925 = vmatpush2.msra.mxu0 0.0
        %926 = vmatprep.subr.mxu0 0.0
        %927 = vmatpush2.msra.mxu0 0.0
        %928 = vmatprep.subr.mxu0 0.0
        %929 = vmatpush2.msra.mxu0 0.0
        %930 = vmatprep.subr.mxu0 0.0
        %931 = vmatpush2.msra.mxu0 0.0
        %932 = vmatprep.subr.mxu0 0.0
        %933 = vmatpush2.msra.mxu0 0.0
        %934 = vmatprep.subr.mxu0 0.0
        %935 = vmatpush2.msra.mxu0 0.0
        %936 = vmatprep.subr.mxu0 0.0
        %937 = vmatpush2.msra.mxu0 0.0
        %938 = vmatprep.subr.mxu0 0.0
        %939 = vmatpush2.msra.mxu0 0.0
        %940 = vmatprep.subr.mxu0 0.0
        %941 = vmatpush2.msra.mxu0 0.0
        %942 = vmatprep.subr.mxu0 0.0
        %943 = vmatpush2.msra.mxu0 0.0
        %944 = vmatprep.subr.mxu0 0.0
        %945 = vmatpush2.msra.mxu0 0.0
        %946 = vmatprep.subr.mxu0 0.0
        %947 = vmatpush2.msra.mxu0 0.0
        %948 = vmatprep.subr.mxu0 0.0
        %949 = vmatpush2.msra.mxu0 0.0
        %950 = vmatprep.subr.mxu0 0.0
        %951 = vmatpush2.msra.mxu0 0.0
        %952 = vmatprep.subr.mxu0 0.0
        %953 = vmatpush2.msra.mxu0 0.0
        %954 = vmatprep.subr.mxu0 0.0
        %955 = vmatpush2.msra.mxu0 0.0
        %956 = vmatprep.mubr.f32.mxu0 0.0
        %957 = vmatmul.mubr.f32.gmra.mxu0 %v589
        %v958 = vpop.f32.mrf.mxu0
        %v959 = vadd.f32 %v890, %v958
        %v960 = vpop.f32.mrf.mxu0
        %961 = vmatprep.mubr.f32.mxu0 0.0
        %962 = vmatmul.mubr.f32.gmra.mxu0 %v590
        %v963 = vpop.f32.mrf.mxu0
        %v964 = vadd.f32 %v890, %v963
        %v965 = vpop.f32.mrf.mxu0
        %966 = vmatprep.mubr.f32.mxu0 0.0
        %967 = vmatmul.mubr.f32.gmra.mxu0 %v591
        %v968 = vpop.f32.mrf.mxu0
        %v969 = vadd.f32 %v890, %v968
        %v970 = vpop.f32.mrf.mxu0
        %971 = vmatprep.mubr.f32.mxu0 0.0
        %972 = vmatmul.mubr.f32.gmra.mxu0 %v592
        %v973 = vpop.f32.mrf.mxu0
        %v974 = vadd.f32 %v890, %v973
        %v975 = vpop.f32.mrf.mxu0
        %976 = vmatprep.mubr.f32.mxu0 0.0
        %977 = vmatmul.mubr.f32.gmra.mxu0 %v593
        %v978 = vpop.f32.mrf.mxu0
        %v979 = vadd.f32 %v890, %v978
        %v980 = vpop.f32.mrf.mxu0
        %981 = vmatprep.mubr.f32.mxu0 0.0
        %982 = vmatmul.mubr.f32.gmra.mxu0 %v594
        %v983 = vpop.f32.mrf.mxu0
        %v984 = vadd.f32 %v890, %v983
        %v985 = vpop.f32.mrf.mxu0
        %986 = vmatprep.mubr.f32.mxu0 0.0
        %987 = vmatmul.mubr.f32.gmra.mxu0 %v595
        %v988 = vpop.f32.mrf.mxu0
        %v989 = vadd.f32 %v890, %v988
        %v990 = vpop.f32.mrf.mxu0
        %991 = vmatprep.mubr.f32.mxu0 0.0
        %992 = vmatmul.mubr.f32.gmra.mxu0 %v596
        %v993 = vpop.f32.mrf.mxu0
        %v994 = vadd.f32 %v890, %v993
        %v995 = vpop.f32.mrf.mxu0
        %996 = vmatprep.mubr.f32.mxu0 0.0
        %997 = vmatmul.mubr.f32.gmra.mxu0 %v597
        %v998 = vpop.f32.mrf.mxu0
        %v999 = vadd.f32 %v890, %v998
        %v1000 = vpop.f32.mrf.mxu0
        %1001 = vmatprep.mubr.f32.mxu0 0.0
        %1002 = vmatmul.mubr.f32.gmra.mxu0 %v598
        %v1003 = vpop.f32.mrf.mxu0
        %v1004 = vadd.f32 %v890, %v1003
        %v1005 = vpop.f32.mrf.mxu0
        %1006 = vmatprep.mubr.f32.mxu0 0.0
        %1007 = vmatmul.mubr.f32.gmra.mxu0 %v599
        %v1008 = vpop.f32.mrf.mxu0
        %v1009 = vadd.f32 %v890, %v1008
        %v1010 = vpop.f32.mrf.mxu0
        %1011 = vmatprep.mubr.f32.mxu0 0.0
        %1012 = vmatmul.mubr.f32.gmra.mxu0 %v600
        %v1013 = vpop.f32.mrf.mxu0
        %v1014 = vadd.f32 %v890, %v1013
        %v1015 = vpop.f32.mrf.mxu0
        %1016 = vmatprep.mubr.f32.mxu0 0.0
        %1017 = vmatmul.mubr.f32.gmra.mxu0 %v601
        %v1018 = vpop.f32.mrf.mxu0
        %v1019 = vadd.f32 %v890, %v1018
        %v1020 = vpop.f32.mrf.mxu0
        %1021 = vmatprep.mubr.f32.mxu0 0.0
        %1022 = vmatmul.mubr.f32.gmra.mxu0 %v602
        %v1023 = vpop.f32.mrf.mxu0
        %v1024 = vadd.f32 %v890, %v1023
        %v1025 = vpop.f32.mrf.mxu0
        %1026 = vmatprep.mubr.f32.mxu0 0.0
        %1027 = vmatmul.mubr.f32.gmra.mxu0 %v603
        %v1028 = vpop.f32.mrf.mxu0
        %v1029 = vadd.f32 %v890, %v1028
        %v1030 = vpop.f32.mrf.mxu0
        %1031 = vmatprep.mubr.f32.mxu0 0.0
        %1032 = vmatmul.mubr.f32.gmra.mxu0 %v604
        %v1033 = vpop.f32.mrf.mxu0
        %v1034 = vadd.f32 %v890, %v1033
        %v1035 = vpop.f32.mrf.mxu0
        %1036 = vmatprep.mubr.f32.mxu0 0.0
        %1037 = vmatmul.mubr.f32.gmra.mxu0 %v605
        %v1038 = vpop.f32.mrf.mxu0
        %v1039 = vadd.f32 %v890, %v1038
        %v1040 = vpop.f32.mrf.mxu0
        %1041 = vmatprep.mubr.f32.mxu0 0.0
        %1042 = vmatmul.mubr.f32.gmra.mxu0 %v606
        %v1043 = vpop.f32.mrf.mxu0
        %v1044 = vadd.f32 %v890, %v1043
        %v1045 = vpop.f32.mrf.mxu0
        %1046 = vmatprep.mubr.f32.mxu0 0.0
        %1047 = vmatmul.mubr.f32.gmra.mxu0 %v607
        %v1048 = vpop.f32.mrf.mxu0
        %v1049 = vadd.f32 %v890, %v1048
        %v1050 = vpop.f32.mrf.mxu0
        %1051 = vmatprep.mubr.f32.mxu0 0.0
        %1052 = vmatmul.mubr.f32.gmra.mxu0 %v608
        %v1053 = vpop.f32.mrf.mxu0
        %v1054 = vadd.f32 %v890, %v1053
        %v1055 = vpop.f32.mrf.mxu0
        %1056 = vmatprep.mubr.f32.mxu0 0.0
        %1057 = vmatmul.mubr.f32.gmra.mxu0 %v609
        %v1058 = vpop.f32.mrf.mxu0
        %v1059 = vadd.f32 %v890, %v1058
        %v1060 = vpop.f32.mrf.mxu0
        %1061 = vmatprep.mubr.f32.mxu0 0.0
        %1062 = vmatmul.mubr.f32.gmra.mxu0 %v610
        %v1063 = vpop.f32.mrf.mxu0
        %v1064 = vadd.f32 %v890, %v1063
        %v1065 = vpop.f32.mrf.mxu0
        %1066 = vmatprep.mubr.f32.mxu0 0.0
        %1067 = vmatmul.mubr.f32.gmra.mxu0 %v611
        %v1068 = vpop.f32.mrf.mxu0
        %v1069 = vadd.f32 %v890, %v1068
        %v1070 = vpop.f32.mrf.mxu0
        %1071 = vmatprep.mubr.f32.mxu0 0.0
        %1072 = vmatmul.mubr.f32.gmra.mxu0 %v612
        %v1073 = vpop.f32.mrf.mxu0
        %v1074 = vadd.f32 %v890, %v1073
        %v1075 = vpop.f32.mrf.mxu0
        %1076 = vmatprep.mubr.f32.mxu0 0.0
        %1077 = vmatmul.mubr.f32.gmra.mxu0 %v613
        %v1078 = vpop.f32.mrf.mxu0
        %v1079 = vadd.f32 %v890, %v1078
        %v1080 = vpop.f32.mrf.mxu0
        %1081 = vmatprep.mubr.f32.mxu0 0.0
        %1082 = vmatmul.mubr.f32.gmra.mxu0 %v614
        %v1083 = vpop.f32.mrf.mxu0
        %v1084 = vadd.f32 %v890, %v1083
        %v1085 = vpop.f32.mrf.mxu0
        %1086 = vmatprep.mubr.f32.mxu0 0.0
        %1087 = vmatmul.mubr.f32.gmra.mxu0 %v615
        %v1088 = vpop.f32.mrf.mxu0
        %v1089 = vadd.f32 %v890, %v1088
        %v1090 = vpop.f32.mrf.mxu0
        %1091 = vmatprep.mubr.f32.mxu0 0.0
        %1092 = vmatmul.mubr.f32.gmra.mxu0 %v616
        %v1093 = vpop.f32.mrf.mxu0
        %v1094 = vadd.f32 %v890, %v1093
        %v1095 = vpop.f32.mrf.mxu0
        %1096 = vmatprep.mubr.f32.mxu0 0.0
        %1097 = vmatmul.mubr.f32.gmra.mxu0 %v617
        %v1098 = vpop.f32.mrf.mxu0
        %v1099 = vadd.f32 %v890, %v1098
        %v1100 = vpop.f32.mrf.mxu0
        %1101 = vmatprep.mubr.f32.mxu0 0.0
        %1102 = vmatmul.mubr.f32.gmra.mxu0 %v618
        %v1103 = vpop.f32.mrf.mxu0
        %v1104 = vadd.f32 %v890, %v1103
        %v1105 = vpop.f32.mrf.mxu0
        %1106 = vmatprep.mubr.f32.mxu0 0.0
        %1107 = vmatmul.mubr.f32.gmra.mxu0 %v619
        %v1108 = vpop.f32.mrf.mxu0
        %v1109 = vadd.f32 %v890, %v1108
        %v1110 = vpop.f32.mrf.mxu0
        %1111 = vmatprep.mubr.f32.mxu0 0.0
        %1112 = vmatmul.mubr.f32.gmra.mxu0 %v620
        %v1113 = vpop.f32.mrf.mxu0
        %v1114 = vadd.f32 %v890, %v1113
        %v1115 = vpop.f32.mrf.mxu0
        %1116 = vdwg.mxu0
        %v1117 = vld [vmem:[#allocation9] sm:$0xff]
        %v1118 = vld [vmem:[#allocation9 + $0x8] sm:$0xff]
        %v1119 = vld [vmem:[#allocation9 + $0x10] sm:$0xff]
        %v1120 = vld [vmem:[#allocation9 + $0x18] sm:$0xff]
        %v1121 = vld [vmem:[#allocation9 + $0x20] sm:$0xff]
        %v1122 = vld [vmem:[#allocation9 + $0x28] sm:$0xff]
        %v1123 = vld [vmem:[#allocation9 + $0x30] sm:$0xff]
        %v1124 = vld [vmem:[#allocation9 + $0x38] sm:$0xff]
        %v1125 = vld [vmem:[#allocation9 + $0x40] sm:$0xff]
        %v1126 = vld [vmem:[#allocation9 + $0x48] sm:$0xff]
        %v1127 = vld [vmem:[#allocation9 + $0x50] sm:$0xff]
        %v1128 = vld [vmem:[#allocation9 + $0x58] sm:$0xff]
        %v1129 = vld [vmem:[#allocation9 + $0x60] sm:$0xff]
        %v1130 = vld [vmem:[#allocation9 + $0x68] sm:$0xff]
        %v1131 = vld [vmem:[#allocation9 + $0x70] sm:$0xff]
        %v1132 = vld [vmem:[#allocation9 + $0x78] sm:$0xff]
        %v1133 = vld [vmem:[%s6] sm:$0x1]
        %v1135 = vlaneseq
        %v1136 = vshrl.u32 %v1135, 7
        %v1137 = vsub.s32 0, %v1136
        %v1138 = vrot.slane %v1133, %v1137
        %1140 = vmatprep.subr.mxu0 0.0
        %1141 = vmatpush1.msra.mxu0 %v1132
        %1142 = vmatprep.subr.mxu0 0.0
        %1143 = vmatpush1.msra.mxu0 %v1131
        %1144 = vmatprep.subr.mxu0 0.0
        %1145 = vmatpush1.msra.mxu0 %v1130
        %1146 = vmatprep.subr.mxu0 0.0
        %1147 = vmatpush1.msra.mxu0 %v1129
        %1148 = vmatprep.subr.mxu0 0.0
        %1149 = vmatpush1.msra.mxu0 %v1128
        %1150 = vmatprep.subr.mxu0 0.0
        %1151 = vmatpush1.msra.mxu0 %v1127
        %1152 = vmatprep.subr.mxu0 0.0
        %1153 = vmatpush1.msra.mxu0 %v1126
        %1154 = vmatprep.subr.mxu0 0.0
        %1155 = vmatpush1.msra.mxu0 %v1125
        %1156 = vmatprep.subr.mxu0 0.0
        %1157 = vmatpush1.msra.mxu0 %v1124
        %1158 = vmatprep.subr.mxu0 0.0
        %1159 = vmatpush1.msra.mxu0 %v1123
        %1160 = vmatprep.subr.mxu0 0.0
        %1161 = vmatpush1.msra.mxu0 %v1122
        %1162 = vmatprep.subr.mxu0 0.0
        %1163 = vmatpush1.msra.mxu0 %v1121
        %1164 = vmatprep.subr.mxu0 0.0
        %1165 = vmatpush1.msra.mxu0 %v1120
        %1166 = vmatprep.subr.mxu0 0.0
        %1167 = vmatpush1.msra.mxu0 %v1119
        %1168 = vmatprep.subr.mxu0 0.0
        %1169 = vmatpush1.msra.mxu0 %v1118
        %1170 = vmatprep.subr.mxu0 0.0
        %1171 = vmatpush1.msra.mxu0 %v1117
        %1172 = vmatprep.subr.mxu0 0.0
        %1173 = vmatpush2.msra.mxu0 0.0
        %1174 = vmatprep.subr.mxu0 0.0
        %1175 = vmatpush2.msra.mxu0 0.0
        %1176 = vmatprep.subr.mxu0 0.0
        %1177 = vmatpush2.msra.mxu0 0.0
        %1178 = vmatprep.subr.mxu0 0.0
        %1179 = vmatpush2.msra.mxu0 0.0
        %1180 = vmatprep.subr.mxu0 0.0
        %1181 = vmatpush2.msra.mxu0 0.0
        %1182 = vmatprep.subr.mxu0 0.0
        %1183 = vmatpush2.msra.mxu0 0.0
        %1184 = vmatprep.subr.mxu0 0.0
        %1185 = vmatpush2.msra.mxu0 0.0
        %1186 = vmatprep.subr.mxu0 0.0
        %1187 = vmatpush2.msra.mxu0 0.0
        %1188 = vmatprep.subr.mxu0 0.0
        %1189 = vmatpush2.msra.mxu0 0.0
        %1190 = vmatprep.subr.mxu0 0.0
        %1191 = vmatpush2.msra.mxu0 0.0
        %1192 = vmatprep.subr.mxu0 0.0
        %1193 = vmatpush2.msra.mxu0 0.0
        %1194 = vmatprep.subr.mxu0 0.0
        %1195 = vmatpush2.msra.mxu0 0.0
        %1196 = vmatprep.subr.mxu0 0.0
        %1197 = vmatpush2.msra.mxu0 0.0
        %1198 = vmatprep.subr.mxu0 0.0
        %1199 = vmatpush2.msra.mxu0 0.0
        %1200 = vmatprep.subr.mxu0 0.0
        %1201 = vmatpush2.msra.mxu0 0.0
        %1202 = vmatprep.subr.mxu0 0.0
        %1203 = vmatpush2.msra.mxu0 0.0
        %1204 = vmatprep.mubr.f32.mxu0 0.0
        %1205 = vmatmul.mubr.f32.gmra.mxu0 %v589
        %v1206 = vpop.f32.mrf.mxu0
        %v1207 = vadd.f32 %v1138, %v1206
        %v1208 = vpop.f32.mrf.mxu0
        %1209 = vmatprep.mubr.f32.mxu0 0.0
        %1210 = vmatmul.mubr.f32.gmra.mxu0 %v590
        %v1211 = vpop.f32.mrf.mxu0
        %v1212 = vadd.f32 %v1138, %v1211
        %v1213 = vpop.f32.mrf.mxu0
        %1214 = vmatprep.mubr.f32.mxu0 0.0
        %1215 = vmatmul.mubr.f32.gmra.mxu0 %v591
        %v1216 = vpop.f32.mrf.mxu0
        %v1217 = vadd.f32 %v1138, %v1216
        %v1218 = vpop.f32.mrf.mxu0
        %1219 = vmatprep.mubr.f32.mxu0 0.0
        %1220 = vmatmul.mubr.f32.gmra.mxu0 %v592
        %v1221 = vpop.f32.mrf.mxu0
        %v1222 = vadd.f32 %v1138, %v1221
        %v1223 = vpop.f32.mrf.mxu0
        %1224 = vmatprep.mubr.f32.mxu0 0.0
        %1225 = vmatmul.mubr.f32.gmra.mxu0 %v593
        %v1226 = vpop.f32.mrf.mxu0
        %v1227 = vadd.f32 %v1138, %v1226
        %v1228 = vpop.f32.mrf.mxu0
        %1229 = vmatprep.mubr.f32.mxu0 0.0
        %1230 = vmatmul.mubr.f32.gmra.mxu0 %v594
        %v1231 = vpop.f32.mrf.mxu0
        %v1232 = vadd.f32 %v1138, %v1231
        %v1233 = vpop.f32.mrf.mxu0
        %1234 = vmatprep.mubr.f32.mxu0 0.0
        %1235 = vmatmul.mubr.f32.gmra.mxu0 %v595
        %v1236 = vpop.f32.mrf.mxu0
        %v1237 = vadd.f32 %v1138, %v1236
        %v1238 = vpop.f32.mrf.mxu0
        %1239 = vmatprep.mubr.f32.mxu0 0.0
        %1240 = vmatmul.mubr.f32.gmra.mxu0 %v596
        %v1241 = vpop.f32.mrf.mxu0
        %v1242 = vadd.f32 %v1138, %v1241
        %v1243 = vpop.f32.mrf.mxu0
        %1244 = vmatprep.mubr.f32.mxu0 0.0
        %1245 = vmatmul.mubr.f32.gmra.mxu0 %v597
        %v1246 = vpop.f32.mrf.mxu0
        %v1247 = vadd.f32 %v1138, %v1246
        %v1248 = vpop.f32.mrf.mxu0
        %1249 = vmatprep.mubr.f32.mxu0 0.0
        %1250 = vmatmul.mubr.f32.gmra.mxu0 %v598
        %v1251 = vpop.f32.mrf.mxu0
        %v1252 = vadd.f32 %v1138, %v1251
        %v1253 = vpop.f32.mrf.mxu0
        %1254 = vmatprep.mubr.f32.mxu0 0.0
        %1255 = vmatmul.mubr.f32.gmra.mxu0 %v599
        %v1256 = vpop.f32.mrf.mxu0
        %v1257 = vadd.f32 %v1138, %v1256
        %v1258 = vpop.f32.mrf.mxu0
        %1259 = vmatprep.mubr.f32.mxu0 0.0
        %1260 = vmatmul.mubr.f32.gmra.mxu0 %v600
        %v1261 = vpop.f32.mrf.mxu0
        %v1262 = vadd.f32 %v1138, %v1261
        %v1263 = vpop.f32.mrf.mxu0
        %1264 = vmatprep.mubr.f32.mxu0 0.0
        %1265 = vmatmul.mubr.f32.gmra.mxu0 %v601
        %v1266 = vpop.f32.mrf.mxu0
        %v1267 = vadd.f32 %v1138, %v1266
        %v1268 = vpop.f32.mrf.mxu0
        %1269 = vmatprep.mubr.f32.mxu0 0.0
        %1270 = vmatmul.mubr.f32.gmra.mxu0 %v602
        %v1271 = vpop.f32.mrf.mxu0
        %v1272 = vadd.f32 %v1138, %v1271
        %v1273 = vpop.f32.mrf.mxu0
        %1274 = vmatprep.mubr.f32.mxu0 0.0
        %1275 = vmatmul.mubr.f32.gmra.mxu0 %v603
        %v1276 = vpop.f32.mrf.mxu0
        %v1277 = vadd.f32 %v1138, %v1276
        %v1278 = vpop.f32.mrf.mxu0
        %1279 = vmatprep.mubr.f32.mxu0 0.0
        %1280 = vmatmul.mubr.f32.gmra.mxu0 %v604
        %v1281 = vpop.f32.mrf.mxu0
        %v1282 = vadd.f32 %v1138, %v1281
        %v1283 = vpop.f32.mrf.mxu0
        %1284 = vmatprep.mubr.f32.mxu0 0.0
        %1285 = vmatmul.mubr.f32.gmra.mxu0 %v605
        %v1286 = vpop.f32.mrf.mxu0
        %v1287 = vadd.f32 %v1138, %v1286
        %v1288 = vpop.f32.mrf.mxu0
        %1289 = vmatprep.mubr.f32.mxu0 0.0
        %1290 = vmatmul.mubr.f32.gmra.mxu0 %v606
        %v1291 = vpop.f32.mrf.mxu0
        %v1292 = vadd.f32 %v1138, %v1291
        %v1293 = vpop.f32.mrf.mxu0
        %1294 = vmatprep.mubr.f32.mxu0 0.0
        %1295 = vmatmul.mubr.f32.gmra.mxu0 %v607
        %v1296 = vpop.f32.mrf.mxu0
        %v1297 = vadd.f32 %v1138, %v1296
        %v1298 = vpop.f32.mrf.mxu0
        %1299 = vmatprep.mubr.f32.mxu0 0.0
        %1300 = vmatmul.mubr.f32.gmra.mxu0 %v608
        %v1301 = vpop.f32.mrf.mxu0
        %v1302 = vadd.f32 %v1138, %v1301
        %v1303 = vpop.f32.mrf.mxu0
        %1304 = vmatprep.mubr.f32.mxu0 0.0
        %1305 = vmatmul.mubr.f32.gmra.mxu0 %v609
        %v1306 = vpop.f32.mrf.mxu0
        %v1307 = vadd.f32 %v1138, %v1306
        %v1308 = vpop.f32.mrf.mxu0
        %1309 = vmatprep.mubr.f32.mxu0 0.0
        %1310 = vmatmul.mubr.f32.gmra.mxu0 %v610
        %v1311 = vpop.f32.mrf.mxu0
        %v1312 = vadd.f32 %v1138, %v1311
        %v1313 = vpop.f32.mrf.mxu0
        %1314 = vmatprep.mubr.f32.mxu0 0.0
        %1315 = vmatmul.mubr.f32.gmra.mxu0 %v611
        %v1316 = vpop.f32.mrf.mxu0
        %v1317 = vadd.f32 %v1138, %v1316
        %v1318 = vpop.f32.mrf.mxu0
        %1319 = vmatprep.mubr.f32.mxu0 0.0
        %1320 = vmatmul.mubr.f32.gmra.mxu0 %v612
        %v1321 = vpop.f32.mrf.mxu0
        %v1322 = vadd.f32 %v1138, %v1321
        %v1323 = vpop.f32.mrf.mxu0
        %1324 = vmatprep.mubr.f32.mxu0 0.0
        %1325 = vmatmul.mubr.f32.gmra.mxu0 %v613
        %v1326 = vpop.f32.mrf.mxu0
        %v1327 = vadd.f32 %v1138, %v1326
        %v1328 = vpop.f32.mrf.mxu0
        %1329 = vmatprep.mubr.f32.mxu0 0.0
        %1330 = vmatmul.mubr.f32.gmra.mxu0 %v614
        %v1331 = vpop.f32.mrf.mxu0
        %v1332 = vadd.f32 %v1138, %v1331
        %v1333 = vpop.f32.mrf.mxu0
        %1334 = vmatprep.mubr.f32.mxu0 0.0
        %1335 = vmatmul.mubr.f32.gmra.mxu0 %v615
        %v1336 = vpop.f32.mrf.mxu0
        %v1337 = vadd.f32 %v1138, %v1336
        %v1338 = vpop.f32.mrf.mxu0
        %1339 = vmatprep.mubr.f32.mxu0 0.0
        %1340 = vmatmul.mubr.f32.gmra.mxu0 %v616
        %v1341 = vpop.f32.mrf.mxu0
        %v1342 = vadd.f32 %v1138, %v1341
        %v1343 = vpop.f32.mrf.mxu0
        %1344 = vmatprep.mubr.f32.mxu0 0.0
        %1345 = vmatmul.mubr.f32.gmra.mxu0 %v617
        %v1346 = vpop.f32.mrf.mxu0
        %v1347 = vadd.f32 %v1138, %v1346
        %v1348 = vpop.f32.mrf.mxu0
        %1349 = vmatprep.mubr.f32.mxu0 0.0
        %1350 = vmatmul.mubr.f32.gmra.mxu0 %v618
        %v1351 = vpop.f32.mrf.mxu0
        %v1352 = vadd.f32 %v1138, %v1351
        %v1353 = vpop.f32.mrf.mxu0
        %1354 = vmatprep.mubr.f32.mxu0 0.0
        %1355 = vmatmul.mubr.f32.gmra.mxu0 %v619
        %v1356 = vpop.f32.mrf.mxu0
        %v1357 = vadd.f32 %v1138, %v1356
        %v1358 = vpop.f32.mrf.mxu0
        %1359 = vmatprep.mubr.f32.mxu0 0.0
        %1360 = vmatmul.mubr.f32.gmra.mxu0 %v620
        %v1361 = vpop.f32.mrf.mxu0
        %v1362 = vadd.f32 %v1138, %v1361
        %v1363 = vpop.f32.mrf.mxu0
        %1364 = vdwg.mxu0
        %v1365 = vmul.f32 %v711, 0.17677669
        %v1366 = vmul.f32 %v716, 0.17677669
        %v1367 = vmul.f32 %v721, 0.17677669
        %v1368 = vmul.f32 %v726, 0.17677669
        %v1369 = vmul.f32 %v731, 0.17677669
        %v1370 = vmul.f32 %v736, 0.17677669
        %v1371 = vmul.f32 %v741, 0.17677669
        %v1372 = vmul.f32 %v746, 0.17677669
        %v1373 = vmul.f32 %v751, 0.17677669
        %v1374 = vmul.f32 %v756, 0.17677669
        %v1375 = vmul.f32 %v761, 0.17677669
        %v1376 = vmul.f32 %v766, 0.17677669
        %v1377 = vmul.f32 %v771, 0.17677669
        %v1378 = vmul.f32 %v776, 0.17677669
        %v1379 = vmul.f32 %v781, 0.17677669
        %v1380 = vmul.f32 %v786, 0.17677669
        %v1381 = vmul.f32 %v791, 0.17677669
        %v1382 = vmul.f32 %v796, 0.17677669
        %v1383 = vmul.f32 %v801, 0.17677669
        %v1384 = vmul.f32 %v806, 0.17677669
        %v1385 = vmul.f32 %v811, 0.17677669
        %v1386 = vmul.f32 %v816, 0.17677669
        %v1387 = vmul.f32 %v821, 0.17677669
        %v1388 = vmul.f32 %v826, 0.17677669
        %v1389 = vmul.f32 %v831, 0.17677669
        %v1390 = vmul.f32 %v836, 0.17677669
        %v1391 = vmul.f32 %v841, 0.17677669
        %v1392 = vmul.f32 %v846, 0.17677669
        %v1393 = vmul.f32 %v851, 0.17677669
        %v1394 = vmul.f32 %v856, 0.17677669
        %v1395 = vmul.f32 %v861, 0.17677669
        %v1396 = vmul.f32 %v866, 0.17677669
        %vm1397 = vcmask 261120
        %v1399 = vsel %vm1397, %v1365, 0
        %v1402 = vsel %vm1397, %v1366, 0
        %v1405 = vsel %vm1397, %v1367, 0
        %v1408 = vsel %vm1397, %v1368, 0
        %v1411 = vsel %vm1397, %v1369, 0
        %v1414 = vsel %vm1397, %v1370, 0
        %v1417 = vsel %vm1397, %v1371, 0
        %v1420 = vsel %vm1397, %v1372, 0
        %v1423 = vsel %vm1397, %v959, 0
        %v1426 = vsel %vm1397, %v964, 0
        %v1429 = vsel %vm1397, %v969, 0
        %v1432 = vsel %vm1397, %v974, 0
        %v1435 = vsel %vm1397, %v979, 0
        %v1438 = vsel %vm1397, %v984, 0
        %v1441 = vsel %vm1397, %v989, 0
        %v1444 = vsel %vm1397, %v994, 0
        %1446 = vmatprep.subr.mxu0 0.0
        %1447 = vmatpush1.xpose.msra.mxu0 0.0
        %1448 = vmatprep.subr.mxu0 0.0
        %1449 = vmatpush1.xpose.msra.mxu0 0.0
        %1450 = vmatprep.subr.mxu0 0.0
        %1451 = vmatpush1.xpose.msra.mxu0 0.0
        %1452 = vmatprep.subr.mxu0 0.0
        %1453 = vmatpush1.xpose.msra.mxu0 0.0
        %1454 = vmatprep.subr.mxu0 0.0
        %1455 = vmatpush1.xpose.msra.mxu0 0.0
        %1456 = vmatprep.subr.mxu0 0.0
        %1457 = vmatpush1.xpose.msra.mxu0 0.0
        %1458 = vmatprep.subr.mxu0 0.0
        %1459 = vmatpush1.xpose.msra.mxu0 0.0
        %1460 = vmatprep.subr.mxu0 0.0
        %1461 = vmatpush1.xpose.msra.mxu0 0.0
        %1462 = vmatprep.subr.mxu0 0.0
        %1463 = vmatpush1.xpose.msra.mxu0 %v1444
        %1464 = vmatprep.subr.mxu0 0.0
        %1465 = vmatpush1.xpose.msra.mxu0 %v1441
        %1466 = vmatprep.subr.mxu0 0.0
        %1467 = vmatpush1.xpose.msra.mxu0 %v1438
        %1468 = vmatprep.subr.mxu0 0.0
        %1469 = vmatpush1.xpose.msra.mxu0 %v1435
        %1470 = vmatprep.subr.mxu0 0.0
        %1471 = vmatpush1.xpose.msra.mxu0 %v1432
        %1472 = vmatprep.subr.mxu0 0.0
        %1473 = vmatpush1.xpose.msra.mxu0 %v1429
        %1474 = vmatprep.subr.mxu0 0.0
        %1475 = vmatpush1.xpose.msra.mxu0 %v1426
        %1476 = vmatprep.subr.mxu0 0.0
        %1477 = vmatpush1.xpose.msra.mxu0 %v1423
        %1478 = vmatprep.subr.mxu0 0.0
        %1479 = vmatpush2.xpose.msra.mxu0 0.0
        %1480 = vmatprep.subr.mxu0 0.0
        %1481 = vmatpush2.xpose.msra.mxu0 0.0
        %1482 = vmatprep.subr.mxu0 0.0
        %1483 = vmatpush2.xpose.msra.mxu0 0.0
        %1484 = vmatprep.subr.mxu0 0.0
        %1485 = vmatpush2.xpose.msra.mxu0 0.0
        %1486 = vmatprep.subr.mxu0 0.0
        %1487 = vmatpush2.xpose.msra.mxu0 0.0
        %1488 = vmatprep.subr.mxu0 0.0
        %1489 = vmatpush2.xpose.msra.mxu0 0.0
        %1490 = vmatprep.subr.mxu0 0.0
        %1491 = vmatpush2.xpose.msra.mxu0 0.0
        %1492 = vmatprep.subr.mxu0 0.0
        %1493 = vmatpush2.xpose.msra.mxu0 0.0
        %1494 = vmatprep.subr.mxu0 0.0
        %1495 = vmatpush2.xpose.msra.mxu0 0.0
        %1496 = vmatprep.subr.mxu0 0.0
        %1497 = vmatpush2.xpose.msra.mxu0 0.0
        %1498 = vmatprep.subr.mxu0 0.0
        %1499 = vmatpush2.xpose.msra.mxu0 0.0
        %1500 = vmatprep.subr.mxu0 0.0
        %1501 = vmatpush2.xpose.msra.mxu0 0.0
        %1502 = vmatprep.subr.mxu0 0.0
        %1503 = vmatpush2.xpose.msra.mxu0 0.0
        %1504 = vmatprep.subr.mxu0 0.0
        %1505 = vmatpush2.xpose.msra.mxu0 0.0
        %1506 = vmatprep.subr.mxu0 0.0
        %1507 = vmatpush2.xpose.msra.mxu0 0.0
        %1508 = vmatprep.subr.mxu0 0.0
        %1509 = vmatpush2.xpose.msra.mxu0 0.0
        %1510 = vmatprep.mubr.f32.mxu0 0.0
        %1511 = vmatmul.mubr.f32.gmra.mxu0 %v1399
        %v1512 = vpop.f32.mrf.mxu0
        %v1513 = vadd.f32 0.0, %v1512
        %v1514 = vpop.f32.mrf.mxu0
        %1515 = vmatprep.mubr.f32.mxu0 0.0
        %1516 = vmatmul.mubr.f32.gmra.mxu0 %v1402
        %v1517 = vpop.f32.mrf.mxu0
        %v1518 = vadd.f32 0.0, %v1517
        %v1519 = vpop.f32.mrf.mxu0
        %1520 = vmatprep.mubr.f32.mxu0 0.0
        %1521 = vmatmul.mubr.f32.gmra.mxu0 %v1405
        %v1522 = vpop.f32.mrf.mxu0
        %v1523 = vadd.f32 0.0, %v1522
        %v1524 = vpop.f32.mrf.mxu0
        %1525 = vmatprep.mubr.f32.mxu0 0.0
        %1526 = vmatmul.mubr.f32.gmra.mxu0 %v1408
        %v1527 = vpop.f32.mrf.mxu0
        %v1528 = vadd.f32 0.0, %v1527
        %v1529 = vpop.f32.mrf.mxu0
        %1530 = vmatprep.mubr.f32.mxu0 0.0
        %1531 = vmatmul.mubr.f32.gmra.mxu0 %v1411
        %v1532 = vpop.f32.mrf.mxu0
        %v1533 = vadd.f32 0.0, %v1532
        %v1534 = vpop.f32.mrf.mxu0
        %1535 = vmatprep.mubr.f32.mxu0 0.0
        %1536 = vmatmul.mubr.f32.gmra.mxu0 %v1414
        %v1537 = vpop.f32.mrf.mxu0
        %v1538 = vadd.f32 0.0, %v1537
        %v1539 = vpop.f32.mrf.mxu0
        %1540 = vmatprep.mubr.f32.mxu0 0.0
        %1541 = vmatmul.mubr.f32.gmra.mxu0 %v1417
        %v1542 = vpop.f32.mrf.mxu0
        %v1543 = vadd.f32 0.0, %v1542
        %v1544 = vpop.f32.mrf.mxu0
        %1545 = vmatprep.mubr.f32.mxu0 0.0
        %1546 = vmatmul.mubr.f32.gmra.mxu0 %v1420
        %v1547 = vpop.f32.mrf.mxu0
        %v1548 = vadd.f32 0.0, %v1547
        %v1549 = vpop.f32.mrf.mxu0
        %1550 = vdwg.mxu0
        %v1552 = vsel %vm1397, %v1373, 0
        %v1555 = vsel %vm1397, %v1374, 0
        %v1558 = vsel %vm1397, %v1375, 0
        %v1561 = vsel %vm1397, %v1376, 0
        %v1564 = vsel %vm1397, %v1377, 0
        %v1567 = vsel %vm1397, %v1378, 0
        %v1570 = vsel %vm1397, %v1379, 0
        %v1573 = vsel %vm1397, %v1380, 0
        %v1576 = vsel %vm1397, %v999, 0
        %v1579 = vsel %vm1397, %v1004, 0
        %v1582 = vsel %vm1397, %v1009, 0
        %v1585 = vsel %vm1397, %v1014, 0
        %v1588 = vsel %vm1397, %v1019, 0
        %v1591 = vsel %vm1397, %v1024, 0
        %v1594 = vsel %vm1397, %v1029, 0
        %v1597 = vsel %vm1397, %v1034, 0
        %1599 = vmatprep.subr.mxu0 0.0
        %1600 = vmatpush1.xpose.msra.mxu0 0.0
        %1601 = vmatprep.subr.mxu0 0.0
        %1602 = vmatpush1.xpose.msra.mxu0 0.0
        %1603 = vmatprep.subr.mxu0 0.0
        %1604 = vmatpush1.xpose.msra.mxu0 0.0
        %1605 = vmatprep.subr.mxu0 0.0
        %1606 = vmatpush1.xpose.msra.mxu0 0.0
        %1607 = vmatprep.subr.mxu0 0.0
        %1608 = vmatpush1.xpose.msra.mxu0 0.0
        %1609 = vmatprep.subr.mxu0 0.0
        %1610 = vmatpush1.xpose.msra.mxu0 0.0
        %1611 = vmatprep.subr.mxu0 0.0
        %1612 = vmatpush1.xpose.msra.mxu0 0.0
        %1613 = vmatprep.subr.mxu0 0.0
        %1614 = vmatpush1.xpose.msra.mxu0 0.0
        %1615 = vmatprep.subr.mxu0 0.0
        %1616 = vmatpush1.xpose.msra.mxu0 %v1597
        %1617 = vmatprep.subr.mxu0 0.0
        %1618 = vmatpush1.xpose.msra.mxu0 %v1594
        %1619 = vmatprep.subr.mxu0 0.0
        %1620 = vmatpush1.xpose.msra.mxu0 %v1591
        %1621 = vmatprep.subr.mxu0 0.0
        %1622 = vmatpush1.xpose.msra.mxu0 %v1588
        %1623 = vmatprep.subr.mxu0 0.0
        %1624 = vmatpush1.xpose.msra.mxu0 %v1585
        %1625 = vmatprep.subr.mxu0 0.0
        %1626 = vmatpush1.xpose.msra.mxu0 %v1582
        %1627 = vmatprep.subr.mxu0 0.0
        %1628 = vmatpush1.xpose.msra.mxu0 %v1579
        %1629 = vmatprep.subr.mxu0 0.0
        %1630 = vmatpush1.xpose.msra.mxu0 %v1576
        %1631 = vmatprep.subr.mxu0 0.0
        %1632 = vmatpush2.xpose.msra.mxu0 0.0
        %1633 = vmatprep.subr.mxu0 0.0
        %1634 = vmatpush2.xpose.msra.mxu0 0.0
        %1635 = vmatprep.subr.mxu0 0.0
        %1636 = vmatpush2.xpose.msra.mxu0 0.0
        %1637 = vmatprep.subr.mxu0 0.0
        %1638 = vmatpush2.xpose.msra.mxu0 0.0
        %1639 = vmatprep.subr.mxu0 0.0
        %1640 = vmatpush2.xpose.msra.mxu0 0.0
        %1641 = vmatprep.subr.mxu0 0.0
        %1642 = vmatpush2.xpose.msra.mxu0 0.0
        %1643 = vmatprep.subr.mxu0 0.0
        %1644 = vmatpush2.xpose.msra.mxu0 0.0
        %1645 = vmatprep.subr.mxu0 0.0
        %1646 = vmatpush2.xpose.msra.mxu0 0.0
        %1647 = vmatprep.subr.mxu0 0.0
        %1648 = vmatpush2.xpose.msra.mxu0 0.0
        %1649 = vmatprep.subr.mxu0 0.0
        %1650 = vmatpush2.xpose.msra.mxu0 0.0
        %1651 = vmatprep.subr.mxu0 0.0
        %1652 = vmatpush2.xpose.msra.mxu0 0.0
        %1653 = vmatprep.subr.mxu0 0.0
        %1654 = vmatpush2.xpose.msra.mxu0 0.0
        %1655 = vmatprep.subr.mxu0 0.0
        %1656 = vmatpush2.xpose.msra.mxu0 0.0
        %1657 = vmatprep.subr.mxu0 0.0
        %1658 = vmatpush2.xpose.msra.mxu0 0.0
        %1659 = vmatprep.subr.mxu0 0.0
        %1660 = vmatpush2.xpose.msra.mxu0 0.0
        %1661 = vmatprep.subr.mxu0 0.0
        %1662 = vmatpush2.xpose.msra.mxu0 0.0
        %1663 = vmatprep.mubr.f32.mxu0 0.0
        %1664 = vmatmul.mubr.f32.gmra.mxu0 %v1552
        %v1665 = vpop.f32.mrf.mxu0
        %v1666 = vadd.f32 0.0, %v1665
        %v1667 = vpop.f32.mrf.mxu0
        %1668 = vmatprep.mubr.f32.mxu0 0.0
        %1669 = vmatmul.mubr.f32.gmra.mxu0 %v1555
        %v1670 = vpop.f32.mrf.mxu0
        %v1671 = vadd.f32 0.0, %v1670
        %v1672 = vpop.f32.mrf.mxu0
        %1673 = vmatprep.mubr.f32.mxu0 0.0
        %1674 = vmatmul.mubr.f32.gmra.mxu0 %v1558
        %v1675 = vpop.f32.mrf.mxu0
        %v1676 = vadd.f32 0.0, %v1675
        %v1677 = vpop.f32.mrf.mxu0
        %1678 = vmatprep.mubr.f32.mxu0 0.0
        %1679 = vmatmul.mubr.f32.gmra.mxu0 %v1561
        %v1680 = vpop.f32.mrf.mxu0
        %v1681 = vadd.f32 0.0, %v1680
        %v1682 = vpop.f32.mrf.mxu0
        %1683 = vmatprep.mubr.f32.mxu0 0.0
        %1684 = vmatmul.mubr.f32.gmra.mxu0 %v1564
        %v1685 = vpop.f32.mrf.mxu0
        %v1686 = vadd.f32 0.0, %v1685
        %v1687 = vpop.f32.mrf.mxu0
        %1688 = vmatprep.mubr.f32.mxu0 0.0
        %1689 = vmatmul.mubr.f32.gmra.mxu0 %v1567
        %v1690 = vpop.f32.mrf.mxu0
        %v1691 = vadd.f32 0.0, %v1690
        %v1692 = vpop.f32.mrf.mxu0
        %1693 = vmatprep.mubr.f32.mxu0 0.0
        %1694 = vmatmul.mubr.f32.gmra.mxu0 %v1570
        %v1695 = vpop.f32.mrf.mxu0
        %v1696 = vadd.f32 0.0, %v1695
        %v1697 = vpop.f32.mrf.mxu0
        %1698 = vmatprep.mubr.f32.mxu0 0.0
        %1699 = vmatmul.mubr.f32.gmra.mxu0 %v1573
        %v1700 = vpop.f32.mrf.mxu0
        %v1701 = vadd.f32 0.0, %v1700
        %v1702 = vpop.f32.mrf.mxu0
        %1703 = vdwg.mxu0
        %v1705 = vsel %vm1397, %v1381, 0
        %v1708 = vsel %vm1397, %v1382, 0
        %v1711 = vsel %vm1397, %v1383, 0
        %v1714 = vsel %vm1397, %v1384, 0
        %v1717 = vsel %vm1397, %v1385, 0
        %v1720 = vsel %vm1397, %v1386, 0
        %v1723 = vsel %vm1397, %v1387, 0
        %v1726 = vsel %vm1397, %v1388, 0
        %v1729 = vsel %vm1397, %v1039, 0
        %v1732 = vsel %vm1397, %v1044, 0
        %v1735 = vsel %vm1397, %v1049, 0
        %v1738 = vsel %vm1397, %v1054, 0
        %v1741 = vsel %vm1397, %v1059, 0
        %v1744 = vsel %vm1397, %v1064, 0
        %v1747 = vsel %vm1397, %v1069, 0
        %v1750 = vsel %vm1397, %v1074, 0
        %1752 = vmatprep.subr.mxu0 0.0
        %1753 = vmatpush1.xpose.msra.mxu0 0.0
        %1754 = vmatprep.subr.mxu0 0.0
        %1755 = vmatpush1.xpose.msra.mxu0 0.0
        %1756 = vmatprep.subr.mxu0 0.0
        %1757 = vmatpush1.xpose.msra.mxu0 0.0
        %1758 = vmatprep.subr.mxu0 0.0
        %1759 = vmatpush1.xpose.msra.mxu0 0.0
        %1760 = vmatprep.subr.mxu0 0.0
        %1761 = vmatpush1.xpose.msra.mxu0 0.0
        %1762 = vmatprep.subr.mxu0 0.0
        %1763 = vmatpush1.xpose.msra.mxu0 0.0
        %1764 = vmatprep.subr.mxu0 0.0
        %1765 = vmatpush1.xpose.msra.mxu0 0.0
        %1766 = vmatprep.subr.mxu0 0.0
        %1767 = vmatpush1.xpose.msra.mxu0 0.0
        %1768 = vmatprep.subr.mxu0 0.0
        %1769 = vmatpush1.xpose.msra.mxu0 %v1750
        %1770 = vmatprep.subr.mxu0 0.0
        %1771 = vmatpush1.xpose.msra.mxu0 %v1747
        %1772 = vmatprep.subr.mxu0 0.0
        %1773 = vmatpush1.xpose.msra.mxu0 %v1744
        %1774 = vmatprep.subr.mxu0 0.0
        %1775 = vmatpush1.xpose.msra.mxu0 %v1741
        %1776 = vmatprep.subr.mxu0 0.0
        %1777 = vmatpush1.xpose.msra.mxu0 %v1738
        %1778 = vmatprep.subr.mxu0 0.0
        %1779 = vmatpush1.xpose.msra.mxu0 %v1735
        %1780 = vmatprep.subr.mxu0 0.0
        %1781 = vmatpush1.xpose.msra.mxu0 %v1732
        %1782 = vmatprep.subr.mxu0 0.0
        %1783 = vmatpush1.xpose.msra.mxu0 %v1729
        %1784 = vmatprep.subr.mxu0 0.0
        %1785 = vmatpush2.xpose.msra.mxu0 0.0
        %1786 = vmatprep.subr.mxu0 0.0
        %1787 = vmatpush2.xpose.msra.mxu0 0.0
        %1788 = vmatprep.subr.mxu0 0.0
        %1789 = vmatpush2.xpose.msra.mxu0 0.0
        %1790 = vmatprep.subr.mxu0 0.0
        %1791 = vmatpush2.xpose.msra.mxu0 0.0
        %1792 = vmatprep.subr.mxu0 0.0
        %1793 = vmatpush2.xpose.msra.mxu0 0.0
        %1794 = vmatprep.subr.mxu0 0.0
        %1795 = vmatpush2.xpose.msra.mxu0 0.0
        %1796 = vmatprep.subr.mxu0 0.0
        %1797 = vmatpush2.xpose.msra.mxu0 0.0
        %1798 = vmatprep.subr.mxu0 0.0
        %1799 = vmatpush2.xpose.msra.mxu0 0.0
        %1800 = vmatprep.subr.mxu0 0.0
        %1801 = vmatpush2.xpose.msra.mxu0 0.0
        %1802 = vmatprep.subr.mxu0 0.0
        %1803 = vmatpush2.xpose.msra.mxu0 0.0
        %1804 = vmatprep.subr.mxu0 0.0
        %1805 = vmatpush2.xpose.msra.mxu0 0.0
        %1806 = vmatprep.subr.mxu0 0.0
        %1807 = vmatpush2.xpose.msra.mxu0 0.0
        %1808 = vmatprep.subr.mxu0 0.0
        %1809 = vmatpush2.xpose.msra.mxu0 0.0
        %1810 = vmatprep.subr.mxu0 0.0
        %1811 = vmatpush2.xpose.msra.mxu0 0.0
        %1812 = vmatprep.subr.mxu0 0.0
        %1813 = vmatpush2.xpose.msra.mxu0 0.0
        %1814 = vmatprep.subr.mxu0 0.0
        %1815 = vmatpush2.xpose.msra.mxu0 0.0
        %1816 = vmatprep.mubr.f32.mxu0 0.0
        %1817 = vmatmul.mubr.f32.gmra.mxu0 %v1705
        %v1818 = vpop.f32.mrf.mxu0
        %v1819 = vadd.f32 0.0, %v1818
        %v1820 = vpop.f32.mrf.mxu0
        %1821 = vmatprep.mubr.f32.mxu0 0.0
        %1822 = vmatmul.mubr.f32.gmra.mxu0 %v1708
        %v1823 = vpop.f32.mrf.mxu0
        %v1824 = vadd.f32 0.0, %v1823
        %v1825 = vpop.f32.mrf.mxu0
        %1826 = vmatprep.mubr.f32.mxu0 0.0
        %1827 = vmatmul.mubr.f32.gmra.mxu0 %v1711
        %v1828 = vpop.f32.mrf.mxu0
        %v1829 = vadd.f32 0.0, %v1828
        %v1830 = vpop.f32.mrf.mxu0
        %1831 = vmatprep.mubr.f32.mxu0 0.0
        %1832 = vmatmul.mubr.f32.gmra.mxu0 %v1714
        %v1833 = vpop.f32.mrf.mxu0
        %v1834 = vadd.f32 0.0, %v1833
        %v1835 = vpop.f32.mrf.mxu0
        %1836 = vmatprep.mubr.f32.mxu0 0.0
        %1837 = vmatmul.mubr.f32.gmra.mxu0 %v1717
        %v1838 = vpop.f32.mrf.mxu0
        %v1839 = vadd.f32 0.0, %v1838
        %v1840 = vpop.f32.mrf.mxu0
        %1841 = vmatprep.mubr.f32.mxu0 0.0
        %1842 = vmatmul.mubr.f32.gmra.mxu0 %v1720
        %v1843 = vpop.f32.mrf.mxu0
        %v1844 = vadd.f32 0.0, %v1843
        %v1845 = vpop.f32.mrf.mxu0
        %1846 = vmatprep.mubr.f32.mxu0 0.0
        %1847 = vmatmul.mubr.f32.gmra.mxu0 %v1723
        %v1848 = vpop.f32.mrf.mxu0
        %v1849 = vadd.f32 0.0, %v1848
        %v1850 = vpop.f32.mrf.mxu0
        %1851 = vmatprep.mubr.f32.mxu0 0.0
        %1852 = vmatmul.mubr.f32.gmra.mxu0 %v1726
        %v1853 = vpop.f32.mrf.mxu0
        %v1854 = vadd.f32 0.0, %v1853
        %v1855 = vpop.f32.mrf.mxu0
        %1856 = vdwg.mxu0
        %v1858 = vsel %vm1397, %v1389, 0
        %v1861 = vsel %vm1397, %v1390, 0
        %v1864 = vsel %vm1397, %v1391, 0
        %v1867 = vsel %vm1397, %v1392, 0
        %v1870 = vsel %vm1397, %v1393, 0
        %v1873 = vsel %vm1397, %v1394, 0
        %v1876 = vsel %vm1397, %v1395, 0
        %v1879 = vsel %vm1397, %v1396, 0
        %v1882 = vsel %vm1397, %v1079, 0
        %v1885 = vsel %vm1397, %v1084, 0
        %v1888 = vsel %vm1397, %v1089, 0
        %v1891 = vsel %vm1397, %v1094, 0
        %v1894 = vsel %vm1397, %v1099, 0
        %v1897 = vsel %vm1397, %v1104, 0
        %v1900 = vsel %vm1397, %v1109, 0
        %v1903 = vsel %vm1397, %v1114, 0
        %1905 = vmatprep.subr.mxu0 0.0
        %1906 = vmatpush1.xpose.msra.mxu0 0.0
        %1907 = vmatprep.subr.mxu0 0.0
        %1908 = vmatpush1.xpose.msra.mxu0 0.0
        %1909 = vmatprep.subr.mxu0 0.0
        %1910 = vmatpush1.xpose.msra.mxu0 0.0
        %1911 = vmatprep.subr.mxu0 0.0
        %1912 = vmatpush1.xpose.msra.mxu0 0.0
        %1913 = vmatprep.subr.mxu0 0.0
        %1914 = vmatpush1.xpose.msra.mxu0 0.0
        %1915 = vmatprep.subr.mxu0 0.0
        %1916 = vmatpush1.xpose.msra.mxu0 0.0
        %1917 = vmatprep.subr.mxu0 0.0
        %1918 = vmatpush1.xpose.msra.mxu0 0.0
        %1919 = vmatprep.subr.mxu0 0.0
        %1920 = vmatpush1.xpose.msra.mxu0 0.0
        %1921 = vmatprep.subr.mxu0 0.0
        %1922 = vmatpush1.xpose.msra.mxu0 %v1903
        %1923 = vmatprep.subr.mxu0 0.0
        %1924 = vmatpush1.xpose.msra.mxu0 %v1900
        %1925 = vmatprep.subr.mxu0 0.0
        %1926 = vmatpush1.xpose.msra.mxu0 %v1897
        %1927 = vmatprep.subr.mxu0 0.0
        %1928 = vmatpush1.xpose.msra.mxu0 %v1894
        %1929 = vmatprep.subr.mxu0 0.0
        %1930 = vmatpush1.xpose.msra.mxu0 %v1891
        %1931 = vmatprep.subr.mxu0 0.0
        %1932 = vmatpush1.xpose.msra.mxu0 %v1888
        %1933 = vmatprep.subr.mxu0 0.0
        %1934 = vmatpush1.xpose.msra.mxu0 %v1885
        %1935 = vmatprep.subr.mxu0 0.0
        %1936 = vmatpush1.xpose.msra.mxu0 %v1882
        %1937 = vmatprep.subr.mxu0 0.0
        %1938 = vmatpush2.xpose.msra.mxu0 0.0
        %1939 = vmatprep.subr.mxu0 0.0
        %1940 = vmatpush2.xpose.msra.mxu0 0.0
        %1941 = vmatprep.subr.mxu0 0.0
        %1942 = vmatpush2.xpose.msra.mxu0 0.0
        %1943 = vmatprep.subr.mxu0 0.0
        %1944 = vmatpush2.xpose.msra.mxu0 0.0
        %1945 = vmatprep.subr.mxu0 0.0
        %1946 = vmatpush2.xpose.msra.mxu0 0.0
        %1947 = vmatprep.subr.mxu0 0.0
        %1948 = vmatpush2.xpose.msra.mxu0 0.0
        %1949 = vmatprep.subr.mxu0 0.0
        %1950 = vmatpush2.xpose.msra.mxu0 0.0
        %1951 = vmatprep.subr.mxu0 0.0
        %1952 = vmatpush2.xpose.msra.mxu0 0.0
        %1953 = vmatprep.subr.mxu0 0.0
        %1954 = vmatpush2.xpose.msra.mxu0 0.0
        %1955 = vmatprep.subr.mxu0 0.0
        %1956 = vmatpush2.xpose.msra.mxu0 0.0
        %1957 = vmatprep.subr.mxu0 0.0
        %1958 = vmatpush2.xpose.msra.mxu0 0.0
        %1959 = vmatprep.subr.mxu0 0.0
        %1960 = vmatpush2.xpose.msra.mxu0 0.0
        %1961 = vmatprep.subr.mxu0 0.0
        %1962 = vmatpush2.xpose.msra.mxu0 0.0
        %1963 = vmatprep.subr.mxu0 0.0
        %1964 = vmatpush2.xpose.msra.mxu0 0.0
        %1965 = vmatprep.subr.mxu0 0.0
        %1966 = vmatpush2.xpose.msra.mxu0 0.0
        %1967 = vmatprep.subr.mxu0 0.0
        %1968 = vmatpush2.xpose.msra.mxu0 0.0
        %1969 = vmatprep.mubr.f32.mxu0 0.0
        %1970 = vmatmul.mubr.f32.gmra.mxu0 %v1858
        %v1971 = vpop.f32.mrf.mxu0
        %v1972 = vadd.f32 0.0, %v1971
        %v1973 = vpop.f32.mrf.mxu0
        %1974 = vmatprep.mubr.f32.mxu0 0.0
        %1975 = vmatmul.mubr.f32.gmra.mxu0 %v1861
        %v1976 = vpop.f32.mrf.mxu0
        %v1977 = vadd.f32 0.0, %v1976
        %v1978 = vpop.f32.mrf.mxu0
        %1979 = vmatprep.mubr.f32.mxu0 0.0
        %1980 = vmatmul.mubr.f32.gmra.mxu0 %v1864
        %v1981 = vpop.f32.mrf.mxu0
        %v1982 = vadd.f32 0.0, %v1981
        %v1983 = vpop.f32.mrf.mxu0
        %1984 = vmatprep.mubr.f32.mxu0 0.0
        %1985 = vmatmul.mubr.f32.gmra.mxu0 %v1867
        %v1986 = vpop.f32.mrf.mxu0
        %v1987 = vadd.f32 0.0, %v1986
        %v1988 = vpop.f32.mrf.mxu0
        %1989 = vmatprep.mubr.f32.mxu0 0.0
        %1990 = vmatmul.mubr.f32.gmra.mxu0 %v1870
        %v1991 = vpop.f32.mrf.mxu0
        %v1992 = vadd.f32 0.0, %v1991
        %v1993 = vpop.f32.mrf.mxu0
        %1994 = vmatprep.mubr.f32.mxu0 0.0
        %1995 = vmatmul.mubr.f32.gmra.mxu0 %v1873
        %v1996 = vpop.f32.mrf.mxu0
        %v1997 = vadd.f32 0.0, %v1996
        %v1998 = vpop.f32.mrf.mxu0
        %1999 = vmatprep.mubr.f32.mxu0 0.0
        %2000 = vmatmul.mubr.f32.gmra.mxu0 %v1876
        %v2001 = vpop.f32.mrf.mxu0
        %v2002 = vadd.f32 0.0, %v2001
        %v2003 = vpop.f32.mrf.mxu0
        %2004 = vmatprep.mubr.f32.mxu0 0.0
        %2005 = vmatmul.mubr.f32.gmra.mxu0 %v1879
        %v2006 = vpop.f32.mrf.mxu0
        %v2007 = vadd.f32 0.0, %v2006
        %v2008 = vpop.f32.mrf.mxu0
        %2009 = vdwg.mxu0
        %vm2010 = vcmask 523264
        %v2011 = vsel %vm2010, %v1513, -inf
        %2012 = vmax.xlane.f32.xlu0 %v2011
        %v2013 = vpop.xlane.xlu0 %2012
        %v2014 = vsel %vm2010, %v1518, -inf
        %2015 = vmax.xlane.f32.xlu0 %v2014
        %v2016 = vpop.xlane.xlu0 %2015
        %v2017 = vsel %vm2010, %v1523, -inf
        %2018 = vmax.xlane.f32.xlu0 %v2017
        %v2019 = vpop.xlane.xlu0 %2018
        %v2020 = vsel %vm2010, %v1528, -inf
        %2021 = vmax.xlane.f32.xlu0 %v2020
        %v2022 = vpop.xlane.xlu0 %2021
        %v2023 = vsel %vm2010, %v1533, -inf
        %2024 = vmax.xlane.f32.xlu0 %v2023
        %v2025 = vpop.xlane.xlu0 %2024
        %v2026 = vsel %vm2010, %v1538, -inf
        %2027 = vmax.xlane.f32.xlu0 %v2026
        %v2028 = vpop.xlane.xlu0 %2027
        %v2029 = vsel %vm2010, %v1543, -inf
        %2030 = vmax.xlane.f32.xlu0 %v2029
        %v2031 = vpop.xlane.xlu0 %2030
        %v2032 = vsel %vm2010, %v1548, -inf
        %2033 = vmax.xlane.f32.xlu0 %v2032
        %v2034 = vpop.xlane.xlu0 %2033
        %v2035 = vsel %vm2010, %v1666, -inf
        %2036 = vmax.xlane.f32.xlu0 %v2035
        %v2037 = vpop.xlane.xlu0 %2036
        %v2038 = vsel %vm2010, %v1671, -inf
        %2039 = vmax.xlane.f32.xlu0 %v2038
        %v2040 = vpop.xlane.xlu0 %2039
        %v2041 = vsel %vm2010, %v1676, -inf
        %2042 = vmax.xlane.f32.xlu0 %v2041
        %v2043 = vpop.xlane.xlu0 %2042
        %v2044 = vsel %vm2010, %v1681, -inf
        %2045 = vmax.xlane.f32.xlu0 %v2044
        %v2046 = vpop.xlane.xlu0 %2045
        %v2047 = vsel %vm2010, %v1686, -inf
        %2048 = vmax.xlane.f32.xlu0 %v2047
        %v2049 = vpop.xlane.xlu0 %2048
        %v2050 = vsel %vm2010, %v1691, -inf
        %2051 = vmax.xlane.f32.xlu0 %v2050
        %v2052 = vpop.xlane.xlu0 %2051
        %v2053 = vsel %vm2010, %v1696, -inf
        %2054 = vmax.xlane.f32.xlu0 %v2053
        %v2055 = vpop.xlane.xlu0 %2054
        %v2056 = vsel %vm2010, %v1701, -inf
        %2057 = vmax.xlane.f32.xlu0 %v2056
        %v2058 = vpop.xlane.xlu0 %2057
        %v2059 = vsel %vm2010, %v1819, -inf
        %2060 = vmax.xlane.f32.xlu0 %v2059
        %v2061 = vpop.xlane.xlu0 %2060
        %v2062 = vsel %vm2010, %v1824, -inf
        %2063 = vmax.xlane.f32.xlu0 %v2062
        %v2064 = vpop.xlane.xlu0 %2063
        %v2065 = vsel %vm2010, %v1829, -inf
        %2066 = vmax.xlane.f32.xlu0 %v2065
        %v2067 = vpop.xlane.xlu0 %2066
        %v2068 = vsel %vm2010, %v1834, -inf
        %2069 = vmax.xlane.f32.xlu0 %v2068
        %v2070 = vpop.xlane.xlu0 %2069
        %v2071 = vsel %vm2010, %v1839, -inf
        %2072 = vmax.xlane.f32.xlu0 %v2071
        %v2073 = vpop.xlane.xlu0 %2072
        %v2074 = vsel %vm2010, %v1844, -inf
        %2075 = vmax.xlane.f32.xlu0 %v2074
        %v2076 = vpop.xlane.xlu0 %2075
        %v2077 = vsel %vm2010, %v1849, -inf
        %2078 = vmax.xlane.f32.xlu0 %v2077
        %v2079 = vpop.xlane.xlu0 %2078
        %v2080 = vsel %vm2010, %v1854, -inf
        %2081 = vmax.xlane.f32.xlu0 %v2080
        %v2082 = vpop.xlane.xlu0 %2081
        %v2083 = vsel %vm2010, %v1972, -inf
        %2084 = vmax.xlane.f32.xlu0 %v2083
        %v2085 = vpop.xlane.xlu0 %2084
        %v2086 = vsel %vm2010, %v1977, -inf
        %2087 = vmax.xlane.f32.xlu0 %v2086
        %v2088 = vpop.xlane.xlu0 %2087
        %v2089 = vsel %vm2010, %v1982, -inf
        %2090 = vmax.xlane.f32.xlu0 %v2089
        %v2091 = vpop.xlane.xlu0 %2090
        %v2092 = vsel %vm2010, %v1987, -inf
        %2093 = vmax.xlane.f32.xlu0 %v2092
        %v2094 = vpop.xlane.xlu0 %2093
        %v2095 = vsel %vm2010, %v1992, -inf
        %2096 = vmax.xlane.f32.xlu0 %v2095
        %v2097 = vpop.xlane.xlu0 %2096
        %v2098 = vsel %vm2010, %v1997, -inf
        %2099 = vmax.xlane.f32.xlu0 %v2098
        %v2100 = vpop.xlane.xlu0 %2099
        %v2101 = vsel %vm2010, %v2002, -inf
        %2102 = vmax.xlane.f32.xlu0 %v2101
        %v2103 = vpop.xlane.xlu0 %2102
        %v2104 = vsel %vm2010, %v2007, -inf
        %2105 = vmax.xlane.f32.xlu0 %v2104
        %v2106 = vpop.xlane.xlu0 %2105
        %v2107 = vsub.f32 %v1513, %v2013
        %v2108 = vsub.f32 %v1518, %v2016
        %v2109 = vsub.f32 %v1523, %v2019
        %v2110 = vsub.f32 %v1528, %v2022
        %v2111 = vsub.f32 %v1533, %v2025
        %v2112 = vsub.f32 %v1538, %v2028
        %v2113 = vsub.f32 %v1543, %v2031
        %v2114 = vsub.f32 %v1548, %v2034
        %v2115 = vsub.f32 %v1666, %v2037
        %v2116 = vsub.f32 %v1671, %v2040
        %v2117 = vsub.f32 %v1676, %v2043
        %v2118 = vsub.f32 %v1681, %v2046
        %v2119 = vsub.f32 %v1686, %v2049
        %v2120 = vsub.f32 %v1691, %v2052
        %v2121 = vsub.f32 %v1696, %v2055
        %v2122 = vsub.f32 %v1701, %v2058
        %v2123 = vsub.f32 %v1819, %v2061
        %v2124 = vsub.f32 %v1824, %v2064
        %v2125 = vsub.f32 %v1829, %v2067
        %v2126 = vsub.f32 %v1834, %v2070
        %v2127 = vsub.f32 %v1839, %v2073
        %v2128 = vsub.f32 %v1844, %v2076
        %v2129 = vsub.f32 %v1849, %v2079
        %v2130 = vsub.f32 %v1854, %v2082
        %v2131 = vsub.f32 %v1972, %v2085
        %v2132 = vsub.f32 %v1977, %v2088
        %v2133 = vsub.f32 %v1982, %v2091
        %v2134 = vsub.f32 %v1987, %v2094
        %v2135 = vsub.f32 %v1992, %v2097
        %v2136 = vsub.f32 %v1997, %v2100
        %v2137 = vsub.f32 %v2002, %v2103
        %v2138 = vsub.f32 %v2007, %v2106
        %v2139 = vmul.f32 %v2107, 1.442695
        %v2140 = vpow.pop %v2139
        %v2141 = vmul.f32 %v2108, 1.442695
        %v2142 = vpow.pop %v2141
        %v2143 = vmul.f32 %v2109, 1.442695
        %v2144 = vpow.pop %v2143
        %v2145 = vmul.f32 %v2110, 1.442695
        %v2146 = vpow.pop %v2145
        %v2147 = vmul.f32 %v2111, 1.442695
        %v2148 = vpow.pop %v2147
        %v2149 = vmul.f32 %v2112, 1.442695
        %v2150 = vpow.pop %v2149
        %v2151 = vmul.f32 %v2113, 1.442695
        %v2152 = vpow.pop %v2151
        %v2153 = vmul.f32 %v2114, 1.442695
        %v2154 = vpow.pop %v2153
        %v2155 = vmul.f32 %v2115, 1.442695
        %v2156 = vpow.pop %v2155
        %v2157 = vmul.f32 %v2116, 1.442695
        %v2158 = vpow.pop %v2157
        %v2159 = vmul.f32 %v2117, 1.442695
        %v2160 = vpow.pop %v2159
        %v2161 = vmul.f32 %v2118, 1.442695
        %v2162 = vpow.pop %v2161
        %v2163 = vmul.f32 %v2119, 1.442695
        %v2164 = vpow.pop %v2163
        %v2165 = vmul.f32 %v2120, 1.442695
        %v2166 = vpow.pop %v2165
        %v2167 = vmul.f32 %v2121, 1.442695
        %v2168 = vpow.pop %v2167
        %v2169 = vmul.f32 %v2122, 1.442695
        %v2170 = vpow.pop %v2169
        %v2171 = vmul.f32 %v2123, 1.442695
        %v2172 = vpow.pop %v2171
        %v2173 = vmul.f32 %v2124, 1.442695
        %v2174 = vpow.pop %v2173
        %v2175 = vmul.f32 %v2125, 1.442695
        %v2176 = vpow.pop %v2175
        %v2177 = vmul.f32 %v2126, 1.442695
        %v2178 = vpow.pop %v2177
        %v2179 = vmul.f32 %v2127, 1.442695
        %v2180 = vpow.pop %v2179
        %v2181 = vmul.f32 %v2128, 1.442695
        %v2182 = vpow.pop %v2181
        %v2183 = vmul.f32 %v2129, 1.442695
        %v2184 = vpow.pop %v2183
        %v2185 = vmul.f32 %v2130, 1.442695
        %v2186 = vpow.pop %v2185
        %v2187 = vmul.f32 %v2131, 1.442695
        %v2188 = vpow.pop %v2187
        %v2189 = vmul.f32 %v2132, 1.442695
        %v2190 = vpow.pop %v2189
        %v2191 = vmul.f32 %v2133, 1.442695
        %v2192 = vpow.pop %v2191
        %v2193 = vmul.f32 %v2134, 1.442695
        %v2194 = vpow.pop %v2193
        %v2195 = vmul.f32 %v2135, 1.442695
        %v2196 = vpow.pop %v2195
        %v2197 = vmul.f32 %v2136, 1.442695
        %v2198 = vpow.pop %v2197
        %v2199 = vmul.f32 %v2137, 1.442695
        %v2200 = vpow.pop %v2199
        %v2201 = vmul.f32 %v2138, 1.442695
        %v2202 = vpow.pop %v2201
        %v2203 = vsel %vm2010, %v2140, 0.0
        %2204 = vadd.xlane.f32.xlu0 %v2203
        %v2205 = vpop.xlane.xlu0 %2204
        %v2206 = vsel %vm2010, %v2142, 0.0
        %2207 = vadd.xlane.f32.xlu0 %v2206
        %v2208 = vpop.xlane.xlu0 %2207
        %v2209 = vsel %vm2010, %v2144, 0.0
        %2210 = vadd.xlane.f32.xlu0 %v2209
        %v2211 = vpop.xlane.xlu0 %2210
        %v2212 = vsel %vm2010, %v2146, 0.0
        %2213 = vadd.xlane.f32.xlu0 %v2212
        %v2214 = vpop.xlane.xlu0 %2213
        %v2215 = vsel %vm2010, %v2148, 0.0
        %2216 = vadd.xlane.f32.xlu0 %v2215
        %v2217 = vpop.xlane.xlu0 %2216
        %v2218 = vsel %vm2010, %v2150, 0.0
        %2219 = vadd.xlane.f32.xlu0 %v2218
        %v2220 = vpop.xlane.xlu0 %2219
        %v2221 = vsel %vm2010, %v2152, 0.0
        %2222 = vadd.xlane.f32.xlu0 %v2221
        %v2223 = vpop.xlane.xlu0 %2222
        %v2224 = vsel %vm2010, %v2154, 0.0
        %2225 = vadd.xlane.f32.xlu0 %v2224
        %v2226 = vpop.xlane.xlu0 %2225
        %v2227 = vsel %vm2010, %v2156, 0.0
        %2228 = vadd.xlane.f32.xlu0 %v2227
        %v2229 = vpop.xlane.xlu0 %2228
        %v2230 = vsel %vm2010, %v2158, 0.0
        %2231 = vadd.xlane.f32.xlu0 %v2230
        %v2232 = vpop.xlane.xlu0 %2231
        %v2233 = vsel %vm2010, %v2160, 0.0
        %2234 = vadd.xlane.f32.xlu0 %v2233
        %v2235 = vpop.xlane.xlu0 %2234
        %v2236 = vsel %vm2010, %v2162, 0.0
        %2237 = vadd.xlane.f32.xlu0 %v2236
        %v2238 = vpop.xlane.xlu0 %2237
        %v2239 = vsel %vm2010, %v2164, 0.0
        %2240 = vadd.xlane.f32.xlu0 %v2239
        %v2241 = vpop.xlane.xlu0 %2240
        %v2242 = vsel %vm2010, %v2166, 0.0
        %2243 = vadd.xlane.f32.xlu0 %v2242
        %v2244 = vpop.xlane.xlu0 %2243
        %v2245 = vsel %vm2010, %v2168, 0.0
        %2246 = vadd.xlane.f32.xlu0 %v2245
        %v2247 = vpop.xlane.xlu0 %2246
        %v2248 = vsel %vm2010, %v2170, 0.0
        %2249 = vadd.xlane.f32.xlu0 %v2248
        %v2250 = vpop.xlane.xlu0 %2249
        %v2251 = vsel %vm2010, %v2172, 0.0
        %2252 = vadd.xlane.f32.xlu0 %v2251
        %v2253 = vpop.xlane.xlu0 %2252
        %v2254 = vsel %vm2010, %v2174, 0.0
        %2255 = vadd.xlane.f32.xlu0 %v2254
        %v2256 = vpop.xlane.xlu0 %2255
        %v2257 = vsel %vm2010, %v2176, 0.0
        %2258 = vadd.xlane.f32.xlu0 %v2257
        %v2259 = vpop.xlane.xlu0 %2258
        %v2260 = vsel %vm2010, %v2178, 0.0
        %2261 = vadd.xlane.f32.xlu0 %v2260
        %v2262 = vpop.xlane.xlu0 %2261
        %v2263 = vsel %vm2010, %v2180, 0.0
        %2264 = vadd.xlane.f32.xlu0 %v2263
        %v2265 = vpop.xlane.xlu0 %2264
        %v2266 = vsel %vm2010, %v2182, 0.0
        %2267 = vadd.xlane.f32.xlu0 %v2266
        %v2268 = vpop.xlane.xlu0 %2267
        %v2269 = vsel %vm2010, %v2184, 0.0
        %2270 = vadd.xlane.f32.xlu0 %v2269
        %v2271 = vpop.xlane.xlu0 %2270
        %v2272 = vsel %vm2010, %v2186, 0.0
        %2273 = vadd.xlane.f32.xlu0 %v2272
        %v2274 = vpop.xlane.xlu0 %2273
        %v2275 = vsel %vm2010, %v2188, 0.0
        %2276 = vadd.xlane.f32.xlu0 %v2275
        %v2277 = vpop.xlane.xlu0 %2276
        %v2278 = vsel %vm2010, %v2190, 0.0
        %2279 = vadd.xlane.f32.xlu0 %v2278
        %v2280 = vpop.xlane.xlu0 %2279
        %v2281 = vsel %vm2010, %v2192, 0.0
        %2282 = vadd.xlane.f32.xlu0 %v2281
        %v2283 = vpop.xlane.xlu0 %2282
        %v2284 = vsel %vm2010, %v2194, 0.0
        %2285 = vadd.xlane.f32.xlu0 %v2284
        %v2286 = vpop.xlane.xlu0 %2285
        %v2287 = vsel %vm2010, %v2196, 0.0
        %2288 = vadd.xlane.f32.xlu0 %v2287
        %v2289 = vpop.xlane.xlu0 %2288
        %v2290 = vsel %vm2010, %v2198, 0.0
        %2291 = vadd.xlane.f32.xlu0 %v2290
        %v2292 = vpop.xlane.xlu0 %2291
        %v2293 = vsel %vm2010, %v2200, 0.0
        %2294 = vadd.xlane.f32.xlu0 %v2293
        %v2295 = vpop.xlane.xlu0 %2294
        %v2296 = vsel %vm2010, %v2202, 0.0
        %2297 = vadd.xlane.f32.xlu0 %v2296
        %v2298 = vpop.xlane.xlu0 %2297
        %v2299 = vrcp.pop %v2205
        %v2300 = vrcp.pop %v2208
        %v2301 = vrcp.pop %v2211
        %v2302 = vrcp.pop %v2214
        %v2303 = vrcp.pop %v2217
        %v2304 = vrcp.pop %v2220
        %v2305 = vrcp.pop %v2223
        %v2306 = vrcp.pop %v2226
        %v2307 = vrcp.pop %v2229
        %v2308 = vrcp.pop %v2232
        %v2309 = vrcp.pop %v2235
        %v2310 = vrcp.pop %v2238
        %v2311 = vrcp.pop %v2241
        %v2312 = vrcp.pop %v2244
        %v2313 = vrcp.pop %v2247
        %v2314 = vrcp.pop %v2250
        %v2315 = vrcp.pop %v2253
        %v2316 = vrcp.pop %v2256
        %v2317 = vrcp.pop %v2259
        %v2318 = vrcp.pop %v2262
        %v2319 = vrcp.pop %v2265
        %v2320 = vrcp.pop %v2268
        %v2321 = vrcp.pop %v2271
        %v2322 = vrcp.pop %v2274
        %v2323 = vrcp.pop %v2277
        %v2324 = vrcp.pop %v2280
        %v2325 = vrcp.pop %v2283
        %v2326 = vrcp.pop %v2286
        %v2327 = vrcp.pop %v2289
        %v2328 = vrcp.pop %v2292
        %v2329 = vrcp.pop %v2295
        %v2330 = vrcp.pop %v2298
        %v2331 = vmul.f32 %v2140, %v2299
        %v2332 = vmul.f32 %v2142, %v2300
        %v2333 = vmul.f32 %v2144, %v2301
        %v2334 = vmul.f32 %v2146, %v2302
        %v2335 = vmul.f32 %v2148, %v2303
        %v2336 = vmul.f32 %v2150, %v2304
        %v2337 = vmul.f32 %v2152, %v2305
        %v2338 = vmul.f32 %v2154, %v2306
        %v2339 = vmul.f32 %v2156, %v2307
        %v2340 = vmul.f32 %v2158, %v2308
        %v2341 = vmul.f32 %v2160, %v2309
        %v2342 = vmul.f32 %v2162, %v2310
        %v2343 = vmul.f32 %v2164, %v2311
        %v2344 = vmul.f32 %v2166, %v2312
        %v2345 = vmul.f32 %v2168, %v2313
        %v2346 = vmul.f32 %v2170, %v2314
        %v2347 = vmul.f32 %v2172, %v2315
        %v2348 = vmul.f32 %v2174, %v2316
        %v2349 = vmul.f32 %v2176, %v2317
        %v2350 = vmul.f32 %v2178, %v2318
        %v2351 = vmul.f32 %v2180, %v2319
        %v2352 = vmul.f32 %v2182, %v2320
        %v2353 = vmul.f32 %v2184, %v2321
        %v2354 = vmul.f32 %v2186, %v2322
        %v2355 = vmul.f32 %v2188, %v2323
        %v2356 = vmul.f32 %v2190, %v2324
        %v2357 = vmul.f32 %v2192, %v2325
        %v2358 = vmul.f32 %v2194, %v2326
        %v2359 = vmul.f32 %v2196, %v2327
        %v2360 = vmul.f32 %v2198, %v2328
        %v2361 = vmul.f32 %v2200, %v2329
        %v2362 = vmul.f32 %v2202, %v2330
        %v2364 = vsel %vm2010, %v2331, 0
        %v2367 = vsel %vm2010, %v2332, 0
        %v2370 = vsel %vm2010, %v2333, 0
        %v2373 = vsel %vm2010, %v2334, 0
        %v2376 = vsel %vm2010, %v2335, 0
        %v2379 = vsel %vm2010, %v2336, 0
        %v2382 = vsel %vm2010, %v2337, 0
        %v2385 = vsel %vm2010, %v2338, 0
        %2387 = vmatprep.subr.mxu0 0.0
        %2388 = vmatpush1.msra.mxu0 0.0
        %2389 = vmatprep.subr.mxu0 0.0
        %2390 = vmatpush1.msra.mxu0 0.0
        %2391 = vmatprep.subr.mxu0 0.0
        %2392 = vmatpush1.msra.mxu0 0.0
        %2393 = vmatprep.subr.mxu0 0.0
        %2394 = vmatpush1.msra.mxu0 0.0
        %2395 = vmatprep.subr.mxu0 0.0
        %2396 = vmatpush1.msra.mxu0 0.0
        %2397 = vmatprep.subr.mxu0 0.0
        %2398 = vmatpush1.msra.mxu0 0.0
        %2399 = vmatprep.subr.mxu0 0.0
        %2400 = vmatpush1.msra.mxu0 0.0
        %2401 = vmatprep.subr.mxu0 0.0
        %2402 = vmatpush1.msra.mxu0 0.0
        %2403 = vmatprep.subr.mxu0 0.0
        %2404 = vmatpush1.msra.mxu0 %v1242
        %2405 = vmatprep.subr.mxu0 0.0
        %2406 = vmatpush1.msra.mxu0 %v1237
        %2407 = vmatprep.subr.mxu0 0.0
        %2408 = vmatpush1.msra.mxu0 %v1232
        %2409 = vmatprep.subr.mxu0 0.0
        %2410 = vmatpush1.msra.mxu0 %v1227
        %2411 = vmatprep.subr.mxu0 0.0
        %2412 = vmatpush1.msra.mxu0 %v1222
        %2413 = vmatprep.subr.mxu0 0.0
        %2414 = vmatpush1.msra.mxu0 %v1217
        %2415 = vmatprep.subr.mxu0 0.0
        %2416 = vmatpush1.msra.mxu0 %v1212
        %2417 = vmatprep.subr.mxu0 0.0
        %2418 = vmatpush1.msra.mxu0 %v1207
        %2419 = vmatprep.subr.mxu0 0.0
        %2420 = vmatpush2.msra.mxu0 0.0
        %2421 = vmatprep.subr.mxu0 0.0
        %2422 = vmatpush2.msra.mxu0 0.0
        %2423 = vmatprep.subr.mxu0 0.0
        %2424 = vmatpush2.msra.mxu0 0.0
        %2425 = vmatprep.subr.mxu0 0.0
        %2426 = vmatpush2.msra.mxu0 0.0
        %2427 = vmatprep.subr.mxu0 0.0
        %2428 = vmatpush2.msra.mxu0 0.0
        %2429 = vmatprep.subr.mxu0 0.0
        %2430 = vmatpush2.msra.mxu0 0.0
        %2431 = vmatprep.subr.mxu0 0.0
        %2432 = vmatpush2.msra.mxu0 0.0
        %2433 = vmatprep.subr.mxu0 0.0
        %2434 = vmatpush2.msra.mxu0 0.0
        %2435 = vmatprep.subr.mxu0 0.0
        %2436 = vmatpush2.msra.mxu0 0.0
        %2437 = vmatprep.subr.mxu0 0.0
        %2438 = vmatpush2.msra.mxu0 0.0
        %2439 = vmatprep.subr.mxu0 0.0
        %2440 = vmatpush2.msra.mxu0 0.0
        %2441 = vmatprep.subr.mxu0 0.0
        %2442 = vmatpush2.msra.mxu0 0.0
        %2443 = vmatprep.subr.mxu0 0.0
        %2444 = vmatpush2.msra.mxu0 0.0
        %2445 = vmatprep.subr.mxu0 0.0
        %2446 = vmatpush2.msra.mxu0 0.0
        %2447 = vmatprep.subr.mxu0 0.0
        %2448 = vmatpush2.msra.mxu0 0.0
        %2449 = vmatprep.subr.mxu0 0.0
        %2450 = vmatpush2.msra.mxu0 0.0
        %2451 = vmatprep.mubr.f32.mxu0 0.0
        %2452 = vmatmul.mubr.f32.gmra.mxu0 %v2364
        %v2453 = vpop.f32.mrf.mxu0
        %v2454 = vadd.f32 0.0, %v2453
        %v2455 = vpop.f32.mrf.mxu0
        %2456 = vmatprep.mubr.f32.mxu0 0.0
        %2457 = vmatmul.mubr.f32.gmra.mxu0 %v2367
        %v2458 = vpop.f32.mrf.mxu0
        %v2459 = vadd.f32 0.0, %v2458
        %v2460 = vpop.f32.mrf.mxu0
        %2461 = vmatprep.mubr.f32.mxu0 0.0
        %2462 = vmatmul.mubr.f32.gmra.mxu0 %v2370
        %v2463 = vpop.f32.mrf.mxu0
        %v2464 = vadd.f32 0.0, %v2463
        %v2465 = vpop.f32.mrf.mxu0
        %2466 = vmatprep.mubr.f32.mxu0 0.0
        %2467 = vmatmul.mubr.f32.gmra.mxu0 %v2373
        %v2468 = vpop.f32.mrf.mxu0
        %v2469 = vadd.f32 0.0, %v2468
        %v2470 = vpop.f32.mrf.mxu0
        %2471 = vmatprep.mubr.f32.mxu0 0.0
        %2472 = vmatmul.mubr.f32.gmra.mxu0 %v2376
        %v2473 = vpop.f32.mrf.mxu0
        %v2474 = vadd.f32 0.0, %v2473
        %v2475 = vpop.f32.mrf.mxu0
        %2476 = vmatprep.mubr.f32.mxu0 0.0
        %2477 = vmatmul.mubr.f32.gmra.mxu0 %v2379
        %v2478 = vpop.f32.mrf.mxu0
        %v2479 = vadd.f32 0.0, %v2478
        %v2480 = vpop.f32.mrf.mxu0
        %2481 = vmatprep.mubr.f32.mxu0 0.0
        %2482 = vmatmul.mubr.f32.gmra.mxu0 %v2382
        %v2483 = vpop.f32.mrf.mxu0
        %v2484 = vadd.f32 0.0, %v2483
        %v2485 = vpop.f32.mrf.mxu0
        %2486 = vmatprep.mubr.f32.mxu0 0.0
        %2487 = vmatmul.mubr.f32.gmra.mxu0 %v2385
        %v2488 = vpop.f32.mrf.mxu0
        %v2489 = vadd.f32 0.0, %v2488
        %v2490 = vpop.f32.mrf.mxu0
        %2491 = vdwg.mxu0
        %v2493 = vsel %vm2010, %v2339, 0
        %v2496 = vsel %vm2010, %v2340, 0
        %v2499 = vsel %vm2010, %v2341, 0
        %v2502 = vsel %vm2010, %v2342, 0
        %v2505 = vsel %vm2010, %v2343, 0
        %v2508 = vsel %vm2010, %v2344, 0
        %v2511 = vsel %vm2010, %v2345, 0
        %v2514 = vsel %vm2010, %v2346, 0
        %2516 = vmatprep.subr.mxu0 0.0
        %2517 = vmatpush1.msra.mxu0 0.0
        %2518 = vmatprep.subr.mxu0 0.0
        %2519 = vmatpush1.msra.mxu0 0.0
        %2520 = vmatprep.subr.mxu0 0.0
        %2521 = vmatpush1.msra.mxu0 0.0
        %2522 = vmatprep.subr.mxu0 0.0
        %2523 = vmatpush1.msra.mxu0 0.0
        %2524 = vmatprep.subr.mxu0 0.0
        %2525 = vmatpush1.msra.mxu0 0.0
        %2526 = vmatprep.subr.mxu0 0.0
        %2527 = vmatpush1.msra.mxu0 0.0
        %2528 = vmatprep.subr.mxu0 0.0
        %2529 = vmatpush1.msra.mxu0 0.0
        %2530 = vmatprep.subr.mxu0 0.0
        %2531 = vmatpush1.msra.mxu0 0.0
        %2532 = vmatprep.subr.mxu0 0.0
        %2533 = vmatpush1.msra.mxu0 %v1282
        %2534 = vmatprep.subr.mxu0 0.0
        %2535 = vmatpush1.msra.mxu0 %v1277
        %2536 = vmatprep.subr.mxu0 0.0
        %2537 = vmatpush1.msra.mxu0 %v1272
        %2538 = vmatprep.subr.mxu0 0.0
        %2539 = vmatpush1.msra.mxu0 %v1267
        %2540 = vmatprep.subr.mxu0 0.0
        %2541 = vmatpush1.msra.mxu0 %v1262
        %2542 = vmatprep.subr.mxu0 0.0
        %2543 = vmatpush1.msra.mxu0 %v1257
        %2544 = vmatprep.subr.mxu0 0.0
        %2545 = vmatpush1.msra.mxu0 %v1252
        %2546 = vmatprep.subr.mxu0 0.0
        %2547 = vmatpush1.msra.mxu0 %v1247
        %2548 = vmatprep.subr.mxu0 0.0
        %2549 = vmatpush2.msra.mxu0 0.0
        %2550 = vmatprep.subr.mxu0 0.0
        %2551 = vmatpush2.msra.mxu0 0.0
        %2552 = vmatprep.subr.mxu0 0.0
        %2553 = vmatpush2.msra.mxu0 0.0
        %2554 = vmatprep.subr.mxu0 0.0
        %2555 = vmatpush2.msra.mxu0 0.0
        %2556 = vmatprep.subr.mxu0 0.0
        %2557 = vmatpush2.msra.mxu0 0.0
        %2558 = vmatprep.subr.mxu0 0.0
        %2559 = vmatpush2.msra.mxu0 0.0
        %2560 = vmatprep.subr.mxu0 0.0
        %2561 = vmatpush2.msra.mxu0 0.0
        %2562 = vmatprep.subr.mxu0 0.0
        %2563 = vmatpush2.msra.mxu0 0.0
        %2564 = vmatprep.subr.mxu0 0.0
        %2565 = vmatpush2.msra.mxu0 0.0
        %2566 = vmatprep.subr.mxu0 0.0
        %2567 = vmatpush2.msra.mxu0 0.0
        %2568 = vmatprep.subr.mxu0 0.0
        %2569 = vmatpush2.msra.mxu0 0.0
        %2570 = vmatprep.subr.mxu0 0.0
        %2571 = vmatpush2.msra.mxu0 0.0
        %2572 = vmatprep.subr.mxu0 0.0
        %2573 = vmatpush2.msra.mxu0 0.0
        %2574 = vmatprep.subr.mxu0 0.0
        %2575 = vmatpush2.msra.mxu0 0.0
        %2576 = vmatprep.subr.mxu0 0.0
        %2577 = vmatpush2.msra.mxu0 0.0
        %2578 = vmatprep.subr.mxu0 0.0
        %2579 = vmatpush2.msra.mxu0 0.0
        %2580 = vmatprep.mubr.f32.mxu0 0.0
        %2581 = vmatmul.mubr.f32.gmra.mxu0 %v2493
        %v2582 = vpop.f32.mrf.mxu0
        %v2583 = vadd.f32 0.0, %v2582
        %v2584 = vpop.f32.mrf.mxu0
        %2585 = vmatprep.mubr.f32.mxu0 0.0
        %2586 = vmatmul.mubr.f32.gmra.mxu0 %v2496
        %v2587 = vpop.f32.mrf.mxu0
        %v2588 = vadd.f32 0.0, %v2587
        %v2589 = vpop.f32.mrf.mxu0
        %2590 = vmatprep.mubr.f32.mxu0 0.0
        %2591 = vmatmul.mubr.f32.gmra.mxu0 %v2499
        %v2592 = vpop.f32.mrf.mxu0
        %v2593 = vadd.f32 0.0, %v2592
        %v2594 = vpop.f32.mrf.mxu0
        %2595 = vmatprep.mubr.f32.mxu0 0.0
        %2596 = vmatmul.mubr.f32.gmra.mxu0 %v2502
        %v2597 = vpop.f32.mrf.mxu0
        %v2598 = vadd.f32 0.0, %v2597
        %v2599 = vpop.f32.mrf.mxu0
        %2600 = vmatprep.mubr.f32.mxu0 0.0
        %2601 = vmatmul.mubr.f32.gmra.mxu0 %v2505
        %v2602 = vpop.f32.mrf.mxu0
        %v2603 = vadd.f32 0.0, %v2602
        %v2604 = vpop.f32.mrf.mxu0
        %2605 = vmatprep.mubr.f32.mxu0 0.0
        %2606 = vmatmul.mubr.f32.gmra.mxu0 %v2508
        %v2607 = vpop.f32.mrf.mxu0
        %v2608 = vadd.f32 0.0, %v2607
        %v2609 = vpop.f32.mrf.mxu0
        %2610 = vmatprep.mubr.f32.mxu0 0.0
        %2611 = vmatmul.mubr.f32.gmra.mxu0 %v2511
        %v2612 = vpop.f32.mrf.mxu0
        %v2613 = vadd.f32 0.0, %v2612
        %v2614 = vpop.f32.mrf.mxu0
        %2615 = vmatprep.mubr.f32.mxu0 0.0
        %2616 = vmatmul.mubr.f32.gmra.mxu0 %v2514
        %v2617 = vpop.f32.mrf.mxu0
        %v2618 = vadd.f32 0.0, %v2617
        %v2619 = vpop.f32.mrf.mxu0
        %2620 = vdwg.mxu0
        %v2622 = vsel %vm2010, %v2347, 0
        %v2625 = vsel %vm2010, %v2348, 0
        %v2628 = vsel %vm2010, %v2349, 0
        %v2631 = vsel %vm2010, %v2350, 0
        %v2634 = vsel %vm2010, %v2351, 0
        %v2637 = vsel %vm2010, %v2352, 0
        %v2640 = vsel %vm2010, %v2353, 0
        %v2643 = vsel %vm2010, %v2354, 0
        %2645 = vmatprep.subr.mxu0 0.0
        %2646 = vmatpush1.msra.mxu0 0.0
        %2647 = vmatprep.subr.mxu0 0.0
        %2648 = vmatpush1.msra.mxu0 0.0
        %2649 = vmatprep.subr.mxu0 0.0
        %2650 = vmatpush1.msra.mxu0 0.0
        %2651 = vmatprep.subr.mxu0 0.0
        %2652 = vmatpush1.msra.mxu0 0.0
        %2653 = vmatprep.subr.mxu0 0.0
        %2654 = vmatpush1.msra.mxu0 0.0
        %2655 = vmatprep.subr.mxu0 0.0
        %2656 = vmatpush1.msra.mxu0 0.0
        %2657 = vmatprep.subr.mxu0 0.0
        %2658 = vmatpush1.msra.mxu0 0.0
        %2659 = vmatprep.subr.mxu0 0.0
        %2660 = vmatpush1.msra.mxu0 0.0
        %2661 = vmatprep.subr.mxu0 0.0
        %2662 = vmatpush1.msra.mxu0 %v1322
        %2663 = vmatprep.subr.mxu0 0.0
        %2664 = vmatpush1.msra.mxu0 %v1317
        %2665 = vmatprep.subr.mxu0 0.0
        %2666 = vmatpush1.msra.mxu0 %v1312
        %2667 = vmatprep.subr.mxu0 0.0
        %2668 = vmatpush1.msra.mxu0 %v1307
        %2669 = vmatprep.subr.mxu0 0.0
        %2670 = vmatpush1.msra.mxu0 %v1302
        %2671 = vmatprep.subr.mxu0 0.0
        %2672 = vmatpush1.msra.mxu0 %v1297
        %2673 = vmatprep.subr.mxu0 0.0
        %2674 = vmatpush1.msra.mxu0 %v1292
        %2675 = vmatprep.subr.mxu0 0.0
        %2676 = vmatpush1.msra.mxu0 %v1287
        %2677 = vmatprep.subr.mxu0 0.0
        %2678 = vmatpush2.msra.mxu0 0.0
        %2679 = vmatprep.subr.mxu0 0.0
        %2680 = vmatpush2.msra.mxu0 0.0
        %2681 = vmatprep.subr.mxu0 0.0
        %2682 = vmatpush2.msra.mxu0 0.0
        %2683 = vmatprep.subr.mxu0 0.0
        %2684 = vmatpush2.msra.mxu0 0.0
        %2685 = vmatprep.subr.mxu0 0.0
        %2686 = vmatpush2.msra.mxu0 0.0
        %2687 = vmatprep.subr.mxu0 0.0
        %2688 = vmatpush2.msra.mxu0 0.0
        %2689 = vmatprep.subr.mxu0 0.0
        %2690 = vmatpush2.msra.mxu0 0.0
        %2691 = vmatprep.subr.mxu0 0.0
        %2692 = vmatpush2.msra.mxu0 0.0
        %2693 = vmatprep.subr.mxu0 0.0
        %2694 = vmatpush2.msra.mxu0 0.0
        %2695 = vmatprep.subr.mxu0 0.0
        %2696 = vmatpush2.msra.mxu0 0.0
        %2697 = vmatprep.subr.mxu0 0.0
        %2698 = vmatpush2.msra.mxu0 0.0
        %2699 = vmatprep.subr.mxu0 0.0
        %2700 = vmatpush2.msra.mxu0 0.0
        %2701 = vmatprep.subr.mxu0 0.0
        %2702 = vmatpush2.msra.mxu0 0.0
        %2703 = vmatprep.subr.mxu0 0.0
        %2704 = vmatpush2.msra.mxu0 0.0
        %2705 = vmatprep.subr.mxu0 0.0
        %2706 = vmatpush2.msra.mxu0 0.0
        %2707 = vmatprep.subr.mxu0 0.0
        %2708 = vmatpush2.msra.mxu0 0.0
        %2709 = vmatprep.mubr.f32.mxu0 0.0
        %2710 = vmatmul.mubr.f32.gmra.mxu0 %v2622
        %v2711 = vpop.f32.mrf.mxu0
        %v2712 = vadd.f32 0.0, %v2711
        %v2713 = vpop.f32.mrf.mxu0
        %2714 = vmatprep.mubr.f32.mxu0 0.0
        %2715 = vmatmul.mubr.f32.gmra.mxu0 %v2625
        %v2716 = vpop.f32.mrf.mxu0
        %v2717 = vadd.f32 0.0, %v2716
        %v2718 = vpop.f32.mrf.mxu0
        %2719 = vmatprep.mubr.f32.mxu0 0.0
        %2720 = vmatmul.mubr.f32.gmra.mxu0 %v2628
        %v2721 = vpop.f32.mrf.mxu0
        %v2722 = vadd.f32 0.0, %v2721
        %v2723 = vpop.f32.mrf.mxu0
        %2724 = vmatprep.mubr.f32.mxu0 0.0
        %2725 = vmatmul.mubr.f32.gmra.mxu0 %v2631
        %v2726 = vpop.f32.mrf.mxu0
        %v2727 = vadd.f32 0.0, %v2726
        %v2728 = vpop.f32.mrf.mxu0
        %2729 = vmatprep.mubr.f32.mxu0 0.0
        %2730 = vmatmul.mubr.f32.gmra.mxu0 %v2634
        %v2731 = vpop.f32.mrf.mxu0
        %v2732 = vadd.f32 0.0, %v2731
        %v2733 = vpop.f32.mrf.mxu0
        %2734 = vmatprep.mubr.f32.mxu0 0.0
        %2735 = vmatmul.mubr.f32.gmra.mxu0 %v2637
        %v2736 = vpop.f32.mrf.mxu0
        %v2737 = vadd.f32 0.0, %v2736
        %v2738 = vpop.f32.mrf.mxu0
        %2739 = vmatprep.mubr.f32.mxu0 0.0
        %2740 = vmatmul.mubr.f32.gmra.mxu0 %v2640
        %v2741 = vpop.f32.mrf.mxu0
        %v2742 = vadd.f32 0.0, %v2741
        %v2743 = vpop.f32.mrf.mxu0
        %2744 = vmatprep.mubr.f32.mxu0 0.0
        %2745 = vmatmul.mubr.f32.gmra.mxu0 %v2643
        %v2746 = vpop.f32.mrf.mxu0
        %v2747 = vadd.f32 0.0, %v2746
        %v2748 = vpop.f32.mrf.mxu0
        %2749 = vdwg.mxu0
        %v2751 = vsel %vm2010, %v2355, 0
        %v2754 = vsel %vm2010, %v2356, 0
        %v2757 = vsel %vm2010, %v2357, 0
        %v2760 = vsel %vm2010, %v2358, 0
        %v2763 = vsel %vm2010, %v2359, 0
        %v2766 = vsel %vm2010, %v2360, 0
        %v2769 = vsel %vm2010, %v2361, 0
        %v2772 = vsel %vm2010, %v2362, 0
        %2774 = vmatprep.subr.mxu0 0.0
        %2775 = vmatpush1.msra.mxu0 0.0
        %2776 = vmatprep.subr.mxu0 0.0
        %2777 = vmatpush1.msra.mxu0 0.0
        %2778 = vmatprep.subr.mxu0 0.0
        %2779 = vmatpush1.msra.mxu0 0.0
        %2780 = vmatprep.subr.mxu0 0.0
        %2781 = vmatpush1.msra.mxu0 0.0
        %2782 = vmatprep.subr.mxu0 0.0
        %2783 = vmatpush1.msra.mxu0 0.0
        %2784 = vmatprep.subr.mxu0 0.0
        %2785 = vmatpush1.msra.mxu0 0.0
        %2786 = vmatprep.subr.mxu0 0.0
        %2787 = vmatpush1.msra.mxu0 0.0
        %2788 = vmatprep.subr.mxu0 0.0
        %2789 = vmatpush1.msra.mxu0 0.0
        %2790 = vmatprep.subr.mxu0 0.0
        %2791 = vmatpush1.msra.mxu0 %v1362
        %2792 = vmatprep.subr.mxu0 0.0
        %2793 = vmatpush1.msra.mxu0 %v1357
        %2794 = vmatprep.subr.mxu0 0.0
        %2795 = vmatpush1.msra.mxu0 %v1352
        %2796 = vmatprep.subr.mxu0 0.0
        %2797 = vmatpush1.msra.mxu0 %v1347
        %2798 = vmatprep.subr.mxu0 0.0
        %2799 = vmatpush1.msra.mxu0 %v1342
        %2800 = vmatprep.subr.mxu0 0.0
        %2801 = vmatpush1.msra.mxu0 %v1337
        %2802 = vmatprep.subr.mxu0 0.0
        %2803 = vmatpush1.msra.mxu0 %v1332
        %2804 = vmatprep.subr.mxu0 0.0
        %2805 = vmatpush1.msra.mxu0 %v1327
        %2806 = vmatprep.subr.mxu0 0.0
        %2807 = vmatpush2.msra.mxu0 0.0
        %2808 = vmatprep.subr.mxu0 0.0
        %2809 = vmatpush2.msra.mxu0 0.0
        %2810 = vmatprep.subr.mxu0 0.0
        %2811 = vmatpush2.msra.mxu0 0.0
        %2812 = vmatprep.subr.mxu0 0.0
        %2813 = vmatpush2.msra.mxu0 0.0
        %2814 = vmatprep.subr.mxu0 0.0
        %2815 = vmatpush2.msra.mxu0 0.0
        %2816 = vmatprep.subr.mxu0 0.0
        %2817 = vmatpush2.msra.mxu0 0.0
        %2818 = vmatprep.subr.mxu0 0.0
        %2819 = vmatpush2.msra.mxu0 0.0
        %2820 = vmatprep.subr.mxu0 0.0
        %2821 = vmatpush2.msra.mxu0 0.0
        %2822 = vmatprep.subr.mxu0 0.0
        %2823 = vmatpush2.msra.mxu0 0.0
        %2824 = vmatprep.subr.mxu0 0.0
        %2825 = vmatpush2.msra.mxu0 0.0
        %2826 = vmatprep.subr.mxu0 0.0
        %2827 = vmatpush2.msra.mxu0 0.0
        %2828 = vmatprep.subr.mxu0 0.0
        %2829 = vmatpush2.msra.mxu0 0.0
        %2830 = vmatprep.subr.mxu0 0.0
        %2831 = vmatpush2.msra.mxu0 0.0
        %2832 = vmatprep.subr.mxu0 0.0
        %2833 = vmatpush2.msra.mxu0 0.0
        %2834 = vmatprep.subr.mxu0 0.0
        %2835 = vmatpush2.msra.mxu0 0.0
        %2836 = vmatprep.subr.mxu0 0.0
        %2837 = vmatpush2.msra.mxu0 0.0
        %2838 = vmatprep.mubr.f32.mxu0 0.0
        %2839 = vmatmul.mubr.f32.gmra.mxu0 %v2751
        %v2840 = vpop.f32.mrf.mxu0
        %v2841 = vadd.f32 0.0, %v2840
        %v2842 = vpop.f32.mrf.mxu0
        %2843 = vmatprep.mubr.f32.mxu0 0.0
        %2844 = vmatmul.mubr.f32.gmra.mxu0 %v2754
        %v2845 = vpop.f32.mrf.mxu0
        %v2846 = vadd.f32 0.0, %v2845
        %v2847 = vpop.f32.mrf.mxu0
        %2848 = vmatprep.mubr.f32.mxu0 0.0
        %2849 = vmatmul.mubr.f32.gmra.mxu0 %v2757
        %v2850 = vpop.f32.mrf.mxu0
        %v2851 = vadd.f32 0.0, %v2850
        %v2852 = vpop.f32.mrf.mxu0
        %2853 = vmatprep.mubr.f32.mxu0 0.0
        %2854 = vmatmul.mubr.f32.gmra.mxu0 %v2760
        %v2855 = vpop.f32.mrf.mxu0
        %v2856 = vadd.f32 0.0, %v2855
        %v2857 = vpop.f32.mrf.mxu0
        %2858 = vmatprep.mubr.f32.mxu0 0.0
        %2859 = vmatmul.mubr.f32.gmra.mxu0 %v2763
        %v2860 = vpop.f32.mrf.mxu0
        %v2861 = vadd.f32 0.0, %v2860
        %v2862 = vpop.f32.mrf.mxu0
        %2863 = vmatprep.mubr.f32.mxu0 0.0
        %2864 = vmatmul.mubr.f32.gmra.mxu0 %v2766
        %v2865 = vpop.f32.mrf.mxu0
        %v2866 = vadd.f32 0.0, %v2865
        %v2867 = vpop.f32.mrf.mxu0
        %2868 = vmatprep.mubr.f32.mxu0 0.0
        %2869 = vmatmul.mubr.f32.gmra.mxu0 %v2769
        %v2870 = vpop.f32.mrf.mxu0
        %v2871 = vadd.f32 0.0, %v2870
        %v2872 = vpop.f32.mrf.mxu0
        %2873 = vmatprep.mubr.f32.mxu0 0.0
        %2874 = vmatmul.mubr.f32.gmra.mxu0 %v2772
        %v2875 = vpop.f32.mrf.mxu0
        %v2876 = vadd.f32 0.0, %v2875
        %v2877 = vpop.f32.mrf.mxu0
        %2878 = vdwg.mxu0
        %2879 = vst.msk [vmem:[#allocation2] sm:$0xff] %vm1397, %v2454
        %2880 = vst.msk [vmem:[#allocation2 + $0x8] sm:$0xff] %vm1397, %v2459
        %2881 = vst.msk [vmem:[#allocation2 + $0x10] sm:$0xff] %vm1397, %v2464
        %2882 = vst.msk [vmem:[#allocation2 + $0x18] sm:$0xff] %vm1397, %v2469
        %2883 = vst.msk [vmem:[#allocation2 + $0x20] sm:$0xff] %vm1397, %v2474
        %2884 = vst.msk [vmem:[#allocation2 + $0x28] sm:$0xff] %vm1397, %v2479
        %2885 = vst.msk [vmem:[#allocation2 + $0x30] sm:$0xff] %vm1397, %v2484
        %2886 = vst.msk [vmem:[#allocation2 + $0x38] sm:$0xff] %vm1397, %v2489
        %2887 = vst.msk [vmem:[#allocation2 + $0x40] sm:$0xff] %vm1397, %v2583
        %2888 = vst.msk [vmem:[#allocation2 + $0x48] sm:$0xff] %vm1397, %v2588
        %2889 = vst.msk [vmem:[#allocation2 + $0x50] sm:$0xff] %vm1397, %v2593
        %2890 = vst.msk [vmem:[#allocation2 + $0x58] sm:$0xff] %vm1397, %v2598
        %2891 = vst.msk [vmem:[#allocation2 + $0x60] sm:$0xff] %vm1397, %v2603
        %2892 = vst.msk [vmem:[#allocation2 + $0x68] sm:$0xff] %vm1397, %v2608
        %2893 = vst.msk [vmem:[#allocation2 + $0x70] sm:$0xff] %vm1397, %v2613
        %2894 = vst.msk [vmem:[#allocation2 + $0x78] sm:$0xff] %vm1397, %v2618
        %2895 = vst.msk [vmem:[#allocation2 + $0x80] sm:$0xff] %vm1397, %v2712
        %2896 = vst.msk [vmem:[#allocation2 + $0x88] sm:$0xff] %vm1397, %v2717
        %2897 = vst.msk [vmem:[#allocation2 + $0x90] sm:$0xff] %vm1397, %v2722
        %2898 = vst.msk [vmem:[#allocation2 + $0x98] sm:$0xff] %vm1397, %v2727
        %2899 = vst.msk [vmem:[#allocation2 + $0xa0] sm:$0xff] %vm1397, %v2732
        %2900 = vst.msk [vmem:[#allocation2 + $0xa8] sm:$0xff] %vm1397, %v2737
        %2901 = vst.msk [vmem:[#allocation2 + $0xb0] sm:$0xff] %vm1397, %v2742
        %2902 = vst.msk [vmem:[#allocation2 + $0xb8] sm:$0xff] %vm1397, %v2747
        %2903 = vst.msk [vmem:[#allocation2 + $0xc0] sm:$0xff] %vm1397, %v2841
        %2904 = vst.msk [vmem:[#allocation2 + $0xc8] sm:$0xff] %vm1397, %v2846
        %2905 = vst.msk [vmem:[#allocation2 + $0xd0] sm:$0xff] %vm1397, %v2851
        %2906 = vst.msk [vmem:[#allocation2 + $0xd8] sm:$0xff] %vm1397, %v2856
        %2907 = vst.msk [vmem:[#allocation2 + $0xe0] sm:$0xff] %vm1397, %v2861
        %2908 = vst.msk [vmem:[#allocation2 + $0xe8] sm:$0xff] %vm1397, %v2866
        %2909 = vst.msk [vmem:[#allocation2 + $0xf0] sm:$0xff] %vm1397, %v2871
        %2910 = vst.msk [vmem:[#allocation2 + $0xf8] sm:$0xff] %vm1397, %v2876
        %2911 = vrot.lane.b32.xlu0 %v1365, 96
        %v2912 = vpop.permute.xlu0 %2911
        %2913 = vrot.lane.b32.xlu0 %v1366, 96
        %v2914 = vpop.permute.xlu0 %2913
        %2915 = vrot.lane.b32.xlu0 %v1367, 96
        %v2916 = vpop.permute.xlu0 %2915
        %2917 = vrot.lane.b32.xlu0 %v1368, 96
        %v2918 = vpop.permute.xlu0 %2917
        %2919 = vrot.lane.b32.xlu0 %v1369, 96
        %v2920 = vpop.permute.xlu0 %2919
        %2921 = vrot.lane.b32.xlu0 %v1370, 96
        %v2922 = vpop.permute.xlu0 %2921
        %2923 = vrot.lane.b32.xlu0 %v1371, 96
        %v2924 = vpop.permute.xlu0 %2923
        %2925 = vrot.lane.b32.xlu0 %v1372, 96
        %v2926 = vpop.permute.xlu0 %2925
        %2927 = vrot.lane.b32.xlu0 %v959, 96
        %v2928 = vpop.permute.xlu0 %2927
        %2929 = vrot.lane.b32.xlu0 %v964, 96
        %v2930 = vpop.permute.xlu0 %2929
        %2931 = vrot.lane.b32.xlu0 %v969, 96
        %v2932 = vpop.permute.xlu0 %2931
        %2933 = vrot.lane.b32.xlu0 %v974, 96
        %v2934 = vpop.permute.xlu0 %2933
        %2935 = vrot.lane.b32.xlu0 %v979, 96
        %v2936 = vpop.permute.xlu0 %2935
        %2937 = vrot.lane.b32.xlu0 %v984, 96
        %v2938 = vpop.permute.xlu0 %2937
        %2939 = vrot.lane.b32.xlu0 %v989, 96
        %v2940 = vpop.permute.xlu0 %2939
        %2941 = vrot.lane.b32.xlu0 %v994, 96
        %v2942 = vpop.permute.xlu0 %2941
        %v2943 = vsel %vm1397, %v2912, 0
        %v2945 = vsel %vm1397, %v2914, 0
        %v2947 = vsel %vm1397, %v2916, 0
        %v2949 = vsel %vm1397, %v2918, 0
        %v2951 = vsel %vm1397, %v2920, 0
        %v2953 = vsel %vm1397, %v2922, 0
        %v2955 = vsel %vm1397, %v2924, 0
        %v2957 = vsel %vm1397, %v2926, 0
        %v2959 = vsel %vm1397, %v2928, 0
        %v2961 = vsel %vm1397, %v2930, 0
        %v2963 = vsel %vm1397, %v2932, 0
        %v2965 = vsel %vm1397, %v2934, 0
        %v2967 = vsel %vm1397, %v2936, 0
        %v2969 = vsel %vm1397, %v2938, 0
        %v2971 = vsel %vm1397, %v2940, 0
        %v2973 = vsel %vm1397, %v2942, 0
        %2975 = vmatprep.subr.mxu0 0.0
        %2976 = vmatpush1.xpose.msra.mxu0 0.0
        %2977 = vmatprep.subr.mxu0 0.0
        %2978 = vmatpush1.xpose.msra.mxu0 0.0
        %2979 = vmatprep.subr.mxu0 0.0
        %2980 = vmatpush1.xpose.msra.mxu0 0.0
        %2981 = vmatprep.subr.mxu0 0.0
        %2982 = vmatpush1.xpose.msra.mxu0 0.0
        %2983 = vmatprep.subr.mxu0 0.0
        %2984 = vmatpush1.xpose.msra.mxu0 0.0
        %2985 = vmatprep.subr.mxu0 0.0
        %2986 = vmatpush1.xpose.msra.mxu0 0.0
        %2987 = vmatprep.subr.mxu0 0.0
        %2988 = vmatpush1.xpose.msra.mxu0 0.0
        %2989 = vmatprep.subr.mxu0 0.0
        %2990 = vmatpush1.xpose.msra.mxu0 0.0
        %2991 = vmatprep.subr.mxu0 0.0
        %2992 = vmatpush1.xpose.msra.mxu0 %v2973
        %2993 = vmatprep.subr.mxu0 0.0
        %2994 = vmatpush1.xpose.msra.mxu0 %v2971
        %2995 = vmatprep.subr.mxu0 0.0
        %2996 = vmatpush1.xpose.msra.mxu0 %v2969
        %2997 = vmatprep.subr.mxu0 0.0
        %2998 = vmatpush1.xpose.msra.mxu0 %v2967
        %2999 = vmatprep.subr.mxu0 0.0
        %3000 = vmatpush1.xpose.msra.mxu0 %v2965
        %3001 = vmatprep.subr.mxu0 0.0
        %3002 = vmatpush1.xpose.msra.mxu0 %v2963
        %3003 = vmatprep.subr.mxu0 0.0
        %3004 = vmatpush1.xpose.msra.mxu0 %v2961
        %3005 = vmatprep.subr.mxu0 0.0
        %3006 = vmatpush1.xpose.msra.mxu0 %v2959
        %3007 = vmatprep.subr.mxu0 0.0
        %3008 = vmatpush2.xpose.msra.mxu0 0.0
        %3009 = vmatprep.subr.mxu0 0.0
        %3010 = vmatpush2.xpose.msra.mxu0 0.0
        %3011 = vmatprep.subr.mxu0 0.0
        %3012 = vmatpush2.xpose.msra.mxu0 0.0
        %3013 = vmatprep.subr.mxu0 0.0
        %3014 = vmatpush2.xpose.msra.mxu0 0.0
        %3015 = vmatprep.subr.mxu0 0.0
        %3016 = vmatpush2.xpose.msra.mxu0 0.0
        %3017 = vmatprep.subr.mxu0 0.0
        %3018 = vmatpush2.xpose.msra.mxu0 0.0
        %3019 = vmatprep.subr.mxu0 0.0
        %3020 = vmatpush2.xpose.msra.mxu0 0.0
        %3021 = vmatprep.subr.mxu0 0.0
        %3022 = vmatpush2.xpose.msra.mxu0 0.0
        %3023 = vmatprep.subr.mxu0 0.0
        %3024 = vmatpush2.xpose.msra.mxu0 0.0
        %3025 = vmatprep.subr.mxu0 0.0
        %3026 = vmatpush2.xpose.msra.mxu0 0.0
        %3027 = vmatprep.subr.mxu0 0.0
        %3028 = vmatpush2.xpose.msra.mxu0 0.0
        %3029 = vmatprep.subr.mxu0 0.0
        %3030 = vmatpush2.xpose.msra.mxu0 0.0
        %3031 = vmatprep.subr.mxu0 0.0
        %3032 = vmatpush2.xpose.msra.mxu0 0.0
        %3033 = vmatprep.subr.mxu0 0.0
        %3034 = vmatpush2.xpose.msra.mxu0 0.0
        %3035 = vmatprep.subr.mxu0 0.0
        %3036 = vmatpush2.xpose.msra.mxu0 0.0
        %3037 = vmatprep.subr.mxu0 0.0
        %3038 = vmatpush2.xpose.msra.mxu0 0.0
        %3039 = vmatprep.mubr.f32.mxu0 0.0
        %3040 = vmatmul.mubr.f32.gmra.mxu0 %v2943
        %v3041 = vpop.f32.mrf.mxu0
        %v3042 = vadd.f32 0.0, %v3041
        %v3043 = vpop.f32.mrf.mxu0
        %3044 = vmatprep.mubr.f32.mxu0 0.0
        %3045 = vmatmul.mubr.f32.gmra.mxu0 %v2945
        %v3046 = vpop.f32.mrf.mxu0
        %v3047 = vadd.f32 0.0, %v3046
        %v3048 = vpop.f32.mrf.mxu0
        %3049 = vmatprep.mubr.f32.mxu0 0.0
        %3050 = vmatmul.mubr.f32.gmra.mxu0 %v2947
        %v3051 = vpop.f32.mrf.mxu0
        %v3052 = vadd.f32 0.0, %v3051
        %v3053 = vpop.f32.mrf.mxu0
        %3054 = vmatprep.mubr.f32.mxu0 0.0
        %3055 = vmatmul.mubr.f32.gmra.mxu0 %v2949
        %v3056 = vpop.f32.mrf.mxu0
        %v3057 = vadd.f32 0.0, %v3056
        %v3058 = vpop.f32.mrf.mxu0
        %3059 = vmatprep.mubr.f32.mxu0 0.0
        %3060 = vmatmul.mubr.f32.gmra.mxu0 %v2951
        %v3061 = vpop.f32.mrf.mxu0
        %v3062 = vadd.f32 0.0, %v3061
        %v3063 = vpop.f32.mrf.mxu0
        %3064 = vmatprep.mubr.f32.mxu0 0.0
        %3065 = vmatmul.mubr.f32.gmra.mxu0 %v2953
        %v3066 = vpop.f32.mrf.mxu0
        %v3067 = vadd.f32 0.0, %v3066
        %v3068 = vpop.f32.mrf.mxu0
        %3069 = vmatprep.mubr.f32.mxu0 0.0
        %3070 = vmatmul.mubr.f32.gmra.mxu0 %v2955
        %v3071 = vpop.f32.mrf.mxu0
        %v3072 = vadd.f32 0.0, %v3071
        %v3073 = vpop.f32.mrf.mxu0
        %3074 = vmatprep.mubr.f32.mxu0 0.0
        %3075 = vmatmul.mubr.f32.gmra.mxu0 %v2957
        %v3076 = vpop.f32.mrf.mxu0
        %v3077 = vadd.f32 0.0, %v3076
        %v3078 = vpop.f32.mrf.mxu0
        %3079 = vdwg.mxu0
        %3080 = vrot.lane.b32.xlu0 %v1373, 96
        %v3081 = vpop.permute.xlu0 %3080
        %3082 = vrot.lane.b32.xlu0 %v1374, 96
        %v3083 = vpop.permute.xlu0 %3082
        %3084 = vrot.lane.b32.xlu0 %v1375, 96
        %v3085 = vpop.permute.xlu0 %3084
        %3086 = vrot.lane.b32.xlu0 %v1376, 96
        %v3087 = vpop.permute.xlu0 %3086
        %3088 = vrot.lane.b32.xlu0 %v1377, 96
        %v3089 = vpop.permute.xlu0 %3088
        %3090 = vrot.lane.b32.xlu0 %v1378, 96
        %v3091 = vpop.permute.xlu0 %3090
        %3092 = vrot.lane.b32.xlu0 %v1379, 96
        %v3093 = vpop.permute.xlu0 %3092
        %3094 = vrot.lane.b32.xlu0 %v1380, 96
        %v3095 = vpop.permute.xlu0 %3094
        %3096 = vrot.lane.b32.xlu0 %v999, 96
        %v3097 = vpop.permute.xlu0 %3096
        %3098 = vrot.lane.b32.xlu0 %v1004, 96
        %v3099 = vpop.permute.xlu0 %3098
        %3100 = vrot.lane.b32.xlu0 %v1009, 96
        %v3101 = vpop.permute.xlu0 %3100
        %3102 = vrot.lane.b32.xlu0 %v1014, 96
        %v3103 = vpop.permute.xlu0 %3102
        %3104 = vrot.lane.b32.xlu0 %v1019, 96
        %v3105 = vpop.permute.xlu0 %3104
        %3106 = vrot.lane.b32.xlu0 %v1024, 96
        %v3107 = vpop.permute.xlu0 %3106
        %3108 = vrot.lane.b32.xlu0 %v1029, 96
        %v3109 = vpop.permute.xlu0 %3108
        %3110 = vrot.lane.b32.xlu0 %v1034, 96
        %v3111 = vpop.permute.xlu0 %3110
        %v3112 = vsel %vm1397, %v3081, 0
        %v3114 = vsel %vm1397, %v3083, 0
        %v3116 = vsel %vm1397, %v3085, 0
        %v3118 = vsel %vm1397, %v3087, 0
        %v3120 = vsel %vm1397, %v3089, 0
        %v3122 = vsel %vm1397, %v3091, 0
        %v3124 = vsel %vm1397, %v3093, 0
        %v3126 = vsel %vm1397, %v3095, 0
        %v3128 = vsel %vm1397, %v3097, 0
        %v3130 = vsel %vm1397, %v3099, 0
        %v3132 = vsel %vm1397, %v3101, 0
        %v3134 = vsel %vm1397, %v3103, 0
        %v3136 = vsel %vm1397, %v3105, 0
        %v3138 = vsel %vm1397, %v3107, 0
        %v3140 = vsel %vm1397, %v3109, 0
        %v3142 = vsel %vm1397, %v3111, 0
        %3144 = vmatprep.subr.mxu0 0.0
        %3145 = vmatpush1.xpose.msra.mxu0 0.0
        %3146 = vmatprep.subr.mxu0 0.0
        %3147 = vmatpush1.xpose.msra.mxu0 0.0
        %3148 = vmatprep.subr.mxu0 0.0
        %3149 = vmatpush1.xpose.msra.mxu0 0.0
        %3150 = vmatprep.subr.mxu0 0.0
        %3151 = vmatpush1.xpose.msra.mxu0 0.0
        %3152 = vmatprep.subr.mxu0 0.0
        %3153 = vmatpush1.xpose.msra.mxu0 0.0
        %3154 = vmatprep.subr.mxu0 0.0
        %3155 = vmatpush1.xpose.msra.mxu0 0.0
        %3156 = vmatprep.subr.mxu0 0.0
        %3157 = vmatpush1.xpose.msra.mxu0 0.0
        %3158 = vmatprep.subr.mxu0 0.0
        %3159 = vmatpush1.xpose.msra.mxu0 0.0
        %3160 = vmatprep.subr.mxu0 0.0
        %3161 = vmatpush1.xpose.msra.mxu0 %v3142
        %3162 = vmatprep.subr.mxu0 0.0
        %3163 = vmatpush1.xpose.msra.mxu0 %v3140
        %3164 = vmatprep.subr.mxu0 0.0
        %3165 = vmatpush1.xpose.msra.mxu0 %v3138
        %3166 = vmatprep.subr.mxu0 0.0
        %3167 = vmatpush1.xpose.msra.mxu0 %v3136
        %3168 = vmatprep.subr.mxu0 0.0
        %3169 = vmatpush1.xpose.msra.mxu0 %v3134
        %3170 = vmatprep.subr.mxu0 0.0
        %3171 = vmatpush1.xpose.msra.mxu0 %v3132
        %3172 = vmatprep.subr.mxu0 0.0
        %3173 = vmatpush1.xpose.msra.mxu0 %v3130
        %3174 = vmatprep.subr.mxu0 0.0
        %3175 = vmatpush1.xpose.msra.mxu0 %v3128
        %3176 = vmatprep.subr.mxu0 0.0
        %3177 = vmatpush2.xpose.msra.mxu0 0.0
        %3178 = vmatprep.subr.mxu0 0.0
        %3179 = vmatpush2.xpose.msra.mxu0 0.0
        %3180 = vmatprep.subr.mxu0 0.0
        %3181 = vmatpush2.xpose.msra.mxu0 0.0
        %3182 = vmatprep.subr.mxu0 0.0
        %3183 = vmatpush2.xpose.msra.mxu0 0.0
        %3184 = vmatprep.subr.mxu0 0.0
        %3185 = vmatpush2.xpose.msra.mxu0 0.0
        %3186 = vmatprep.subr.mxu0 0.0
        %3187 = vmatpush2.xpose.msra.mxu0 0.0
        %3188 = vmatprep.subr.mxu0 0.0
        %3189 = vmatpush2.xpose.msra.mxu0 0.0
        %3190 = vmatprep.subr.mxu0 0.0
        %3191 = vmatpush2.xpose.msra.mxu0 0.0
        %3192 = vmatprep.subr.mxu0 0.0
        %3193 = vmatpush2.xpose.msra.mxu0 0.0
        %3194 = vmatprep.subr.mxu0 0.0
        %3195 = vmatpush2.xpose.msra.mxu0 0.0
        %3196 = vmatprep.subr.mxu0 0.0
        %3197 = vmatpush2.xpose.msra.mxu0 0.0
        %3198 = vmatprep.subr.mxu0 0.0
        %3199 = vmatpush2.xpose.msra.mxu0 0.0
        %3200 = vmatprep.subr.mxu0 0.0
        %3201 = vmatpush2.xpose.msra.mxu0 0.0
        %3202 = vmatprep.subr.mxu0 0.0
        %3203 = vmatpush2.xpose.msra.mxu0 0.0
        %3204 = vmatprep.subr.mxu0 0.0
        %3205 = vmatpush2.xpose.msra.mxu0 0.0
        %3206 = vmatprep.subr.mxu0 0.0
        %3207 = vmatpush2.xpose.msra.mxu0 0.0
        %3208 = vmatprep.mubr.f32.mxu0 0.0
        %3209 = vmatmul.mubr.f32.gmra.mxu0 %v3112
        %v3210 = vpop.f32.mrf.mxu0
        %v3211 = vadd.f32 0.0, %v3210
        %v3212 = vpop.f32.mrf.mxu0
        %3213 = vmatprep.mubr.f32.mxu0 0.0
        %3214 = vmatmul.mubr.f32.gmra.mxu0 %v3114
        %v3215 = vpop.f32.mrf.mxu0
        %v3216 = vadd.f32 0.0, %v3215
        %v3217 = vpop.f32.mrf.mxu0
        %3218 = vmatprep.mubr.f32.mxu0 0.0
        %3219 = vmatmul.mubr.f32.gmra.mxu0 %v3116
        %v3220 = vpop.f32.mrf.mxu0
        %v3221 = vadd.f32 0.0, %v3220
        %v3222 = vpop.f32.mrf.mxu0
        %3223 = vmatprep.mubr.f32.mxu0 0.0
        %3224 = vmatmul.mubr.f32.gmra.mxu0 %v3118
        %v3225 = vpop.f32.mrf.mxu0
        %v3226 = vadd.f32 0.0, %v3225
        %v3227 = vpop.f32.mrf.mxu0
        %3228 = vmatprep.mubr.f32.mxu0 0.0
        %3229 = vmatmul.mubr.f32.gmra.mxu0 %v3120
        %v3230 = vpop.f32.mrf.mxu0
        %v3231 = vadd.f32 0.0, %v3230
        %v3232 = vpop.f32.mrf.mxu0
        %3233 = vmatprep.mubr.f32.mxu0 0.0
        %3234 = vmatmul.mubr.f32.gmra.mxu0 %v3122
        %v3235 = vpop.f32.mrf.mxu0
        %v3236 = vadd.f32 0.0, %v3235
        %v3237 = vpop.f32.mrf.mxu0
        %3238 = vmatprep.mubr.f32.mxu0 0.0
        %3239 = vmatmul.mubr.f32.gmra.mxu0 %v3124
        %v3240 = vpop.f32.mrf.mxu0
        %v3241 = vadd.f32 0.0, %v3240
        %v3242 = vpop.f32.mrf.mxu0
        %3243 = vmatprep.mubr.f32.mxu0 0.0
        %3244 = vmatmul.mubr.f32.gmra.mxu0 %v3126
        %v3245 = vpop.f32.mrf.mxu0
        %v3246 = vadd.f32 0.0, %v3245
        %v3247 = vpop.f32.mrf.mxu0
        %3248 = vdwg.mxu0
        %3249 = vrot.lane.b32.xlu0 %v1381, 96
        %v3250 = vpop.permute.xlu0 %3249
        %3251 = vrot.lane.b32.xlu0 %v1382, 96
        %v3252 = vpop.permute.xlu0 %3251
        %3253 = vrot.lane.b32.xlu0 %v1383, 96
        %v3254 = vpop.permute.xlu0 %3253
        %3255 = vrot.lane.b32.xlu0 %v1384, 96
        %v3256 = vpop.permute.xlu0 %3255
        %3257 = vrot.lane.b32.xlu0 %v1385, 96
        %v3258 = vpop.permute.xlu0 %3257
        %3259 = vrot.lane.b32.xlu0 %v1386, 96
        %v3260 = vpop.permute.xlu0 %3259
        %3261 = vrot.lane.b32.xlu0 %v1387, 96
        %v3262 = vpop.permute.xlu0 %3261
        %3263 = vrot.lane.b32.xlu0 %v1388, 96
        %v3264 = vpop.permute.xlu0 %3263
        %3265 = vrot.lane.b32.xlu0 %v1039, 96
        %v3266 = vpop.permute.xlu0 %3265
        %3267 = vrot.lane.b32.xlu0 %v1044, 96
        %v3268 = vpop.permute.xlu0 %3267
        %3269 = vrot.lane.b32.xlu0 %v1049, 96
        %v3270 = vpop.permute.xlu0 %3269
        %3271 = vrot.lane.b32.xlu0 %v1054, 96
        %v3272 = vpop.permute.xlu0 %3271
        %3273 = vrot.lane.b32.xlu0 %v1059, 96
        %v3274 = vpop.permute.xlu0 %3273
        %3275 = vrot.lane.b32.xlu0 %v1064, 96
        %v3276 = vpop.permute.xlu0 %3275
        %3277 = vrot.lane.b32.xlu0 %v1069, 96
        %v3278 = vpop.permute.xlu0 %3277
        %3279 = vrot.lane.b32.xlu0 %v1074, 96
        %v3280 = vpop.permute.xlu0 %3279
        %v3281 = vsel %vm1397, %v3250, 0
        %v3283 = vsel %vm1397, %v3252, 0
        %v3285 = vsel %vm1397, %v3254, 0
        %v3287 = vsel %vm1397, %v3256, 0
        %v3289 = vsel %vm1397, %v3258, 0
        %v3291 = vsel %vm1397, %v3260, 0
        %v3293 = vsel %vm1397, %v3262, 0
        %v3295 = vsel %vm1397, %v3264, 0
        %v3297 = vsel %vm1397, %v3266, 0
        %v3299 = vsel %vm1397, %v3268, 0
        %v3301 = vsel %vm1397, %v3270, 0
        %v3303 = vsel %vm1397, %v3272, 0
        %v3305 = vsel %vm1397, %v3274, 0
        %v3307 = vsel %vm1397, %v3276, 0
        %v3309 = vsel %vm1397, %v3278, 0
        %v3311 = vsel %vm1397, %v3280, 0
        %3313 = vmatprep.subr.mxu0 0.0
        %3314 = vmatpush1.xpose.msra.mxu0 0.0
        %3315 = vmatprep.subr.mxu0 0.0
        %3316 = vmatpush1.xpose.msra.mxu0 0.0
        %3317 = vmatprep.subr.mxu0 0.0
        %3318 = vmatpush1.xpose.msra.mxu0 0.0
        %3319 = vmatprep.subr.mxu0 0.0
        %3320 = vmatpush1.xpose.msra.mxu0 0.0
        %3321 = vmatprep.subr.mxu0 0.0
        %3322 = vmatpush1.xpose.msra.mxu0 0.0
        %3323 = vmatprep.subr.mxu0 0.0
        %3324 = vmatpush1.xpose.msra.mxu0 0.0
        %3325 = vmatprep.subr.mxu0 0.0
        %3326 = vmatpush1.xpose.msra.mxu0 0.0
        %3327 = vmatprep.subr.mxu0 0.0
        %3328 = vmatpush1.xpose.msra.mxu0 0.0
        %3329 = vmatprep.subr.mxu0 0.0
        %3330 = vmatpush1.xpose.msra.mxu0 %v3311
        %3331 = vmatprep.subr.mxu0 0.0
        %3332 = vmatpush1.xpose.msra.mxu0 %v3309
        %3333 = vmatprep.subr.mxu0 0.0
        %3334 = vmatpush1.xpose.msra.mxu0 %v3307
        %3335 = vmatprep.subr.mxu0 0.0
        %3336 = vmatpush1.xpose.msra.mxu0 %v3305
        %3337 = vmatprep.subr.mxu0 0.0
        %3338 = vmatpush1.xpose.msra.mxu0 %v3303
        %3339 = vmatprep.subr.mxu0 0.0
        %3340 = vmatpush1.xpose.msra.mxu0 %v3301
        %3341 = vmatprep.subr.mxu0 0.0
        %3342 = vmatpush1.xpose.msra.mxu0 %v3299
        %3343 = vmatprep.subr.mxu0 0.0
        %3344 = vmatpush1.xpose.msra.mxu0 %v3297
        %3345 = vmatprep.subr.mxu0 0.0
        %3346 = vmatpush2.xpose.msra.mxu0 0.0
        %3347 = vmatprep.subr.mxu0 0.0
        %3348 = vmatpush2.xpose.msra.mxu0 0.0
        %3349 = vmatprep.subr.mxu0 0.0
        %3350 = vmatpush2.xpose.msra.mxu0 0.0
        %3351 = vmatprep.subr.mxu0 0.0
        %3352 = vmatpush2.xpose.msra.mxu0 0.0
        %3353 = vmatprep.subr.mxu0 0.0
        %3354 = vmatpush2.xpose.msra.mxu0 0.0
        %3355 = vmatprep.subr.mxu0 0.0
        %3356 = vmatpush2.xpose.msra.mxu0 0.0
        %3357 = vmatprep.subr.mxu0 0.0
        %3358 = vmatpush2.xpose.msra.mxu0 0.0
        %3359 = vmatprep.subr.mxu0 0.0
        %3360 = vmatpush2.xpose.msra.mxu0 0.0
        %3361 = vmatprep.subr.mxu0 0.0
        %3362 = vmatpush2.xpose.msra.mxu0 0.0
        %3363 = vmatprep.subr.mxu0 0.0
        %3364 = vmatpush2.xpose.msra.mxu0 0.0
        %3365 = vmatprep.subr.mxu0 0.0
        %3366 = vmatpush2.xpose.msra.mxu0 0.0
        %3367 = vmatprep.subr.mxu0 0.0
        %3368 = vmatpush2.xpose.msra.mxu0 0.0
        %3369 = vmatprep.subr.mxu0 0.0
        %3370 = vmatpush2.xpose.msra.mxu0 0.0
        %3371 = vmatprep.subr.mxu0 0.0
        %3372 = vmatpush2.xpose.msra.mxu0 0.0
        %3373 = vmatprep.subr.mxu0 0.0
        %3374 = vmatpush2.xpose.msra.mxu0 0.0
        %3375 = vmatprep.subr.mxu0 0.0
        %3376 = vmatpush2.xpose.msra.mxu0 0.0
        %3377 = vmatprep.mubr.f32.mxu0 0.0
        %3378 = vmatmul.mubr.f32.gmra.mxu0 %v3281
        %v3379 = vpop.f32.mrf.mxu0
        %v3380 = vadd.f32 0.0, %v3379
        %v3381 = vpop.f32.mrf.mxu0
        %3382 = vmatprep.mubr.f32.mxu0 0.0
        %3383 = vmatmul.mubr.f32.gmra.mxu0 %v3283
        %v3384 = vpop.f32.mrf.mxu0
        %v3385 = vadd.f32 0.0, %v3384
        %v3386 = vpop.f32.mrf.mxu0
        %3387 = vmatprep.mubr.f32.mxu0 0.0
        %3388 = vmatmul.mubr.f32.gmra.mxu0 %v3285
        %v3389 = vpop.f32.mrf.mxu0
        %v3390 = vadd.f32 0.0, %v3389
        %v3391 = vpop.f32.mrf.mxu0
        %3392 = vmatprep.mubr.f32.mxu0 0.0
        %3393 = vmatmul.mubr.f32.gmra.mxu0 %v3287
        %v3394 = vpop.f32.mrf.mxu0
        %v3395 = vadd.f32 0.0, %v3394
        %v3396 = vpop.f32.mrf.mxu0
        %3397 = vmatprep.mubr.f32.mxu0 0.0
        %3398 = vmatmul.mubr.f32.gmra.mxu0 %v3289
        %v3399 = vpop.f32.mrf.mxu0
        %v3400 = vadd.f32 0.0, %v3399
        %v3401 = vpop.f32.mrf.mxu0
        %3402 = vmatprep.mubr.f32.mxu0 0.0
        %3403 = vmatmul.mubr.f32.gmra.mxu0 %v3291
        %v3404 = vpop.f32.mrf.mxu0
        %v3405 = vadd.f32 0.0, %v3404
        %v3406 = vpop.f32.mrf.mxu0
        %3407 = vmatprep.mubr.f32.mxu0 0.0
        %3408 = vmatmul.mubr.f32.gmra.mxu0 %v3293
        %v3409 = vpop.f32.mrf.mxu0
        %v3410 = vadd.f32 0.0, %v3409
        %v3411 = vpop.f32.mrf.mxu0
        %3412 = vmatprep.mubr.f32.mxu0 0.0
        %3413 = vmatmul.mubr.f32.gmra.mxu0 %v3295
        %v3414 = vpop.f32.mrf.mxu0
        %v3415 = vadd.f32 0.0, %v3414
        %v3416 = vpop.f32.mrf.mxu0
        %3417 = vdwg.mxu0
        %3418 = vrot.lane.b32.xlu0 %v1389, 96
        %v3419 = vpop.permute.xlu0 %3418
        %3420 = vrot.lane.b32.xlu0 %v1390, 96
        %v3421 = vpop.permute.xlu0 %3420
        %3422 = vrot.lane.b32.xlu0 %v1391, 96
        %v3423 = vpop.permute.xlu0 %3422
        %3424 = vrot.lane.b32.xlu0 %v1392, 96
        %v3425 = vpop.permute.xlu0 %3424
        %3426 = vrot.lane.b32.xlu0 %v1393, 96
        %v3427 = vpop.permute.xlu0 %3426
        %3428 = vrot.lane.b32.xlu0 %v1394, 96
        %v3429 = vpop.permute.xlu0 %3428
        %3430 = vrot.lane.b32.xlu0 %v1395, 96
        %v3431 = vpop.permute.xlu0 %3430
        %3432 = vrot.lane.b32.xlu0 %v1396, 96
        %v3433 = vpop.permute.xlu0 %3432
        %3434 = vrot.lane.b32.xlu0 %v1079, 96
        %v3435 = vpop.permute.xlu0 %3434
        %3436 = vrot.lane.b32.xlu0 %v1084, 96
        %v3437 = vpop.permute.xlu0 %3436
        %3438 = vrot.lane.b32.xlu0 %v1089, 96
        %v3439 = vpop.permute.xlu0 %3438
        %3440 = vrot.lane.b32.xlu0 %v1094, 96
        %v3441 = vpop.permute.xlu0 %3440
        %3442 = vrot.lane.b32.xlu0 %v1099, 96
        %v3443 = vpop.permute.xlu0 %3442
        %3444 = vrot.lane.b32.xlu0 %v1104, 96
        %v3445 = vpop.permute.xlu0 %3444
        %3446 = vrot.lane.b32.xlu0 %v1109, 96
        %v3447 = vpop.permute.xlu0 %3446
        %3448 = vrot.lane.b32.xlu0 %v1114, 96
        %v3449 = vpop.permute.xlu0 %3448
        %v3450 = vsel %vm1397, %v3419, 0
        %v3452 = vsel %vm1397, %v3421, 0
        %v3454 = vsel %vm1397, %v3423, 0
        %v3456 = vsel %vm1397, %v3425, 0
        %v3458 = vsel %vm1397, %v3427, 0
        %v3460 = vsel %vm1397, %v3429, 0
        %v3462 = vsel %vm1397, %v3431, 0
        %v3464 = vsel %vm1397, %v3433, 0
        %v3466 = vsel %vm1397, %v3435, 0
        %v3468 = vsel %vm1397, %v3437, 0
        %v3470 = vsel %vm1397, %v3439, 0
        %v3472 = vsel %vm1397, %v3441, 0
        %v3474 = vsel %vm1397, %v3443, 0
        %v3476 = vsel %vm1397, %v3445, 0
        %v3478 = vsel %vm1397, %v3447, 0
        %v3480 = vsel %vm1397, %v3449, 0
        %3482 = vmatprep.subr.mxu0 0.0
        %3483 = vmatpush1.xpose.msra.mxu0 0.0
        %3484 = vmatprep.subr.mxu0 0.0
        %3485 = vmatpush1.xpose.msra.mxu0 0.0
        %3486 = vmatprep.subr.mxu0 0.0
        %3487 = vmatpush1.xpose.msra.mxu0 0.0
        %3488 = vmatprep.subr.mxu0 0.0
        %3489 = vmatpush1.xpose.msra.mxu0 0.0
        %3490 = vmatprep.subr.mxu0 0.0
        %3491 = vmatpush1.xpose.msra.mxu0 0.0
        %3492 = vmatprep.subr.mxu0 0.0
        %3493 = vmatpush1.xpose.msra.mxu0 0.0
        %3494 = vmatprep.subr.mxu0 0.0
        %3495 = vmatpush1.xpose.msra.mxu0 0.0
        %3496 = vmatprep.subr.mxu0 0.0
        %3497 = vmatpush1.xpose.msra.mxu0 0.0
        %3498 = vmatprep.subr.mxu0 0.0
        %3499 = vmatpush1.xpose.msra.mxu0 %v3480
        %3500 = vmatprep.subr.mxu0 0.0
        %3501 = vmatpush1.xpose.msra.mxu0 %v3478
        %3502 = vmatprep.subr.mxu0 0.0
        %3503 = vmatpush1.xpose.msra.mxu0 %v3476
        %3504 = vmatprep.subr.mxu0 0.0
        %3505 = vmatpush1.xpose.msra.mxu0 %v3474
        %3506 = vmatprep.subr.mxu0 0.0
        %3507 = vmatpush1.xpose.msra.mxu0 %v3472
        %3508 = vmatprep.subr.mxu0 0.0
        %3509 = vmatpush1.xpose.msra.mxu0 %v3470
        %3510 = vmatprep.subr.mxu0 0.0
        %3511 = vmatpush1.xpose.msra.mxu0 %v3468
        %3512 = vmatprep.subr.mxu0 0.0
        %3513 = vmatpush1.xpose.msra.mxu0 %v3466
        %3514 = vmatprep.subr.mxu0 0.0
        %3515 = vmatpush2.xpose.msra.mxu0 0.0
        %3516 = vmatprep.subr.mxu0 0.0
        %3517 = vmatpush2.xpose.msra.mxu0 0.0
        %3518 = vmatprep.subr.mxu0 0.0
        %3519 = vmatpush2.xpose.msra.mxu0 0.0
        %3520 = vmatprep.subr.mxu0 0.0
        %3521 = vmatpush2.xpose.msra.mxu0 0.0
        %3522 = vmatprep.subr.mxu0 0.0
        %3523 = vmatpush2.xpose.msra.mxu0 0.0
        %3524 = vmatprep.subr.mxu0 0.0
        %3525 = vmatpush2.xpose.msra.mxu0 0.0
        %3526 = vmatprep.subr.mxu0 0.0
        %3527 = vmatpush2.xpose.msra.mxu0 0.0
        %3528 = vmatprep.subr.mxu0 0.0
        %3529 = vmatpush2.xpose.msra.mxu0 0.0
        %3530 = vmatprep.subr.mxu0 0.0
        %3531 = vmatpush2.xpose.msra.mxu0 0.0
        %3532 = vmatprep.subr.mxu0 0.0
        %3533 = vmatpush2.xpose.msra.mxu0 0.0
        %3534 = vmatprep.subr.mxu0 0.0
        %3535 = vmatpush2.xpose.msra.mxu0 0.0
        %3536 = vmatprep.subr.mxu0 0.0
        %3537 = vmatpush2.xpose.msra.mxu0 0.0
        %3538 = vmatprep.subr.mxu0 0.0
        %3539 = vmatpush2.xpose.msra.mxu0 0.0
        %3540 = vmatprep.subr.mxu0 0.0
        %3541 = vmatpush2.xpose.msra.mxu0 0.0
        %3542 = vmatprep.subr.mxu0 0.0
        %3543 = vmatpush2.xpose.msra.mxu0 0.0
        %3544 = vmatprep.subr.mxu0 0.0
        %3545 = vmatpush2.xpose.msra.mxu0 0.0
        %3546 = vmatprep.mubr.f32.mxu0 0.0
        %3547 = vmatmul.mubr.f32.gmra.mxu0 %v3450
        %v3548 = vpop.f32.mrf.mxu0
        %v3549 = vadd.f32 0.0, %v3548
        %v3550 = vpop.f32.mrf.mxu0
        %3551 = vmatprep.mubr.f32.mxu0 0.0
        %3552 = vmatmul.mubr.f32.gmra.mxu0 %v3452
        %v3553 = vpop.f32.mrf.mxu0
        %v3554 = vadd.f32 0.0, %v3553
        %v3555 = vpop.f32.mrf.mxu0
        %3556 = vmatprep.mubr.f32.mxu0 0.0
        %3557 = vmatmul.mubr.f32.gmra.mxu0 %v3454
        %v3558 = vpop.f32.mrf.mxu0
        %v3559 = vadd.f32 0.0, %v3558
        %v3560 = vpop.f32.mrf.mxu0
        %3561 = vmatprep.mubr.f32.mxu0 0.0
        %3562 = vmatmul.mubr.f32.gmra.mxu0 %v3456
        %v3563 = vpop.f32.mrf.mxu0
        %v3564 = vadd.f32 0.0, %v3563
        %v3565 = vpop.f32.mrf.mxu0
        %3566 = vmatprep.mubr.f32.mxu0 0.0
        %3567 = vmatmul.mubr.f32.gmra.mxu0 %v3458
        %v3568 = vpop.f32.mrf.mxu0
        %v3569 = vadd.f32 0.0, %v3568
        %v3570 = vpop.f32.mrf.mxu0
        %3571 = vmatprep.mubr.f32.mxu0 0.0
        %3572 = vmatmul.mubr.f32.gmra.mxu0 %v3460
        %v3573 = vpop.f32.mrf.mxu0
        %v3574 = vadd.f32 0.0, %v3573
        %v3575 = vpop.f32.mrf.mxu0
        %3576 = vmatprep.mubr.f32.mxu0 0.0
        %3577 = vmatmul.mubr.f32.gmra.mxu0 %v3462
        %v3578 = vpop.f32.mrf.mxu0
        %v3579 = vadd.f32 0.0, %v3578
        %v3580 = vpop.f32.mrf.mxu0
        %3581 = vmatprep.mubr.f32.mxu0 0.0
        %3582 = vmatmul.mubr.f32.gmra.mxu0 %v3464
        %v3583 = vpop.f32.mrf.mxu0
        %v3584 = vadd.f32 0.0, %v3583
        %v3585 = vpop.f32.mrf.mxu0
        %3586 = vdwg.mxu0
        %v3587 = vsel %vm2010, %v3042, -inf
        %3588 = vmax.xlane.f32.xlu0 %v3587
        %v3589 = vpop.xlane.xlu0 %3588
        %v3590 = vsel %vm2010, %v3047, -inf
        %3591 = vmax.xlane.f32.xlu0 %v3590
        %v3592 = vpop.xlane.xlu0 %3591
        %v3593 = vsel %vm2010, %v3052, -inf
        %3594 = vmax.xlane.f32.xlu0 %v3593
        %v3595 = vpop.xlane.xlu0 %3594
        %v3596 = vsel %vm2010, %v3057, -inf
        %3597 = vmax.xlane.f32.xlu0 %v3596
        %v3598 = vpop.xlane.xlu0 %3597
        %v3599 = vsel %vm2010, %v3062, -inf
        %3600 = vmax.xlane.f32.xlu0 %v3599
        %v3601 = vpop.xlane.xlu0 %3600
        %v3602 = vsel %vm2010, %v3067, -inf
        %3603 = vmax.xlane.f32.xlu0 %v3602
        %v3604 = vpop.xlane.xlu0 %3603
        %v3605 = vsel %vm2010, %v3072, -inf
        %3606 = vmax.xlane.f32.xlu0 %v3605
        %v3607 = vpop.xlane.xlu0 %3606
        %v3608 = vsel %vm2010, %v3077, -inf
        %3609 = vmax.xlane.f32.xlu0 %v3608
        %v3610 = vpop.xlane.xlu0 %3609
        %v3611 = vsel %vm2010, %v3211, -inf
        %3612 = vmax.xlane.f32.xlu0 %v3611
        %v3613 = vpop.xlane.xlu0 %3612
        %v3614 = vsel %vm2010, %v3216, -inf
        %3615 = vmax.xlane.f32.xlu0 %v3614
        %v3616 = vpop.xlane.xlu0 %3615
        %v3617 = vsel %vm2010, %v3221, -inf
        %3618 = vmax.xlane.f32.xlu0 %v3617
        %v3619 = vpop.xlane.xlu0 %3618
        %v3620 = vsel %vm2010, %v3226, -inf
        %3621 = vmax.xlane.f32.xlu0 %v3620
        %v3622 = vpop.xlane.xlu0 %3621
        %v3623 = vsel %vm2010, %v3231, -inf
        %3624 = vmax.xlane.f32.xlu0 %v3623
        %v3625 = vpop.xlane.xlu0 %3624
        %v3626 = vsel %vm2010, %v3236, -inf
        %3627 = vmax.xlane.f32.xlu0 %v3626
        %v3628 = vpop.xlane.xlu0 %3627
        %v3629 = vsel %vm2010, %v3241, -inf
        %3630 = vmax.xlane.f32.xlu0 %v3629
        %v3631 = vpop.xlane.xlu0 %3630
        %v3632 = vsel %vm2010, %v3246, -inf
        %3633 = vmax.xlane.f32.xlu0 %v3632
        %v3634 = vpop.xlane.xlu0 %3633
        %v3635 = vsel %vm2010, %v3380, -inf
        %3636 = vmax.xlane.f32.xlu0 %v3635
        %v3637 = vpop.xlane.xlu0 %3636
        %v3638 = vsel %vm2010, %v3385, -inf
        %3639 = vmax.xlane.f32.xlu0 %v3638
        %v3640 = vpop.xlane.xlu0 %3639
        %v3641 = vsel %vm2010, %v3390, -inf
        %3642 = vmax.xlane.f32.xlu0 %v3641
        %v3643 = vpop.xlane.xlu0 %3642
        %v3644 = vsel %vm2010, %v3395, -inf
        %3645 = vmax.xlane.f32.xlu0 %v3644
        %v3646 = vpop.xlane.xlu0 %3645
        %v3647 = vsel %vm2010, %v3400, -inf
        %3648 = vmax.xlane.f32.xlu0 %v3647
        %v3649 = vpop.xlane.xlu0 %3648
        %v3650 = vsel %vm2010, %v3405, -inf
        %3651 = vmax.xlane.f32.xlu0 %v3650
        %v3652 = vpop.xlane.xlu0 %3651
        %v3653 = vsel %vm2010, %v3410, -inf
        %3654 = vmax.xlane.f32.xlu0 %v3653
        %v3655 = vpop.xlane.xlu0 %3654
        %v3656 = vsel %vm2010, %v3415, -inf
        %3657 = vmax.xlane.f32.xlu0 %v3656
        %v3658 = vpop.xlane.xlu0 %3657
        %v3659 = vsel %vm2010, %v3549, -inf
        %3660 = vmax.xlane.f32.xlu0 %v3659
        %v3661 = vpop.xlane.xlu0 %3660
        %v3662 = vsel %vm2010, %v3554, -inf
        %3663 = vmax.xlane.f32.xlu0 %v3662
        %v3664 = vpop.xlane.xlu0 %3663
        %v3665 = vsel %vm2010, %v3559, -inf
        %3666 = vmax.xlane.f32.xlu0 %v3665
        %v3667 = vpop.xlane.xlu0 %3666
        %v3668 = vsel %vm2010, %v3564, -inf
        %3669 = vmax.xlane.f32.xlu0 %v3668
        %v3670 = vpop.xlane.xlu0 %3669
        %v3671 = vsel %vm2010, %v3569, -inf
        %3672 = vmax.xlane.f32.xlu0 %v3671
        %v3673 = vpop.xlane.xlu0 %3672
        %v3674 = vsel %vm2010, %v3574, -inf
        %3675 = vmax.xlane.f32.xlu0 %v3674
        %v3676 = vpop.xlane.xlu0 %3675
        %v3677 = vsel %vm2010, %v3579, -inf
        %3678 = vmax.xlane.f32.xlu0 %v3677
        %v3679 = vpop.xlane.xlu0 %3678
        %v3680 = vsel %vm2010, %v3584, -inf
        %3681 = vmax.xlane.f32.xlu0 %v3680
        %v3682 = vpop.xlane.xlu0 %3681
        %v3683 = vsub.f32 %v3042, %v3589
        %v3684 = vsub.f32 %v3047, %v3592
        %v3685 = vsub.f32 %v3052, %v3595
        %v3686 = vsub.f32 %v3057, %v3598
        %v3687 = vsub.f32 %v3062, %v3601
        %v3688 = vsub.f32 %v3067, %v3604
        %v3689 = vsub.f32 %v3072, %v3607
        %v3690 = vsub.f32 %v3077, %v3610
        %v3691 = vsub.f32 %v3211, %v3613
        %v3692 = vsub.f32 %v3216, %v3616
        %v3693 = vsub.f32 %v3221, %v3619
        %v3694 = vsub.f32 %v3226, %v3622
        %v3695 = vsub.f32 %v3231, %v3625
        %v3696 = vsub.f32 %v3236, %v3628
        %v3697 = vsub.f32 %v3241, %v3631
        %v3698 = vsub.f32 %v3246, %v3634
        %v3699 = vsub.f32 %v3380, %v3637
        %v3700 = vsub.f32 %v3385, %v3640
        %v3701 = vsub.f32 %v3390, %v3643
        %v3702 = vsub.f32 %v3395, %v3646
        %v3703 = vsub.f32 %v3400, %v3649
        %v3704 = vsub.f32 %v3405, %v3652
        %v3705 = vsub.f32 %v3410, %v3655
        %v3706 = vsub.f32 %v3415, %v3658
        %v3707 = vsub.f32 %v3549, %v3661
        %v3708 = vsub.f32 %v3554, %v3664
        %v3709 = vsub.f32 %v3559, %v3667
        %v3710 = vsub.f32 %v3564, %v3670
        %v3711 = vsub.f32 %v3569, %v3673
        %v3712 = vsub.f32 %v3574, %v3676
        %v3713 = vsub.f32 %v3579, %v3679
        %v3714 = vsub.f32 %v3584, %v3682
        %v3715 = vmul.f32 %v3683, 1.442695
        %v3716 = vpow.pop %v3715
        %v3717 = vmul.f32 %v3684, 1.442695
        %v3718 = vpow.pop %v3717
        %v3719 = vmul.f32 %v3685, 1.442695
        %v3720 = vpow.pop %v3719
        %v3721 = vmul.f32 %v3686, 1.442695
        %v3722 = vpow.pop %v3721
        %v3723 = vmul.f32 %v3687, 1.442695
        %v3724 = vpow.pop %v3723
        %v3725 = vmul.f32 %v3688, 1.442695
        %v3726 = vpow.pop %v3725
        %v3727 = vmul.f32 %v3689, 1.442695
        %v3728 = vpow.pop %v3727
        %v3729 = vmul.f32 %v3690, 1.442695
        %v3730 = vpow.pop %v3729
        %v3731 = vmul.f32 %v3691, 1.442695
        %v3732 = vpow.pop %v3731
        %v3733 = vmul.f32 %v3692, 1.442695
        %v3734 = vpow.pop %v3733
        %v3735 = vmul.f32 %v3693, 1.442695
        %v3736 = vpow.pop %v3735
        %v3737 = vmul.f32 %v3694, 1.442695
        %v3738 = vpow.pop %v3737
        %v3739 = vmul.f32 %v3695, 1.442695
        %v3740 = vpow.pop %v3739
        %v3741 = vmul.f32 %v3696, 1.442695
        %v3742 = vpow.pop %v3741
        %v3743 = vmul.f32 %v3697, 1.442695
        %v3744 = vpow.pop %v3743
        %v3745 = vmul.f32 %v3698, 1.442695
        %v3746 = vpow.pop %v3745
        %v3747 = vmul.f32 %v3699, 1.442695
        %v3748 = vpow.pop %v3747
        %v3749 = vmul.f32 %v3700, 1.442695
        %v3750 = vpow.pop %v3749
        %v3751 = vmul.f32 %v3701, 1.442695
        %v3752 = vpow.pop %v3751
        %v3753 = vmul.f32 %v3702, 1.442695
        %v3754 = vpow.pop %v3753
        %v3755 = vmul.f32 %v3703, 1.442695
        %v3756 = vpow.pop %v3755
        %v3757 = vmul.f32 %v3704, 1.442695
        %v3758 = vpow.pop %v3757
        %v3759 = vmul.f32 %v3705, 1.442695
        %v3760 = vpow.pop %v3759
        %v3761 = vmul.f32 %v3706, 1.442695
        %v3762 = vpow.pop %v3761
        %v3763 = vmul.f32 %v3707, 1.442695
        %v3764 = vpow.pop %v3763
        %v3765 = vmul.f32 %v3708, 1.442695
        %v3766 = vpow.pop %v3765
        %v3767 = vmul.f32 %v3709, 1.442695
        %v3768 = vpow.pop %v3767
        %v3769 = vmul.f32 %v3710, 1.442695
        %v3770 = vpow.pop %v3769
        %v3771 = vmul.f32 %v3711, 1.442695
        %v3772 = vpow.pop %v3771
        %v3773 = vmul.f32 %v3712, 1.442695
        %v3774 = vpow.pop %v3773
        %v3775 = vmul.f32 %v3713, 1.442695
        %v3776 = vpow.pop %v3775
        %v3777 = vmul.f32 %v3714, 1.442695
        %v3778 = vpow.pop %v3777
        %v3779 = vsel %vm2010, %v3716, 0.0
        %3780 = vadd.xlane.f32.xlu0 %v3779
        %v3781 = vpop.xlane.xlu0 %3780
        %v3782 = vsel %vm2010, %v3718, 0.0
        %3783 = vadd.xlane.f32.xlu0 %v3782
        %v3784 = vpop.xlane.xlu0 %3783
        %v3785 = vsel %vm2010, %v3720, 0.0
        %3786 = vadd.xlane.f32.xlu0 %v3785
        %v3787 = vpop.xlane.xlu0 %3786
        %v3788 = vsel %vm2010, %v3722, 0.0
        %3789 = vadd.xlane.f32.xlu0 %v3788
        %v3790 = vpop.xlane.xlu0 %3789
        %v3791 = vsel %vm2010, %v3724, 0.0
        %3792 = vadd.xlane.f32.xlu0 %v3791
        %v3793 = vpop.xlane.xlu0 %3792
        %v3794 = vsel %vm2010, %v3726, 0.0
        %3795 = vadd.xlane.f32.xlu0 %v3794
        %v3796 = vpop.xlane.xlu0 %3795
        %v3797 = vsel %vm2010, %v3728, 0.0
        %3798 = vadd.xlane.f32.xlu0 %v3797
        %v3799 = vpop.xlane.xlu0 %3798
        %v3800 = vsel %vm2010, %v3730, 0.0
        %3801 = vadd.xlane.f32.xlu0 %v3800
        %v3802 = vpop.xlane.xlu0 %3801
        %v3803 = vsel %vm2010, %v3732, 0.0
        %3804 = vadd.xlane.f32.xlu0 %v3803
        %v3805 = vpop.xlane.xlu0 %3804
        %v3806 = vsel %vm2010, %v3734, 0.0
        %3807 = vadd.xlane.f32.xlu0 %v3806
        %v3808 = vpop.xlane.xlu0 %3807
        %v3809 = vsel %vm2010, %v3736, 0.0
        %3810 = vadd.xlane.f32.xlu0 %v3809
        %v3811 = vpop.xlane.xlu0 %3810
        %v3812 = vsel %vm2010, %v3738, 0.0
        %3813 = vadd.xlane.f32.xlu0 %v3812
        %v3814 = vpop.xlane.xlu0 %3813
        %v3815 = vsel %vm2010, %v3740, 0.0
        %3816 = vadd.xlane.f32.xlu0 %v3815
        %v3817 = vpop.xlane.xlu0 %3816
        %v3818 = vsel %vm2010, %v3742, 0.0
        %3819 = vadd.xlane.f32.xlu0 %v3818
        %v3820 = vpop.xlane.xlu0 %3819
        %v3821 = vsel %vm2010, %v3744, 0.0
        %3822 = vadd.xlane.f32.xlu0 %v3821
        %v3823 = vpop.xlane.xlu0 %3822
        %v3824 = vsel %vm2010, %v3746, 0.0
        %3825 = vadd.xlane.f32.xlu0 %v3824
        %v3826 = vpop.xlane.xlu0 %3825
        %v3827 = vsel %vm2010, %v3748, 0.0
        %3828 = vadd.xlane.f32.xlu0 %v3827
        %v3829 = vpop.xlane.xlu0 %3828
        %v3830 = vsel %vm2010, %v3750, 0.0
        %3831 = vadd.xlane.f32.xlu0 %v3830
        %v3832 = vpop.xlane.xlu0 %3831
        %v3833 = vsel %vm2010, %v3752, 0.0
        %3834 = vadd.xlane.f32.xlu0 %v3833
        %v3835 = vpop.xlane.xlu0 %3834
        %v3836 = vsel %vm2010, %v3754, 0.0
        %3837 = vadd.xlane.f32.xlu0 %v3836
        %v3838 = vpop.xlane.xlu0 %3837
        %v3839 = vsel %vm2010, %v3756, 0.0
        %3840 = vadd.xlane.f32.xlu0 %v3839
        %v3841 = vpop.xlane.xlu0 %3840
        %v3842 = vsel %vm2010, %v3758, 0.0
        %3843 = vadd.xlane.f32.xlu0 %v3842
        %v3844 = vpop.xlane.xlu0 %3843
        %v3845 = vsel %vm2010, %v3760, 0.0
        %3846 = vadd.xlane.f32.xlu0 %v3845
        %v3847 = vpop.xlane.xlu0 %3846
        %v3848 = vsel %vm2010, %v3762, 0.0
        %3849 = vadd.xlane.f32.xlu0 %v3848
        %v3850 = vpop.xlane.xlu0 %3849
        %v3851 = vsel %vm2010, %v3764, 0.0
        %3852 = vadd.xlane.f32.xlu0 %v3851
        %v3853 = vpop.xlane.xlu0 %3852
        %v3854 = vsel %vm2010, %v3766, 0.0
        %3855 = vadd.xlane.f32.xlu0 %v3854
        %v3856 = vpop.xlane.xlu0 %3855
        %v3857 = vsel %vm2010, %v3768, 0.0
        %3858 = vadd.xlane.f32.xlu0 %v3857
        %v3859 = vpop.xlane.xlu0 %3858
        %v3860 = vsel %vm2010, %v3770, 0.0
        %3861 = vadd.xlane.f32.xlu0 %v3860
        %v3862 = vpop.xlane.xlu0 %3861
        %v3863 = vsel %vm2010, %v3772, 0.0
        %3864 = vadd.xlane.f32.xlu0 %v3863
        %v3865 = vpop.xlane.xlu0 %3864
        %v3866 = vsel %vm2010, %v3774, 0.0
        %3867 = vadd.xlane.f32.xlu0 %v3866
        %v3868 = vpop.xlane.xlu0 %3867
        %v3869 = vsel %vm2010, %v3776, 0.0
        %3870 = vadd.xlane.f32.xlu0 %v3869
        %v3871 = vpop.xlane.xlu0 %3870
        %v3872 = vsel %vm2010, %v3778, 0.0
        %3873 = vadd.xlane.f32.xlu0 %v3872
        %v3874 = vpop.xlane.xlu0 %3873
        %v3875 = vrcp.pop %v3781
        %v3876 = vrcp.pop %v3784
        %v3877 = vrcp.pop %v3787
        %v3878 = vrcp.pop %v3790
        %v3879 = vrcp.pop %v3793
        %v3880 = vrcp.pop %v3796
        %v3881 = vrcp.pop %v3799
        %v3882 = vrcp.pop %v3802
        %v3883 = vrcp.pop %v3805
        %v3884 = vrcp.pop %v3808
        %v3885 = vrcp.pop %v3811
        %v3886 = vrcp.pop %v3814
        %v3887 = vrcp.pop %v3817
        %v3888 = vrcp.pop %v3820
        %v3889 = vrcp.pop %v3823
        %v3890 = vrcp.pop %v3826
        %v3891 = vrcp.pop %v3829
        %v3892 = vrcp.pop %v3832
        %v3893 = vrcp.pop %v3835
        %v3894 = vrcp.pop %v3838
        %v3895 = vrcp.pop %v3841
        %v3896 = vrcp.pop %v3844
        %v3897 = vrcp.pop %v3847
        %v3898 = vrcp.pop %v3850
        %v3899 = vrcp.pop %v3853
        %v3900 = vrcp.pop %v3856
        %v3901 = vrcp.pop %v3859
        %v3902 = vrcp.pop %v3862
        %v3903 = vrcp.pop %v3865
        %v3904 = vrcp.pop %v3868
        %v3905 = vrcp.pop %v3871
        %v3906 = vrcp.pop %v3874
        %v3907 = vmul.f32 %v3716, %v3875
        %v3908 = vmul.f32 %v3718, %v3876
        %v3909 = vmul.f32 %v3720, %v3877
        %v3910 = vmul.f32 %v3722, %v3878
        %v3911 = vmul.f32 %v3724, %v3879
        %v3912 = vmul.f32 %v3726, %v3880
        %v3913 = vmul.f32 %v3728, %v3881
        %v3914 = vmul.f32 %v3730, %v3882
        %v3915 = vmul.f32 %v3732, %v3883
        %v3916 = vmul.f32 %v3734, %v3884
        %v3917 = vmul.f32 %v3736, %v3885
        %v3918 = vmul.f32 %v3738, %v3886
        %v3919 = vmul.f32 %v3740, %v3887
        %v3920 = vmul.f32 %v3742, %v3888
        %v3921 = vmul.f32 %v3744, %v3889
        %v3922 = vmul.f32 %v3746, %v3890
        %v3923 = vmul.f32 %v3748, %v3891
        %v3924 = vmul.f32 %v3750, %v3892
        %v3925 = vmul.f32 %v3752, %v3893
        %v3926 = vmul.f32 %v3754, %v3894
        %v3927 = vmul.f32 %v3756, %v3895
        %v3928 = vmul.f32 %v3758, %v3896
        %v3929 = vmul.f32 %v3760, %v3897
        %v3930 = vmul.f32 %v3762, %v3898
        %v3931 = vmul.f32 %v3764, %v3899
        %v3932 = vmul.f32 %v3766, %v3900
        %v3933 = vmul.f32 %v3768, %v3901
        %v3934 = vmul.f32 %v3770, %v3902
        %v3935 = vmul.f32 %v3772, %v3903
        %v3936 = vmul.f32 %v3774, %v3904
        %v3937 = vmul.f32 %v3776, %v3905
        %v3938 = vmul.f32 %v3778, %v3906
        %3947 = vrot.lane.b32.xlu0 %v1207, 96
        %v3948 = vpop.permute.xlu0 %3947
        %3949 = vrot.lane.b32.xlu0 %v1212, 96
        %v3950 = vpop.permute.xlu0 %3949
        %3951 = vrot.lane.b32.xlu0 %v1217, 96
        %v3952 = vpop.permute.xlu0 %3951
        %3953 = vrot.lane.b32.xlu0 %v1222, 96
        %v3954 = vpop.permute.xlu0 %3953
        %3955 = vrot.lane.b32.xlu0 %v1227, 96
        %v3956 = vpop.permute.xlu0 %3955
        %3957 = vrot.lane.b32.xlu0 %v1232, 96
        %v3958 = vpop.permute.xlu0 %3957
        %3959 = vrot.lane.b32.xlu0 %v1237, 96
        %v3960 = vpop.permute.xlu0 %3959
        %3961 = vrot.lane.b32.xlu0 %v1242, 96
        %v3962 = vpop.permute.xlu0 %3961
        %v3972 = vsel %vm2010, %v3907, 0
        %v3975 = vsel %vm2010, %v3908, 0
        %v3978 = vsel %vm2010, %v3909, 0
        %v3981 = vsel %vm2010, %v3910, 0
        %v3984 = vsel %vm2010, %v3911, 0
        %v3987 = vsel %vm2010, %v3912, 0
        %v3990 = vsel %vm2010, %v3913, 0
        %v3993 = vsel %vm2010, %v3914, 0
        %3995 = vmatprep.subr.mxu0 0.0
        %3996 = vmatpush1.msra.mxu0 0.0
        %3997 = vmatprep.subr.mxu0 0.0
        %3998 = vmatpush1.msra.mxu0 0.0
        %3999 = vmatprep.subr.mxu0 0.0
        %4000 = vmatpush1.msra.mxu0 0.0
        %4001 = vmatprep.subr.mxu0 0.0
        %4002 = vmatpush1.msra.mxu0 0.0
        %4003 = vmatprep.subr.mxu0 0.0
        %4004 = vmatpush1.msra.mxu0 0.0
        %4005 = vmatprep.subr.mxu0 0.0
        %4006 = vmatpush1.msra.mxu0 0.0
        %4007 = vmatprep.subr.mxu0 0.0
        %4008 = vmatpush1.msra.mxu0 0.0
        %4009 = vmatprep.subr.mxu0 0.0
        %4010 = vmatpush1.msra.mxu0 0.0
        %4011 = vmatprep.subr.mxu0 0.0
        %4012 = vmatpush1.msra.mxu0 %v3962
        %4013 = vmatprep.subr.mxu0 0.0
        %4014 = vmatpush1.msra.mxu0 %v3960
        %4015 = vmatprep.subr.mxu0 0.0
        %4016 = vmatpush1.msra.mxu0 %v3958
        %4017 = vmatprep.subr.mxu0 0.0
        %4018 = vmatpush1.msra.mxu0 %v3956
        %4019 = vmatprep.subr.mxu0 0.0
        %4020 = vmatpush1.msra.mxu0 %v3954
        %4021 = vmatprep.subr.mxu0 0.0
        %4022 = vmatpush1.msra.mxu0 %v3952
        %4023 = vmatprep.subr.mxu0 0.0
        %4024 = vmatpush1.msra.mxu0 %v3950
        %4025 = vmatprep.subr.mxu0 0.0
        %4026 = vmatpush1.msra.mxu0 %v3948
        %4027 = vmatprep.subr.mxu0 0.0
        %4028 = vmatpush2.msra.mxu0 0.0
        %4029 = vmatprep.subr.mxu0 0.0
        %4030 = vmatpush2.msra.mxu0 0.0
        %4031 = vmatprep.subr.mxu0 0.0
        %4032 = vmatpush2.msra.mxu0 0.0
        %4033 = vmatprep.subr.mxu0 0.0
        %4034 = vmatpush2.msra.mxu0 0.0
        %4035 = vmatprep.subr.mxu0 0.0
        %4036 = vmatpush2.msra.mxu0 0.0
        %4037 = vmatprep.subr.mxu0 0.0
        %4038 = vmatpush2.msra.mxu0 0.0
        %4039 = vmatprep.subr.mxu0 0.0
        %4040 = vmatpush2.msra.mxu0 0.0
        %4041 = vmatprep.subr.mxu0 0.0
        %4042 = vmatpush2.msra.mxu0 0.0
        %4043 = vmatprep.subr.mxu0 0.0
        %4044 = vmatpush2.msra.mxu0 0.0
        %4045 = vmatprep.subr.mxu0 0.0
        %4046 = vmatpush2.msra.mxu0 0.0
        %4047 = vmatprep.subr.mxu0 0.0
        %4048 = vmatpush2.msra.mxu0 0.0
        %4049 = vmatprep.subr.mxu0 0.0
        %4050 = vmatpush2.msra.mxu0 0.0
        %4051 = vmatprep.subr.mxu0 0.0
        %4052 = vmatpush2.msra.mxu0 0.0
        %4053 = vmatprep.subr.mxu0 0.0
        %4054 = vmatpush2.msra.mxu0 0.0
        %4055 = vmatprep.subr.mxu0 0.0
        %4056 = vmatpush2.msra.mxu0 0.0
        %4057 = vmatprep.subr.mxu0 0.0
        %4058 = vmatpush2.msra.mxu0 0.0
        %4059 = vmatprep.mubr.f32.mxu0 0.0
        %4060 = vmatmul.mubr.f32.gmra.mxu0 %v3972
        %v4061 = vpop.f32.mrf.mxu0
        %v4062 = vadd.f32 0.0, %v4061
        %v4063 = vpop.f32.mrf.mxu0
        %4064 = vmatprep.mubr.f32.mxu0 0.0
        %4065 = vmatmul.mubr.f32.gmra.mxu0 %v3975
        %v4066 = vpop.f32.mrf.mxu0
        %v4067 = vadd.f32 0.0, %v4066
        %v4068 = vpop.f32.mrf.mxu0
        %4069 = vmatprep.mubr.f32.mxu0 0.0
        %4070 = vmatmul.mubr.f32.gmra.mxu0 %v3978
        %v4071 = vpop.f32.mrf.mxu0
        %v4072 = vadd.f32 0.0, %v4071
        %v4073 = vpop.f32.mrf.mxu0
        %4074 = vmatprep.mubr.f32.mxu0 0.0
        %4075 = vmatmul.mubr.f32.gmra.mxu0 %v3981
        %v4076 = vpop.f32.mrf.mxu0
        %v4077 = vadd.f32 0.0, %v4076
        %v4078 = vpop.f32.mrf.mxu0
        %4079 = vmatprep.mubr.f32.mxu0 0.0
        %4080 = vmatmul.mubr.f32.gmra.mxu0 %v3984
        %v4081 = vpop.f32.mrf.mxu0
        %v4082 = vadd.f32 0.0, %v4081
        %v4083 = vpop.f32.mrf.mxu0
        %4084 = vmatprep.mubr.f32.mxu0 0.0
        %4085 = vmatmul.mubr.f32.gmra.mxu0 %v3987
        %v4086 = vpop.f32.mrf.mxu0
        %v4087 = vadd.f32 0.0, %v4086
        %v4088 = vpop.f32.mrf.mxu0
        %4089 = vmatprep.mubr.f32.mxu0 0.0
        %4090 = vmatmul.mubr.f32.gmra.mxu0 %v3990
        %v4091 = vpop.f32.mrf.mxu0
        %v4092 = vadd.f32 0.0, %v4091
        %v4093 = vpop.f32.mrf.mxu0
        %4094 = vmatprep.mubr.f32.mxu0 0.0
        %4095 = vmatmul.mubr.f32.gmra.mxu0 %v3993
        %v4096 = vpop.f32.mrf.mxu0
        %v4097 = vadd.f32 0.0, %v4096
        %v4098 = vpop.f32.mrf.mxu0
        %4099 = vdwg.mxu0
        %4108 = vrot.lane.b32.xlu0 %v1247, 96
        %v4109 = vpop.permute.xlu0 %4108
        %4110 = vrot.lane.b32.xlu0 %v1252, 96
        %v4111 = vpop.permute.xlu0 %4110
        %4112 = vrot.lane.b32.xlu0 %v1257, 96
        %v4113 = vpop.permute.xlu0 %4112
        %4114 = vrot.lane.b32.xlu0 %v1262, 96
        %v4115 = vpop.permute.xlu0 %4114
        %4116 = vrot.lane.b32.xlu0 %v1267, 96
        %v4117 = vpop.permute.xlu0 %4116
        %4118 = vrot.lane.b32.xlu0 %v1272, 96
        %v4119 = vpop.permute.xlu0 %4118
        %4120 = vrot.lane.b32.xlu0 %v1277, 96
        %v4121 = vpop.permute.xlu0 %4120
        %4122 = vrot.lane.b32.xlu0 %v1282, 96
        %v4123 = vpop.permute.xlu0 %4122
        %v4133 = vsel %vm2010, %v3915, 0
        %v4136 = vsel %vm2010, %v3916, 0
        %v4139 = vsel %vm2010, %v3917, 0
        %v4142 = vsel %vm2010, %v3918, 0
        %v4145 = vsel %vm2010, %v3919, 0
        %v4148 = vsel %vm2010, %v3920, 0
        %v4151 = vsel %vm2010, %v3921, 0
        %v4154 = vsel %vm2010, %v3922, 0
        %4156 = vmatprep.subr.mxu0 0.0
        %4157 = vmatpush1.msra.mxu0 0.0
        %4158 = vmatprep.subr.mxu0 0.0
        %4159 = vmatpush1.msra.mxu0 0.0
        %4160 = vmatprep.subr.mxu0 0.0
        %4161 = vmatpush1.msra.mxu0 0.0
        %4162 = vmatprep.subr.mxu0 0.0
        %4163 = vmatpush1.msra.mxu0 0.0
        %4164 = vmatprep.subr.mxu0 0.0
        %4165 = vmatpush1.msra.mxu0 0.0
        %4166 = vmatprep.subr.mxu0 0.0
        %4167 = vmatpush1.msra.mxu0 0.0
        %4168 = vmatprep.subr.mxu0 0.0
        %4169 = vmatpush1.msra.mxu0 0.0
        %4170 = vmatprep.subr.mxu0 0.0
        %4171 = vmatpush1.msra.mxu0 0.0
        %4172 = vmatprep.subr.mxu0 0.0
        %4173 = vmatpush1.msra.mxu0 %v4123
        %4174 = vmatprep.subr.mxu0 0.0
        %4175 = vmatpush1.msra.mxu0 %v4121
        %4176 = vmatprep.subr.mxu0 0.0
        %4177 = vmatpush1.msra.mxu0 %v4119
        %4178 = vmatprep.subr.mxu0 0.0
        %4179 = vmatpush1.msra.mxu0 %v4117
        %4180 = vmatprep.subr.mxu0 0.0
        %4181 = vmatpush1.msra.mxu0 %v4115
        %4182 = vmatprep.subr.mxu0 0.0
        %4183 = vmatpush1.msra.mxu0 %v4113
        %4184 = vmatprep.subr.mxu0 0.0
        %4185 = vmatpush1.msra.mxu0 %v4111
        %4186 = vmatprep.subr.mxu0 0.0
        %4187 = vmatpush1.msra.mxu0 %v4109
        %4188 = vmatprep.subr.mxu0 0.0
        %4189 = vmatpush2.msra.mxu0 0.0
        %4190 = vmatprep.subr.mxu0 0.0
        %4191 = vmatpush2.msra.mxu0 0.0
        %4192 = vmatprep.subr.mxu0 0.0
        %4193 = vmatpush2.msra.mxu0 0.0
        %4194 = vmatprep.subr.mxu0 0.0
        %4195 = vmatpush2.msra.mxu0 0.0
        %4196 = vmatprep.subr.mxu0 0.0
        %4197 = vmatpush2.msra.mxu0 0.0
        %4198 = vmatprep.subr.mxu0 0.0
        %4199 = vmatpush2.msra.mxu0 0.0
        %4200 = vmatprep.subr.mxu0 0.0
        %4201 = vmatpush2.msra.mxu0 0.0
        %4202 = vmatprep.subr.mxu0 0.0
        %4203 = vmatpush2.msra.mxu0 0.0
        %4204 = vmatprep.subr.mxu0 0.0
        %4205 = vmatpush2.msra.mxu0 0.0
        %4206 = vmatprep.subr.mxu0 0.0
        %4207 = vmatpush2.msra.mxu0 0.0
        %4208 = vmatprep.subr.mxu0 0.0
        %4209 = vmatpush2.msra.mxu0 0.0
        %4210 = vmatprep.subr.mxu0 0.0
        %4211 = vmatpush2.msra.mxu0 0.0
        %4212 = vmatprep.subr.mxu0 0.0
        %4213 = vmatpush2.msra.mxu0 0.0
        %4214 = vmatprep.subr.mxu0 0.0
        %4215 = vmatpush2.msra.mxu0 0.0
        %4216 = vmatprep.subr.mxu0 0.0
        %4217 = vmatpush2.msra.mxu0 0.0
        %4218 = vmatprep.subr.mxu0 0.0
        %4219 = vmatpush2.msra.mxu0 0.0
        %4220 = vmatprep.mubr.f32.mxu0 0.0
        %4221 = vmatmul.mubr.f32.gmra.mxu0 %v4133
        %v4222 = vpop.f32.mrf.mxu0
        %v4223 = vadd.f32 0.0, %v4222
        %v4224 = vpop.f32.mrf.mxu0
        %4225 = vmatprep.mubr.f32.mxu0 0.0
        %4226 = vmatmul.mubr.f32.gmra.mxu0 %v4136
        %v4227 = vpop.f32.mrf.mxu0
        %v4228 = vadd.f32 0.0, %v4227
        %v4229 = vpop.f32.mrf.mxu0
        %4230 = vmatprep.mubr.f32.mxu0 0.0
        %4231 = vmatmul.mubr.f32.gmra.mxu0 %v4139
        %v4232 = vpop.f32.mrf.mxu0
        %v4233 = vadd.f32 0.0, %v4232
        %v4234 = vpop.f32.mrf.mxu0
        %4235 = vmatprep.mubr.f32.mxu0 0.0
        %4236 = vmatmul.mubr.f32.gmra.mxu0 %v4142
        %v4237 = vpop.f32.mrf.mxu0
        %v4238 = vadd.f32 0.0, %v4237
        %v4239 = vpop.f32.mrf.mxu0
        %4240 = vmatprep.mubr.f32.mxu0 0.0
        %4241 = vmatmul.mubr.f32.gmra.mxu0 %v4145
        %v4242 = vpop.f32.mrf.mxu0
        %v4243 = vadd.f32 0.0, %v4242
        %v4244 = vpop.f32.mrf.mxu0
        %4245 = vmatprep.mubr.f32.mxu0 0.0
        %4246 = vmatmul.mubr.f32.gmra.mxu0 %v4148
        %v4247 = vpop.f32.mrf.mxu0
        %v4248 = vadd.f32 0.0, %v4247
        %v4249 = vpop.f32.mrf.mxu0
        %4250 = vmatprep.mubr.f32.mxu0 0.0
        %4251 = vmatmul.mubr.f32.gmra.mxu0 %v4151
        %v4252 = vpop.f32.mrf.mxu0
        %v4253 = vadd.f32 0.0, %v4252
        %v4254 = vpop.f32.mrf.mxu0
        %4255 = vmatprep.mubr.f32.mxu0 0.0
        %4256 = vmatmul.mubr.f32.gmra.mxu0 %v4154
        %v4257 = vpop.f32.mrf.mxu0
        %v4258 = vadd.f32 0.0, %v4257
        %v4259 = vpop.f32.mrf.mxu0
        %4260 = vdwg.mxu0
        %4269 = vrot.lane.b32.xlu0 %v1287, 96
        %v4270 = vpop.permute.xlu0 %4269
        %4271 = vrot.lane.b32.xlu0 %v1292, 96
        %v4272 = vpop.permute.xlu0 %4271
        %4273 = vrot.lane.b32.xlu0 %v1297, 96
        %v4274 = vpop.permute.xlu0 %4273
        %4275 = vrot.lane.b32.xlu0 %v1302, 96
        %v4276 = vpop.permute.xlu0 %4275
        %4277 = vrot.lane.b32.xlu0 %v1307, 96
        %v4278 = vpop.permute.xlu0 %4277
        %4279 = vrot.lane.b32.xlu0 %v1312, 96
        %v4280 = vpop.permute.xlu0 %4279
        %4281 = vrot.lane.b32.xlu0 %v1317, 96
        %v4282 = vpop.permute.xlu0 %4281
        %4283 = vrot.lane.b32.xlu0 %v1322, 96
        %v4284 = vpop.permute.xlu0 %4283
        %v4294 = vsel %vm2010, %v3923, 0
        %v4297 = vsel %vm2010, %v3924, 0
        %v4300 = vsel %vm2010, %v3925, 0
        %v4303 = vsel %vm2010, %v3926, 0
        %v4306 = vsel %vm2010, %v3927, 0
        %v4309 = vsel %vm2010, %v3928, 0
        %v4312 = vsel %vm2010, %v3929, 0
        %v4315 = vsel %vm2010, %v3930, 0
        %4317 = vmatprep.subr.mxu0 0.0
        %4318 = vmatpush1.msra.mxu0 0.0
        %4319 = vmatprep.subr.mxu0 0.0
        %4320 = vmatpush1.msra.mxu0 0.0
        %4321 = vmatprep.subr.mxu0 0.0
        %4322 = vmatpush1.msra.mxu0 0.0
        %4323 = vmatprep.subr.mxu0 0.0
        %4324 = vmatpush1.msra.mxu0 0.0
        %4325 = vmatprep.subr.mxu0 0.0
        %4326 = vmatpush1.msra.mxu0 0.0
        %4327 = vmatprep.subr.mxu0 0.0
        %4328 = vmatpush1.msra.mxu0 0.0
        %4329 = vmatprep.subr.mxu0 0.0
        %4330 = vmatpush1.msra.mxu0 0.0
        %4331 = vmatprep.subr.mxu0 0.0
        %4332 = vmatpush1.msra.mxu0 0.0
        %4333 = vmatprep.subr.mxu0 0.0
        %4334 = vmatpush1.msra.mxu0 %v4284
        %4335 = vmatprep.subr.mxu0 0.0
        %4336 = vmatpush1.msra.mxu0 %v4282
        %4337 = vmatprep.subr.mxu0 0.0
        %4338 = vmatpush1.msra.mxu0 %v4280
        %4339 = vmatprep.subr.mxu0 0.0
        %4340 = vmatpush1.msra.mxu0 %v4278
        %4341 = vmatprep.subr.mxu0 0.0
        %4342 = vmatpush1.msra.mxu0 %v4276
        %4343 = vmatprep.subr.mxu0 0.0
        %4344 = vmatpush1.msra.mxu0 %v4274
        %4345 = vmatprep.subr.mxu0 0.0
        %4346 = vmatpush1.msra.mxu0 %v4272
        %4347 = vmatprep.subr.mxu0 0.0
        %4348 = vmatpush1.msra.mxu0 %v4270
        %4349 = vmatprep.subr.mxu0 0.0
        %4350 = vmatpush2.msra.mxu0 0.0
        %4351 = vmatprep.subr.mxu0 0.0
        %4352 = vmatpush2.msra.mxu0 0.0
        %4353 = vmatprep.subr.mxu0 0.0
        %4354 = vmatpush2.msra.mxu0 0.0
        %4355 = vmatprep.subr.mxu0 0.0
        %4356 = vmatpush2.msra.mxu0 0.0
        %4357 = vmatprep.subr.mxu0 0.0
        %4358 = vmatpush2.msra.mxu0 0.0
        %4359 = vmatprep.subr.mxu0 0.0
        %4360 = vmatpush2.msra.mxu0 0.0
        %4361 = vmatprep.subr.mxu0 0.0
        %4362 = vmatpush2.msra.mxu0 0.0
        %4363 = vmatprep.subr.mxu0 0.0
        %4364 = vmatpush2.msra.mxu0 0.0
        %4365 = vmatprep.subr.mxu0 0.0
        %4366 = vmatpush2.msra.mxu0 0.0
        %4367 = vmatprep.subr.mxu0 0.0
        %4368 = vmatpush2.msra.mxu0 0.0
        %4369 = vmatprep.subr.mxu0 0.0
        %4370 = vmatpush2.msra.mxu0 0.0
        %4371 = vmatprep.subr.mxu0 0.0
        %4372 = vmatpush2.msra.mxu0 0.0
        %4373 = vmatprep.subr.mxu0 0.0
        %4374 = vmatpush2.msra.mxu0 0.0
        %4375 = vmatprep.subr.mxu0 0.0
        %4376 = vmatpush2.msra.mxu0 0.0
        %4377 = vmatprep.subr.mxu0 0.0
        %4378 = vmatpush2.msra.mxu0 0.0
        %4379 = vmatprep.subr.mxu0 0.0
        %4380 = vmatpush2.msra.mxu0 0.0
        %4381 = vmatprep.mubr.f32.mxu0 0.0
        %4382 = vmatmul.mubr.f32.gmra.mxu0 %v4294
        %v4383 = vpop.f32.mrf.mxu0
        %v4384 = vadd.f32 0.0, %v4383
        %v4385 = vpop.f32.mrf.mxu0
        %4386 = vmatprep.mubr.f32.mxu0 0.0
        %4387 = vmatmul.mubr.f32.gmra.mxu0 %v4297
        %v4388 = vpop.f32.mrf.mxu0
        %v4389 = vadd.f32 0.0, %v4388
        %v4390 = vpop.f32.mrf.mxu0
        %4391 = vmatprep.mubr.f32.mxu0 0.0
        %4392 = vmatmul.mubr.f32.gmra.mxu0 %v4300
        %v4393 = vpop.f32.mrf.mxu0
        %v4394 = vadd.f32 0.0, %v4393
        %v4395 = vpop.f32.mrf.mxu0
        %4396 = vmatprep.mubr.f32.mxu0 0.0
        %4397 = vmatmul.mubr.f32.gmra.mxu0 %v4303
        %v4398 = vpop.f32.mrf.mxu0
        %v4399 = vadd.f32 0.0, %v4398
        %v4400 = vpop.f32.mrf.mxu0
        %4401 = vmatprep.mubr.f32.mxu0 0.0
        %4402 = vmatmul.mubr.f32.gmra.mxu0 %v4306
        %v4403 = vpop.f32.mrf.mxu0
        %v4404 = vadd.f32 0.0, %v4403
        %v4405 = vpop.f32.mrf.mxu0
        %4406 = vmatprep.mubr.f32.mxu0 0.0
        %4407 = vmatmul.mubr.f32.gmra.mxu0 %v4309
        %v4408 = vpop.f32.mrf.mxu0
        %v4409 = vadd.f32 0.0, %v4408
        %v4410 = vpop.f32.mrf.mxu0
        %4411 = vmatprep.mubr.f32.mxu0 0.0
        %4412 = vmatmul.mubr.f32.gmra.mxu0 %v4312
        %v4413 = vpop.f32.mrf.mxu0
        %v4414 = vadd.f32 0.0, %v4413
        %v4415 = vpop.f32.mrf.mxu0
        %4416 = vmatprep.mubr.f32.mxu0 0.0
        %4417 = vmatmul.mubr.f32.gmra.mxu0 %v4315
        %v4418 = vpop.f32.mrf.mxu0
        %v4419 = vadd.f32 0.0, %v4418
        %v4420 = vpop.f32.mrf.mxu0
        %4421 = vdwg.mxu0
        %4430 = vrot.lane.b32.xlu0 %v1327, 96
        %v4431 = vpop.permute.xlu0 %4430
        %4432 = vrot.lane.b32.xlu0 %v1332, 96
        %v4433 = vpop.permute.xlu0 %4432
        %4434 = vrot.lane.b32.xlu0 %v1337, 96
        %v4435 = vpop.permute.xlu0 %4434
        %4436 = vrot.lane.b32.xlu0 %v1342, 96
        %v4437 = vpop.permute.xlu0 %4436
        %4438 = vrot.lane.b32.xlu0 %v1347, 96
        %v4439 = vpop.permute.xlu0 %4438
        %4440 = vrot.lane.b32.xlu0 %v1352, 96
        %v4441 = vpop.permute.xlu0 %4440
        %4442 = vrot.lane.b32.xlu0 %v1357, 96
        %v4443 = vpop.permute.xlu0 %4442
        %4444 = vrot.lane.b32.xlu0 %v1362, 96
        %v4445 = vpop.permute.xlu0 %4444
        %v4455 = vsel %vm2010, %v3931, 0
        %v4458 = vsel %vm2010, %v3932, 0
        %v4461 = vsel %vm2010, %v3933, 0
        %v4464 = vsel %vm2010, %v3934, 0
        %v4467 = vsel %vm2010, %v3935, 0
        %v4470 = vsel %vm2010, %v3936, 0
        %v4473 = vsel %vm2010, %v3937, 0
        %v4476 = vsel %vm2010, %v3938, 0
        %4478 = vmatprep.subr.mxu0 0.0
        %4479 = vmatpush1.msra.mxu0 0.0
        %4480 = vmatprep.subr.mxu0 0.0
        %4481 = vmatpush1.msra.mxu0 0.0
        %4482 = vmatprep.subr.mxu0 0.0
        %4483 = vmatpush1.msra.mxu0 0.0
        %4484 = vmatprep.subr.mxu0 0.0
        %4485 = vmatpush1.msra.mxu0 0.0
        %4486 = vmatprep.subr.mxu0 0.0
        %4487 = vmatpush1.msra.mxu0 0.0
        %4488 = vmatprep.subr.mxu0 0.0
        %4489 = vmatpush1.msra.mxu0 0.0
        %4490 = vmatprep.subr.mxu0 0.0
        %4491 = vmatpush1.msra.mxu0 0.0
        %4492 = vmatprep.subr.mxu0 0.0
        %4493 = vmatpush1.msra.mxu0 0.0
        %4494 = vmatprep.subr.mxu0 0.0
        %4495 = vmatpush1.msra.mxu0 %v4445
        %4496 = vmatprep.subr.mxu0 0.0
        %4497 = vmatpush1.msra.mxu0 %v4443
        %4498 = vmatprep.subr.mxu0 0.0
        %4499 = vmatpush1.msra.mxu0 %v4441
        %4500 = vmatprep.subr.mxu0 0.0
        %4501 = vmatpush1.msra.mxu0 %v4439
        %4502 = vmatprep.subr.mxu0 0.0
        %4503 = vmatpush1.msra.mxu0 %v4437
        %4504 = vmatprep.subr.mxu0 0.0
        %4505 = vmatpush1.msra.mxu0 %v4435
        %4506 = vmatprep.subr.mxu0 0.0
        %4507 = vmatpush1.msra.mxu0 %v4433
        %4508 = vmatprep.subr.mxu0 0.0
        %4509 = vmatpush1.msra.mxu0 %v4431
        %4510 = vmatprep.subr.mxu0 0.0
        %4511 = vmatpush2.msra.mxu0 0.0
        %4512 = vmatprep.subr.mxu0 0.0
        %4513 = vmatpush2.msra.mxu0 0.0
        %4514 = vmatprep.subr.mxu0 0.0
        %4515 = vmatpush2.msra.mxu0 0.0
        %4516 = vmatprep.subr.mxu0 0.0
        %4517 = vmatpush2.msra.mxu0 0.0
        %4518 = vmatprep.subr.mxu0 0.0
        %4519 = vmatpush2.msra.mxu0 0.0
        %4520 = vmatprep.subr.mxu0 0.0
        %4521 = vmatpush2.msra.mxu0 0.0
        %4522 = vmatprep.subr.mxu0 0.0
        %4523 = vmatpush2.msra.mxu0 0.0
        %4524 = vmatprep.subr.mxu0 0.0
        %4525 = vmatpush2.msra.mxu0 0.0
        %4526 = vmatprep.subr.mxu0 0.0
        %4527 = vmatpush2.msra.mxu0 0.0
        %4528 = vmatprep.subr.mxu0 0.0
        %4529 = vmatpush2.msra.mxu0 0.0
        %4530 = vmatprep.subr.mxu0 0.0
        %4531 = vmatpush2.msra.mxu0 0.0
        %4532 = vmatprep.subr.mxu0 0.0
        %4533 = vmatpush2.msra.mxu0 0.0
        %4534 = vmatprep.subr.mxu0 0.0
        %4535 = vmatpush2.msra.mxu0 0.0
        %4536 = vmatprep.subr.mxu0 0.0
        %4537 = vmatpush2.msra.mxu0 0.0
        %4538 = vmatprep.subr.mxu0 0.0
        %4539 = vmatpush2.msra.mxu0 0.0
        %4540 = vmatprep.subr.mxu0 0.0
        %4541 = vmatpush2.msra.mxu0 0.0
        %4542 = vmatprep.mubr.f32.mxu0 0.0
        %4543 = vmatmul.mubr.f32.gmra.mxu0 %v4455
        %v4544 = vpop.f32.mrf.mxu0
        %v4545 = vadd.f32 0.0, %v4544
        %v4546 = vpop.f32.mrf.mxu0
        %4547 = vmatprep.mubr.f32.mxu0 0.0
        %4548 = vmatmul.mubr.f32.gmra.mxu0 %v4458
        %v4549 = vpop.f32.mrf.mxu0
        %v4550 = vadd.f32 0.0, %v4549
        %v4551 = vpop.f32.mrf.mxu0
        %4552 = vmatprep.mubr.f32.mxu0 0.0
        %4553 = vmatmul.mubr.f32.gmra.mxu0 %v4461
        %v4554 = vpop.f32.mrf.mxu0
        %v4555 = vadd.f32 0.0, %v4554
        %v4556 = vpop.f32.mrf.mxu0
        %4557 = vmatprep.mubr.f32.mxu0 0.0
        %4558 = vmatmul.mubr.f32.gmra.mxu0 %v4464
        %v4559 = vpop.f32.mrf.mxu0
        %v4560 = vadd.f32 0.0, %v4559
        %v4561 = vpop.f32.mrf.mxu0
        %4562 = vmatprep.mubr.f32.mxu0 0.0
        %4563 = vmatmul.mubr.f32.gmra.mxu0 %v4467
        %v4564 = vpop.f32.mrf.mxu0
        %v4565 = vadd.f32 0.0, %v4564
        %v4566 = vpop.f32.mrf.mxu0
        %4567 = vmatprep.mubr.f32.mxu0 0.0
        %4568 = vmatmul.mubr.f32.gmra.mxu0 %v4470
        %v4569 = vpop.f32.mrf.mxu0
        %v4570 = vadd.f32 0.0, %v4569
        %v4571 = vpop.f32.mrf.mxu0
        %4572 = vmatprep.mubr.f32.mxu0 0.0
        %4573 = vmatmul.mubr.f32.gmra.mxu0 %v4473
        %v4574 = vpop.f32.mrf.mxu0
        %v4575 = vadd.f32 0.0, %v4574
        %v4576 = vpop.f32.mrf.mxu0
        %4577 = vmatprep.mubr.f32.mxu0 0.0
        %4578 = vmatmul.mubr.f32.gmra.mxu0 %v4476
        %v4579 = vpop.f32.mrf.mxu0
        %v4580 = vadd.f32 0.0, %v4579
        %v4581 = vpop.f32.mrf.mxu0
        %4582 = vdwg.mxu0
        %4615 = vrot.lane.b32.xlu0 %v4062, 32
        %v4616 = vpop.permute.xlu0 %4615
        %4617 = vrot.lane.b32.xlu0 %v4067, 32
        %v4618 = vpop.permute.xlu0 %4617
        %4619 = vrot.lane.b32.xlu0 %v4072, 32
        %v4620 = vpop.permute.xlu0 %4619
        %4621 = vrot.lane.b32.xlu0 %v4077, 32
        %v4622 = vpop.permute.xlu0 %4621
        %4623 = vrot.lane.b32.xlu0 %v4082, 32
        %v4624 = vpop.permute.xlu0 %4623
        %4625 = vrot.lane.b32.xlu0 %v4087, 32
        %v4626 = vpop.permute.xlu0 %4625
        %4627 = vrot.lane.b32.xlu0 %v4092, 32
        %v4628 = vpop.permute.xlu0 %4627
        %4629 = vrot.lane.b32.xlu0 %v4097, 32
        %v4630 = vpop.permute.xlu0 %4629
        %4631 = vrot.lane.b32.xlu0 %v4223, 32
        %v4632 = vpop.permute.xlu0 %4631
        %4633 = vrot.lane.b32.xlu0 %v4228, 32
        %v4634 = vpop.permute.xlu0 %4633
        %4635 = vrot.lane.b32.xlu0 %v4233, 32
        %v4636 = vpop.permute.xlu0 %4635
        %4637 = vrot.lane.b32.xlu0 %v4238, 32
        %v4638 = vpop.permute.xlu0 %4637
        %4639 = vrot.lane.b32.xlu0 %v4243, 32
        %v4640 = vpop.permute.xlu0 %4639
        %4641 = vrot.lane.b32.xlu0 %v4248, 32
        %v4642 = vpop.permute.xlu0 %4641
        %4643 = vrot.lane.b32.xlu0 %v4253, 32
        %v4644 = vpop.permute.xlu0 %4643
        %4645 = vrot.lane.b32.xlu0 %v4258, 32
        %v4646 = vpop.permute.xlu0 %4645
        %4647 = vrot.lane.b32.xlu0 %v4384, 32
        %v4648 = vpop.permute.xlu0 %4647
        %4649 = vrot.lane.b32.xlu0 %v4389, 32
        %v4650 = vpop.permute.xlu0 %4649
        %4651 = vrot.lane.b32.xlu0 %v4394, 32
        %v4652 = vpop.permute.xlu0 %4651
        %4653 = vrot.lane.b32.xlu0 %v4399, 32
        %v4654 = vpop.permute.xlu0 %4653
        %4655 = vrot.lane.b32.xlu0 %v4404, 32
        %v4656 = vpop.permute.xlu0 %4655
        %4657 = vrot.lane.b32.xlu0 %v4409, 32
        %v4658 = vpop.permute.xlu0 %4657
        %4659 = vrot.lane.b32.xlu0 %v4414, 32
        %v4660 = vpop.permute.xlu0 %4659
        %4661 = vrot.lane.b32.xlu0 %v4419, 32
        %v4662 = vpop.permute.xlu0 %4661
        %4663 = vrot.lane.b32.xlu0 %v4545, 32
        %v4664 = vpop.permute.xlu0 %4663
        %4665 = vrot.lane.b32.xlu0 %v4550, 32
        %v4666 = vpop.permute.xlu0 %4665
        %4667 = vrot.lane.b32.xlu0 %v4555, 32
        %v4668 = vpop.permute.xlu0 %4667
        %4669 = vrot.lane.b32.xlu0 %v4560, 32
        %v4670 = vpop.permute.xlu0 %4669
        %4671 = vrot.lane.b32.xlu0 %v4565, 32
        %v4672 = vpop.permute.xlu0 %4671
        %4673 = vrot.lane.b32.xlu0 %v4570, 32
        %v4674 = vpop.permute.xlu0 %4673
        %4675 = vrot.lane.b32.xlu0 %v4575, 32
        %v4676 = vpop.permute.xlu0 %4675
        %4677 = vrot.lane.b32.xlu0 %v4580, 32
        %v4678 = vpop.permute.xlu0 %4677
        %vm4711 = vcmask 523520
        %4712 = vst.msk [vmem:[#allocation2] sm:$0xff] %vm4711, %v4616
        %4713 = vst.msk [vmem:[#allocation2 + $0x8] sm:$0xff] %vm4711, %v4618
        %4714 = vst.msk [vmem:[#allocation2 + $0x10] sm:$0xff] %vm4711, %v4620
        %4715 = vst.msk [vmem:[#allocation2 + $0x18] sm:$0xff] %vm4711, %v4622
        %4716 = vst.msk [vmem:[#allocation2 + $0x20] sm:$0xff] %vm4711, %v4624
        %4717 = vst.msk [vmem:[#allocation2 + $0x28] sm:$0xff] %vm4711, %v4626
        %4718 = vst.msk [vmem:[#allocation2 + $0x30] sm:$0xff] %vm4711, %v4628
        %4719 = vst.msk [vmem:[#allocation2 + $0x38] sm:$0xff] %vm4711, %v4630
        %4720 = vst.msk [vmem:[#allocation2 + $0x40] sm:$0xff] %vm4711, %v4632
        %4721 = vst.msk [vmem:[#allocation2 + $0x48] sm:$0xff] %vm4711, %v4634
        %4722 = vst.msk [vmem:[#allocation2 + $0x50] sm:$0xff] %vm4711, %v4636
        %4723 = vst.msk [vmem:[#allocation2 + $0x58] sm:$0xff] %vm4711, %v4638
        %4724 = vst.msk [vmem:[#allocation2 + $0x60] sm:$0xff] %vm4711, %v4640
        %4725 = vst.msk [vmem:[#allocation2 + $0x68] sm:$0xff] %vm4711, %v4642
        %4726 = vst.msk [vmem:[#allocation2 + $0x70] sm:$0xff] %vm4711, %v4644
        %4727 = vst.msk [vmem:[#allocation2 + $0x78] sm:$0xff] %vm4711, %v4646
        %4728 = vst.msk [vmem:[#allocation2 + $0x80] sm:$0xff] %vm4711, %v4648
        %4729 = vst.msk [vmem:[#allocation2 + $0x88] sm:$0xff] %vm4711, %v4650
        %4730 = vst.msk [vmem:[#allocation2 + $0x90] sm:$0xff] %vm4711, %v4652
        %4731 = vst.msk [vmem:[#allocation2 + $0x98] sm:$0xff] %vm4711, %v4654
        %4732 = vst.msk [vmem:[#allocation2 + $0xa0] sm:$0xff] %vm4711, %v4656
        %4733 = vst.msk [vmem:[#allocation2 + $0xa8] sm:$0xff] %vm4711, %v4658
        %4734 = vst.msk [vmem:[#allocation2 + $0xb0] sm:$0xff] %vm4711, %v4660
        %4735 = vst.msk [vmem:[#allocation2 + $0xb8] sm:$0xff] %vm4711, %v4662
        %4736 = vst.msk [vmem:[#allocation2 + $0xc0] sm:$0xff] %vm4711, %v4664
        %4737 = vst.msk [vmem:[#allocation2 + $0xc8] sm:$0xff] %vm4711, %v4666
        %4738 = vst.msk [vmem:[#allocation2 + $0xd0] sm:$0xff] %vm4711, %v4668
        %4739 = vst.msk [vmem:[#allocation2 + $0xd8] sm:$0xff] %vm4711, %v4670
        %4740 = vst.msk [vmem:[#allocation2 + $0xe0] sm:$0xff] %vm4711, %v4672
        %4741 = vst.msk [vmem:[#allocation2 + $0xe8] sm:$0xff] %vm4711, %v4674
        %4742 = vst.msk [vmem:[#allocation2 + $0xf0] sm:$0xff] %vm4711, %v4676
        %4743 = vst.msk [vmem:[#allocation2 + $0xf8] sm:$0xff] %vm4711, %v4678
        %4744 = vrot.lane.b32.xlu0 %v1365, 64
        %v4745 = vpop.permute.xlu0 %4744
        %4746 = vrot.lane.b32.xlu0 %v1366, 64
        %v4747 = vpop.permute.xlu0 %4746
        %4748 = vrot.lane.b32.xlu0 %v1367, 64
        %v4749 = vpop.permute.xlu0 %4748
        %4750 = vrot.lane.b32.xlu0 %v1368, 64
        %v4751 = vpop.permute.xlu0 %4750
        %4752 = vrot.lane.b32.xlu0 %v1369, 64
        %v4753 = vpop.permute.xlu0 %4752
        %4754 = vrot.lane.b32.xlu0 %v1370, 64
        %v4755 = vpop.permute.xlu0 %4754
        %4756 = vrot.lane.b32.xlu0 %v1371, 64
        %v4757 = vpop.permute.xlu0 %4756
        %4758 = vrot.lane.b32.xlu0 %v1372, 64
        %v4759 = vpop.permute.xlu0 %4758
        %4760 = vrot.lane.b32.xlu0 %v959, 64
        %v4761 = vpop.permute.xlu0 %4760
        %4762 = vrot.lane.b32.xlu0 %v964, 64
        %v4763 = vpop.permute.xlu0 %4762
        %4764 = vrot.lane.b32.xlu0 %v969, 64
        %v4765 = vpop.permute.xlu0 %4764
        %4766 = vrot.lane.b32.xlu0 %v974, 64
        %v4767 = vpop.permute.xlu0 %4766
        %4768 = vrot.lane.b32.xlu0 %v979, 64
        %v4769 = vpop.permute.xlu0 %4768
        %4770 = vrot.lane.b32.xlu0 %v984, 64
        %v4771 = vpop.permute.xlu0 %4770
        %4772 = vrot.lane.b32.xlu0 %v989, 64
        %v4773 = vpop.permute.xlu0 %4772
        %4774 = vrot.lane.b32.xlu0 %v994, 64
        %v4775 = vpop.permute.xlu0 %4774
        %v4776 = vsel %vm1397, %v4745, 0
        %v4778 = vsel %vm1397, %v4747, 0
        %v4780 = vsel %vm1397, %v4749, 0
        %v4782 = vsel %vm1397, %v4751, 0
        %v4784 = vsel %vm1397, %v4753, 0
        %v4786 = vsel %vm1397, %v4755, 0
        %v4788 = vsel %vm1397, %v4757, 0
        %v4790 = vsel %vm1397, %v4759, 0
        %v4792 = vsel %vm1397, %v4761, 0
        %v4794 = vsel %vm1397, %v4763, 0
        %v4796 = vsel %vm1397, %v4765, 0
        %v4798 = vsel %vm1397, %v4767, 0
        %v4800 = vsel %vm1397, %v4769, 0
        %v4802 = vsel %vm1397, %v4771, 0
        %v4804 = vsel %vm1397, %v4773, 0
        %v4806 = vsel %vm1397, %v4775, 0
        %4808 = vmatprep.subr.mxu0 0.0
        %4809 = vmatpush1.xpose.msra.mxu0 0.0
        %4810 = vmatprep.subr.mxu0 0.0
        %4811 = vmatpush1.xpose.msra.mxu0 0.0
        %4812 = vmatprep.subr.mxu0 0.0
        %4813 = vmatpush1.xpose.msra.mxu0 0.0
        %4814 = vmatprep.subr.mxu0 0.0
        %4815 = vmatpush1.xpose.msra.mxu0 0.0
        %4816 = vmatprep.subr.mxu0 0.0
        %4817 = vmatpush1.xpose.msra.mxu0 0.0
        %4818 = vmatprep.subr.mxu0 0.0
        %4819 = vmatpush1.xpose.msra.mxu0 0.0
        %4820 = vmatprep.subr.mxu0 0.0
        %4821 = vmatpush1.xpose.msra.mxu0 0.0
        %4822 = vmatprep.subr.mxu0 0.0
        %4823 = vmatpush1.xpose.msra.mxu0 0.0
        %4824 = vmatprep.subr.mxu0 0.0
        %4825 = vmatpush1.xpose.msra.mxu0 %v4806
        %4826 = vmatprep.subr.mxu0 0.0
        %4827 = vmatpush1.xpose.msra.mxu0 %v4804
        %4828 = vmatprep.subr.mxu0 0.0
        %4829 = vmatpush1.xpose.msra.mxu0 %v4802
        %4830 = vmatprep.subr.mxu0 0.0
        %4831 = vmatpush1.xpose.msra.mxu0 %v4800
        %4832 = vmatprep.subr.mxu0 0.0
        %4833 = vmatpush1.xpose.msra.mxu0 %v4798
        %4834 = vmatprep.subr.mxu0 0.0
        %4835 = vmatpush1.xpose.msra.mxu0 %v4796
        %4836 = vmatprep.subr.mxu0 0.0
        %4837 = vmatpush1.xpose.msra.mxu0 %v4794
        %4838 = vmatprep.subr.mxu0 0.0
        %4839 = vmatpush1.xpose.msra.mxu0 %v4792
        %4840 = vmatprep.subr.mxu0 0.0
        %4841 = vmatpush2.xpose.msra.mxu0 0.0
        %4842 = vmatprep.subr.mxu0 0.0
        %4843 = vmatpush2.xpose.msra.mxu0 0.0
        %4844 = vmatprep.subr.mxu0 0.0
        %4845 = vmatpush2.xpose.msra.mxu0 0.0
        %4846 = vmatprep.subr.mxu0 0.0
        %4847 = vmatpush2.xpose.msra.mxu0 0.0
        %4848 = vmatprep.subr.mxu0 0.0
        %4849 = vmatpush2.xpose.msra.mxu0 0.0
        %4850 = vmatprep.subr.mxu0 0.0
        %4851 = vmatpush2.xpose.msra.mxu0 0.0
        %4852 = vmatprep.subr.mxu0 0.0
        %4853 = vmatpush2.xpose.msra.mxu0 0.0
        %4854 = vmatprep.subr.mxu0 0.0
        %4855 = vmatpush2.xpose.msra.mxu0 0.0
        %4856 = vmatprep.subr.mxu0 0.0
        %4857 = vmatpush2.xpose.msra.mxu0 0.0
        %4858 = vmatprep.subr.mxu0 0.0
        %4859 = vmatpush2.xpose.msra.mxu0 0.0
        %4860 = vmatprep.subr.mxu0 0.0
        %4861 = vmatpush2.xpose.msra.mxu0 0.0
        %4862 = vmatprep.subr.mxu0 0.0
        %4863 = vmatpush2.xpose.msra.mxu0 0.0
        %4864 = vmatprep.subr.mxu0 0.0
        %4865 = vmatpush2.xpose.msra.mxu0 0.0
        %4866 = vmatprep.subr.mxu0 0.0
        %4867 = vmatpush2.xpose.msra.mxu0 0.0
        %4868 = vmatprep.subr.mxu0 0.0
        %4869 = vmatpush2.xpose.msra.mxu0 0.0
        %4870 = vmatprep.subr.mxu0 0.0
        %4871 = vmatpush2.xpose.msra.mxu0 0.0
        %4872 = vmatprep.mubr.f32.mxu0 0.0
        %4873 = vmatmul.mubr.f32.gmra.mxu0 %v4776
        %v4874 = vpop.f32.mrf.mxu0
        %v4875 = vadd.f32 0.0, %v4874
        %v4876 = vpop.f32.mrf.mxu0
        %4877 = vmatprep.mubr.f32.mxu0 0.0
        %4878 = vmatmul.mubr.f32.gmra.mxu0 %v4778
        %v4879 = vpop.f32.mrf.mxu0
        %v4880 = vadd.f32 0.0, %v4879
        %v4881 = vpop.f32.mrf.mxu0
        %4882 = vmatprep.mubr.f32.mxu0 0.0
        %4883 = vmatmul.mubr.f32.gmra.mxu0 %v4780
        %v4884 = vpop.f32.mrf.mxu0
        %v4885 = vadd.f32 0.0, %v4884
        %v4886 = vpop.f32.mrf.mxu0
        %4887 = vmatprep.mubr.f32.mxu0 0.0
        %4888 = vmatmul.mubr.f32.gmra.mxu0 %v4782
        %v4889 = vpop.f32.mrf.mxu0
        %v4890 = vadd.f32 0.0, %v4889
        %v4891 = vpop.f32.mrf.mxu0
        %4892 = vmatprep.mubr.f32.mxu0 0.0
        %4893 = vmatmul.mubr.f32.gmra.mxu0 %v4784
        %v4894 = vpop.f32.mrf.mxu0
        %v4895 = vadd.f32 0.0, %v4894
        %v4896 = vpop.f32.mrf.mxu0
        %4897 = vmatprep.mubr.f32.mxu0 0.0
        %4898 = vmatmul.mubr.f32.gmra.mxu0 %v4786
        %v4899 = vpop.f32.mrf.mxu0
        %v4900 = vadd.f32 0.0, %v4899
        %v4901 = vpop.f32.mrf.mxu0
        %4902 = vmatprep.mubr.f32.mxu0 0.0
        %4903 = vmatmul.mubr.f32.gmra.mxu0 %v4788
        %v4904 = vpop.f32.mrf.mxu0
        %v4905 = vadd.f32 0.0, %v4904
        %v4906 = vpop.f32.mrf.mxu0
        %4907 = vmatprep.mubr.f32.mxu0 0.0
        %4908 = vmatmul.mubr.f32.gmra.mxu0 %v4790
        %v4909 = vpop.f32.mrf.mxu0
        %v4910 = vadd.f32 0.0, %v4909
        %v4911 = vpop.f32.mrf.mxu0
        %4912 = vdwg.mxu0
        %4913 = vrot.lane.b32.xlu0 %v1373, 64
        %v4914 = vpop.permute.xlu0 %4913
        %4915 = vrot.lane.b32.xlu0 %v1374, 64
        %v4916 = vpop.permute.xlu0 %4915
        %4917 = vrot.lane.b32.xlu0 %v1375, 64
        %v4918 = vpop.permute.xlu0 %4917
        %4919 = vrot.lane.b32.xlu0 %v1376, 64
        %v4920 = vpop.permute.xlu0 %4919
        %4921 = vrot.lane.b32.xlu0 %v1377, 64
        %v4922 = vpop.permute.xlu0 %4921
        %4923 = vrot.lane.b32.xlu0 %v1378, 64
        %v4924 = vpop.permute.xlu0 %4923
        %4925 = vrot.lane.b32.xlu0 %v1379, 64
        %v4926 = vpop.permute.xlu0 %4925
        %4927 = vrot.lane.b32.xlu0 %v1380, 64
        %v4928 = vpop.permute.xlu0 %4927
        %4929 = vrot.lane.b32.xlu0 %v999, 64
        %v4930 = vpop.permute.xlu0 %4929
        %4931 = vrot.lane.b32.xlu0 %v1004, 64
        %v4932 = vpop.permute.xlu0 %4931
        %4933 = vrot.lane.b32.xlu0 %v1009, 64
        %v4934 = vpop.permute.xlu0 %4933
        %4935 = vrot.lane.b32.xlu0 %v1014, 64
        %v4936 = vpop.permute.xlu0 %4935
        %4937 = vrot.lane.b32.xlu0 %v1019, 64
        %v4938 = vpop.permute.xlu0 %4937
        %4939 = vrot.lane.b32.xlu0 %v1024, 64
        %v4940 = vpop.permute.xlu0 %4939
        %4941 = vrot.lane.b32.xlu0 %v1029, 64
        %v4942 = vpop.permute.xlu0 %4941
        %4943 = vrot.lane.b32.xlu0 %v1034, 64
        %v4944 = vpop.permute.xlu0 %4943
        %v4945 = vsel %vm1397, %v4914, 0
        %v4947 = vsel %vm1397, %v4916, 0
        %v4949 = vsel %vm1397, %v4918, 0
        %v4951 = vsel %vm1397, %v4920, 0
        %v4953 = vsel %vm1397, %v4922, 0
        %v4955 = vsel %vm1397, %v4924, 0
        %v4957 = vsel %vm1397, %v4926, 0
        %v4959 = vsel %vm1397, %v4928, 0
        %v4961 = vsel %vm1397, %v4930, 0
        %v4963 = vsel %vm1397, %v4932, 0
        %v4965 = vsel %vm1397, %v4934, 0
        %v4967 = vsel %vm1397, %v4936, 0
        %v4969 = vsel %vm1397, %v4938, 0
        %v4971 = vsel %vm1397, %v4940, 0
        %v4973 = vsel %vm1397, %v4942, 0
        %v4975 = vsel %vm1397, %v4944, 0
        %4977 = vmatprep.subr.mxu0 0.0
        %4978 = vmatpush1.xpose.msra.mxu0 0.0
        %4979 = vmatprep.subr.mxu0 0.0
        %4980 = vmatpush1.xpose.msra.mxu0 0.0
        %4981 = vmatprep.subr.mxu0 0.0
        %4982 = vmatpush1.xpose.msra.mxu0 0.0
        %4983 = vmatprep.subr.mxu0 0.0
        %4984 = vmatpush1.xpose.msra.mxu0 0.0
        %4985 = vmatprep.subr.mxu0 0.0
        %4986 = vmatpush1.xpose.msra.mxu0 0.0
        %4987 = vmatprep.subr.mxu0 0.0
        %4988 = vmatpush1.xpose.msra.mxu0 0.0
        %4989 = vmatprep.subr.mxu0 0.0
        %4990 = vmatpush1.xpose.msra.mxu0 0.0
        %4991 = vmatprep.subr.mxu0 0.0
        %4992 = vmatpush1.xpose.msra.mxu0 0.0
        %4993 = vmatprep.subr.mxu0 0.0
        %4994 = vmatpush1.xpose.msra.mxu0 %v4975
        %4995 = vmatprep.subr.mxu0 0.0
        %4996 = vmatpush1.xpose.msra.mxu0 %v4973
        %4997 = vmatprep.subr.mxu0 0.0
        %4998 = vmatpush1.xpose.msra.mxu0 %v4971
        %4999 = vmatprep.subr.mxu0 0.0
        %5000 = vmatpush1.xpose.msra.mxu0 %v4969
        %5001 = vmatprep.subr.mxu0 0.0
        %5002 = vmatpush1.xpose.msra.mxu0 %v4967
        %5003 = vmatprep.subr.mxu0 0.0
        %5004 = vmatpush1.xpose.msra.mxu0 %v4965
        %5005 = vmatprep.subr.mxu0 0.0
        %5006 = vmatpush1.xpose.msra.mxu0 %v4963
        %5007 = vmatprep.subr.mxu0 0.0
        %5008 = vmatpush1.xpose.msra.mxu0 %v4961
        %5009 = vmatprep.subr.mxu0 0.0
        %5010 = vmatpush2.xpose.msra.mxu0 0.0
        %5011 = vmatprep.subr.mxu0 0.0
        %5012 = vmatpush2.xpose.msra.mxu0 0.0
        %5013 = vmatprep.subr.mxu0 0.0
        %5014 = vmatpush2.xpose.msra.mxu0 0.0
        %5015 = vmatprep.subr.mxu0 0.0
        %5016 = vmatpush2.xpose.msra.mxu0 0.0
        %5017 = vmatprep.subr.mxu0 0.0
        %5018 = vmatpush2.xpose.msra.mxu0 0.0
        %5019 = vmatprep.subr.mxu0 0.0
        %5020 = vmatpush2.xpose.msra.mxu0 0.0
        %5021 = vmatprep.subr.mxu0 0.0
        %5022 = vmatpush2.xpose.msra.mxu0 0.0
        %5023 = vmatprep.subr.mxu0 0.0
        %5024 = vmatpush2.xpose.msra.mxu0 0.0
        %5025 = vmatprep.subr.mxu0 0.0
        %5026 = vmatpush2.xpose.msra.mxu0 0.0
        %5027 = vmatprep.subr.mxu0 0.0
        %5028 = vmatpush2.xpose.msra.mxu0 0.0
        %5029 = vmatprep.subr.mxu0 0.0
        %5030 = vmatpush2.xpose.msra.mxu0 0.0
        %5031 = vmatprep.subr.mxu0 0.0
        %5032 = vmatpush2.xpose.msra.mxu0 0.0
        %5033 = vmatprep.subr.mxu0 0.0
        %5034 = vmatpush2.xpose.msra.mxu0 0.0
        %5035 = vmatprep.subr.mxu0 0.0
        %5036 = vmatpush2.xpose.msra.mxu0 0.0
        %5037 = vmatprep.subr.mxu0 0.0
        %5038 = vmatpush2.xpose.msra.mxu0 0.0
        %5039 = vmatprep.subr.mxu0 0.0
        %5040 = vmatpush2.xpose.msra.mxu0 0.0
        %5041 = vmatprep.mubr.f32.mxu0 0.0
        %5042 = vmatmul.mubr.f32.gmra.mxu0 %v4945
        %v5043 = vpop.f32.mrf.mxu0
        %v5044 = vadd.f32 0.0, %v5043
        %v5045 = vpop.f32.mrf.mxu0
        %5046 = vmatprep.mubr.f32.mxu0 0.0
        %5047 = vmatmul.mubr.f32.gmra.mxu0 %v4947
        %v5048 = vpop.f32.mrf.mxu0
        %v5049 = vadd.f32 0.0, %v5048
        %v5050 = vpop.f32.mrf.mxu0
        %5051 = vmatprep.mubr.f32.mxu0 0.0
        %5052 = vmatmul.mubr.f32.gmra.mxu0 %v4949
        %v5053 = vpop.f32.mrf.mxu0
        %v5054 = vadd.f32 0.0, %v5053
        %v5055 = vpop.f32.mrf.mxu0
        %5056 = vmatprep.mubr.f32.mxu0 0.0
        %5057 = vmatmul.mubr.f32.gmra.mxu0 %v4951
        %v5058 = vpop.f32.mrf.mxu0
        %v5059 = vadd.f32 0.0, %v5058
        %v5060 = vpop.f32.mrf.mxu0
        %5061 = vmatprep.mubr.f32.mxu0 0.0
        %5062 = vmatmul.mubr.f32.gmra.mxu0 %v4953
        %v5063 = vpop.f32.mrf.mxu0
        %v5064 = vadd.f32 0.0, %v5063
        %v5065 = vpop.f32.mrf.mxu0
        %5066 = vmatprep.mubr.f32.mxu0 0.0
        %5067 = vmatmul.mubr.f32.gmra.mxu0 %v4955
        %v5068 = vpop.f32.mrf.mxu0
        %v5069 = vadd.f32 0.0, %v5068
        %v5070 = vpop.f32.mrf.mxu0
        %5071 = vmatprep.mubr.f32.mxu0 0.0
        %5072 = vmatmul.mubr.f32.gmra.mxu0 %v4957
        %v5073 = vpop.f32.mrf.mxu0
        %v5074 = vadd.f32 0.0, %v5073
        %v5075 = vpop.f32.mrf.mxu0
        %5076 = vmatprep.mubr.f32.mxu0 0.0
        %5077 = vmatmul.mubr.f32.gmra.mxu0 %v4959
        %v5078 = vpop.f32.mrf.mxu0
        %v5079 = vadd.f32 0.0, %v5078
        %v5080 = vpop.f32.mrf.mxu0
        %5081 = vdwg.mxu0
        %5082 = vrot.lane.b32.xlu0 %v1381, 64
        %v5083 = vpop.permute.xlu0 %5082
        %5084 = vrot.lane.b32.xlu0 %v1382, 64
        %v5085 = vpop.permute.xlu0 %5084
        %5086 = vrot.lane.b32.xlu0 %v1383, 64
        %v5087 = vpop.permute.xlu0 %5086
        %5088 = vrot.lane.b32.xlu0 %v1384, 64
        %v5089 = vpop.permute.xlu0 %5088
        %5090 = vrot.lane.b32.xlu0 %v1385, 64
        %v5091 = vpop.permute.xlu0 %5090
        %5092 = vrot.lane.b32.xlu0 %v1386, 64
        %v5093 = vpop.permute.xlu0 %5092
        %5094 = vrot.lane.b32.xlu0 %v1387, 64
        %v5095 = vpop.permute.xlu0 %5094
        %5096 = vrot.lane.b32.xlu0 %v1388, 64
        %v5097 = vpop.permute.xlu0 %5096
        %5098 = vrot.lane.b32.xlu0 %v1039, 64
        %v5099 = vpop.permute.xlu0 %5098
        %5100 = vrot.lane.b32.xlu0 %v1044, 64
        %v5101 = vpop.permute.xlu0 %5100
        %5102 = vrot.lane.b32.xlu0 %v1049, 64
        %v5103 = vpop.permute.xlu0 %5102
        %5104 = vrot.lane.b32.xlu0 %v1054, 64
        %v5105 = vpop.permute.xlu0 %5104
        %5106 = vrot.lane.b32.xlu0 %v1059, 64
        %v5107 = vpop.permute.xlu0 %5106
        %5108 = vrot.lane.b32.xlu0 %v1064, 64
        %v5109 = vpop.permute.xlu0 %5108
        %5110 = vrot.lane.b32.xlu0 %v1069, 64
        %v5111 = vpop.permute.xlu0 %5110
        %5112 = vrot.lane.b32.xlu0 %v1074, 64
        %v5113 = vpop.permute.xlu0 %5112
        %v5114 = vsel %vm1397, %v5083, 0
        %v5116 = vsel %vm1397, %v5085, 0
        %v5118 = vsel %vm1397, %v5087, 0
        %v5120 = vsel %vm1397, %v5089, 0
        %v5122 = vsel %vm1397, %v5091, 0
        %v5124 = vsel %vm1397, %v5093, 0
        %v5126 = vsel %vm1397, %v5095, 0
        %v5128 = vsel %vm1397, %v5097, 0
        %v5130 = vsel %vm1397, %v5099, 0
        %v5132 = vsel %vm1397, %v5101, 0
        %v5134 = vsel %vm1397, %v5103, 0
        %v5136 = vsel %vm1397, %v5105, 0
        %v5138 = vsel %vm1397, %v5107, 0
        %v5140 = vsel %vm1397, %v5109, 0
        %v5142 = vsel %vm1397, %v5111, 0
        %v5144 = vsel %vm1397, %v5113, 0
        %5146 = vmatprep.subr.mxu0 0.0
        %5147 = vmatpush1.xpose.msra.mxu0 0.0
        %5148 = vmatprep.subr.mxu0 0.0
        %5149 = vmatpush1.xpose.msra.mxu0 0.0
        %5150 = vmatprep.subr.mxu0 0.0
        %5151 = vmatpush1.xpose.msra.mxu0 0.0
        %5152 = vmatprep.subr.mxu0 0.0
        %5153 = vmatpush1.xpose.msra.mxu0 0.0
        %5154 = vmatprep.subr.mxu0 0.0
        %5155 = vmatpush1.xpose.msra.mxu0 0.0
        %5156 = vmatprep.subr.mxu0 0.0
        %5157 = vmatpush1.xpose.msra.mxu0 0.0
        %5158 = vmatprep.subr.mxu0 0.0
        %5159 = vmatpush1.xpose.msra.mxu0 0.0
        %5160 = vmatprep.subr.mxu0 0.0
        %5161 = vmatpush1.xpose.msra.mxu0 0.0
        %5162 = vmatprep.subr.mxu0 0.0
        %5163 = vmatpush1.xpose.msra.mxu0 %v5144
        %5164 = vmatprep.subr.mxu0 0.0
        %5165 = vmatpush1.xpose.msra.mxu0 %v5142
        %5166 = vmatprep.subr.mxu0 0.0
        %5167 = vmatpush1.xpose.msra.mxu0 %v5140
        %5168 = vmatprep.subr.mxu0 0.0
        %5169 = vmatpush1.xpose.msra.mxu0 %v5138
        %5170 = vmatprep.subr.mxu0 0.0
        %5171 = vmatpush1.xpose.msra.mxu0 %v5136
        %5172 = vmatprep.subr.mxu0 0.0
        %5173 = vmatpush1.xpose.msra.mxu0 %v5134
        %5174 = vmatprep.subr.mxu0 0.0
        %5175 = vmatpush1.xpose.msra.mxu0 %v5132
        %5176 = vmatprep.subr.mxu0 0.0
        %5177 = vmatpush1.xpose.msra.mxu0 %v5130
        %5178 = vmatprep.subr.mxu0 0.0
        %5179 = vmatpush2.xpose.msra.mxu0 0.0
        %5180 = vmatprep.subr.mxu0 0.0
        %5181 = vmatpush2.xpose.msra.mxu0 0.0
        %5182 = vmatprep.subr.mxu0 0.0
        %5183 = vmatpush2.xpose.msra.mxu0 0.0
        %5184 = vmatprep.subr.mxu0 0.0
        %5185 = vmatpush2.xpose.msra.mxu0 0.0
        %5186 = vmatprep.subr.mxu0 0.0
        %5187 = vmatpush2.xpose.msra.mxu0 0.0
        %5188 = vmatprep.subr.mxu0 0.0
        %5189 = vmatpush2.xpose.msra.mxu0 0.0
        %5190 = vmatprep.subr.mxu0 0.0
        %5191 = vmatpush2.xpose.msra.mxu0 0.0
        %5192 = vmatprep.subr.mxu0 0.0
        %5193 = vmatpush2.xpose.msra.mxu0 0.0
        %5194 = vmatprep.subr.mxu0 0.0
        %5195 = vmatpush2.xpose.msra.mxu0 0.0
        %5196 = vmatprep.subr.mxu0 0.0
        %5197 = vmatpush2.xpose.msra.mxu0 0.0
        %5198 = vmatprep.subr.mxu0 0.0
        %5199 = vmatpush2.xpose.msra.mxu0 0.0
        %5200 = vmatprep.subr.mxu0 0.0
        %5201 = vmatpush2.xpose.msra.mxu0 0.0
        %5202 = vmatprep.subr.mxu0 0.0
        %5203 = vmatpush2.xpose.msra.mxu0 0.0
        %5204 = vmatprep.subr.mxu0 0.0
        %5205 = vmatpush2.xpose.msra.mxu0 0.0
        %5206 = vmatprep.subr.mxu0 0.0
        %5207 = vmatpush2.xpose.msra.mxu0 0.0
        %5208 = vmatprep.subr.mxu0 0.0
        %5209 = vmatpush2.xpose.msra.mxu0 0.0
        %5210 = vmatprep.mubr.f32.mxu0 0.0
        %5211 = vmatmul.mubr.f32.gmra.mxu0 %v5114
        %v5212 = vpop.f32.mrf.mxu0
        %v5213 = vadd.f32 0.0, %v5212
        %v5214 = vpop.f32.mrf.mxu0
        %5215 = vmatprep.mubr.f32.mxu0 0.0
        %5216 = vmatmul.mubr.f32.gmra.mxu0 %v5116
        %v5217 = vpop.f32.mrf.mxu0
        %v5218 = vadd.f32 0.0, %v5217
        %v5219 = vpop.f32.mrf.mxu0
        %5220 = vmatprep.mubr.f32.mxu0 0.0
        %5221 = vmatmul.mubr.f32.gmra.mxu0 %v5118
        %v5222 = vpop.f32.mrf.mxu0
        %v5223 = vadd.f32 0.0, %v5222
        %v5224 = vpop.f32.mrf.mxu0
        %5225 = vmatprep.mubr.f32.mxu0 0.0
        %5226 = vmatmul.mubr.f32.gmra.mxu0 %v5120
        %v5227 = vpop.f32.mrf.mxu0
        %v5228 = vadd.f32 0.0, %v5227
        %v5229 = vpop.f32.mrf.mxu0
        %5230 = vmatprep.mubr.f32.mxu0 0.0
        %5231 = vmatmul.mubr.f32.gmra.mxu0 %v5122
        %v5232 = vpop.f32.mrf.mxu0
        %v5233 = vadd.f32 0.0, %v5232
        %v5234 = vpop.f32.mrf.mxu0
        %5235 = vmatprep.mubr.f32.mxu0 0.0
        %5236 = vmatmul.mubr.f32.gmra.mxu0 %v5124
        %v5237 = vpop.f32.mrf.mxu0
        %v5238 = vadd.f32 0.0, %v5237
        %v5239 = vpop.f32.mrf.mxu0
        %5240 = vmatprep.mubr.f32.mxu0 0.0
        %5241 = vmatmul.mubr.f32.gmra.mxu0 %v5126
        %v5242 = vpop.f32.mrf.mxu0
        %v5243 = vadd.f32 0.0, %v5242
        %v5244 = vpop.f32.mrf.mxu0
        %5245 = vmatprep.mubr.f32.mxu0 0.0
        %5246 = vmatmul.mubr.f32.gmra.mxu0 %v5128
        %v5247 = vpop.f32.mrf.mxu0
        %v5248 = vadd.f32 0.0, %v5247
        %v5249 = vpop.f32.mrf.mxu0
        %5250 = vdwg.mxu0
        %5251 = vrot.lane.b32.xlu0 %v1389, 64
        %v5252 = vpop.permute.xlu0 %5251
        %5253 = vrot.lane.b32.xlu0 %v1390, 64
        %v5254 = vpop.permute.xlu0 %5253
        %5255 = vrot.lane.b32.xlu0 %v1391, 64
        %v5256 = vpop.permute.xlu0 %5255
        %5257 = vrot.lane.b32.xlu0 %v1392, 64
        %v5258 = vpop.permute.xlu0 %5257
        %5259 = vrot.lane.b32.xlu0 %v1393, 64
        %v5260 = vpop.permute.xlu0 %5259
        %5261 = vrot.lane.b32.xlu0 %v1394, 64
        %v5262 = vpop.permute.xlu0 %5261
        %5263 = vrot.lane.b32.xlu0 %v1395, 64
        %v5264 = vpop.permute.xlu0 %5263
        %5265 = vrot.lane.b32.xlu0 %v1396, 64
        %v5266 = vpop.permute.xlu0 %5265
        %5267 = vrot.lane.b32.xlu0 %v1079, 64
        %v5268 = vpop.permute.xlu0 %5267
        %5269 = vrot.lane.b32.xlu0 %v1084, 64
        %v5270 = vpop.permute.xlu0 %5269
        %5271 = vrot.lane.b32.xlu0 %v1089, 64
        %v5272 = vpop.permute.xlu0 %5271
        %5273 = vrot.lane.b32.xlu0 %v1094, 64
        %v5274 = vpop.permute.xlu0 %5273
        %5275 = vrot.lane.b32.xlu0 %v1099, 64
        %v5276 = vpop.permute.xlu0 %5275
        %5277 = vrot.lane.b32.xlu0 %v1104, 64
        %v5278 = vpop.permute.xlu0 %5277
        %5279 = vrot.lane.b32.xlu0 %v1109, 64
        %v5280 = vpop.permute.xlu0 %5279
        %5281 = vrot.lane.b32.xlu0 %v1114, 64
        %v5282 = vpop.permute.xlu0 %5281
        %v5283 = vsel %vm1397, %v5252, 0
        %v5285 = vsel %vm1397, %v5254, 0
        %v5287 = vsel %vm1397, %v5256, 0
        %v5289 = vsel %vm1397, %v5258, 0
        %v5291 = vsel %vm1397, %v5260, 0
        %v5293 = vsel %vm1397, %v5262, 0
        %v5295 = vsel %vm1397, %v5264, 0
        %v5297 = vsel %vm1397, %v5266, 0
        %v5299 = vsel %vm1397, %v5268, 0
        %v5301 = vsel %vm1397, %v5270, 0
        %v5303 = vsel %vm1397, %v5272, 0
        %v5305 = vsel %vm1397, %v5274, 0
        %v5307 = vsel %vm1397, %v5276, 0
        %v5309 = vsel %vm1397, %v5278, 0
        %v5311 = vsel %vm1397, %v5280, 0
        %v5313 = vsel %vm1397, %v5282, 0
        %5315 = vmatprep.subr.mxu0 0.0
        %5316 = vmatpush1.xpose.msra.mxu0 0.0
        %5317 = vmatprep.subr.mxu0 0.0
        %5318 = vmatpush1.xpose.msra.mxu0 0.0
        %5319 = vmatprep.subr.mxu0 0.0
        %5320 = vmatpush1.xpose.msra.mxu0 0.0
        %5321 = vmatprep.subr.mxu0 0.0
        %5322 = vmatpush1.xpose.msra.mxu0 0.0
        %5323 = vmatprep.subr.mxu0 0.0
        %5324 = vmatpush1.xpose.msra.mxu0 0.0
        %5325 = vmatprep.subr.mxu0 0.0
        %5326 = vmatpush1.xpose.msra.mxu0 0.0
        %5327 = vmatprep.subr.mxu0 0.0
        %5328 = vmatpush1.xpose.msra.mxu0 0.0
        %5329 = vmatprep.subr.mxu0 0.0
        %5330 = vmatpush1.xpose.msra.mxu0 0.0
        %5331 = vmatprep.subr.mxu0 0.0
        %5332 = vmatpush1.xpose.msra.mxu0 %v5313
        %5333 = vmatprep.subr.mxu0 0.0
        %5334 = vmatpush1.xpose.msra.mxu0 %v5311
        %5335 = vmatprep.subr.mxu0 0.0
        %5336 = vmatpush1.xpose.msra.mxu0 %v5309
        %5337 = vmatprep.subr.mxu0 0.0
        %5338 = vmatpush1.xpose.msra.mxu0 %v5307
        %5339 = vmatprep.subr.mxu0 0.0
        %5340 = vmatpush1.xpose.msra.mxu0 %v5305
        %5341 = vmatprep.subr.mxu0 0.0
        %5342 = vmatpush1.xpose.msra.mxu0 %v5303
        %5343 = vmatprep.subr.mxu0 0.0
        %5344 = vmatpush1.xpose.msra.mxu0 %v5301
        %5345 = vmatprep.subr.mxu0 0.0
        %5346 = vmatpush1.xpose.msra.mxu0 %v5299
        %5347 = vmatprep.subr.mxu0 0.0
        %5348 = vmatpush2.xpose.msra.mxu0 0.0
        %5349 = vmatprep.subr.mxu0 0.0
        %5350 = vmatpush2.xpose.msra.mxu0 0.0
        %5351 = vmatprep.subr.mxu0 0.0
        %5352 = vmatpush2.xpose.msra.mxu0 0.0
        %5353 = vmatprep.subr.mxu0 0.0
        %5354 = vmatpush2.xpose.msra.mxu0 0.0
        %5355 = vmatprep.subr.mxu0 0.0
        %5356 = vmatpush2.xpose.msra.mxu0 0.0
        %5357 = vmatprep.subr.mxu0 0.0
        %5358 = vmatpush2.xpose.msra.mxu0 0.0
        %5359 = vmatprep.subr.mxu0 0.0
        %5360 = vmatpush2.xpose.msra.mxu0 0.0
        %5361 = vmatprep.subr.mxu0 0.0
        %5362 = vmatpush2.xpose.msra.mxu0 0.0
        %5363 = vmatprep.subr.mxu0 0.0
        %5364 = vmatpush2.xpose.msra.mxu0 0.0
        %5365 = vmatprep.subr.mxu0 0.0
        %5366 = vmatpush2.xpose.msra.mxu0 0.0
        %5367 = vmatprep.subr.mxu0 0.0
        %5368 = vmatpush2.xpose.msra.mxu0 0.0
        %5369 = vmatprep.subr.mxu0 0.0
        %5370 = vmatpush2.xpose.msra.mxu0 0.0
        %5371 = vmatprep.subr.mxu0 0.0
        %5372 = vmatpush2.xpose.msra.mxu0 0.0
        %5373 = vmatprep.subr.mxu0 0.0
        %5374 = vmatpush2.xpose.msra.mxu0 0.0
        %5375 = vmatprep.subr.mxu0 0.0
        %5376 = vmatpush2.xpose.msra.mxu0 0.0
        %5377 = vmatprep.subr.mxu0 0.0
        %5378 = vmatpush2.xpose.msra.mxu0 0.0
        %5379 = vmatprep.mubr.f32.mxu0 0.0
        %5380 = vmatmul.mubr.f32.gmra.mxu0 %v5283
        %v5381 = vpop.f32.mrf.mxu0
        %v5382 = vadd.f32 0.0, %v5381
        %v5383 = vpop.f32.mrf.mxu0
        %5384 = vmatprep.mubr.f32.mxu0 0.0
        %5385 = vmatmul.mubr.f32.gmra.mxu0 %v5285
        %v5386 = vpop.f32.mrf.mxu0
        %v5387 = vadd.f32 0.0, %v5386
        %v5388 = vpop.f32.mrf.mxu0
        %5389 = vmatprep.mubr.f32.mxu0 0.0
        %5390 = vmatmul.mubr.f32.gmra.mxu0 %v5287
        %v5391 = vpop.f32.mrf.mxu0
        %v5392 = vadd.f32 0.0, %v5391
        %v5393 = vpop.f32.mrf.mxu0
        %5394 = vmatprep.mubr.f32.mxu0 0.0
        %5395 = vmatmul.mubr.f32.gmra.mxu0 %v5289
        %v5396 = vpop.f32.mrf.mxu0
        %v5397 = vadd.f32 0.0, %v5396
        %v5398 = vpop.f32.mrf.mxu0
        %5399 = vmatprep.mubr.f32.mxu0 0.0
        %5400 = vmatmul.mubr.f32.gmra.mxu0 %v5291
        %v5401 = vpop.f32.mrf.mxu0
        %v5402 = vadd.f32 0.0, %v5401
        %v5403 = vpop.f32.mrf.mxu0
        %5404 = vmatprep.mubr.f32.mxu0 0.0
        %5405 = vmatmul.mubr.f32.gmra.mxu0 %v5293
        %v5406 = vpop.f32.mrf.mxu0
        %v5407 = vadd.f32 0.0, %v5406
        %v5408 = vpop.f32.mrf.mxu0
        %5409 = vmatprep.mubr.f32.mxu0 0.0
        %5410 = vmatmul.mubr.f32.gmra.mxu0 %v5295
        %v5411 = vpop.f32.mrf.mxu0
        %v5412 = vadd.f32 0.0, %v5411
        %v5413 = vpop.f32.mrf.mxu0
        %5414 = vmatprep.mubr.f32.mxu0 0.0
        %5415 = vmatmul.mubr.f32.gmra.mxu0 %v5297
        %v5416 = vpop.f32.mrf.mxu0
        %v5417 = vadd.f32 0.0, %v5416
        %v5418 = vpop.f32.mrf.mxu0
        %5419 = vdwg.mxu0
        %v5420 = vsel %vm2010, %v4875, -inf
        %5421 = vmax.xlane.f32.xlu0 %v5420
        %v5422 = vpop.xlane.xlu0 %5421
        %v5423 = vsel %vm2010, %v4880, -inf
        %5424 = vmax.xlane.f32.xlu0 %v5423
        %v5425 = vpop.xlane.xlu0 %5424
        %v5426 = vsel %vm2010, %v4885, -inf
        %5427 = vmax.xlane.f32.xlu0 %v5426
        %v5428 = vpop.xlane.xlu0 %5427
        %v5429 = vsel %vm2010, %v4890, -inf
        %5430 = vmax.xlane.f32.xlu0 %v5429
        %v5431 = vpop.xlane.xlu0 %5430
        %v5432 = vsel %vm2010, %v4895, -inf
        %5433 = vmax.xlane.f32.xlu0 %v5432
        %v5434 = vpop.xlane.xlu0 %5433
        %v5435 = vsel %vm2010, %v4900, -inf
        %5436 = vmax.xlane.f32.xlu0 %v5435
        %v5437 = vpop.xlane.xlu0 %5436
        %v5438 = vsel %vm2010, %v4905, -inf
        %5439 = vmax.xlane.f32.xlu0 %v5438
        %v5440 = vpop.xlane.xlu0 %5439
        %v5441 = vsel %vm2010, %v4910, -inf
        %5442 = vmax.xlane.f32.xlu0 %v5441
        %v5443 = vpop.xlane.xlu0 %5442
        %v5444 = vsel %vm2010, %v5044, -inf
        %5445 = vmax.xlane.f32.xlu0 %v5444
        %v5446 = vpop.xlane.xlu0 %5445
        %v5447 = vsel %vm2010, %v5049, -inf
        %5448 = vmax.xlane.f32.xlu0 %v5447
        %v5449 = vpop.xlane.xlu0 %5448
        %v5450 = vsel %vm2010, %v5054, -inf
        %5451 = vmax.xlane.f32.xlu0 %v5450
        %v5452 = vpop.xlane.xlu0 %5451
        %v5453 = vsel %vm2010, %v5059, -inf
        %5454 = vmax.xlane.f32.xlu0 %v5453
        %v5455 = vpop.xlane.xlu0 %5454
        %v5456 = vsel %vm2010, %v5064, -inf
        %5457 = vmax.xlane.f32.xlu0 %v5456
        %v5458 = vpop.xlane.xlu0 %5457
        %v5459 = vsel %vm2010, %v5069, -inf
        %5460 = vmax.xlane.f32.xlu0 %v5459
        %v5461 = vpop.xlane.xlu0 %5460
        %v5462 = vsel %vm2010, %v5074, -inf
        %5463 = vmax.xlane.f32.xlu0 %v5462
        %v5464 = vpop.xlane.xlu0 %5463
        %v5465 = vsel %vm2010, %v5079, -inf
        %5466 = vmax.xlane.f32.xlu0 %v5465
        %v5467 = vpop.xlane.xlu0 %5466
        %v5468 = vsel %vm2010, %v5213, -inf
        %5469 = vmax.xlane.f32.xlu0 %v5468
        %v5470 = vpop.xlane.xlu0 %5469
        %v5471 = vsel %vm2010, %v5218, -inf
        %5472 = vmax.xlane.f32.xlu0 %v5471
        %v5473 = vpop.xlane.xlu0 %5472
        %v5474 = vsel %vm2010, %v5223, -inf
        %5475 = vmax.xlane.f32.xlu0 %v5474
        %v5476 = vpop.xlane.xlu0 %5475
        %v5477 = vsel %vm2010, %v5228, -inf
        %5478 = vmax.xlane.f32.xlu0 %v5477
        %v5479 = vpop.xlane.xlu0 %5478
        %v5480 = vsel %vm2010, %v5233, -inf
        %5481 = vmax.xlane.f32.xlu0 %v5480
        %v5482 = vpop.xlane.xlu0 %5481
        %v5483 = vsel %vm2010, %v5238, -inf
        %5484 = vmax.xlane.f32.xlu0 %v5483
        %v5485 = vpop.xlane.xlu0 %5484
        %v5486 = vsel %vm2010, %v5243, -inf
        %5487 = vmax.xlane.f32.xlu0 %v5486
        %v5488 = vpop.xlane.xlu0 %5487
        %v5489 = vsel %vm2010, %v5248, -inf
        %5490 = vmax.xlane.f32.xlu0 %v5489
        %v5491 = vpop.xlane.xlu0 %5490
        %v5492 = vsel %vm2010, %v5382, -inf
        %5493 = vmax.xlane.f32.xlu0 %v5492
        %v5494 = vpop.xlane.xlu0 %5493
        %v5495 = vsel %vm2010, %v5387, -inf
        %5496 = vmax.xlane.f32.xlu0 %v5495
        %v5497 = vpop.xlane.xlu0 %5496
        %v5498 = vsel %vm2010, %v5392, -inf
        %5499 = vmax.xlane.f32.xlu0 %v5498
        %v5500 = vpop.xlane.xlu0 %5499
        %v5501 = vsel %vm2010, %v5397, -inf
        %5502 = vmax.xlane.f32.xlu0 %v5501
        %v5503 = vpop.xlane.xlu0 %5502
        %v5504 = vsel %vm2010, %v5402, -inf
        %5505 = vmax.xlane.f32.xlu0 %v5504
        %v5506 = vpop.xlane.xlu0 %5505
        %v5507 = vsel %vm2010, %v5407, -inf
        %5508 = vmax.xlane.f32.xlu0 %v5507
        %v5509 = vpop.xlane.xlu0 %5508
        %v5510 = vsel %vm2010, %v5412, -inf
        %5511 = vmax.xlane.f32.xlu0 %v5510
        %v5512 = vpop.xlane.xlu0 %5511
        %v5513 = vsel %vm2010, %v5417, -inf
        %5514 = vmax.xlane.f32.xlu0 %v5513
        %v5515 = vpop.xlane.xlu0 %5514
        %v5516 = vsub.f32 %v4875, %v5422
        %v5517 = vsub.f32 %v4880, %v5425
        %v5518 = vsub.f32 %v4885, %v5428
        %v5519 = vsub.f32 %v4890, %v5431
        %v5520 = vsub.f32 %v4895, %v5434
        %v5521 = vsub.f32 %v4900, %v5437
        %v5522 = vsub.f32 %v4905, %v5440
        %v5523 = vsub.f32 %v4910, %v5443
        %v5524 = vsub.f32 %v5044, %v5446
        %v5525 = vsub.f32 %v5049, %v5449
        %v5526 = vsub.f32 %v5054, %v5452
        %v5527 = vsub.f32 %v5059, %v5455
        %v5528 = vsub.f32 %v5064, %v5458
        %v5529 = vsub.f32 %v5069, %v5461
        %v5530 = vsub.f32 %v5074, %v5464
        %v5531 = vsub.f32 %v5079, %v5467
        %v5532 = vsub.f32 %v5213, %v5470
        %v5533 = vsub.f32 %v5218, %v5473
        %v5534 = vsub.f32 %v5223, %v5476
        %v5535 = vsub.f32 %v5228, %v5479
        %v5536 = vsub.f32 %v5233, %v5482
        %v5537 = vsub.f32 %v5238, %v5485
        %v5538 = vsub.f32 %v5243, %v5488
        %v5539 = vsub.f32 %v5248, %v5491
        %v5540 = vsub.f32 %v5382, %v5494
        %v5541 = vsub.f32 %v5387, %v5497
        %v5542 = vsub.f32 %v5392, %v5500
        %v5543 = vsub.f32 %v5397, %v5503
        %v5544 = vsub.f32 %v5402, %v5506
        %v5545 = vsub.f32 %v5407, %v5509
        %v5546 = vsub.f32 %v5412, %v5512
        %v5547 = vsub.f32 %v5417, %v5515
        %v5548 = vmul.f32 %v5516, 1.442695
        %v5549 = vpow.pop %v5548
        %v5550 = vmul.f32 %v5517, 1.442695
        %v5551 = vpow.pop %v5550
        %v5552 = vmul.f32 %v5518, 1.442695
        %v5553 = vpow.pop %v5552
        %v5554 = vmul.f32 %v5519, 1.442695
        %v5555 = vpow.pop %v5554
        %v5556 = vmul.f32 %v5520, 1.442695
        %v5557 = vpow.pop %v5556
        %v5558 = vmul.f32 %v5521, 1.442695
        %v5559 = vpow.pop %v5558
        %v5560 = vmul.f32 %v5522, 1.442695
        %v5561 = vpow.pop %v5560
        %v5562 = vmul.f32 %v5523, 1.442695
        %v5563 = vpow.pop %v5562
        %v5564 = vmul.f32 %v5524, 1.442695
        %v5565 = vpow.pop %v5564
        %v5566 = vmul.f32 %v5525, 1.442695
        %v5567 = vpow.pop %v5566
        %v5568 = vmul.f32 %v5526, 1.442695
        %v5569 = vpow.pop %v5568
        %v5570 = vmul.f32 %v5527, 1.442695
        %v5571 = vpow.pop %v5570
        %v5572 = vmul.f32 %v5528, 1.442695
        %v5573 = vpow.pop %v5572
        %v5574 = vmul.f32 %v5529, 1.442695
        %v5575 = vpow.pop %v5574
        %v5576 = vmul.f32 %v5530, 1.442695
        %v5577 = vpow.pop %v5576
        %v5578 = vmul.f32 %v5531, 1.442695
        %v5579 = vpow.pop %v5578
        %v5580 = vmul.f32 %v5532, 1.442695
        %v5581 = vpow.pop %v5580
        %v5582 = vmul.f32 %v5533, 1.442695
        %v5583 = vpow.pop %v5582
        %v5584 = vmul.f32 %v5534, 1.442695
        %v5585 = vpow.pop %v5584
        %v5586 = vmul.f32 %v5535, 1.442695
        %v5587 = vpow.pop %v5586
        %v5588 = vmul.f32 %v5536, 1.442695
        %v5589 = vpow.pop %v5588
        %v5590 = vmul.f32 %v5537, 1.442695
        %v5591 = vpow.pop %v5590
        %v5592 = vmul.f32 %v5538, 1.442695
        %v5593 = vpow.pop %v5592
        %v5594 = vmul.f32 %v5539, 1.442695
        %v5595 = vpow.pop %v5594
        %v5596 = vmul.f32 %v5540, 1.442695
        %v5597 = vpow.pop %v5596
        %v5598 = vmul.f32 %v5541, 1.442695
        %v5599 = vpow.pop %v5598
        %v5600 = vmul.f32 %v5542, 1.442695
        %v5601 = vpow.pop %v5600
        %v5602 = vmul.f32 %v5543, 1.442695
        %v5603 = vpow.pop %v5602
        %v5604 = vmul.f32 %v5544, 1.442695
        %v5605 = vpow.pop %v5604
        %v5606 = vmul.f32 %v5545, 1.442695
        %v5607 = vpow.pop %v5606
        %v5608 = vmul.f32 %v5546, 1.442695
        %v5609 = vpow.pop %v5608
        %v5610 = vmul.f32 %v5547, 1.442695
        %v5611 = vpow.pop %v5610
        %v5612 = vsel %vm2010, %v5549, 0.0
        %5613 = vadd.xlane.f32.xlu0 %v5612
        %v5614 = vpop.xlane.xlu0 %5613
        %v5615 = vsel %vm2010, %v5551, 0.0
        %5616 = vadd.xlane.f32.xlu0 %v5615
        %v5617 = vpop.xlane.xlu0 %5616
        %v5618 = vsel %vm2010, %v5553, 0.0
        %5619 = vadd.xlane.f32.xlu0 %v5618
        %v5620 = vpop.xlane.xlu0 %5619
        %v5621 = vsel %vm2010, %v5555, 0.0
        %5622 = vadd.xlane.f32.xlu0 %v5621
        %v5623 = vpop.xlane.xlu0 %5622
        %v5624 = vsel %vm2010, %v5557, 0.0
        %5625 = vadd.xlane.f32.xlu0 %v5624
        %v5626 = vpop.xlane.xlu0 %5625
        %v5627 = vsel %vm2010, %v5559, 0.0
        %5628 = vadd.xlane.f32.xlu0 %v5627
        %v5629 = vpop.xlane.xlu0 %5628
        %v5630 = vsel %vm2010, %v5561, 0.0
        %5631 = vadd.xlane.f32.xlu0 %v5630
        %v5632 = vpop.xlane.xlu0 %5631
        %v5633 = vsel %vm2010, %v5563, 0.0
        %5634 = vadd.xlane.f32.xlu0 %v5633
        %v5635 = vpop.xlane.xlu0 %5634
        %v5636 = vsel %vm2010, %v5565, 0.0
        %5637 = vadd.xlane.f32.xlu0 %v5636
        %v5638 = vpop.xlane.xlu0 %5637
        %v5639 = vsel %vm2010, %v5567, 0.0
        %5640 = vadd.xlane.f32.xlu0 %v5639
        %v5641 = vpop.xlane.xlu0 %5640
        %v5642 = vsel %vm2010, %v5569, 0.0
        %5643 = vadd.xlane.f32.xlu0 %v5642
        %v5644 = vpop.xlane.xlu0 %5643
        %v5645 = vsel %vm2010, %v5571, 0.0
        %5646 = vadd.xlane.f32.xlu0 %v5645
        %v5647 = vpop.xlane.xlu0 %5646
        %v5648 = vsel %vm2010, %v5573, 0.0
        %5649 = vadd.xlane.f32.xlu0 %v5648
        %v5650 = vpop.xlane.xlu0 %5649
        %v5651 = vsel %vm2010, %v5575, 0.0
        %5652 = vadd.xlane.f32.xlu0 %v5651
        %v5653 = vpop.xlane.xlu0 %5652
        %v5654 = vsel %vm2010, %v5577, 0.0
        %5655 = vadd.xlane.f32.xlu0 %v5654
        %v5656 = vpop.xlane.xlu0 %5655
        %v5657 = vsel %vm2010, %v5579, 0.0
        %5658 = vadd.xlane.f32.xlu0 %v5657
        %v5659 = vpop.xlane.xlu0 %5658
        %v5660 = vsel %vm2010, %v5581, 0.0
        %5661 = vadd.xlane.f32.xlu0 %v5660
        %v5662 = vpop.xlane.xlu0 %5661
        %v5663 = vsel %vm2010, %v5583, 0.0
        %5664 = vadd.xlane.f32.xlu0 %v5663
        %v5665 = vpop.xlane.xlu0 %5664
        %v5666 = vsel %vm2010, %v5585, 0.0
        %5667 = vadd.xlane.f32.xlu0 %v5666
        %v5668 = vpop.xlane.xlu0 %5667
        %v5669 = vsel %vm2010, %v5587, 0.0
        %5670 = vadd.xlane.f32.xlu0 %v5669
        %v5671 = vpop.xlane.xlu0 %5670
        %v5672 = vsel %vm2010, %v5589, 0.0
        %5673 = vadd.xlane.f32.xlu0 %v5672
        %v5674 = vpop.xlane.xlu0 %5673
        %v5675 = vsel %vm2010, %v5591, 0.0
        %5676 = vadd.xlane.f32.xlu0 %v5675
        %v5677 = vpop.xlane.xlu0 %5676
        %v5678 = vsel %vm2010, %v5593, 0.0
        %5679 = vadd.xlane.f32.xlu0 %v5678
        %v5680 = vpop.xlane.xlu0 %5679
        %v5681 = vsel %vm2010, %v5595, 0.0
        %5682 = vadd.xlane.f32.xlu0 %v5681
        %v5683 = vpop.xlane.xlu0 %5682
        %v5684 = vsel %vm2010, %v5597, 0.0
        %5685 = vadd.xlane.f32.xlu0 %v5684
        %v5686 = vpop.xlane.xlu0 %5685
        %v5687 = vsel %vm2010, %v5599, 0.0
        %5688 = vadd.xlane.f32.xlu0 %v5687
        %v5689 = vpop.xlane.xlu0 %5688
        %v5690 = vsel %vm2010, %v5601, 0.0
        %5691 = vadd.xlane.f32.xlu0 %v5690
        %v5692 = vpop.xlane.xlu0 %5691
        %v5693 = vsel %vm2010, %v5603, 0.0
        %5694 = vadd.xlane.f32.xlu0 %v5693
        %v5695 = vpop.xlane.xlu0 %5694
        %v5696 = vsel %vm2010, %v5605, 0.0
        %5697 = vadd.xlane.f32.xlu0 %v5696
        %v5698 = vpop.xlane.xlu0 %5697
        %v5699 = vsel %vm2010, %v5607, 0.0
        %5700 = vadd.xlane.f32.xlu0 %v5699
        %v5701 = vpop.xlane.xlu0 %5700
        %v5702 = vsel %vm2010, %v5609, 0.0
        %5703 = vadd.xlane.f32.xlu0 %v5702
        %v5704 = vpop.xlane.xlu0 %5703
        %v5705 = vsel %vm2010, %v5611, 0.0
        %5706 = vadd.xlane.f32.xlu0 %v5705
        %v5707 = vpop.xlane.xlu0 %5706
        %v5708 = vrcp.pop %v5614
        %v5709 = vrcp.pop %v5617
        %v5710 = vrcp.pop %v5620
        %v5711 = vrcp.pop %v5623
        %v5712 = vrcp.pop %v5626
        %v5713 = vrcp.pop %v5629
        %v5714 = vrcp.pop %v5632
        %v5715 = vrcp.pop %v5635
        %v5716 = vrcp.pop %v5638
        %v5717 = vrcp.pop %v5641
        %v5718 = vrcp.pop %v5644
        %v5719 = vrcp.pop %v5647
        %v5720 = vrcp.pop %v5650
        %v5721 = vrcp.pop %v5653
        %v5722 = vrcp.pop %v5656
        %v5723 = vrcp.pop %v5659
        %v5724 = vrcp.pop %v5662
        %v5725 = vrcp.pop %v5665
        %v5726 = vrcp.pop %v5668
        %v5727 = vrcp.pop %v5671
        %v5728 = vrcp.pop %v5674
        %v5729 = vrcp.pop %v5677
        %v5730 = vrcp.pop %v5680
        %v5731 = vrcp.pop %v5683
        %v5732 = vrcp.pop %v5686
        %v5733 = vrcp.pop %v5689
        %v5734 = vrcp.pop %v5692
        %v5735 = vrcp.pop %v5695
        %v5736 = vrcp.pop %v5698
        %v5737 = vrcp.pop %v5701
        %v5738 = vrcp.pop %v5704
        %v5739 = vrcp.pop %v5707
        %v5740 = vmul.f32 %v5549, %v5708
        %v5741 = vmul.f32 %v5551, %v5709
        %v5742 = vmul.f32 %v5553, %v5710
        %v5743 = vmul.f32 %v5555, %v5711
        %v5744 = vmul.f32 %v5557, %v5712
        %v5745 = vmul.f32 %v5559, %v5713
        %v5746 = vmul.f32 %v5561, %v5714
        %v5747 = vmul.f32 %v5563, %v5715
        %v5748 = vmul.f32 %v5565, %v5716
        %v5749 = vmul.f32 %v5567, %v5717
        %v5750 = vmul.f32 %v5569, %v5718
        %v5751 = vmul.f32 %v5571, %v5719
        %v5752 = vmul.f32 %v5573, %v5720
        %v5753 = vmul.f32 %v5575, %v5721
        %v5754 = vmul.f32 %v5577, %v5722
        %v5755 = vmul.f32 %v5579, %v5723
        %v5756 = vmul.f32 %v5581, %v5724
        %v5757 = vmul.f32 %v5583, %v5725
        %v5758 = vmul.f32 %v5585, %v5726
        %v5759 = vmul.f32 %v5587, %v5727
        %v5760 = vmul.f32 %v5589, %v5728
        %v5761 = vmul.f32 %v5591, %v5729
        %v5762 = vmul.f32 %v5593, %v5730
        %v5763 = vmul.f32 %v5595, %v5731
        %v5764 = vmul.f32 %v5597, %v5732
        %v5765 = vmul.f32 %v5599, %v5733
        %v5766 = vmul.f32 %v5601, %v5734
        %v5767 = vmul.f32 %v5603, %v5735
        %v5768 = vmul.f32 %v5605, %v5736
        %v5769 = vmul.f32 %v5607, %v5737
        %v5770 = vmul.f32 %v5609, %v5738
        %v5771 = vmul.f32 %v5611, %v5739
        %5772 = vrot.lane.b32.xlu0 %v1207, 64
        %v5773 = vpop.permute.xlu0 %5772
        %5774 = vrot.lane.b32.xlu0 %v1212, 64
        %v5775 = vpop.permute.xlu0 %5774
        %5776 = vrot.lane.b32.xlu0 %v1217, 64
        %v5777 = vpop.permute.xlu0 %5776
        %5778 = vrot.lane.b32.xlu0 %v1222, 64
        %v5779 = vpop.permute.xlu0 %5778
        %5780 = vrot.lane.b32.xlu0 %v1227, 64
        %v5781 = vpop.permute.xlu0 %5780
        %5782 = vrot.lane.b32.xlu0 %v1232, 64
        %v5783 = vpop.permute.xlu0 %5782
        %5784 = vrot.lane.b32.xlu0 %v1237, 64
        %v5785 = vpop.permute.xlu0 %5784
        %5786 = vrot.lane.b32.xlu0 %v1242, 64
        %v5787 = vpop.permute.xlu0 %5786
        %v5797 = vsel %vm2010, %v5740, 0
        %v5800 = vsel %vm2010, %v5741, 0
        %v5803 = vsel %vm2010, %v5742, 0
        %v5806 = vsel %vm2010, %v5743, 0
        %v5809 = vsel %vm2010, %v5744, 0
        %v5812 = vsel %vm2010, %v5745, 0
        %v5815 = vsel %vm2010, %v5746, 0
        %v5818 = vsel %vm2010, %v5747, 0
        %5820 = vmatprep.subr.mxu0 0.0
        %5821 = vmatpush1.msra.mxu0 0.0
        %5822 = vmatprep.subr.mxu0 0.0
        %5823 = vmatpush1.msra.mxu0 0.0
        %5824 = vmatprep.subr.mxu0 0.0
        %5825 = vmatpush1.msra.mxu0 0.0
        %5826 = vmatprep.subr.mxu0 0.0
        %5827 = vmatpush1.msra.mxu0 0.0
        %5828 = vmatprep.subr.mxu0 0.0
        %5829 = vmatpush1.msra.mxu0 0.0
        %5830 = vmatprep.subr.mxu0 0.0
        %5831 = vmatpush1.msra.mxu0 0.0
        %5832 = vmatprep.subr.mxu0 0.0
        %5833 = vmatpush1.msra.mxu0 0.0
        %5834 = vmatprep.subr.mxu0 0.0
        %5835 = vmatpush1.msra.mxu0 0.0
        %5836 = vmatprep.subr.mxu0 0.0
        %5837 = vmatpush1.msra.mxu0 %v5787
        %5838 = vmatprep.subr.mxu0 0.0
        %5839 = vmatpush1.msra.mxu0 %v5785
        %5840 = vmatprep.subr.mxu0 0.0
        %5841 = vmatpush1.msra.mxu0 %v5783
        %5842 = vmatprep.subr.mxu0 0.0
        %5843 = vmatpush1.msra.mxu0 %v5781
        %5844 = vmatprep.subr.mxu0 0.0
        %5845 = vmatpush1.msra.mxu0 %v5779
        %5846 = vmatprep.subr.mxu0 0.0
        %5847 = vmatpush1.msra.mxu0 %v5777
        %5848 = vmatprep.subr.mxu0 0.0
        %5849 = vmatpush1.msra.mxu0 %v5775
        %5850 = vmatprep.subr.mxu0 0.0
        %5851 = vmatpush1.msra.mxu0 %v5773
        %5852 = vmatprep.subr.mxu0 0.0
        %5853 = vmatpush2.msra.mxu0 0.0
        %5854 = vmatprep.subr.mxu0 0.0
        %5855 = vmatpush2.msra.mxu0 0.0
        %5856 = vmatprep.subr.mxu0 0.0
        %5857 = vmatpush2.msra.mxu0 0.0
        %5858 = vmatprep.subr.mxu0 0.0
        %5859 = vmatpush2.msra.mxu0 0.0
        %5860 = vmatprep.subr.mxu0 0.0
        %5861 = vmatpush2.msra.mxu0 0.0
        %5862 = vmatprep.subr.mxu0 0.0
        %5863 = vmatpush2.msra.mxu0 0.0
        %5864 = vmatprep.subr.mxu0 0.0
        %5865 = vmatpush2.msra.mxu0 0.0
        %5866 = vmatprep.subr.mxu0 0.0
        %5867 = vmatpush2.msra.mxu0 0.0
        %5868 = vmatprep.subr.mxu0 0.0
        %5869 = vmatpush2.msra.mxu0 0.0
        %5870 = vmatprep.subr.mxu0 0.0
        %5871 = vmatpush2.msra.mxu0 0.0
        %5872 = vmatprep.subr.mxu0 0.0
        %5873 = vmatpush2.msra.mxu0 0.0
        %5874 = vmatprep.subr.mxu0 0.0
        %5875 = vmatpush2.msra.mxu0 0.0
        %5876 = vmatprep.subr.mxu0 0.0
        %5877 = vmatpush2.msra.mxu0 0.0
        %5878 = vmatprep.subr.mxu0 0.0
        %5879 = vmatpush2.msra.mxu0 0.0
        %5880 = vmatprep.subr.mxu0 0.0
        %5881 = vmatpush2.msra.mxu0 0.0
        %5882 = vmatprep.subr.mxu0 0.0
        %5883 = vmatpush2.msra.mxu0 0.0
        %5884 = vmatprep.mubr.f32.mxu0 0.0
        %5885 = vmatmul.mubr.f32.gmra.mxu0 %v5797
        %v5886 = vpop.f32.mrf.mxu0
        %v5887 = vadd.f32 0.0, %v5886
        %v5888 = vpop.f32.mrf.mxu0
        %5889 = vmatprep.mubr.f32.mxu0 0.0
        %5890 = vmatmul.mubr.f32.gmra.mxu0 %v5800
        %v5891 = vpop.f32.mrf.mxu0
        %v5892 = vadd.f32 0.0, %v5891
        %v5893 = vpop.f32.mrf.mxu0
        %5894 = vmatprep.mubr.f32.mxu0 0.0
        %5895 = vmatmul.mubr.f32.gmra.mxu0 %v5803
        %v5896 = vpop.f32.mrf.mxu0
        %v5897 = vadd.f32 0.0, %v5896
        %v5898 = vpop.f32.mrf.mxu0
        %5899 = vmatprep.mubr.f32.mxu0 0.0
        %5900 = vmatmul.mubr.f32.gmra.mxu0 %v5806
        %v5901 = vpop.f32.mrf.mxu0
        %v5902 = vadd.f32 0.0, %v5901
        %v5903 = vpop.f32.mrf.mxu0
        %5904 = vmatprep.mubr.f32.mxu0 0.0
        %5905 = vmatmul.mubr.f32.gmra.mxu0 %v5809
        %v5906 = vpop.f32.mrf.mxu0
        %v5907 = vadd.f32 0.0, %v5906
        %v5908 = vpop.f32.mrf.mxu0
        %5909 = vmatprep.mubr.f32.mxu0 0.0
        %5910 = vmatmul.mubr.f32.gmra.mxu0 %v5812
        %v5911 = vpop.f32.mrf.mxu0
        %v5912 = vadd.f32 0.0, %v5911
        %v5913 = vpop.f32.mrf.mxu0
        %5914 = vmatprep.mubr.f32.mxu0 0.0
        %5915 = vmatmul.mubr.f32.gmra.mxu0 %v5815
        %v5916 = vpop.f32.mrf.mxu0
        %v5917 = vadd.f32 0.0, %v5916
        %v5918 = vpop.f32.mrf.mxu0
        %5919 = vmatprep.mubr.f32.mxu0 0.0
        %5920 = vmatmul.mubr.f32.gmra.mxu0 %v5818
        %v5921 = vpop.f32.mrf.mxu0
        %v5922 = vadd.f32 0.0, %v5921
        %v5923 = vpop.f32.mrf.mxu0
        %5924 = vdwg.mxu0
        %5925 = vrot.lane.b32.xlu0 %v1247, 64
        %v5926 = vpop.permute.xlu0 %5925
        %5927 = vrot.lane.b32.xlu0 %v1252, 64
        %v5928 = vpop.permute.xlu0 %5927
        %5929 = vrot.lane.b32.xlu0 %v1257, 64
        %v5930 = vpop.permute.xlu0 %5929
        %5931 = vrot.lane.b32.xlu0 %v1262, 64
        %v5932 = vpop.permute.xlu0 %5931
        %5933 = vrot.lane.b32.xlu0 %v1267, 64
        %v5934 = vpop.permute.xlu0 %5933
        %5935 = vrot.lane.b32.xlu0 %v1272, 64
        %v5936 = vpop.permute.xlu0 %5935
        %5937 = vrot.lane.b32.xlu0 %v1277, 64
        %v5938 = vpop.permute.xlu0 %5937
        %5939 = vrot.lane.b32.xlu0 %v1282, 64
        %v5940 = vpop.permute.xlu0 %5939
        %v5950 = vsel %vm2010, %v5748, 0
        %v5953 = vsel %vm2010, %v5749, 0
        %v5956 = vsel %vm2010, %v5750, 0
        %v5959 = vsel %vm2010, %v5751, 0
        %v5962 = vsel %vm2010, %v5752, 0
        %v5965 = vsel %vm2010, %v5753, 0
        %v5968 = vsel %vm2010, %v5754, 0
        %v5971 = vsel %vm2010, %v5755, 0
        %5973 = vmatprep.subr.mxu0 0.0
        %5974 = vmatpush1.msra.mxu0 0.0
        %5975 = vmatprep.subr.mxu0 0.0
        %5976 = vmatpush1.msra.mxu0 0.0
        %5977 = vmatprep.subr.mxu0 0.0
        %5978 = vmatpush1.msra.mxu0 0.0
        %5979 = vmatprep.subr.mxu0 0.0
        %5980 = vmatpush1.msra.mxu0 0.0
        %5981 = vmatprep.subr.mxu0 0.0
        %5982 = vmatpush1.msra.mxu0 0.0
        %5983 = vmatprep.subr.mxu0 0.0
        %5984 = vmatpush1.msra.mxu0 0.0
        %5985 = vmatprep.subr.mxu0 0.0
        %5986 = vmatpush1.msra.mxu0 0.0
        %5987 = vmatprep.subr.mxu0 0.0
        %5988 = vmatpush1.msra.mxu0 0.0
        %5989 = vmatprep.subr.mxu0 0.0
        %5990 = vmatpush1.msra.mxu0 %v5940
        %5991 = vmatprep.subr.mxu0 0.0
        %5992 = vmatpush1.msra.mxu0 %v5938
        %5993 = vmatprep.subr.mxu0 0.0
        %5994 = vmatpush1.msra.mxu0 %v5936
        %5995 = vmatprep.subr.mxu0 0.0
        %5996 = vmatpush1.msra.mxu0 %v5934
        %5997 = vmatprep.subr.mxu0 0.0
        %5998 = vmatpush1.msra.mxu0 %v5932
        %5999 = vmatprep.subr.mxu0 0.0
        %6000 = vmatpush1.msra.mxu0 %v5930
        %6001 = vmatprep.subr.mxu0 0.0
        %6002 = vmatpush1.msra.mxu0 %v5928
        %6003 = vmatprep.subr.mxu0 0.0
        %6004 = vmatpush1.msra.mxu0 %v5926
        %6005 = vmatprep.subr.mxu0 0.0
        %6006 = vmatpush2.msra.mxu0 0.0
        %6007 = vmatprep.subr.mxu0 0.0
        %6008 = vmatpush2.msra.mxu0 0.0
        %6009 = vmatprep.subr.mxu0 0.0
        %6010 = vmatpush2.msra.mxu0 0.0
        %6011 = vmatprep.subr.mxu0 0.0
        %6012 = vmatpush2.msra.mxu0 0.0
        %6013 = vmatprep.subr.mxu0 0.0
        %6014 = vmatpush2.msra.mxu0 0.0
        %6015 = vmatprep.subr.mxu0 0.0
        %6016 = vmatpush2.msra.mxu0 0.0
        %6017 = vmatprep.subr.mxu0 0.0
        %6018 = vmatpush2.msra.mxu0 0.0
        %6019 = vmatprep.subr.mxu0 0.0
        %6020 = vmatpush2.msra.mxu0 0.0
        %6021 = vmatprep.subr.mxu0 0.0
        %6022 = vmatpush2.msra.mxu0 0.0
        %6023 = vmatprep.subr.mxu0 0.0
        %6024 = vmatpush2.msra.mxu0 0.0
        %6025 = vmatprep.subr.mxu0 0.0
        %6026 = vmatpush2.msra.mxu0 0.0
        %6027 = vmatprep.subr.mxu0 0.0
        %6028 = vmatpush2.msra.mxu0 0.0
        %6029 = vmatprep.subr.mxu0 0.0
        %6030 = vmatpush2.msra.mxu0 0.0
        %6031 = vmatprep.subr.mxu0 0.0
        %6032 = vmatpush2.msra.mxu0 0.0
        %6033 = vmatprep.subr.mxu0 0.0
        %6034 = vmatpush2.msra.mxu0 0.0
        %6035 = vmatprep.subr.mxu0 0.0
        %6036 = vmatpush2.msra.mxu0 0.0
        %6037 = vmatprep.mubr.f32.mxu0 0.0
        %6038 = vmatmul.mubr.f32.gmra.mxu0 %v5950
        %v6039 = vpop.f32.mrf.mxu0
        %v6040 = vadd.f32 0.0, %v6039
        %v6041 = vpop.f32.mrf.mxu0
        %6042 = vmatprep.mubr.f32.mxu0 0.0
        %6043 = vmatmul.mubr.f32.gmra.mxu0 %v5953
        %v6044 = vpop.f32.mrf.mxu0
        %v6045 = vadd.f32 0.0, %v6044
        %v6046 = vpop.f32.mrf.mxu0
        %6047 = vmatprep.mubr.f32.mxu0 0.0
        %6048 = vmatmul.mubr.f32.gmra.mxu0 %v5956
        %v6049 = vpop.f32.mrf.mxu0
        %v6050 = vadd.f32 0.0, %v6049
        %v6051 = vpop.f32.mrf.mxu0
        %6052 = vmatprep.mubr.f32.mxu0 0.0
        %6053 = vmatmul.mubr.f32.gmra.mxu0 %v5959
        %v6054 = vpop.f32.mrf.mxu0
        %v6055 = vadd.f32 0.0, %v6054
        %v6056 = vpop.f32.mrf.mxu0
        %6057 = vmatprep.mubr.f32.mxu0 0.0
        %6058 = vmatmul.mubr.f32.gmra.mxu0 %v5962
        %v6059 = vpop.f32.mrf.mxu0
        %v6060 = vadd.f32 0.0, %v6059
        %v6061 = vpop.f32.mrf.mxu0
        %6062 = vmatprep.mubr.f32.mxu0 0.0
        %6063 = vmatmul.mubr.f32.gmra.mxu0 %v5965
        %v6064 = vpop.f32.mrf.mxu0
        %v6065 = vadd.f32 0.0, %v6064
        %v6066 = vpop.f32.mrf.mxu0
        %6067 = vmatprep.mubr.f32.mxu0 0.0
        %6068 = vmatmul.mubr.f32.gmra.mxu0 %v5968
        %v6069 = vpop.f32.mrf.mxu0
        %v6070 = vadd.f32 0.0, %v6069
        %v6071 = vpop.f32.mrf.mxu0
        %6072 = vmatprep.mubr.f32.mxu0 0.0
        %6073 = vmatmul.mubr.f32.gmra.mxu0 %v5971
        %v6074 = vpop.f32.mrf.mxu0
        %v6075 = vadd.f32 0.0, %v6074
        %v6076 = vpop.f32.mrf.mxu0
        %6077 = vdwg.mxu0
        %6078 = vrot.lane.b32.xlu0 %v1287, 64
        %v6079 = vpop.permute.xlu0 %6078
        %6080 = vrot.lane.b32.xlu0 %v1292, 64
        %v6081 = vpop.permute.xlu0 %6080
        %6082 = vrot.lane.b32.xlu0 %v1297, 64
        %v6083 = vpop.permute.xlu0 %6082
        %6084 = vrot.lane.b32.xlu0 %v1302, 64
        %v6085 = vpop.permute.xlu0 %6084
        %6086 = vrot.lane.b32.xlu0 %v1307, 64
        %v6087 = vpop.permute.xlu0 %6086
        %6088 = vrot.lane.b32.xlu0 %v1312, 64
        %v6089 = vpop.permute.xlu0 %6088
        %6090 = vrot.lane.b32.xlu0 %v1317, 64
        %v6091 = vpop.permute.xlu0 %6090
        %6092 = vrot.lane.b32.xlu0 %v1322, 64
        %v6093 = vpop.permute.xlu0 %6092
        %v6103 = vsel %vm2010, %v5756, 0
        %v6106 = vsel %vm2010, %v5757, 0
        %v6109 = vsel %vm2010, %v5758, 0
        %v6112 = vsel %vm2010, %v5759, 0
        %v6115 = vsel %vm2010, %v5760, 0
        %v6118 = vsel %vm2010, %v5761, 0
        %v6121 = vsel %vm2010, %v5762, 0
        %v6124 = vsel %vm2010, %v5763, 0
        %6126 = vmatprep.subr.mxu0 0.0
        %6127 = vmatpush1.msra.mxu0 0.0
        %6128 = vmatprep.subr.mxu0 0.0
        %6129 = vmatpush1.msra.mxu0 0.0
        %6130 = vmatprep.subr.mxu0 0.0
        %6131 = vmatpush1.msra.mxu0 0.0
        %6132 = vmatprep.subr.mxu0 0.0
        %6133 = vmatpush1.msra.mxu0 0.0
        %6134 = vmatprep.subr.mxu0 0.0
        %6135 = vmatpush1.msra.mxu0 0.0
        %6136 = vmatprep.subr.mxu0 0.0
        %6137 = vmatpush1.msra.mxu0 0.0
        %6138 = vmatprep.subr.mxu0 0.0
        %6139 = vmatpush1.msra.mxu0 0.0
        %6140 = vmatprep.subr.mxu0 0.0
        %6141 = vmatpush1.msra.mxu0 0.0
        %6142 = vmatprep.subr.mxu0 0.0
        %6143 = vmatpush1.msra.mxu0 %v6093
        %6144 = vmatprep.subr.mxu0 0.0
        %6145 = vmatpush1.msra.mxu0 %v6091
        %6146 = vmatprep.subr.mxu0 0.0
        %6147 = vmatpush1.msra.mxu0 %v6089
        %6148 = vmatprep.subr.mxu0 0.0
        %6149 = vmatpush1.msra.mxu0 %v6087
        %6150 = vmatprep.subr.mxu0 0.0
        %6151 = vmatpush1.msra.mxu0 %v6085
        %6152 = vmatprep.subr.mxu0 0.0
        %6153 = vmatpush1.msra.mxu0 %v6083
        %6154 = vmatprep.subr.mxu0 0.0
        %6155 = vmatpush1.msra.mxu0 %v6081
        %6156 = vmatprep.subr.mxu0 0.0
        %6157 = vmatpush1.msra.mxu0 %v6079
        %6158 = vmatprep.subr.mxu0 0.0
        %6159 = vmatpush2.msra.mxu0 0.0
        %6160 = vmatprep.subr.mxu0 0.0
        %6161 = vmatpush2.msra.mxu0 0.0
        %6162 = vmatprep.subr.mxu0 0.0
        %6163 = vmatpush2.msra.mxu0 0.0
        %6164 = vmatprep.subr.mxu0 0.0
        %6165 = vmatpush2.msra.mxu0 0.0
        %6166 = vmatprep.subr.mxu0 0.0
        %6167 = vmatpush2.msra.mxu0 0.0
        %6168 = vmatprep.subr.mxu0 0.0
        %6169 = vmatpush2.msra.mxu0 0.0
        %6170 = vmatprep.subr.mxu0 0.0
        %6171 = vmatpush2.msra.mxu0 0.0
        %6172 = vmatprep.subr.mxu0 0.0
        %6173 = vmatpush2.msra.mxu0 0.0
        %6174 = vmatprep.subr.mxu0 0.0
        %6175 = vmatpush2.msra.mxu0 0.0
        %6176 = vmatprep.subr.mxu0 0.0
        %6177 = vmatpush2.msra.mxu0 0.0
        %6178 = vmatprep.subr.mxu0 0.0
        %6179 = vmatpush2.msra.mxu0 0.0
        %6180 = vmatprep.subr.mxu0 0.0
        %6181 = vmatpush2.msra.mxu0 0.0
        %6182 = vmatprep.subr.mxu0 0.0
        %6183 = vmatpush2.msra.mxu0 0.0
        %6184 = vmatprep.subr.mxu0 0.0
        %6185 = vmatpush2.msra.mxu0 0.0
        %6186 = vmatprep.subr.mxu0 0.0
        %6187 = vmatpush2.msra.mxu0 0.0
        %6188 = vmatprep.subr.mxu0 0.0
        %6189 = vmatpush2.msra.mxu0 0.0
        %6190 = vmatprep.mubr.f32.mxu0 0.0
        %6191 = vmatmul.mubr.f32.gmra.mxu0 %v6103
        %v6192 = vpop.f32.mrf.mxu0
        %v6193 = vadd.f32 0.0, %v6192
        %v6194 = vpop.f32.mrf.mxu0
        %6195 = vmatprep.mubr.f32.mxu0 0.0
        %6196 = vmatmul.mubr.f32.gmra.mxu0 %v6106
        %v6197 = vpop.f32.mrf.mxu0
        %v6198 = vadd.f32 0.0, %v6197
        %v6199 = vpop.f32.mrf.mxu0
        %6200 = vmatprep.mubr.f32.mxu0 0.0
        %6201 = vmatmul.mubr.f32.gmra.mxu0 %v6109
        %v6202 = vpop.f32.mrf.mxu0
        %v6203 = vadd.f32 0.0, %v6202
        %v6204 = vpop.f32.mrf.mxu0
        %6205 = vmatprep.mubr.f32.mxu0 0.0
        %6206 = vmatmul.mubr.f32.gmra.mxu0 %v6112
        %v6207 = vpop.f32.mrf.mxu0
        %v6208 = vadd.f32 0.0, %v6207
        %v6209 = vpop.f32.mrf.mxu0
        %6210 = vmatprep.mubr.f32.mxu0 0.0
        %6211 = vmatmul.mubr.f32.gmra.mxu0 %v6115
        %v6212 = vpop.f32.mrf.mxu0
        %v6213 = vadd.f32 0.0, %v6212
        %v6214 = vpop.f32.mrf.mxu0
        %6215 = vmatprep.mubr.f32.mxu0 0.0
        %6216 = vmatmul.mubr.f32.gmra.mxu0 %v6118
        %v6217 = vpop.f32.mrf.mxu0
        %v6218 = vadd.f32 0.0, %v6217
        %v6219 = vpop.f32.mrf.mxu0
        %6220 = vmatprep.mubr.f32.mxu0 0.0
        %6221 = vmatmul.mubr.f32.gmra.mxu0 %v6121
        %v6222 = vpop.f32.mrf.mxu0
        %v6223 = vadd.f32 0.0, %v6222
        %v6224 = vpop.f32.mrf.mxu0
        %6225 = vmatprep.mubr.f32.mxu0 0.0
        %6226 = vmatmul.mubr.f32.gmra.mxu0 %v6124
        %v6227 = vpop.f32.mrf.mxu0
        %v6228 = vadd.f32 0.0, %v6227
        %v6229 = vpop.f32.mrf.mxu0
        %6230 = vdwg.mxu0
        %6231 = vrot.lane.b32.xlu0 %v1327, 64
        %v6232 = vpop.permute.xlu0 %6231
        %6233 = vrot.lane.b32.xlu0 %v1332, 64
        %v6234 = vpop.permute.xlu0 %6233
        %6235 = vrot.lane.b32.xlu0 %v1337, 64
        %v6236 = vpop.permute.xlu0 %6235
        %6237 = vrot.lane.b32.xlu0 %v1342, 64
        %v6238 = vpop.permute.xlu0 %6237
        %6239 = vrot.lane.b32.xlu0 %v1347, 64
        %v6240 = vpop.permute.xlu0 %6239
        %6241 = vrot.lane.b32.xlu0 %v1352, 64
        %v6242 = vpop.permute.xlu0 %6241
        %6243 = vrot.lane.b32.xlu0 %v1357, 64
        %v6244 = vpop.permute.xlu0 %6243
        %6245 = vrot.lane.b32.xlu0 %v1362, 64
        %v6246 = vpop.permute.xlu0 %6245
        %v6256 = vsel %vm2010, %v5764, 0
        %v6259 = vsel %vm2010, %v5765, 0
        %v6262 = vsel %vm2010, %v5766, 0
        %v6265 = vsel %vm2010, %v5767, 0
        %v6268 = vsel %vm2010, %v5768, 0
        %v6271 = vsel %vm2010, %v5769, 0
        %v6274 = vsel %vm2010, %v5770, 0
        %v6277 = vsel %vm2010, %v5771, 0
        %6279 = vmatprep.subr.mxu0 0.0
        %6280 = vmatpush1.msra.mxu0 0.0
        %6281 = vmatprep.subr.mxu0 0.0
        %6282 = vmatpush1.msra.mxu0 0.0
        %6283 = vmatprep.subr.mxu0 0.0
        %6284 = vmatpush1.msra.mxu0 0.0
        %6285 = vmatprep.subr.mxu0 0.0
        %6286 = vmatpush1.msra.mxu0 0.0
        %6287 = vmatprep.subr.mxu0 0.0
        %6288 = vmatpush1.msra.mxu0 0.0
        %6289 = vmatprep.subr.mxu0 0.0
        %6290 = vmatpush1.msra.mxu0 0.0
        %6291 = vmatprep.subr.mxu0 0.0
        %6292 = vmatpush1.msra.mxu0 0.0
        %6293 = vmatprep.subr.mxu0 0.0
        %6294 = vmatpush1.msra.mxu0 0.0
        %6295 = vmatprep.subr.mxu0 0.0
        %6296 = vmatpush1.msra.mxu0 %v6246
        %6297 = vmatprep.subr.mxu0 0.0
        %6298 = vmatpush1.msra.mxu0 %v6244
        %6299 = vmatprep.subr.mxu0 0.0
        %6300 = vmatpush1.msra.mxu0 %v6242
        %6301 = vmatprep.subr.mxu0 0.0
        %6302 = vmatpush1.msra.mxu0 %v6240
        %6303 = vmatprep.subr.mxu0 0.0
        %6304 = vmatpush1.msra.mxu0 %v6238
        %6305 = vmatprep.subr.mxu0 0.0
        %6306 = vmatpush1.msra.mxu0 %v6236
        %6307 = vmatprep.subr.mxu0 0.0
        %6308 = vmatpush1.msra.mxu0 %v6234
        %6309 = vmatprep.subr.mxu0 0.0
        %6310 = vmatpush1.msra.mxu0 %v6232
        %6311 = vmatprep.subr.mxu0 0.0
        %6312 = vmatpush2.msra.mxu0 0.0
        %6313 = vmatprep.subr.mxu0 0.0
        %6314 = vmatpush2.msra.mxu0 0.0
        %6315 = vmatprep.subr.mxu0 0.0
        %6316 = vmatpush2.msra.mxu0 0.0
        %6317 = vmatprep.subr.mxu0 0.0
        %6318 = vmatpush2.msra.mxu0 0.0
        %6319 = vmatprep.subr.mxu0 0.0
        %6320 = vmatpush2.msra.mxu0 0.0
        %6321 = vmatprep.subr.mxu0 0.0
        %6322 = vmatpush2.msra.mxu0 0.0
        %6323 = vmatprep.subr.mxu0 0.0
        %6324 = vmatpush2.msra.mxu0 0.0
        %6325 = vmatprep.subr.mxu0 0.0
        %6326 = vmatpush2.msra.mxu0 0.0
        %6327 = vmatprep.subr.mxu0 0.0
        %6328 = vmatpush2.msra.mxu0 0.0
        %6329 = vmatprep.subr.mxu0 0.0
        %6330 = vmatpush2.msra.mxu0 0.0
        %6331 = vmatprep.subr.mxu0 0.0
        %6332 = vmatpush2.msra.mxu0 0.0
        %6333 = vmatprep.subr.mxu0 0.0
        %6334 = vmatpush2.msra.mxu0 0.0
        %6335 = vmatprep.subr.mxu0 0.0
        %6336 = vmatpush2.msra.mxu0 0.0
        %6337 = vmatprep.subr.mxu0 0.0
        %6338 = vmatpush2.msra.mxu0 0.0
        %6339 = vmatprep.subr.mxu0 0.0
        %6340 = vmatpush2.msra.mxu0 0.0
        %6341 = vmatprep.subr.mxu0 0.0
        %6342 = vmatpush2.msra.mxu0 0.0
        %6343 = vmatprep.mubr.f32.mxu0 0.0
        %6344 = vmatmul.mubr.f32.gmra.mxu0 %v6256
        %v6345 = vpop.f32.mrf.mxu0
        %v6346 = vadd.f32 0.0, %v6345
        %v6347 = vpop.f32.mrf.mxu0
        %6348 = vmatprep.mubr.f32.mxu0 0.0
        %6349 = vmatmul.mubr.f32.gmra.mxu0 %v6259
        %v6350 = vpop.f32.mrf.mxu0
        %v6351 = vadd.f32 0.0, %v6350
        %v6352 = vpop.f32.mrf.mxu0
        %6353 = vmatprep.mubr.f32.mxu0 0.0
        %6354 = vmatmul.mubr.f32.gmra.mxu0 %v6262
        %v6355 = vpop.f32.mrf.mxu0
        %v6356 = vadd.f32 0.0, %v6355
        %v6357 = vpop.f32.mrf.mxu0
        %6358 = vmatprep.mubr.f32.mxu0 0.0
        %6359 = vmatmul.mubr.f32.gmra.mxu0 %v6265
        %v6360 = vpop.f32.mrf.mxu0
        %v6361 = vadd.f32 0.0, %v6360
        %v6362 = vpop.f32.mrf.mxu0
        %6363 = vmatprep.mubr.f32.mxu0 0.0
        %6364 = vmatmul.mubr.f32.gmra.mxu0 %v6268
        %v6365 = vpop.f32.mrf.mxu0
        %v6366 = vadd.f32 0.0, %v6365
        %v6367 = vpop.f32.mrf.mxu0
        %6368 = vmatprep.mubr.f32.mxu0 0.0
        %6369 = vmatmul.mubr.f32.gmra.mxu0 %v6271
        %v6370 = vpop.f32.mrf.mxu0
        %v6371 = vadd.f32 0.0, %v6370
        %v6372 = vpop.f32.mrf.mxu0
        %6373 = vmatprep.mubr.f32.mxu0 0.0
        %6374 = vmatmul.mubr.f32.gmra.mxu0 %v6274
        %v6375 = vpop.f32.mrf.mxu0
        %v6376 = vadd.f32 0.0, %v6375
        %v6377 = vpop.f32.mrf.mxu0
        %6378 = vmatprep.mubr.f32.mxu0 0.0
        %6379 = vmatmul.mubr.f32.gmra.mxu0 %v6277
        %v6380 = vpop.f32.mrf.mxu0
        %v6381 = vadd.f32 0.0, %v6380
        %v6382 = vpop.f32.mrf.mxu0
        %6383 = vdwg.mxu0
        %6416 = vrot.lane.b32.xlu0 %v5887, 64
        %v6417 = vpop.permute.xlu0 %6416
        %6418 = vrot.lane.b32.xlu0 %v5892, 64
        %v6419 = vpop.permute.xlu0 %6418
        %6420 = vrot.lane.b32.xlu0 %v5897, 64
        %v6421 = vpop.permute.xlu0 %6420
        %6422 = vrot.lane.b32.xlu0 %v5902, 64
        %v6423 = vpop.permute.xlu0 %6422
        %6424 = vrot.lane.b32.xlu0 %v5907, 64
        %v6425 = vpop.permute.xlu0 %6424
        %6426 = vrot.lane.b32.xlu0 %v5912, 64
        %v6427 = vpop.permute.xlu0 %6426
        %6428 = vrot.lane.b32.xlu0 %v5917, 64
        %v6429 = vpop.permute.xlu0 %6428
        %6430 = vrot.lane.b32.xlu0 %v5922, 64
        %v6431 = vpop.permute.xlu0 %6430
        %6432 = vrot.lane.b32.xlu0 %v6040, 64
        %v6433 = vpop.permute.xlu0 %6432
        %6434 = vrot.lane.b32.xlu0 %v6045, 64
        %v6435 = vpop.permute.xlu0 %6434
        %6436 = vrot.lane.b32.xlu0 %v6050, 64
        %v6437 = vpop.permute.xlu0 %6436
        %6438 = vrot.lane.b32.xlu0 %v6055, 64
        %v6439 = vpop.permute.xlu0 %6438
        %6440 = vrot.lane.b32.xlu0 %v6060, 64
        %v6441 = vpop.permute.xlu0 %6440
        %6442 = vrot.lane.b32.xlu0 %v6065, 64
        %v6443 = vpop.permute.xlu0 %6442
        %6444 = vrot.lane.b32.xlu0 %v6070, 64
        %v6445 = vpop.permute.xlu0 %6444
        %6446 = vrot.lane.b32.xlu0 %v6075, 64
        %v6447 = vpop.permute.xlu0 %6446
        %6448 = vrot.lane.b32.xlu0 %v6193, 64
        %v6449 = vpop.permute.xlu0 %6448
        %6450 = vrot.lane.b32.xlu0 %v6198, 64
        %v6451 = vpop.permute.xlu0 %6450
        %6452 = vrot.lane.b32.xlu0 %v6203, 64
        %v6453 = vpop.permute.xlu0 %6452
        %6454 = vrot.lane.b32.xlu0 %v6208, 64
        %v6455 = vpop.permute.xlu0 %6454
        %6456 = vrot.lane.b32.xlu0 %v6213, 64
        %v6457 = vpop.permute.xlu0 %6456
        %6458 = vrot.lane.b32.xlu0 %v6218, 64
        %v6459 = vpop.permute.xlu0 %6458
        %6460 = vrot.lane.b32.xlu0 %v6223, 64
        %v6461 = vpop.permute.xlu0 %6460
        %6462 = vrot.lane.b32.xlu0 %v6228, 64
        %v6463 = vpop.permute.xlu0 %6462
        %6464 = vrot.lane.b32.xlu0 %v6346, 64
        %v6465 = vpop.permute.xlu0 %6464
        %6466 = vrot.lane.b32.xlu0 %v6351, 64
        %v6467 = vpop.permute.xlu0 %6466
        %6468 = vrot.lane.b32.xlu0 %v6356, 64
        %v6469 = vpop.permute.xlu0 %6468
        %6470 = vrot.lane.b32.xlu0 %v6361, 64
        %v6471 = vpop.permute.xlu0 %6470
        %6472 = vrot.lane.b32.xlu0 %v6366, 64
        %v6473 = vpop.permute.xlu0 %6472
        %6474 = vrot.lane.b32.xlu0 %v6371, 64
        %v6475 = vpop.permute.xlu0 %6474
        %6476 = vrot.lane.b32.xlu0 %v6376, 64
        %v6477 = vpop.permute.xlu0 %6476
        %6478 = vrot.lane.b32.xlu0 %v6381, 64
        %v6479 = vpop.permute.xlu0 %6478
        %vm6512 = vcmask 785920
        %6513 = vst.msk [vmem:[#allocation2] sm:$0xff] %vm6512, %v6417
        %6514 = vst.msk [vmem:[#allocation2 + $0x8] sm:$0xff] %vm6512, %v6419
        %6515 = vst.msk [vmem:[#allocation2 + $0x10] sm:$0xff] %vm6512, %v6421
        %6516 = vst.msk [vmem:[#allocation2 + $0x18] sm:$0xff] %vm6512, %v6423
        %6517 = vst.msk [vmem:[#allocation2 + $0x20] sm:$0xff] %vm6512, %v6425
        %6518 = vst.msk [vmem:[#allocation2 + $0x28] sm:$0xff] %vm6512, %v6427
        %6519 = vst.msk [vmem:[#allocation2 + $0x30] sm:$0xff] %vm6512, %v6429
        %6520 = vst.msk [vmem:[#allocation2 + $0x38] sm:$0xff] %vm6512, %v6431
        %6521 = vst.msk [vmem:[#allocation2 + $0x40] sm:$0xff] %vm6512, %v6433
        %6522 = vst.msk [vmem:[#allocation2 + $0x48] sm:$0xff] %vm6512, %v6435
        %6523 = vst.msk [vmem:[#allocation2 + $0x50] sm:$0xff] %vm6512, %v6437
        %6524 = vst.msk [vmem:[#allocation2 + $0x58] sm:$0xff] %vm6512, %v6439
        %6525 = vst.msk [vmem:[#allocation2 + $0x60] sm:$0xff] %vm6512, %v6441
        %6526 = vst.msk [vmem:[#allocation2 + $0x68] sm:$0xff] %vm6512, %v6443
        %6527 = vst.msk [vmem:[#allocation2 + $0x70] sm:$0xff] %vm6512, %v6445
        %6528 = vst.msk [vmem:[#allocation2 + $0x78] sm:$0xff] %vm6512, %v6447
        %6529 = vst.msk [vmem:[#allocation2 + $0x80] sm:$0xff] %vm6512, %v6449
        %6530 = vst.msk [vmem:[#allocation2 + $0x88] sm:$0xff] %vm6512, %v6451
        %6531 = vst.msk [vmem:[#allocation2 + $0x90] sm:$0xff] %vm6512, %v6453
        %6532 = vst.msk [vmem:[#allocation2 + $0x98] sm:$0xff] %vm6512, %v6455
        %6533 = vst.msk [vmem:[#allocation2 + $0xa0] sm:$0xff] %vm6512, %v6457
        %6534 = vst.msk [vmem:[#allocation2 + $0xa8] sm:$0xff] %vm6512, %v6459
        %6535 = vst.msk [vmem:[#allocation2 + $0xb0] sm:$0xff] %vm6512, %v6461
        %6536 = vst.msk [vmem:[#allocation2 + $0xb8] sm:$0xff] %vm6512, %v6463
        %6537 = vst.msk [vmem:[#allocation2 + $0xc0] sm:$0xff] %vm6512, %v6465
        %6538 = vst.msk [vmem:[#allocation2 + $0xc8] sm:$0xff] %vm6512, %v6467
        %6539 = vst.msk [vmem:[#allocation2 + $0xd0] sm:$0xff] %vm6512, %v6469
        %6540 = vst.msk [vmem:[#allocation2 + $0xd8] sm:$0xff] %vm6512, %v6471
        %6541 = vst.msk [vmem:[#allocation2 + $0xe0] sm:$0xff] %vm6512, %v6473
        %6542 = vst.msk [vmem:[#allocation2 + $0xe8] sm:$0xff] %vm6512, %v6475
        %6543 = vst.msk [vmem:[#allocation2 + $0xf0] sm:$0xff] %vm6512, %v6477
        %6544 = vst.msk [vmem:[#allocation2 + $0xf8] sm:$0xff] %vm6512, %v6479
        %6545 = vrot.lane.b32.xlu0 %v1365, 32
        %v6546 = vpop.permute.xlu0 %6545
        %6547 = vrot.lane.b32.xlu0 %v1366, 32
        %v6548 = vpop.permute.xlu0 %6547
        %6549 = vrot.lane.b32.xlu0 %v1367, 32
        %v6550 = vpop.permute.xlu0 %6549
        %6551 = vrot.lane.b32.xlu0 %v1368, 32
        %v6552 = vpop.permute.xlu0 %6551
        %6553 = vrot.lane.b32.xlu0 %v1369, 32
        %v6554 = vpop.permute.xlu0 %6553
        %6555 = vrot.lane.b32.xlu0 %v1370, 32
        %v6556 = vpop.permute.xlu0 %6555
        %6557 = vrot.lane.b32.xlu0 %v1371, 32
        %v6558 = vpop.permute.xlu0 %6557
        %6559 = vrot.lane.b32.xlu0 %v1372, 32
        %v6560 = vpop.permute.xlu0 %6559
        %6561 = vrot.lane.b32.xlu0 %v959, 32
        %v6562 = vpop.permute.xlu0 %6561
        %6563 = vrot.lane.b32.xlu0 %v964, 32
        %v6564 = vpop.permute.xlu0 %6563
        %6565 = vrot.lane.b32.xlu0 %v969, 32
        %v6566 = vpop.permute.xlu0 %6565
        %6567 = vrot.lane.b32.xlu0 %v974, 32
        %v6568 = vpop.permute.xlu0 %6567
        %6569 = vrot.lane.b32.xlu0 %v979, 32
        %v6570 = vpop.permute.xlu0 %6569
        %6571 = vrot.lane.b32.xlu0 %v984, 32
        %v6572 = vpop.permute.xlu0 %6571
        %6573 = vrot.lane.b32.xlu0 %v989, 32
        %v6574 = vpop.permute.xlu0 %6573
        %6575 = vrot.lane.b32.xlu0 %v994, 32
        %v6576 = vpop.permute.xlu0 %6575
        %v6577 = vsel %vm1397, %v6546, 0
        %v6579 = vsel %vm1397, %v6548, 0
        %v6581 = vsel %vm1397, %v6550, 0
        %v6583 = vsel %vm1397, %v6552, 0
        %v6585 = vsel %vm1397, %v6554, 0
        %v6587 = vsel %vm1397, %v6556, 0
        %v6589 = vsel %vm1397, %v6558, 0
        %v6591 = vsel %vm1397, %v6560, 0
        %v6593 = vsel %vm1397, %v6562, 0
        %v6595 = vsel %vm1397, %v6564, 0
        %v6597 = vsel %vm1397, %v6566, 0
        %v6599 = vsel %vm1397, %v6568, 0
        %v6601 = vsel %vm1397, %v6570, 0
        %v6603 = vsel %vm1397, %v6572, 0
        %v6605 = vsel %vm1397, %v6574, 0
        %v6607 = vsel %vm1397, %v6576, 0
        %6609 = vmatprep.subr.mxu0 0.0
        %6610 = vmatpush1.xpose.msra.mxu0 0.0
        %6611 = vmatprep.subr.mxu0 0.0
        %6612 = vmatpush1.xpose.msra.mxu0 0.0
        %6613 = vmatprep.subr.mxu0 0.0
        %6614 = vmatpush1.xpose.msra.mxu0 0.0
        %6615 = vmatprep.subr.mxu0 0.0
        %6616 = vmatpush1.xpose.msra.mxu0 0.0
        %6617 = vmatprep.subr.mxu0 0.0
        %6618 = vmatpush1.xpose.msra.mxu0 0.0
        %6619 = vmatprep.subr.mxu0 0.0
        %6620 = vmatpush1.xpose.msra.mxu0 0.0
        %6621 = vmatprep.subr.mxu0 0.0
        %6622 = vmatpush1.xpose.msra.mxu0 0.0
        %6623 = vmatprep.subr.mxu0 0.0
        %6624 = vmatpush1.xpose.msra.mxu0 0.0
        %6625 = vmatprep.subr.mxu0 0.0
        %6626 = vmatpush1.xpose.msra.mxu0 %v6607
        %6627 = vmatprep.subr.mxu0 0.0
        %6628 = vmatpush1.xpose.msra.mxu0 %v6605
        %6629 = vmatprep.subr.mxu0 0.0
        %6630 = vmatpush1.xpose.msra.mxu0 %v6603
        %6631 = vmatprep.subr.mxu0 0.0
        %6632 = vmatpush1.xpose.msra.mxu0 %v6601
        %6633 = vmatprep.subr.mxu0 0.0
        %6634 = vmatpush1.xpose.msra.mxu0 %v6599
        %6635 = vmatprep.subr.mxu0 0.0
        %6636 = vmatpush1.xpose.msra.mxu0 %v6597
        %6637 = vmatprep.subr.mxu0 0.0
        %6638 = vmatpush1.xpose.msra.mxu0 %v6595
        %6639 = vmatprep.subr.mxu0 0.0
        %6640 = vmatpush1.xpose.msra.mxu0 %v6593
        %6641 = vmatprep.subr.mxu0 0.0
        %6642 = vmatpush2.xpose.msra.mxu0 0.0
        %6643 = vmatprep.subr.mxu0 0.0
        %6644 = vmatpush2.xpose.msra.mxu0 0.0
        %6645 = vmatprep.subr.mxu0 0.0
        %6646 = vmatpush2.xpose.msra.mxu0 0.0
        %6647 = vmatprep.subr.mxu0 0.0
        %6648 = vmatpush2.xpose.msra.mxu0 0.0
        %6649 = vmatprep.subr.mxu0 0.0
        %6650 = vmatpush2.xpose.msra.mxu0 0.0
        %6651 = vmatprep.subr.mxu0 0.0
        %6652 = vmatpush2.xpose.msra.mxu0 0.0
        %6653 = vmatprep.subr.mxu0 0.0
        %6654 = vmatpush2.xpose.msra.mxu0 0.0
        %6655 = vmatprep.subr.mxu0 0.0
        %6656 = vmatpush2.xpose.msra.mxu0 0.0
        %6657 = vmatprep.subr.mxu0 0.0
        %6658 = vmatpush2.xpose.msra.mxu0 0.0
        %6659 = vmatprep.subr.mxu0 0.0
        %6660 = vmatpush2.xpose.msra.mxu0 0.0
        %6661 = vmatprep.subr.mxu0 0.0
        %6662 = vmatpush2.xpose.msra.mxu0 0.0
        %6663 = vmatprep.subr.mxu0 0.0
        %6664 = vmatpush2.xpose.msra.mxu0 0.0
        %6665 = vmatprep.subr.mxu0 0.0
        %6666 = vmatpush2.xpose.msra.mxu0 0.0
        %6667 = vmatprep.subr.mxu0 0.0
        %6668 = vmatpush2.xpose.msra.mxu0 0.0
        %6669 = vmatprep.subr.mxu0 0.0
        %6670 = vmatpush2.xpose.msra.mxu0 0.0
        %6671 = vmatprep.subr.mxu0 0.0
        %6672 = vmatpush2.xpose.msra.mxu0 0.0
        %6673 = vmatprep.mubr.f32.mxu0 0.0
        %6674 = vmatmul.mubr.f32.gmra.mxu0 %v6577
        %v6675 = vpop.f32.mrf.mxu0
        %v6676 = vadd.f32 0.0, %v6675
        %v6677 = vpop.f32.mrf.mxu0
        %6678 = vmatprep.mubr.f32.mxu0 0.0
        %6679 = vmatmul.mubr.f32.gmra.mxu0 %v6579
        %v6680 = vpop.f32.mrf.mxu0
        %v6681 = vadd.f32 0.0, %v6680
        %v6682 = vpop.f32.mrf.mxu0
        %6683 = vmatprep.mubr.f32.mxu0 0.0
        %6684 = vmatmul.mubr.f32.gmra.mxu0 %v6581
        %v6685 = vpop.f32.mrf.mxu0
        %v6686 = vadd.f32 0.0, %v6685
        %v6687 = vpop.f32.mrf.mxu0
        %6688 = vmatprep.mubr.f32.mxu0 0.0
        %6689 = vmatmul.mubr.f32.gmra.mxu0 %v6583
        %v6690 = vpop.f32.mrf.mxu0
        %v6691 = vadd.f32 0.0, %v6690
        %v6692 = vpop.f32.mrf.mxu0
        %6693 = vmatprep.mubr.f32.mxu0 0.0
        %6694 = vmatmul.mubr.f32.gmra.mxu0 %v6585
        %v6695 = vpop.f32.mrf.mxu0
        %v6696 = vadd.f32 0.0, %v6695
        %v6697 = vpop.f32.mrf.mxu0
        %6698 = vmatprep.mubr.f32.mxu0 0.0
        %6699 = vmatmul.mubr.f32.gmra.mxu0 %v6587
        %v6700 = vpop.f32.mrf.mxu0
        %v6701 = vadd.f32 0.0, %v6700
        %v6702 = vpop.f32.mrf.mxu0
        %6703 = vmatprep.mubr.f32.mxu0 0.0
        %6704 = vmatmul.mubr.f32.gmra.mxu0 %v6589
        %v6705 = vpop.f32.mrf.mxu0
        %v6706 = vadd.f32 0.0, %v6705
        %v6707 = vpop.f32.mrf.mxu0
        %6708 = vmatprep.mubr.f32.mxu0 0.0
        %6709 = vmatmul.mubr.f32.gmra.mxu0 %v6591
        %v6710 = vpop.f32.mrf.mxu0
        %v6711 = vadd.f32 0.0, %v6710
        %v6712 = vpop.f32.mrf.mxu0
        %6713 = vdwg.mxu0
        %6714 = vrot.lane.b32.xlu0 %v1373, 32
        %v6715 = vpop.permute.xlu0 %6714
        %6716 = vrot.lane.b32.xlu0 %v1374, 32
        %v6717 = vpop.permute.xlu0 %6716
        %6718 = vrot.lane.b32.xlu0 %v1375, 32
        %v6719 = vpop.permute.xlu0 %6718
        %6720 = vrot.lane.b32.xlu0 %v1376, 32
        %v6721 = vpop.permute.xlu0 %6720
        %6722 = vrot.lane.b32.xlu0 %v1377, 32
        %v6723 = vpop.permute.xlu0 %6722
        %6724 = vrot.lane.b32.xlu0 %v1378, 32
        %v6725 = vpop.permute.xlu0 %6724
        %6726 = vrot.lane.b32.xlu0 %v1379, 32
        %v6727 = vpop.permute.xlu0 %6726
        %6728 = vrot.lane.b32.xlu0 %v1380, 32
        %v6729 = vpop.permute.xlu0 %6728
        %6730 = vrot.lane.b32.xlu0 %v999, 32
        %v6731 = vpop.permute.xlu0 %6730
        %6732 = vrot.lane.b32.xlu0 %v1004, 32
        %v6733 = vpop.permute.xlu0 %6732
        %6734 = vrot.lane.b32.xlu0 %v1009, 32
        %v6735 = vpop.permute.xlu0 %6734
        %6736 = vrot.lane.b32.xlu0 %v1014, 32
        %v6737 = vpop.permute.xlu0 %6736
        %6738 = vrot.lane.b32.xlu0 %v1019, 32
        %v6739 = vpop.permute.xlu0 %6738
        %6740 = vrot.lane.b32.xlu0 %v1024, 32
        %v6741 = vpop.permute.xlu0 %6740
        %6742 = vrot.lane.b32.xlu0 %v1029, 32
        %v6743 = vpop.permute.xlu0 %6742
        %6744 = vrot.lane.b32.xlu0 %v1034, 32
        %v6745 = vpop.permute.xlu0 %6744
        %v6746 = vsel %vm1397, %v6715, 0
        %v6748 = vsel %vm1397, %v6717, 0
        %v6750 = vsel %vm1397, %v6719, 0
        %v6752 = vsel %vm1397, %v6721, 0
        %v6754 = vsel %vm1397, %v6723, 0
        %v6756 = vsel %vm1397, %v6725, 0
        %v6758 = vsel %vm1397, %v6727, 0
        %v6760 = vsel %vm1397, %v6729, 0
        %v6762 = vsel %vm1397, %v6731, 0
        %v6764 = vsel %vm1397, %v6733, 0
        %v6766 = vsel %vm1397, %v6735, 0
        %v6768 = vsel %vm1397, %v6737, 0
        %v6770 = vsel %vm1397, %v6739, 0
        %v6772 = vsel %vm1397, %v6741, 0
        %v6774 = vsel %vm1397, %v6743, 0
        %v6776 = vsel %vm1397, %v6745, 0
        %6778 = vmatprep.subr.mxu0 0.0
        %6779 = vmatpush1.xpose.msra.mxu0 0.0
        %6780 = vmatprep.subr.mxu0 0.0
        %6781 = vmatpush1.xpose.msra.mxu0 0.0
        %6782 = vmatprep.subr.mxu0 0.0
        %6783 = vmatpush1.xpose.msra.mxu0 0.0
        %6784 = vmatprep.subr.mxu0 0.0
        %6785 = vmatpush1.xpose.msra.mxu0 0.0
        %6786 = vmatprep.subr.mxu0 0.0
        %6787 = vmatpush1.xpose.msra.mxu0 0.0
        %6788 = vmatprep.subr.mxu0 0.0
        %6789 = vmatpush1.xpose.msra.mxu0 0.0
        %6790 = vmatprep.subr.mxu0 0.0
        %6791 = vmatpush1.xpose.msra.mxu0 0.0
        %6792 = vmatprep.subr.mxu0 0.0
        %6793 = vmatpush1.xpose.msra.mxu0 0.0
        %6794 = vmatprep.subr.mxu0 0.0
        %6795 = vmatpush1.xpose.msra.mxu0 %v6776
        %6796 = vmatprep.subr.mxu0 0.0
        %6797 = vmatpush1.xpose.msra.mxu0 %v6774
        %6798 = vmatprep.subr.mxu0 0.0
        %6799 = vmatpush1.xpose.msra.mxu0 %v6772
        %6800 = vmatprep.subr.mxu0 0.0
        %6801 = vmatpush1.xpose.msra.mxu0 %v6770
        %6802 = vmatprep.subr.mxu0 0.0
        %6803 = vmatpush1.xpose.msra.mxu0 %v6768
        %6804 = vmatprep.subr.mxu0 0.0
        %6805 = vmatpush1.xpose.msra.mxu0 %v6766
        %6806 = vmatprep.subr.mxu0 0.0
        %6807 = vmatpush1.xpose.msra.mxu0 %v6764
        %6808 = vmatprep.subr.mxu0 0.0
        %6809 = vmatpush1.xpose.msra.mxu0 %v6762
        %6810 = vmatprep.subr.mxu0 0.0
        %6811 = vmatpush2.xpose.msra.mxu0 0.0
        %6812 = vmatprep.subr.mxu0 0.0
        %6813 = vmatpush2.xpose.msra.mxu0 0.0
        %6814 = vmatprep.subr.mxu0 0.0
        %6815 = vmatpush2.xpose.msra.mxu0 0.0
        %6816 = vmatprep.subr.mxu0 0.0
        %6817 = vmatpush2.xpose.msra.mxu0 0.0
        %6818 = vmatprep.subr.mxu0 0.0
        %6819 = vmatpush2.xpose.msra.mxu0 0.0
        %6820 = vmatprep.subr.mxu0 0.0
        %6821 = vmatpush2.xpose.msra.mxu0 0.0
        %6822 = vmatprep.subr.mxu0 0.0
        %6823 = vmatpush2.xpose.msra.mxu0 0.0
        %6824 = vmatprep.subr.mxu0 0.0
        %6825 = vmatpush2.xpose.msra.mxu0 0.0
        %6826 = vmatprep.subr.mxu0 0.0
        %6827 = vmatpush2.xpose.msra.mxu0 0.0
        %6828 = vmatprep.subr.mxu0 0.0
        %6829 = vmatpush2.xpose.msra.mxu0 0.0
        %6830 = vmatprep.subr.mxu0 0.0
        %6831 = vmatpush2.xpose.msra.mxu0 0.0
        %6832 = vmatprep.subr.mxu0 0.0
        %6833 = vmatpush2.xpose.msra.mxu0 0.0
        %6834 = vmatprep.subr.mxu0 0.0
        %6835 = vmatpush2.xpose.msra.mxu0 0.0
        %6836 = vmatprep.subr.mxu0 0.0
        %6837 = vmatpush2.xpose.msra.mxu0 0.0
        %6838 = vmatprep.subr.mxu0 0.0
        %6839 = vmatpush2.xpose.msra.mxu0 0.0
        %6840 = vmatprep.subr.mxu0 0.0
        %6841 = vmatpush2.xpose.msra.mxu0 0.0
        %6842 = vmatprep.mubr.f32.mxu0 0.0
        %6843 = vmatmul.mubr.f32.gmra.mxu0 %v6746
        %v6844 = vpop.f32.mrf.mxu0
        %v6845 = vadd.f32 0.0, %v6844
        %v6846 = vpop.f32.mrf.mxu0
        %6847 = vmatprep.mubr.f32.mxu0 0.0
        %6848 = vmatmul.mubr.f32.gmra.mxu0 %v6748
        %v6849 = vpop.f32.mrf.mxu0
        %v6850 = vadd.f32 0.0, %v6849
        %v6851 = vpop.f32.mrf.mxu0
        %6852 = vmatprep.mubr.f32.mxu0 0.0
        %6853 = vmatmul.mubr.f32.gmra.mxu0 %v6750
        %v6854 = vpop.f32.mrf.mxu0
        %v6855 = vadd.f32 0.0, %v6854
        %v6856 = vpop.f32.mrf.mxu0
        %6857 = vmatprep.mubr.f32.mxu0 0.0
        %6858 = vmatmul.mubr.f32.gmra.mxu0 %v6752
        %v6859 = vpop.f32.mrf.mxu0
        %v6860 = vadd.f32 0.0, %v6859
        %v6861 = vpop.f32.mrf.mxu0
        %6862 = vmatprep.mubr.f32.mxu0 0.0
        %6863 = vmatmul.mubr.f32.gmra.mxu0 %v6754
        %v6864 = vpop.f32.mrf.mxu0
        %v6865 = vadd.f32 0.0, %v6864
        %v6866 = vpop.f32.mrf.mxu0
        %6867 = vmatprep.mubr.f32.mxu0 0.0
        %6868 = vmatmul.mubr.f32.gmra.mxu0 %v6756
        %v6869 = vpop.f32.mrf.mxu0
        %v6870 = vadd.f32 0.0, %v6869
        %v6871 = vpop.f32.mrf.mxu0
        %6872 = vmatprep.mubr.f32.mxu0 0.0
        %6873 = vmatmul.mubr.f32.gmra.mxu0 %v6758
        %v6874 = vpop.f32.mrf.mxu0
        %v6875 = vadd.f32 0.0, %v6874
        %v6876 = vpop.f32.mrf.mxu0
        %6877 = vmatprep.mubr.f32.mxu0 0.0
        %6878 = vmatmul.mubr.f32.gmra.mxu0 %v6760
        %v6879 = vpop.f32.mrf.mxu0
        %v6880 = vadd.f32 0.0, %v6879
        %v6881 = vpop.f32.mrf.mxu0
        %6882 = vdwg.mxu0
        %6883 = vrot.lane.b32.xlu0 %v1381, 32
        %v6884 = vpop.permute.xlu0 %6883
        %6885 = vrot.lane.b32.xlu0 %v1382, 32
        %v6886 = vpop.permute.xlu0 %6885
        %6887 = vrot.lane.b32.xlu0 %v1383, 32
        %v6888 = vpop.permute.xlu0 %6887
        %6889 = vrot.lane.b32.xlu0 %v1384, 32
        %v6890 = vpop.permute.xlu0 %6889
        %6891 = vrot.lane.b32.xlu0 %v1385, 32
        %v6892 = vpop.permute.xlu0 %6891
        %6893 = vrot.lane.b32.xlu0 %v1386, 32
        %v6894 = vpop.permute.xlu0 %6893
        %6895 = vrot.lane.b32.xlu0 %v1387, 32
        %v6896 = vpop.permute.xlu0 %6895
        %6897 = vrot.lane.b32.xlu0 %v1388, 32
        %v6898 = vpop.permute.xlu0 %6897
        %6899 = vrot.lane.b32.xlu0 %v1039, 32
        %v6900 = vpop.permute.xlu0 %6899
        %6901 = vrot.lane.b32.xlu0 %v1044, 32
        %v6902 = vpop.permute.xlu0 %6901
        %6903 = vrot.lane.b32.xlu0 %v1049, 32
        %v6904 = vpop.permute.xlu0 %6903
        %6905 = vrot.lane.b32.xlu0 %v1054, 32
        %v6906 = vpop.permute.xlu0 %6905
        %6907 = vrot.lane.b32.xlu0 %v1059, 32
        %v6908 = vpop.permute.xlu0 %6907
        %6909 = vrot.lane.b32.xlu0 %v1064, 32
        %v6910 = vpop.permute.xlu0 %6909
        %6911 = vrot.lane.b32.xlu0 %v1069, 32
        %v6912 = vpop.permute.xlu0 %6911
        %6913 = vrot.lane.b32.xlu0 %v1074, 32
        %v6914 = vpop.permute.xlu0 %6913
        %v6915 = vsel %vm1397, %v6884, 0
        %v6917 = vsel %vm1397, %v6886, 0
        %v6919 = vsel %vm1397, %v6888, 0
        %v6921 = vsel %vm1397, %v6890, 0
        %v6923 = vsel %vm1397, %v6892, 0
        %v6925 = vsel %vm1397, %v6894, 0
        %v6927 = vsel %vm1397, %v6896, 0
        %v6929 = vsel %vm1397, %v6898, 0
        %v6931 = vsel %vm1397, %v6900, 0
        %v6933 = vsel %vm1397, %v6902, 0
        %v6935 = vsel %vm1397, %v6904, 0
        %v6937 = vsel %vm1397, %v6906, 0
        %v6939 = vsel %vm1397, %v6908, 0
        %v6941 = vsel %vm1397, %v6910, 0
        %v6943 = vsel %vm1397, %v6912, 0
        %v6945 = vsel %vm1397, %v6914, 0
        %6947 = vmatprep.subr.mxu0 0.0
        %6948 = vmatpush1.xpose.msra.mxu0 0.0
        %6949 = vmatprep.subr.mxu0 0.0
        %6950 = vmatpush1.xpose.msra.mxu0 0.0
        %6951 = vmatprep.subr.mxu0 0.0
        %6952 = vmatpush1.xpose.msra.mxu0 0.0
        %6953 = vmatprep.subr.mxu0 0.0
        %6954 = vmatpush1.xpose.msra.mxu0 0.0
        %6955 = vmatprep.subr.mxu0 0.0
        %6956 = vmatpush1.xpose.msra.mxu0 0.0
        %6957 = vmatprep.subr.mxu0 0.0
        %6958 = vmatpush1.xpose.msra.mxu0 0.0
        %6959 = vmatprep.subr.mxu0 0.0
        %6960 = vmatpush1.xpose.msra.mxu0 0.0
        %6961 = vmatprep.subr.mxu0 0.0
        %6962 = vmatpush1.xpose.msra.mxu0 0.0
        %6963 = vmatprep.subr.mxu0 0.0
        %6964 = vmatpush1.xpose.msra.mxu0 %v6945
        %6965 = vmatprep.subr.mxu0 0.0
        %6966 = vmatpush1.xpose.msra.mxu0 %v6943
        %6967 = vmatprep.subr.mxu0 0.0
        %6968 = vmatpush1.xpose.msra.mxu0 %v6941
        %6969 = vmatprep.subr.mxu0 0.0
        %6970 = vmatpush1.xpose.msra.mxu0 %v6939
        %6971 = vmatprep.subr.mxu0 0.0
        %6972 = vmatpush1.xpose.msra.mxu0 %v6937
        %6973 = vmatprep.subr.mxu0 0.0
        %6974 = vmatpush1.xpose.msra.mxu0 %v6935
        %6975 = vmatprep.subr.mxu0 0.0
        %6976 = vmatpush1.xpose.msra.mxu0 %v6933
        %6977 = vmatprep.subr.mxu0 0.0
        %6978 = vmatpush1.xpose.msra.mxu0 %v6931
        %6979 = vmatprep.subr.mxu0 0.0
        %6980 = vmatpush2.xpose.msra.mxu0 0.0
        %6981 = vmatprep.subr.mxu0 0.0
        %6982 = vmatpush2.xpose.msra.mxu0 0.0
        %6983 = vmatprep.subr.mxu0 0.0
        %6984 = vmatpush2.xpose.msra.mxu0 0.0
        %6985 = vmatprep.subr.mxu0 0.0
        %6986 = vmatpush2.xpose.msra.mxu0 0.0
        %6987 = vmatprep.subr.mxu0 0.0
        %6988 = vmatpush2.xpose.msra.mxu0 0.0
        %6989 = vmatprep.subr.mxu0 0.0
        %6990 = vmatpush2.xpose.msra.mxu0 0.0
        %6991 = vmatprep.subr.mxu0 0.0
        %6992 = vmatpush2.xpose.msra.mxu0 0.0
        %6993 = vmatprep.subr.mxu0 0.0
        %6994 = vmatpush2.xpose.msra.mxu0 0.0
        %6995 = vmatprep.subr.mxu0 0.0
        %6996 = vmatpush2.xpose.msra.mxu0 0.0
        %6997 = vmatprep.subr.mxu0 0.0
        %6998 = vmatpush2.xpose.msra.mxu0 0.0
        %6999 = vmatprep.subr.mxu0 0.0
        %7000 = vmatpush2.xpose.msra.mxu0 0.0
        %7001 = vmatprep.subr.mxu0 0.0
        %7002 = vmatpush2.xpose.msra.mxu0 0.0
        %7003 = vmatprep.subr.mxu0 0.0
        %7004 = vmatpush2.xpose.msra.mxu0 0.0
        %7005 = vmatprep.subr.mxu0 0.0
        %7006 = vmatpush2.xpose.msra.mxu0 0.0
        %7007 = vmatprep.subr.mxu0 0.0
        %7008 = vmatpush2.xpose.msra.mxu0 0.0
        %7009 = vmatprep.subr.mxu0 0.0
        %7010 = vmatpush2.xpose.msra.mxu0 0.0
        %7011 = vmatprep.mubr.f32.mxu0 0.0
        %7012 = vmatmul.mubr.f32.gmra.mxu0 %v6915
        %v7013 = vpop.f32.mrf.mxu0
        %v7014 = vadd.f32 0.0, %v7013
        %v7015 = vpop.f32.mrf.mxu0
        %7016 = vmatprep.mubr.f32.mxu0 0.0
        %7017 = vmatmul.mubr.f32.gmra.mxu0 %v6917
        %v7018 = vpop.f32.mrf.mxu0
        %v7019 = vadd.f32 0.0, %v7018
        %v7020 = vpop.f32.mrf.mxu0
        %7021 = vmatprep.mubr.f32.mxu0 0.0
        %7022 = vmatmul.mubr.f32.gmra.mxu0 %v6919
        %v7023 = vpop.f32.mrf.mxu0
        %v7024 = vadd.f32 0.0, %v7023
        %v7025 = vpop.f32.mrf.mxu0
        %7026 = vmatprep.mubr.f32.mxu0 0.0
        %7027 = vmatmul.mubr.f32.gmra.mxu0 %v6921
        %v7028 = vpop.f32.mrf.mxu0
        %v7029 = vadd.f32 0.0, %v7028
        %v7030 = vpop.f32.mrf.mxu0
        %7031 = vmatprep.mubr.f32.mxu0 0.0
        %7032 = vmatmul.mubr.f32.gmra.mxu0 %v6923
        %v7033 = vpop.f32.mrf.mxu0
        %v7034 = vadd.f32 0.0, %v7033
        %v7035 = vpop.f32.mrf.mxu0
        %7036 = vmatprep.mubr.f32.mxu0 0.0
        %7037 = vmatmul.mubr.f32.gmra.mxu0 %v6925
        %v7038 = vpop.f32.mrf.mxu0
        %v7039 = vadd.f32 0.0, %v7038
        %v7040 = vpop.f32.mrf.mxu0
        %7041 = vmatprep.mubr.f32.mxu0 0.0
        %7042 = vmatmul.mubr.f32.gmra.mxu0 %v6927
        %v7043 = vpop.f32.mrf.mxu0
        %v7044 = vadd.f32 0.0, %v7043
        %v7045 = vpop.f32.mrf.mxu0
        %7046 = vmatprep.mubr.f32.mxu0 0.0
        %7047 = vmatmul.mubr.f32.gmra.mxu0 %v6929
        %v7048 = vpop.f32.mrf.mxu0
        %v7049 = vadd.f32 0.0, %v7048
        %v7050 = vpop.f32.mrf.mxu0
        %7051 = vdwg.mxu0
        %7052 = vrot.lane.b32.xlu0 %v1389, 32
        %v7053 = vpop.permute.xlu0 %7052
        %7054 = vrot.lane.b32.xlu0 %v1390, 32
        %v7055 = vpop.permute.xlu0 %7054
        %7056 = vrot.lane.b32.xlu0 %v1391, 32
        %v7057 = vpop.permute.xlu0 %7056
        %7058 = vrot.lane.b32.xlu0 %v1392, 32
        %v7059 = vpop.permute.xlu0 %7058
        %7060 = vrot.lane.b32.xlu0 %v1393, 32
        %v7061 = vpop.permute.xlu0 %7060
        %7062 = vrot.lane.b32.xlu0 %v1394, 32
        %v7063 = vpop.permute.xlu0 %7062
        %7064 = vrot.lane.b32.xlu0 %v1395, 32
        %v7065 = vpop.permute.xlu0 %7064
        %7066 = vrot.lane.b32.xlu0 %v1396, 32
        %v7067 = vpop.permute.xlu0 %7066
        %7068 = vrot.lane.b32.xlu0 %v1079, 32
        %v7069 = vpop.permute.xlu0 %7068
        %7070 = vrot.lane.b32.xlu0 %v1084, 32
        %v7071 = vpop.permute.xlu0 %7070
        %7072 = vrot.lane.b32.xlu0 %v1089, 32
        %v7073 = vpop.permute.xlu0 %7072
        %7074 = vrot.lane.b32.xlu0 %v1094, 32
        %v7075 = vpop.permute.xlu0 %7074
        %7076 = vrot.lane.b32.xlu0 %v1099, 32
        %v7077 = vpop.permute.xlu0 %7076
        %7078 = vrot.lane.b32.xlu0 %v1104, 32
        %v7079 = vpop.permute.xlu0 %7078
        %7080 = vrot.lane.b32.xlu0 %v1109, 32
        %v7081 = vpop.permute.xlu0 %7080
        %7082 = vrot.lane.b32.xlu0 %v1114, 32
        %v7083 = vpop.permute.xlu0 %7082
        %v7084 = vsel %vm1397, %v7053, 0
        %v7086 = vsel %vm1397, %v7055, 0
        %v7088 = vsel %vm1397, %v7057, 0
        %v7090 = vsel %vm1397, %v7059, 0
        %v7092 = vsel %vm1397, %v7061, 0
        %v7094 = vsel %vm1397, %v7063, 0
        %v7096 = vsel %vm1397, %v7065, 0
        %v7098 = vsel %vm1397, %v7067, 0
        %v7100 = vsel %vm1397, %v7069, 0
        %v7102 = vsel %vm1397, %v7071, 0
        %v7104 = vsel %vm1397, %v7073, 0
        %v7106 = vsel %vm1397, %v7075, 0
        %v7108 = vsel %vm1397, %v7077, 0
        %v7110 = vsel %vm1397, %v7079, 0
        %v7112 = vsel %vm1397, %v7081, 0
        %v7114 = vsel %vm1397, %v7083, 0
        %7116 = vmatprep.subr.mxu0 0.0
        %7117 = vmatpush1.xpose.msra.mxu0 0.0
        %7118 = vmatprep.subr.mxu0 0.0
        %7119 = vmatpush1.xpose.msra.mxu0 0.0
        %7120 = vmatprep.subr.mxu0 0.0
        %7121 = vmatpush1.xpose.msra.mxu0 0.0
        %7122 = vmatprep.subr.mxu0 0.0
        %7123 = vmatpush1.xpose.msra.mxu0 0.0
        %7124 = vmatprep.subr.mxu0 0.0
        %7125 = vmatpush1.xpose.msra.mxu0 0.0
        %7126 = vmatprep.subr.mxu0 0.0
        %7127 = vmatpush1.xpose.msra.mxu0 0.0
        %7128 = vmatprep.subr.mxu0 0.0
        %7129 = vmatpush1.xpose.msra.mxu0 0.0
        %7130 = vmatprep.subr.mxu0 0.0
        %7131 = vmatpush1.xpose.msra.mxu0 0.0
        %7132 = vmatprep.subr.mxu0 0.0
        %7133 = vmatpush1.xpose.msra.mxu0 %v7114
        %7134 = vmatprep.subr.mxu0 0.0
        %7135 = vmatpush1.xpose.msra.mxu0 %v7112
        %7136 = vmatprep.subr.mxu0 0.0
        %7137 = vmatpush1.xpose.msra.mxu0 %v7110
        %7138 = vmatprep.subr.mxu0 0.0
        %7139 = vmatpush1.xpose.msra.mxu0 %v7108
        %7140 = vmatprep.subr.mxu0 0.0
        %7141 = vmatpush1.xpose.msra.mxu0 %v7106
        %7142 = vmatprep.subr.mxu0 0.0
        %7143 = vmatpush1.xpose.msra.mxu0 %v7104
        %7144 = vmatprep.subr.mxu0 0.0
        %7145 = vmatpush1.xpose.msra.mxu0 %v7102
        %7146 = vmatprep.subr.mxu0 0.0
        %7147 = vmatpush1.xpose.msra.mxu0 %v7100
        %7148 = vmatprep.subr.mxu0 0.0
        %7149 = vmatpush2.xpose.msra.mxu0 0.0
        %7150 = vmatprep.subr.mxu0 0.0
        %7151 = vmatpush2.xpose.msra.mxu0 0.0
        %7152 = vmatprep.subr.mxu0 0.0
        %7153 = vmatpush2.xpose.msra.mxu0 0.0
        %7154 = vmatprep.subr.mxu0 0.0
        %7155 = vmatpush2.xpose.msra.mxu0 0.0
        %7156 = vmatprep.subr.mxu0 0.0
        %7157 = vmatpush2.xpose.msra.mxu0 0.0
        %7158 = vmatprep.subr.mxu0 0.0
        %7159 = vmatpush2.xpose.msra.mxu0 0.0
        %7160 = vmatprep.subr.mxu0 0.0
        %7161 = vmatpush2.xpose.msra.mxu0 0.0
        %7162 = vmatprep.subr.mxu0 0.0
        %7163 = vmatpush2.xpose.msra.mxu0 0.0
        %7164 = vmatprep.subr.mxu0 0.0
        %7165 = vmatpush2.xpose.msra.mxu0 0.0
        %7166 = vmatprep.subr.mxu0 0.0
        %7167 = vmatpush2.xpose.msra.mxu0 0.0
        %7168 = vmatprep.subr.mxu0 0.0
        %7169 = vmatpush2.xpose.msra.mxu0 0.0
        %7170 = vmatprep.subr.mxu0 0.0
        %7171 = vmatpush2.xpose.msra.mxu0 0.0
        %7172 = vmatprep.subr.mxu0 0.0
        %7173 = vmatpush2.xpose.msra.mxu0 0.0
        %7174 = vmatprep.subr.mxu0 0.0
        %7175 = vmatpush2.xpose.msra.mxu0 0.0
        %7176 = vmatprep.subr.mxu0 0.0
        %7177 = vmatpush2.xpose.msra.mxu0 0.0
        %7178 = vmatprep.subr.mxu0 0.0
        %7179 = vmatpush2.xpose.msra.mxu0 0.0
        %7180 = vmatprep.mubr.f32.mxu0 0.0
        %7181 = vmatmul.mubr.f32.gmra.mxu0 %v7084
        %v7182 = vpop.f32.mrf.mxu0
        %v7183 = vadd.f32 0.0, %v7182
        %v7184 = vpop.f32.mrf.mxu0
        %7185 = vmatprep.mubr.f32.mxu0 0.0
        %7186 = vmatmul.mubr.f32.gmra.mxu0 %v7086
        %v7187 = vpop.f32.mrf.mxu0
        %v7188 = vadd.f32 0.0, %v7187
        %v7189 = vpop.f32.mrf.mxu0
        %7190 = vmatprep.mubr.f32.mxu0 0.0
        %7191 = vmatmul.mubr.f32.gmra.mxu0 %v7088
        %v7192 = vpop.f32.mrf.mxu0
        %v7193 = vadd.f32 0.0, %v7192
        %v7194 = vpop.f32.mrf.mxu0
        %7195 = vmatprep.mubr.f32.mxu0 0.0
        %7196 = vmatmul.mubr.f32.gmra.mxu0 %v7090
        %v7197 = vpop.f32.mrf.mxu0
        %v7198 = vadd.f32 0.0, %v7197
        %v7199 = vpop.f32.mrf.mxu0
        %7200 = vmatprep.mubr.f32.mxu0 0.0
        %7201 = vmatmul.mubr.f32.gmra.mxu0 %v7092
        %v7202 = vpop.f32.mrf.mxu0
        %v7203 = vadd.f32 0.0, %v7202
        %v7204 = vpop.f32.mrf.mxu0
        %7205 = vmatprep.mubr.f32.mxu0 0.0
        %7206 = vmatmul.mubr.f32.gmra.mxu0 %v7094
        %v7207 = vpop.f32.mrf.mxu0
        %v7208 = vadd.f32 0.0, %v7207
        %v7209 = vpop.f32.mrf.mxu0
        %7210 = vmatprep.mubr.f32.mxu0 0.0
        %7211 = vmatmul.mubr.f32.gmra.mxu0 %v7096
        %v7212 = vpop.f32.mrf.mxu0
        %v7213 = vadd.f32 0.0, %v7212
        %v7214 = vpop.f32.mrf.mxu0
        %7215 = vmatprep.mubr.f32.mxu0 0.0
        %7216 = vmatmul.mubr.f32.gmra.mxu0 %v7098
        %v7217 = vpop.f32.mrf.mxu0
        %v7218 = vadd.f32 0.0, %v7217
        %v7219 = vpop.f32.mrf.mxu0
        %7220 = vdwg.mxu0
        %v7221 = vsel %vm2010, %v6676, -inf
        %7222 = vmax.xlane.f32.xlu0 %v7221
        %v7223 = vpop.xlane.xlu0 %7222
        %v7224 = vsel %vm2010, %v6681, -inf
        %7225 = vmax.xlane.f32.xlu0 %v7224
        %v7226 = vpop.xlane.xlu0 %7225
        %v7227 = vsel %vm2010, %v6686, -inf
        %7228 = vmax.xlane.f32.xlu0 %v7227
        %v7229 = vpop.xlane.xlu0 %7228
        %v7230 = vsel %vm2010, %v6691, -inf
        %7231 = vmax.xlane.f32.xlu0 %v7230
        %v7232 = vpop.xlane.xlu0 %7231
        %v7233 = vsel %vm2010, %v6696, -inf
        %7234 = vmax.xlane.f32.xlu0 %v7233
        %v7235 = vpop.xlane.xlu0 %7234
        %v7236 = vsel %vm2010, %v6701, -inf
        %7237 = vmax.xlane.f32.xlu0 %v7236
        %v7238 = vpop.xlane.xlu0 %7237
        %v7239 = vsel %vm2010, %v6706, -inf
        %7240 = vmax.xlane.f32.xlu0 %v7239
        %v7241 = vpop.xlane.xlu0 %7240
        %v7242 = vsel %vm2010, %v6711, -inf
        %7243 = vmax.xlane.f32.xlu0 %v7242
        %v7244 = vpop.xlane.xlu0 %7243
        %v7245 = vsel %vm2010, %v6845, -inf
        %7246 = vmax.xlane.f32.xlu0 %v7245
        %v7247 = vpop.xlane.xlu0 %7246
        %v7248 = vsel %vm2010, %v6850, -inf
        %7249 = vmax.xlane.f32.xlu0 %v7248
        %v7250 = vpop.xlane.xlu0 %7249
        %v7251 = vsel %vm2010, %v6855, -inf
        %7252 = vmax.xlane.f32.xlu0 %v7251
        %v7253 = vpop.xlane.xlu0 %7252
        %v7254 = vsel %vm2010, %v6860, -inf
        %7255 = vmax.xlane.f32.xlu0 %v7254
        %v7256 = vpop.xlane.xlu0 %7255
        %v7257 = vsel %vm2010, %v6865, -inf
        %7258 = vmax.xlane.f32.xlu0 %v7257
        %v7259 = vpop.xlane.xlu0 %7258
        %v7260 = vsel %vm2010, %v6870, -inf
        %7261 = vmax.xlane.f32.xlu0 %v7260
        %v7262 = vpop.xlane.xlu0 %7261
        %v7263 = vsel %vm2010, %v6875, -inf
        %7264 = vmax.xlane.f32.xlu0 %v7263
        %v7265 = vpop.xlane.xlu0 %7264
        %v7266 = vsel %vm2010, %v6880, -inf
        %7267 = vmax.xlane.f32.xlu0 %v7266
        %v7268 = vpop.xlane.xlu0 %7267
        %v7269 = vsel %vm2010, %v7014, -inf
        %7270 = vmax.xlane.f32.xlu0 %v7269
        %v7271 = vpop.xlane.xlu0 %7270
        %v7272 = vsel %vm2010, %v7019, -inf
        %7273 = vmax.xlane.f32.xlu0 %v7272
        %v7274 = vpop.xlane.xlu0 %7273
        %v7275 = vsel %vm2010, %v7024, -inf
        %7276 = vmax.xlane.f32.xlu0 %v7275
        %v7277 = vpop.xlane.xlu0 %7276
        %v7278 = vsel %vm2010, %v7029, -inf
        %7279 = vmax.xlane.f32.xlu0 %v7278
        %v7280 = vpop.xlane.xlu0 %7279
        %v7281 = vsel %vm2010, %v7034, -inf
        %7282 = vmax.xlane.f32.xlu0 %v7281
        %v7283 = vpop.xlane.xlu0 %7282
        %v7284 = vsel %vm2010, %v7039, -inf
        %7285 = vmax.xlane.f32.xlu0 %v7284
        %v7286 = vpop.xlane.xlu0 %7285
        %v7287 = vsel %vm2010, %v7044, -inf
        %7288 = vmax.xlane.f32.xlu0 %v7287
        %v7289 = vpop.xlane.xlu0 %7288
        %v7290 = vsel %vm2010, %v7049, -inf
        %7291 = vmax.xlane.f32.xlu0 %v7290
        %v7292 = vpop.xlane.xlu0 %7291
        %v7293 = vsel %vm2010, %v7183, -inf
        %7294 = vmax.xlane.f32.xlu0 %v7293
        %v7295 = vpop.xlane.xlu0 %7294
        %v7296 = vsel %vm2010, %v7188, -inf
        %7297 = vmax.xlane.f32.xlu0 %v7296
        %v7298 = vpop.xlane.xlu0 %7297
        %v7299 = vsel %vm2010, %v7193, -inf
        %7300 = vmax.xlane.f32.xlu0 %v7299
        %v7301 = vpop.xlane.xlu0 %7300
        %v7302 = vsel %vm2010, %v7198, -inf
        %7303 = vmax.xlane.f32.xlu0 %v7302
        %v7304 = vpop.xlane.xlu0 %7303
        %v7305 = vsel %vm2010, %v7203, -inf
        %7306 = vmax.xlane.f32.xlu0 %v7305
        %v7307 = vpop.xlane.xlu0 %7306
        %v7308 = vsel %vm2010, %v7208, -inf
        %7309 = vmax.xlane.f32.xlu0 %v7308
        %v7310 = vpop.xlane.xlu0 %7309
        %v7311 = vsel %vm2010, %v7213, -inf
        %7312 = vmax.xlane.f32.xlu0 %v7311
        %v7313 = vpop.xlane.xlu0 %7312
        %v7314 = vsel %vm2010, %v7218, -inf
        %7315 = vmax.xlane.f32.xlu0 %v7314
        %v7316 = vpop.xlane.xlu0 %7315
        %v7317 = vsub.f32 %v6676, %v7223
        %v7318 = vsub.f32 %v6681, %v7226
        %v7319 = vsub.f32 %v6686, %v7229
        %v7320 = vsub.f32 %v6691, %v7232
        %v7321 = vsub.f32 %v6696, %v7235
        %v7322 = vsub.f32 %v6701, %v7238
        %v7323 = vsub.f32 %v6706, %v7241
        %v7324 = vsub.f32 %v6711, %v7244
        %v7325 = vsub.f32 %v6845, %v7247
        %v7326 = vsub.f32 %v6850, %v7250
        %v7327 = vsub.f32 %v6855, %v7253
        %v7328 = vsub.f32 %v6860, %v7256
        %v7329 = vsub.f32 %v6865, %v7259
        %v7330 = vsub.f32 %v6870, %v7262
        %v7331 = vsub.f32 %v6875, %v7265
        %v7332 = vsub.f32 %v6880, %v7268
        %v7333 = vsub.f32 %v7014, %v7271
        %v7334 = vsub.f32 %v7019, %v7274
        %v7335 = vsub.f32 %v7024, %v7277
        %v7336 = vsub.f32 %v7029, %v7280
        %v7337 = vsub.f32 %v7034, %v7283
        %v7338 = vsub.f32 %v7039, %v7286
        %v7339 = vsub.f32 %v7044, %v7289
        %v7340 = vsub.f32 %v7049, %v7292
        %v7341 = vsub.f32 %v7183, %v7295
        %v7342 = vsub.f32 %v7188, %v7298
        %v7343 = vsub.f32 %v7193, %v7301
        %v7344 = vsub.f32 %v7198, %v7304
        %v7345 = vsub.f32 %v7203, %v7307
        %v7346 = vsub.f32 %v7208, %v7310
        %v7347 = vsub.f32 %v7213, %v7313
        %v7348 = vsub.f32 %v7218, %v7316
        %v7349 = vmul.f32 %v7317, 1.442695
        %v7350 = vpow.pop %v7349
        %v7351 = vmul.f32 %v7318, 1.442695
        %v7352 = vpow.pop %v7351
        %v7353 = vmul.f32 %v7319, 1.442695
        %v7354 = vpow.pop %v7353
        %v7355 = vmul.f32 %v7320, 1.442695
        %v7356 = vpow.pop %v7355
        %v7357 = vmul.f32 %v7321, 1.442695
        %v7358 = vpow.pop %v7357
        %v7359 = vmul.f32 %v7322, 1.442695
        %v7360 = vpow.pop %v7359
        %v7361 = vmul.f32 %v7323, 1.442695
        %v7362 = vpow.pop %v7361
        %v7363 = vmul.f32 %v7324, 1.442695
        %v7364 = vpow.pop %v7363
        %v7365 = vmul.f32 %v7325, 1.442695
        %v7366 = vpow.pop %v7365
        %v7367 = vmul.f32 %v7326, 1.442695
        %v7368 = vpow.pop %v7367
        %v7369 = vmul.f32 %v7327, 1.442695
        %v7370 = vpow.pop %v7369
        %v7371 = vmul.f32 %v7328, 1.442695
        %v7372 = vpow.pop %v7371
        %v7373 = vmul.f32 %v7329, 1.442695
        %v7374 = vpow.pop %v7373
        %v7375 = vmul.f32 %v7330, 1.442695
        %v7376 = vpow.pop %v7375
        %v7377 = vmul.f32 %v7331, 1.442695
        %v7378 = vpow.pop %v7377
        %v7379 = vmul.f32 %v7332, 1.442695
        %v7380 = vpow.pop %v7379
        %v7381 = vmul.f32 %v7333, 1.442695
        %v7382 = vpow.pop %v7381
        %v7383 = vmul.f32 %v7334, 1.442695
        %v7384 = vpow.pop %v7383
        %v7385 = vmul.f32 %v7335, 1.442695
        %v7386 = vpow.pop %v7385
        %v7387 = vmul.f32 %v7336, 1.442695
        %v7388 = vpow.pop %v7387
        %v7389 = vmul.f32 %v7337, 1.442695
        %v7390 = vpow.pop %v7389
        %v7391 = vmul.f32 %v7338, 1.442695
        %v7392 = vpow.pop %v7391
        %v7393 = vmul.f32 %v7339, 1.442695
        %v7394 = vpow.pop %v7393
        %v7395 = vmul.f32 %v7340, 1.442695
        %v7396 = vpow.pop %v7395
        %v7397 = vmul.f32 %v7341, 1.442695
        %v7398 = vpow.pop %v7397
        %v7399 = vmul.f32 %v7342, 1.442695
        %v7400 = vpow.pop %v7399
        %v7401 = vmul.f32 %v7343, 1.442695
        %v7402 = vpow.pop %v7401
        %v7403 = vmul.f32 %v7344, 1.442695
        %v7404 = vpow.pop %v7403
        %v7405 = vmul.f32 %v7345, 1.442695
        %v7406 = vpow.pop %v7405
        %v7407 = vmul.f32 %v7346, 1.442695
        %v7408 = vpow.pop %v7407
        %v7409 = vmul.f32 %v7347, 1.442695
        %v7410 = vpow.pop %v7409
        %v7411 = vmul.f32 %v7348, 1.442695
        %v7412 = vpow.pop %v7411
        %v7413 = vsel %vm2010, %v7350, 0.0
        %7414 = vadd.xlane.f32.xlu0 %v7413
        %v7415 = vpop.xlane.xlu0 %7414
        %v7416 = vsel %vm2010, %v7352, 0.0
        %7417 = vadd.xlane.f32.xlu0 %v7416
        %v7418 = vpop.xlane.xlu0 %7417
        %v7419 = vsel %vm2010, %v7354, 0.0
        %7420 = vadd.xlane.f32.xlu0 %v7419
        %v7421 = vpop.xlane.xlu0 %7420
        %v7422 = vsel %vm2010, %v7356, 0.0
        %7423 = vadd.xlane.f32.xlu0 %v7422
        %v7424 = vpop.xlane.xlu0 %7423
        %v7425 = vsel %vm2010, %v7358, 0.0
        %7426 = vadd.xlane.f32.xlu0 %v7425
        %v7427 = vpop.xlane.xlu0 %7426
        %v7428 = vsel %vm2010, %v7360, 0.0
        %7429 = vadd.xlane.f32.xlu0 %v7428
        %v7430 = vpop.xlane.xlu0 %7429
        %v7431 = vsel %vm2010, %v7362, 0.0
        %7432 = vadd.xlane.f32.xlu0 %v7431
        %v7433 = vpop.xlane.xlu0 %7432
        %v7434 = vsel %vm2010, %v7364, 0.0
        %7435 = vadd.xlane.f32.xlu0 %v7434
        %v7436 = vpop.xlane.xlu0 %7435
        %v7437 = vsel %vm2010, %v7366, 0.0
        %7438 = vadd.xlane.f32.xlu0 %v7437
        %v7439 = vpop.xlane.xlu0 %7438
        %v7440 = vsel %vm2010, %v7368, 0.0
        %7441 = vadd.xlane.f32.xlu0 %v7440
        %v7442 = vpop.xlane.xlu0 %7441
        %v7443 = vsel %vm2010, %v7370, 0.0
        %7444 = vadd.xlane.f32.xlu0 %v7443
        %v7445 = vpop.xlane.xlu0 %7444
        %v7446 = vsel %vm2010, %v7372, 0.0
        %7447 = vadd.xlane.f32.xlu0 %v7446
        %v7448 = vpop.xlane.xlu0 %7447
        %v7449 = vsel %vm2010, %v7374, 0.0
        %7450 = vadd.xlane.f32.xlu0 %v7449
        %v7451 = vpop.xlane.xlu0 %7450
        %v7452 = vsel %vm2010, %v7376, 0.0
        %7453 = vadd.xlane.f32.xlu0 %v7452
        %v7454 = vpop.xlane.xlu0 %7453
        %v7455 = vsel %vm2010, %v7378, 0.0
        %7456 = vadd.xlane.f32.xlu0 %v7455
        %v7457 = vpop.xlane.xlu0 %7456
        %v7458 = vsel %vm2010, %v7380, 0.0
        %7459 = vadd.xlane.f32.xlu0 %v7458
        %v7460 = vpop.xlane.xlu0 %7459
        %v7461 = vsel %vm2010, %v7382, 0.0
        %7462 = vadd.xlane.f32.xlu0 %v7461
        %v7463 = vpop.xlane.xlu0 %7462
        %v7464 = vsel %vm2010, %v7384, 0.0
        %7465 = vadd.xlane.f32.xlu0 %v7464
        %v7466 = vpop.xlane.xlu0 %7465
        %v7467 = vsel %vm2010, %v7386, 0.0
        %7468 = vadd.xlane.f32.xlu0 %v7467
        %v7469 = vpop.xlane.xlu0 %7468
        %v7470 = vsel %vm2010, %v7388, 0.0
        %7471 = vadd.xlane.f32.xlu0 %v7470
        %v7472 = vpop.xlane.xlu0 %7471
        %v7473 = vsel %vm2010, %v7390, 0.0
        %7474 = vadd.xlane.f32.xlu0 %v7473
        %v7475 = vpop.xlane.xlu0 %7474
        %v7476 = vsel %vm2010, %v7392, 0.0
        %7477 = vadd.xlane.f32.xlu0 %v7476
        %v7478 = vpop.xlane.xlu0 %7477
        %v7479 = vsel %vm2010, %v7394, 0.0
        %7480 = vadd.xlane.f32.xlu0 %v7479
        %v7481 = vpop.xlane.xlu0 %7480
        %v7482 = vsel %vm2010, %v7396, 0.0
        %7483 = vadd.xlane.f32.xlu0 %v7482
        %v7484 = vpop.xlane.xlu0 %7483
        %v7485 = vsel %vm2010, %v7398, 0.0
        %7486 = vadd.xlane.f32.xlu0 %v7485
        %v7487 = vpop.xlane.xlu0 %7486
        %v7488 = vsel %vm2010, %v7400, 0.0
        %7489 = vadd.xlane.f32.xlu0 %v7488
        %v7490 = vpop.xlane.xlu0 %7489
        %v7491 = vsel %vm2010, %v7402, 0.0
        %7492 = vadd.xlane.f32.xlu0 %v7491
        %v7493 = vpop.xlane.xlu0 %7492
        %v7494 = vsel %vm2010, %v7404, 0.0
        %7495 = vadd.xlane.f32.xlu0 %v7494
        %v7496 = vpop.xlane.xlu0 %7495
        %v7497 = vsel %vm2010, %v7406, 0.0
        %7498 = vadd.xlane.f32.xlu0 %v7497
        %v7499 = vpop.xlane.xlu0 %7498
        %v7500 = vsel %vm2010, %v7408, 0.0
        %7501 = vadd.xlane.f32.xlu0 %v7500
        %v7502 = vpop.xlane.xlu0 %7501
        %v7503 = vsel %vm2010, %v7410, 0.0
        %7504 = vadd.xlane.f32.xlu0 %v7503
        %v7505 = vpop.xlane.xlu0 %7504
        %v7506 = vsel %vm2010, %v7412, 0.0
        %7507 = vadd.xlane.f32.xlu0 %v7506
        %v7508 = vpop.xlane.xlu0 %7507
        %v7509 = vrcp.pop %v7415
        %v7510 = vrcp.pop %v7418
        %v7511 = vrcp.pop %v7421
        %v7512 = vrcp.pop %v7424
        %v7513 = vrcp.pop %v7427
        %v7514 = vrcp.pop %v7430
        %v7515 = vrcp.pop %v7433
        %v7516 = vrcp.pop %v7436
        %v7517 = vrcp.pop %v7439
        %v7518 = vrcp.pop %v7442
        %v7519 = vrcp.pop %v7445
        %v7520 = vrcp.pop %v7448
        %v7521 = vrcp.pop %v7451
        %v7522 = vrcp.pop %v7454
        %v7523 = vrcp.pop %v7457
        %v7524 = vrcp.pop %v7460
        %v7525 = vrcp.pop %v7463
        %v7526 = vrcp.pop %v7466
        %v7527 = vrcp.pop %v7469
        %v7528 = vrcp.pop %v7472
        %v7529 = vrcp.pop %v7475
        %v7530 = vrcp.pop %v7478
        %v7531 = vrcp.pop %v7481
        %v7532 = vrcp.pop %v7484
        %v7533 = vrcp.pop %v7487
        %v7534 = vrcp.pop %v7490
        %v7535 = vrcp.pop %v7493
        %v7536 = vrcp.pop %v7496
        %v7537 = vrcp.pop %v7499
        %v7538 = vrcp.pop %v7502
        %v7539 = vrcp.pop %v7505
        %v7540 = vrcp.pop %v7508
        %v7541 = vmul.f32 %v7350, %v7509
        %v7542 = vmul.f32 %v7352, %v7510
        %v7543 = vmul.f32 %v7354, %v7511
        %v7544 = vmul.f32 %v7356, %v7512
        %v7545 = vmul.f32 %v7358, %v7513
        %v7546 = vmul.f32 %v7360, %v7514
        %v7547 = vmul.f32 %v7362, %v7515
        %v7548 = vmul.f32 %v7364, %v7516
        %v7549 = vmul.f32 %v7366, %v7517
        %v7550 = vmul.f32 %v7368, %v7518
        %v7551 = vmul.f32 %v7370, %v7519
        %v7552 = vmul.f32 %v7372, %v7520
        %v7553 = vmul.f32 %v7374, %v7521
        %v7554 = vmul.f32 %v7376, %v7522
        %v7555 = vmul.f32 %v7378, %v7523
        %v7556 = vmul.f32 %v7380, %v7524
        %v7557 = vmul.f32 %v7382, %v7525
        %v7558 = vmul.f32 %v7384, %v7526
        %v7559 = vmul.f32 %v7386, %v7527
        %v7560 = vmul.f32 %v7388, %v7528
        %v7561 = vmul.f32 %v7390, %v7529
        %v7562 = vmul.f32 %v7392, %v7530
        %v7563 = vmul.f32 %v7394, %v7531
        %v7564 = vmul.f32 %v7396, %v7532
        %v7565 = vmul.f32 %v7398, %v7533
        %v7566 = vmul.f32 %v7400, %v7534
        %v7567 = vmul.f32 %v7402, %v7535
        %v7568 = vmul.f32 %v7404, %v7536
        %v7569 = vmul.f32 %v7406, %v7537
        %v7570 = vmul.f32 %v7408, %v7538
        %v7571 = vmul.f32 %v7410, %v7539
        %v7572 = vmul.f32 %v7412, %v7540
        %7573 = vrot.lane.b32.xlu0 %v1207, 32
        %v7574 = vpop.permute.xlu0 %7573
        %7575 = vrot.lane.b32.xlu0 %v1212, 32
        %v7576 = vpop.permute.xlu0 %7575
        %7577 = vrot.lane.b32.xlu0 %v1217, 32
        %v7578 = vpop.permute.xlu0 %7577
        %7579 = vrot.lane.b32.xlu0 %v1222, 32
        %v7580 = vpop.permute.xlu0 %7579
        %7581 = vrot.lane.b32.xlu0 %v1227, 32
        %v7582 = vpop.permute.xlu0 %7581
        %7583 = vrot.lane.b32.xlu0 %v1232, 32
        %v7584 = vpop.permute.xlu0 %7583
        %7585 = vrot.lane.b32.xlu0 %v1237, 32
        %v7586 = vpop.permute.xlu0 %7585
        %7587 = vrot.lane.b32.xlu0 %v1242, 32
        %v7588 = vpop.permute.xlu0 %7587
        %v7598 = vsel %vm2010, %v7541, 0
        %v7601 = vsel %vm2010, %v7542, 0
        %v7604 = vsel %vm2010, %v7543, 0
        %v7607 = vsel %vm2010, %v7544, 0
        %v7610 = vsel %vm2010, %v7545, 0
        %v7613 = vsel %vm2010, %v7546, 0
        %v7616 = vsel %vm2010, %v7547, 0
        %v7619 = vsel %vm2010, %v7548, 0
        %7621 = vmatprep.subr.mxu0 0.0
        %7622 = vmatpush1.msra.mxu0 0.0
        %7623 = vmatprep.subr.mxu0 0.0
        %7624 = vmatpush1.msra.mxu0 0.0
        %7625 = vmatprep.subr.mxu0 0.0
        %7626 = vmatpush1.msra.mxu0 0.0
        %7627 = vmatprep.subr.mxu0 0.0
        %7628 = vmatpush1.msra.mxu0 0.0
        %7629 = vmatprep.subr.mxu0 0.0
        %7630 = vmatpush1.msra.mxu0 0.0
        %7631 = vmatprep.subr.mxu0 0.0
        %7632 = vmatpush1.msra.mxu0 0.0
        %7633 = vmatprep.subr.mxu0 0.0
        %7634 = vmatpush1.msra.mxu0 0.0
        %7635 = vmatprep.subr.mxu0 0.0
        %7636 = vmatpush1.msra.mxu0 0.0
        %7637 = vmatprep.subr.mxu0 0.0
        %7638 = vmatpush1.msra.mxu0 %v7588
        %7639 = vmatprep.subr.mxu0 0.0
        %7640 = vmatpush1.msra.mxu0 %v7586
        %7641 = vmatprep.subr.mxu0 0.0
        %7642 = vmatpush1.msra.mxu0 %v7584
        %7643 = vmatprep.subr.mxu0 0.0
        %7644 = vmatpush1.msra.mxu0 %v7582
        %7645 = vmatprep.subr.mxu0 0.0
        %7646 = vmatpush1.msra.mxu0 %v7580
        %7647 = vmatprep.subr.mxu0 0.0
        %7648 = vmatpush1.msra.mxu0 %v7578
        %7649 = vmatprep.subr.mxu0 0.0
        %7650 = vmatpush1.msra.mxu0 %v7576
        %7651 = vmatprep.subr.mxu0 0.0
        %7652 = vmatpush1.msra.mxu0 %v7574
        %7653 = vmatprep.subr.mxu0 0.0
        %7654 = vmatpush2.msra.mxu0 0.0
        %7655 = vmatprep.subr.mxu0 0.0
        %7656 = vmatpush2.msra.mxu0 0.0
        %7657 = vmatprep.subr.mxu0 0.0
        %7658 = vmatpush2.msra.mxu0 0.0
        %7659 = vmatprep.subr.mxu0 0.0
        %7660 = vmatpush2.msra.mxu0 0.0
        %7661 = vmatprep.subr.mxu0 0.0
        %7662 = vmatpush2.msra.mxu0 0.0
        %7663 = vmatprep.subr.mxu0 0.0
        %7664 = vmatpush2.msra.mxu0 0.0
        %7665 = vmatprep.subr.mxu0 0.0
        %7666 = vmatpush2.msra.mxu0 0.0
        %7667 = vmatprep.subr.mxu0 0.0
        %7668 = vmatpush2.msra.mxu0 0.0
        %7669 = vmatprep.subr.mxu0 0.0
        %7670 = vmatpush2.msra.mxu0 0.0
        %7671 = vmatprep.subr.mxu0 0.0
        %7672 = vmatpush2.msra.mxu0 0.0
        %7673 = vmatprep.subr.mxu0 0.0
        %7674 = vmatpush2.msra.mxu0 0.0
        %7675 = vmatprep.subr.mxu0 0.0
        %7676 = vmatpush2.msra.mxu0 0.0
        %7677 = vmatprep.subr.mxu0 0.0
        %7678 = vmatpush2.msra.mxu0 0.0
        %7679 = vmatprep.subr.mxu0 0.0
        %7680 = vmatpush2.msra.mxu0 0.0
        %7681 = vmatprep.subr.mxu0 0.0
        %7682 = vmatpush2.msra.mxu0 0.0
        %7683 = vmatprep.subr.mxu0 0.0
        %7684 = vmatpush2.msra.mxu0 0.0
        %7685 = vmatprep.mubr.f32.mxu0 0.0
        %7686 = vmatmul.mubr.f32.gmra.mxu0 %v7598
        %v7687 = vpop.f32.mrf.mxu0
        %v7688 = vadd.f32 0.0, %v7687
        %v7689 = vpop.f32.mrf.mxu0
        %7690 = vmatprep.mubr.f32.mxu0 0.0
        %7691 = vmatmul.mubr.f32.gmra.mxu0 %v7601
        %v7692 = vpop.f32.mrf.mxu0
        %v7693 = vadd.f32 0.0, %v7692
        %v7694 = vpop.f32.mrf.mxu0
        %7695 = vmatprep.mubr.f32.mxu0 0.0
        %7696 = vmatmul.mubr.f32.gmra.mxu0 %v7604
        %v7697 = vpop.f32.mrf.mxu0
        %v7698 = vadd.f32 0.0, %v7697
        %v7699 = vpop.f32.mrf.mxu0
        %7700 = vmatprep.mubr.f32.mxu0 0.0
        %7701 = vmatmul.mubr.f32.gmra.mxu0 %v7607
        %v7702 = vpop.f32.mrf.mxu0
        %v7703 = vadd.f32 0.0, %v7702
        %v7704 = vpop.f32.mrf.mxu0
        %7705 = vmatprep.mubr.f32.mxu0 0.0
        %7706 = vmatmul.mubr.f32.gmra.mxu0 %v7610
        %v7707 = vpop.f32.mrf.mxu0
        %v7708 = vadd.f32 0.0, %v7707
        %v7709 = vpop.f32.mrf.mxu0
        %7710 = vmatprep.mubr.f32.mxu0 0.0
        %7711 = vmatmul.mubr.f32.gmra.mxu0 %v7613
        %v7712 = vpop.f32.mrf.mxu0
        %v7713 = vadd.f32 0.0, %v7712
        %v7714 = vpop.f32.mrf.mxu0
        %7715 = vmatprep.mubr.f32.mxu0 0.0
        %7716 = vmatmul.mubr.f32.gmra.mxu0 %v7616
        %v7717 = vpop.f32.mrf.mxu0
        %v7718 = vadd.f32 0.0, %v7717
        %v7719 = vpop.f32.mrf.mxu0
        %7720 = vmatprep.mubr.f32.mxu0 0.0
        %7721 = vmatmul.mubr.f32.gmra.mxu0 %v7619
        %v7722 = vpop.f32.mrf.mxu0
        %v7723 = vadd.f32 0.0, %v7722
        %v7724 = vpop.f32.mrf.mxu0
        %7725 = vdwg.mxu0
        %7726 = vrot.lane.b32.xlu0 %v1247, 32
        %v7727 = vpop.permute.xlu0 %7726
        %7728 = vrot.lane.b32.xlu0 %v1252, 32
        %v7729 = vpop.permute.xlu0 %7728
        %7730 = vrot.lane.b32.xlu0 %v1257, 32
        %v7731 = vpop.permute.xlu0 %7730
        %7732 = vrot.lane.b32.xlu0 %v1262, 32
        %v7733 = vpop.permute.xlu0 %7732
        %7734 = vrot.lane.b32.xlu0 %v1267, 32
        %v7735 = vpop.permute.xlu0 %7734
        %7736 = vrot.lane.b32.xlu0 %v1272, 32
        %v7737 = vpop.permute.xlu0 %7736
        %7738 = vrot.lane.b32.xlu0 %v1277, 32
        %v7739 = vpop.permute.xlu0 %7738
        %7740 = vrot.lane.b32.xlu0 %v1282, 32
        %v7741 = vpop.permute.xlu0 %7740
        %v7751 = vsel %vm2010, %v7549, 0
        %v7754 = vsel %vm2010, %v7550, 0
        %v7757 = vsel %vm2010, %v7551, 0
        %v7760 = vsel %vm2010, %v7552, 0
        %v7763 = vsel %vm2010, %v7553, 0
        %v7766 = vsel %vm2010, %v7554, 0
        %v7769 = vsel %vm2010, %v7555, 0
        %v7772 = vsel %vm2010, %v7556, 0
        %7774 = vmatprep.subr.mxu0 0.0
        %7775 = vmatpush1.msra.mxu0 0.0
        %7776 = vmatprep.subr.mxu0 0.0
        %7777 = vmatpush1.msra.mxu0 0.0
        %7778 = vmatprep.subr.mxu0 0.0
        %7779 = vmatpush1.msra.mxu0 0.0
        %7780 = vmatprep.subr.mxu0 0.0
        %7781 = vmatpush1.msra.mxu0 0.0
        %7782 = vmatprep.subr.mxu0 0.0
        %7783 = vmatpush1.msra.mxu0 0.0
        %7784 = vmatprep.subr.mxu0 0.0
        %7785 = vmatpush1.msra.mxu0 0.0
        %7786 = vmatprep.subr.mxu0 0.0
        %7787 = vmatpush1.msra.mxu0 0.0
        %7788 = vmatprep.subr.mxu0 0.0
        %7789 = vmatpush1.msra.mxu0 0.0
        %7790 = vmatprep.subr.mxu0 0.0
        %7791 = vmatpush1.msra.mxu0 %v7741
        %7792 = vmatprep.subr.mxu0 0.0
        %7793 = vmatpush1.msra.mxu0 %v7739
        %7794 = vmatprep.subr.mxu0 0.0
        %7795 = vmatpush1.msra.mxu0 %v7737
        %7796 = vmatprep.subr.mxu0 0.0
        %7797 = vmatpush1.msra.mxu0 %v7735
        %7798 = vmatprep.subr.mxu0 0.0
        %7799 = vmatpush1.msra.mxu0 %v7733
        %7800 = vmatprep.subr.mxu0 0.0
        %7801 = vmatpush1.msra.mxu0 %v7731
        %7802 = vmatprep.subr.mxu0 0.0
        %7803 = vmatpush1.msra.mxu0 %v7729
        %7804 = vmatprep.subr.mxu0 0.0
        %7805 = vmatpush1.msra.mxu0 %v7727
        %7806 = vmatprep.subr.mxu0 0.0
        %7807 = vmatpush2.msra.mxu0 0.0
        %7808 = vmatprep.subr.mxu0 0.0
        %7809 = vmatpush2.msra.mxu0 0.0
        %7810 = vmatprep.subr.mxu0 0.0
        %7811 = vmatpush2.msra.mxu0 0.0
        %7812 = vmatprep.subr.mxu0 0.0
        %7813 = vmatpush2.msra.mxu0 0.0
        %7814 = vmatprep.subr.mxu0 0.0
        %7815 = vmatpush2.msra.mxu0 0.0
        %7816 = vmatprep.subr.mxu0 0.0
        %7817 = vmatpush2.msra.mxu0 0.0
        %7818 = vmatprep.subr.mxu0 0.0
        %7819 = vmatpush2.msra.mxu0 0.0
        %7820 = vmatprep.subr.mxu0 0.0
        %7821 = vmatpush2.msra.mxu0 0.0
        %7822 = vmatprep.subr.mxu0 0.0
        %7823 = vmatpush2.msra.mxu0 0.0
        %7824 = vmatprep.subr.mxu0 0.0
        %7825 = vmatpush2.msra.mxu0 0.0
        %7826 = vmatprep.subr.mxu0 0.0
        %7827 = vmatpush2.msra.mxu0 0.0
        %7828 = vmatprep.subr.mxu0 0.0
        %7829 = vmatpush2.msra.mxu0 0.0
        %7830 = vmatprep.subr.mxu0 0.0
        %7831 = vmatpush2.msra.mxu0 0.0
        %7832 = vmatprep.subr.mxu0 0.0
        %7833 = vmatpush2.msra.mxu0 0.0
        %7834 = vmatprep.subr.mxu0 0.0
        %7835 = vmatpush2.msra.mxu0 0.0
        %7836 = vmatprep.subr.mxu0 0.0
        %7837 = vmatpush2.msra.mxu0 0.0
        %7838 = vmatprep.mubr.f32.mxu0 0.0
        %7839 = vmatmul.mubr.f32.gmra.mxu0 %v7751
        %v7840 = vpop.f32.mrf.mxu0
        %v7841 = vadd.f32 0.0, %v7840
        %v7842 = vpop.f32.mrf.mxu0
        %7843 = vmatprep.mubr.f32.mxu0 0.0
        %7844 = vmatmul.mubr.f32.gmra.mxu0 %v7754
        %v7845 = vpop.f32.mrf.mxu0
        %v7846 = vadd.f32 0.0, %v7845
        %v7847 = vpop.f32.mrf.mxu0
        %7848 = vmatprep.mubr.f32.mxu0 0.0
        %7849 = vmatmul.mubr.f32.gmra.mxu0 %v7757
        %v7850 = vpop.f32.mrf.mxu0
        %v7851 = vadd.f32 0.0, %v7850
        %v7852 = vpop.f32.mrf.mxu0
        %7853 = vmatprep.mubr.f32.mxu0 0.0
        %7854 = vmatmul.mubr.f32.gmra.mxu0 %v7760
        %v7855 = vpop.f32.mrf.mxu0
        %v7856 = vadd.f32 0.0, %v7855
        %v7857 = vpop.f32.mrf.mxu0
        %7858 = vmatprep.mubr.f32.mxu0 0.0
        %7859 = vmatmul.mubr.f32.gmra.mxu0 %v7763
        %v7860 = vpop.f32.mrf.mxu0
        %v7861 = vadd.f32 0.0, %v7860
        %v7862 = vpop.f32.mrf.mxu0
        %7863 = vmatprep.mubr.f32.mxu0 0.0
        %7864 = vmatmul.mubr.f32.gmra.mxu0 %v7766
        %v7865 = vpop.f32.mrf.mxu0
        %v7866 = vadd.f32 0.0, %v7865
        %v7867 = vpop.f32.mrf.mxu0
        %7868 = vmatprep.mubr.f32.mxu0 0.0
        %7869 = vmatmul.mubr.f32.gmra.mxu0 %v7769
        %v7870 = vpop.f32.mrf.mxu0
        %v7871 = vadd.f32 0.0, %v7870
        %v7872 = vpop.f32.mrf.mxu0
        %7873 = vmatprep.mubr.f32.mxu0 0.0
        %7874 = vmatmul.mubr.f32.gmra.mxu0 %v7772
        %v7875 = vpop.f32.mrf.mxu0
        %v7876 = vadd.f32 0.0, %v7875
        %v7877 = vpop.f32.mrf.mxu0
        %7878 = vdwg.mxu0
        %7879 = vrot.lane.b32.xlu0 %v1287, 32
        %v7880 = vpop.permute.xlu0 %7879
        %7881 = vrot.lane.b32.xlu0 %v1292, 32
        %v7882 = vpop.permute.xlu0 %7881
        %7883 = vrot.lane.b32.xlu0 %v1297, 32
        %v7884 = vpop.permute.xlu0 %7883
        %7885 = vrot.lane.b32.xlu0 %v1302, 32
        %v7886 = vpop.permute.xlu0 %7885
        %7887 = vrot.lane.b32.xlu0 %v1307, 32
        %v7888 = vpop.permute.xlu0 %7887
        %7889 = vrot.lane.b32.xlu0 %v1312, 32
        %v7890 = vpop.permute.xlu0 %7889
        %7891 = vrot.lane.b32.xlu0 %v1317, 32
        %v7892 = vpop.permute.xlu0 %7891
        %7893 = vrot.lane.b32.xlu0 %v1322, 32
        %v7894 = vpop.permute.xlu0 %7893
        %v7904 = vsel %vm2010, %v7557, 0
        %v7907 = vsel %vm2010, %v7558, 0
        %v7910 = vsel %vm2010, %v7559, 0
        %v7913 = vsel %vm2010, %v7560, 0
        %v7916 = vsel %vm2010, %v7561, 0
        %v7919 = vsel %vm2010, %v7562, 0
        %v7922 = vsel %vm2010, %v7563, 0
        %v7925 = vsel %vm2010, %v7564, 0
        %7927 = vmatprep.subr.mxu0 0.0
        %7928 = vmatpush1.msra.mxu0 0.0
        %7929 = vmatprep.subr.mxu0 0.0
        %7930 = vmatpush1.msra.mxu0 0.0
        %7931 = vmatprep.subr.mxu0 0.0
        %7932 = vmatpush1.msra.mxu0 0.0
        %7933 = vmatprep.subr.mxu0 0.0
        %7934 = vmatpush1.msra.mxu0 0.0
        %7935 = vmatprep.subr.mxu0 0.0
        %7936 = vmatpush1.msra.mxu0 0.0
        %7937 = vmatprep.subr.mxu0 0.0
        %7938 = vmatpush1.msra.mxu0 0.0
        %7939 = vmatprep.subr.mxu0 0.0
        %7940 = vmatpush1.msra.mxu0 0.0
        %7941 = vmatprep.subr.mxu0 0.0
        %7942 = vmatpush1.msra.mxu0 0.0
        %7943 = vmatprep.subr.mxu0 0.0
        %7944 = vmatpush1.msra.mxu0 %v7894
        %7945 = vmatprep.subr.mxu0 0.0
        %7946 = vmatpush1.msra.mxu0 %v7892
        %7947 = vmatprep.subr.mxu0 0.0
        %7948 = vmatpush1.msra.mxu0 %v7890
        %7949 = vmatprep.subr.mxu0 0.0
        %7950 = vmatpush1.msra.mxu0 %v7888
        %7951 = vmatprep.subr.mxu0 0.0
        %7952 = vmatpush1.msra.mxu0 %v7886
        %7953 = vmatprep.subr.mxu0 0.0
        %7954 = vmatpush1.msra.mxu0 %v7884
        %7955 = vmatprep.subr.mxu0 0.0
        %7956 = vmatpush1.msra.mxu0 %v7882
        %7957 = vmatprep.subr.mxu0 0.0
        %7958 = vmatpush1.msra.mxu0 %v7880
        %7959 = vmatprep.subr.mxu0 0.0
        %7960 = vmatpush2.msra.mxu0 0.0
        %7961 = vmatprep.subr.mxu0 0.0
        %7962 = vmatpush2.msra.mxu0 0.0
        %7963 = vmatprep.subr.mxu0 0.0
        %7964 = vmatpush2.msra.mxu0 0.0
        %7965 = vmatprep.subr.mxu0 0.0
        %7966 = vmatpush2.msra.mxu0 0.0
        %7967 = vmatprep.subr.mxu0 0.0
        %7968 = vmatpush2.msra.mxu0 0.0
        %7969 = vmatprep.subr.mxu0 0.0
        %7970 = vmatpush2.msra.mxu0 0.0
        %7971 = vmatprep.subr.mxu0 0.0
        %7972 = vmatpush2.msra.mxu0 0.0
        %7973 = vmatprep.subr.mxu0 0.0
        %7974 = vmatpush2.msra.mxu0 0.0
        %7975 = vmatprep.subr.mxu0 0.0
        %7976 = vmatpush2.msra.mxu0 0.0
        %7977 = vmatprep.subr.mxu0 0.0
        %7978 = vmatpush2.msra.mxu0 0.0
        %7979 = vmatprep.subr.mxu0 0.0
        %7980 = vmatpush2.msra.mxu0 0.0
        %7981 = vmatprep.subr.mxu0 0.0
        %7982 = vmatpush2.msra.mxu0 0.0
        %7983 = vmatprep.subr.mxu0 0.0
        %7984 = vmatpush2.msra.mxu0 0.0
        %7985 = vmatprep.subr.mxu0 0.0
        %7986 = vmatpush2.msra.mxu0 0.0
        %7987 = vmatprep.subr.mxu0 0.0
        %7988 = vmatpush2.msra.mxu0 0.0
        %7989 = vmatprep.subr.mxu0 0.0
        %7990 = vmatpush2.msra.mxu0 0.0
        %7991 = vmatprep.mubr.f32.mxu0 0.0
        %7992 = vmatmul.mubr.f32.gmra.mxu0 %v7904
        %v7993 = vpop.f32.mrf.mxu0
        %v7994 = vadd.f32 0.0, %v7993
        %v7995 = vpop.f32.mrf.mxu0
        %7996 = vmatprep.mubr.f32.mxu0 0.0
        %7997 = vmatmul.mubr.f32.gmra.mxu0 %v7907
        %v7998 = vpop.f32.mrf.mxu0
        %v7999 = vadd.f32 0.0, %v7998
        %v8000 = vpop.f32.mrf.mxu0
        %8001 = vmatprep.mubr.f32.mxu0 0.0
        %8002 = vmatmul.mubr.f32.gmra.mxu0 %v7910
        %v8003 = vpop.f32.mrf.mxu0
        %v8004 = vadd.f32 0.0, %v8003
        %v8005 = vpop.f32.mrf.mxu0
        %8006 = vmatprep.mubr.f32.mxu0 0.0
        %8007 = vmatmul.mubr.f32.gmra.mxu0 %v7913
        %v8008 = vpop.f32.mrf.mxu0
        %v8009 = vadd.f32 0.0, %v8008
        %v8010 = vpop.f32.mrf.mxu0
        %8011 = vmatprep.mubr.f32.mxu0 0.0
        %8012 = vmatmul.mubr.f32.gmra.mxu0 %v7916
        %v8013 = vpop.f32.mrf.mxu0
        %v8014 = vadd.f32 0.0, %v8013
        %v8015 = vpop.f32.mrf.mxu0
        %8016 = vmatprep.mubr.f32.mxu0 0.0
        %8017 = vmatmul.mubr.f32.gmra.mxu0 %v7919
        %v8018 = vpop.f32.mrf.mxu0
        %v8019 = vadd.f32 0.0, %v8018
        %v8020 = vpop.f32.mrf.mxu0
        %8021 = vmatprep.mubr.f32.mxu0 0.0
        %8022 = vmatmul.mubr.f32.gmra.mxu0 %v7922
        %v8023 = vpop.f32.mrf.mxu0
        %v8024 = vadd.f32 0.0, %v8023
        %v8025 = vpop.f32.mrf.mxu0
        %8026 = vmatprep.mubr.f32.mxu0 0.0
        %8027 = vmatmul.mubr.f32.gmra.mxu0 %v7925
        %v8028 = vpop.f32.mrf.mxu0
        %v8029 = vadd.f32 0.0, %v8028
        %v8030 = vpop.f32.mrf.mxu0
        %8031 = vdwg.mxu0
        %8032 = vrot.lane.b32.xlu0 %v1327, 32
        %v8033 = vpop.permute.xlu0 %8032
        %8034 = vrot.lane.b32.xlu0 %v1332, 32
        %v8035 = vpop.permute.xlu0 %8034
        %8036 = vrot.lane.b32.xlu0 %v1337, 32
        %v8037 = vpop.permute.xlu0 %8036
        %8038 = vrot.lane.b32.xlu0 %v1342, 32
        %v8039 = vpop.permute.xlu0 %8038
        %8040 = vrot.lane.b32.xlu0 %v1347, 32
        %v8041 = vpop.permute.xlu0 %8040
        %8042 = vrot.lane.b32.xlu0 %v1352, 32
        %v8043 = vpop.permute.xlu0 %8042
        %8044 = vrot.lane.b32.xlu0 %v1357, 32
        %v8045 = vpop.permute.xlu0 %8044
        %8046 = vrot.lane.b32.xlu0 %v1362, 32
        %v8047 = vpop.permute.xlu0 %8046
        %v8057 = vsel %vm2010, %v7565, 0
        %v8060 = vsel %vm2010, %v7566, 0
        %v8063 = vsel %vm2010, %v7567, 0
        %v8066 = vsel %vm2010, %v7568, 0
        %v8069 = vsel %vm2010, %v7569, 0
        %v8072 = vsel %vm2010, %v7570, 0
        %v8075 = vsel %vm2010, %v7571, 0
        %v8078 = vsel %vm2010, %v7572, 0
        %8080 = vmatprep.subr.mxu0 0.0
        %8081 = vmatpush1.msra.mxu0 0.0
        %8082 = vmatprep.subr.mxu0 0.0
        %8083 = vmatpush1.msra.mxu0 0.0
        %8084 = vmatprep.subr.mxu0 0.0
        %8085 = vmatpush1.msra.mxu0 0.0
        %8086 = vmatprep.subr.mxu0 0.0
        %8087 = vmatpush1.msra.mxu0 0.0
        %8088 = vmatprep.subr.mxu0 0.0
        %8089 = vmatpush1.msra.mxu0 0.0
        %8090 = vmatprep.subr.mxu0 0.0
        %8091 = vmatpush1.msra.mxu0 0.0
        %8092 = vmatprep.subr.mxu0 0.0
        %8093 = vmatpush1.msra.mxu0 0.0
        %8094 = vmatprep.subr.mxu0 0.0
        %8095 = vmatpush1.msra.mxu0 0.0
        %8096 = vmatprep.subr.mxu0 0.0
        %8097 = vmatpush1.msra.mxu0 %v8047
        %8098 = vmatprep.subr.mxu0 0.0
        %8099 = vmatpush1.msra.mxu0 %v8045
        %8100 = vmatprep.subr.mxu0 0.0
        %8101 = vmatpush1.msra.mxu0 %v8043
        %8102 = vmatprep.subr.mxu0 0.0
        %8103 = vmatpush1.msra.mxu0 %v8041
        %8104 = vmatprep.subr.mxu0 0.0
        %8105 = vmatpush1.msra.mxu0 %v8039
        %8106 = vmatprep.subr.mxu0 0.0
        %8107 = vmatpush1.msra.mxu0 %v8037
        %8108 = vmatprep.subr.mxu0 0.0
        %8109 = vmatpush1.msra.mxu0 %v8035
        %8110 = vmatprep.subr.mxu0 0.0
        %8111 = vmatpush1.msra.mxu0 %v8033
        %8112 = vmatprep.subr.mxu0 0.0
        %8113 = vmatpush2.msra.mxu0 0.0
        %8114 = vmatprep.subr.mxu0 0.0
        %8115 = vmatpush2.msra.mxu0 0.0
        %8116 = vmatprep.subr.mxu0 0.0
        %8117 = vmatpush2.msra.mxu0 0.0
        %8118 = vmatprep.subr.mxu0 0.0
        %8119 = vmatpush2.msra.mxu0 0.0
        %8120 = vmatprep.subr.mxu0 0.0
        %8121 = vmatpush2.msra.mxu0 0.0
        %8122 = vmatprep.subr.mxu0 0.0
        %8123 = vmatpush2.msra.mxu0 0.0
        %8124 = vmatprep.subr.mxu0 0.0
        %8125 = vmatpush2.msra.mxu0 0.0
        %8126 = vmatprep.subr.mxu0 0.0
        %8127 = vmatpush2.msra.mxu0 0.0
        %8128 = vmatprep.subr.mxu0 0.0
        %8129 = vmatpush2.msra.mxu0 0.0
        %8130 = vmatprep.subr.mxu0 0.0
        %8131 = vmatpush2.msra.mxu0 0.0
        %8132 = vmatprep.subr.mxu0 0.0
        %8133 = vmatpush2.msra.mxu0 0.0
        %8134 = vmatprep.subr.mxu0 0.0
        %8135 = vmatpush2.msra.mxu0 0.0
        %8136 = vmatprep.subr.mxu0 0.0
        %8137 = vmatpush2.msra.mxu0 0.0
        %8138 = vmatprep.subr.mxu0 0.0
        %8139 = vmatpush2.msra.mxu0 0.0
        %8140 = vmatprep.subr.mxu0 0.0
        %8141 = vmatpush2.msra.mxu0 0.0
        %8142 = vmatprep.subr.mxu0 0.0
        %8143 = vmatpush2.msra.mxu0 0.0
        %8144 = vmatprep.mubr.f32.mxu0 0.0
        %8145 = vmatmul.mubr.f32.gmra.mxu0 %v8057
        %v8146 = vpop.f32.mrf.mxu0
        %v8147 = vadd.f32 0.0, %v8146
        %v8148 = vpop.f32.mrf.mxu0
        %8149 = vmatprep.mubr.f32.mxu0 0.0
        %8150 = vmatmul.mubr.f32.gmra.mxu0 %v8060
        %v8151 = vpop.f32.mrf.mxu0
        %v8152 = vadd.f32 0.0, %v8151
        %v8153 = vpop.f32.mrf.mxu0
        %8154 = vmatprep.mubr.f32.mxu0 0.0
        %8155 = vmatmul.mubr.f32.gmra.mxu0 %v8063
        %v8156 = vpop.f32.mrf.mxu0
        %v8157 = vadd.f32 0.0, %v8156
        %v8158 = vpop.f32.mrf.mxu0
        %8159 = vmatprep.mubr.f32.mxu0 0.0
        %8160 = vmatmul.mubr.f32.gmra.mxu0 %v8066
        %v8161 = vpop.f32.mrf.mxu0
        %v8162 = vadd.f32 0.0, %v8161
        %v8163 = vpop.f32.mrf.mxu0
        %8164 = vmatprep.mubr.f32.mxu0 0.0
        %8165 = vmatmul.mubr.f32.gmra.mxu0 %v8069
        %v8166 = vpop.f32.mrf.mxu0
        %v8167 = vadd.f32 0.0, %v8166
        %v8168 = vpop.f32.mrf.mxu0
        %8169 = vmatprep.mubr.f32.mxu0 0.0
        %8170 = vmatmul.mubr.f32.gmra.mxu0 %v8072
        %v8171 = vpop.f32.mrf.mxu0
        %v8172 = vadd.f32 0.0, %v8171
        %v8173 = vpop.f32.mrf.mxu0
        %8174 = vmatprep.mubr.f32.mxu0 0.0
        %8175 = vmatmul.mubr.f32.gmra.mxu0 %v8075
        %v8176 = vpop.f32.mrf.mxu0
        %v8177 = vadd.f32 0.0, %v8176
        %v8178 = vpop.f32.mrf.mxu0
        %8179 = vmatprep.mubr.f32.mxu0 0.0
        %8180 = vmatmul.mubr.f32.gmra.mxu0 %v8078
        %v8181 = vpop.f32.mrf.mxu0
        %v8182 = vadd.f32 0.0, %v8181
        %v8183 = vpop.f32.mrf.mxu0
        %8184 = vdwg.mxu0
        %8217 = vrot.lane.b32.xlu0 %v7688, 96
        %v8218 = vpop.permute.xlu0 %8217
        %8219 = vrot.lane.b32.xlu0 %v7693, 96
        %v8220 = vpop.permute.xlu0 %8219
        %8221 = vrot.lane.b32.xlu0 %v7698, 96
        %v8222 = vpop.permute.xlu0 %8221
        %8223 = vrot.lane.b32.xlu0 %v7703, 96
        %v8224 = vpop.permute.xlu0 %8223
        %8225 = vrot.lane.b32.xlu0 %v7708, 96
        %v8226 = vpop.permute.xlu0 %8225
        %8227 = vrot.lane.b32.xlu0 %v7713, 96
        %v8228 = vpop.permute.xlu0 %8227
        %8229 = vrot.lane.b32.xlu0 %v7718, 96
        %v8230 = vpop.permute.xlu0 %8229
        %8231 = vrot.lane.b32.xlu0 %v7723, 96
        %v8232 = vpop.permute.xlu0 %8231
        %8233 = vrot.lane.b32.xlu0 %v7841, 96
        %v8234 = vpop.permute.xlu0 %8233
        %8235 = vrot.lane.b32.xlu0 %v7846, 96
        %v8236 = vpop.permute.xlu0 %8235
        %8237 = vrot.lane.b32.xlu0 %v7851, 96
        %v8238 = vpop.permute.xlu0 %8237
        %8239 = vrot.lane.b32.xlu0 %v7856, 96
        %v8240 = vpop.permute.xlu0 %8239
        %8241 = vrot.lane.b32.xlu0 %v7861, 96
        %v8242 = vpop.permute.xlu0 %8241
        %8243 = vrot.lane.b32.xlu0 %v7866, 96
        %v8244 = vpop.permute.xlu0 %8243
        %8245 = vrot.lane.b32.xlu0 %v7871, 96
        %v8246 = vpop.permute.xlu0 %8245
        %8247 = vrot.lane.b32.xlu0 %v7876, 96
        %v8248 = vpop.permute.xlu0 %8247
        %8249 = vrot.lane.b32.xlu0 %v7994, 96
        %v8250 = vpop.permute.xlu0 %8249
        %8251 = vrot.lane.b32.xlu0 %v7999, 96
        %v8252 = vpop.permute.xlu0 %8251
        %8253 = vrot.lane.b32.xlu0 %v8004, 96
        %v8254 = vpop.permute.xlu0 %8253
        %8255 = vrot.lane.b32.xlu0 %v8009, 96
        %v8256 = vpop.permute.xlu0 %8255
        %8257 = vrot.lane.b32.xlu0 %v8014, 96
        %v8258 = vpop.permute.xlu0 %8257
        %8259 = vrot.lane.b32.xlu0 %v8019, 96
        %v8260 = vpop.permute.xlu0 %8259
        %8261 = vrot.lane.b32.xlu0 %v8024, 96
        %v8262 = vpop.permute.xlu0 %8261
        %8263 = vrot.lane.b32.xlu0 %v8029, 96
        %v8264 = vpop.permute.xlu0 %8263
        %8265 = vrot.lane.b32.xlu0 %v8147, 96
        %v8266 = vpop.permute.xlu0 %8265
        %8267 = vrot.lane.b32.xlu0 %v8152, 96
        %v8268 = vpop.permute.xlu0 %8267
        %8269 = vrot.lane.b32.xlu0 %v8157, 96
        %v8270 = vpop.permute.xlu0 %8269
        %8271 = vrot.lane.b32.xlu0 %v8162, 96
        %v8272 = vpop.permute.xlu0 %8271
        %8273 = vrot.lane.b32.xlu0 %v8167, 96
        %v8274 = vpop.permute.xlu0 %8273
        %8275 = vrot.lane.b32.xlu0 %v8172, 96
        %v8276 = vpop.permute.xlu0 %8275
        %8277 = vrot.lane.b32.xlu0 %v8177, 96
        %v8278 = vpop.permute.xlu0 %8277
        %8279 = vrot.lane.b32.xlu0 %v8182, 96
        %v8280 = vpop.permute.xlu0 %8279
        %vm8313 = vcmask 1048320
        %8314 = vst.msk [vmem:[#allocation2] sm:$0xff] %vm8313, %v8218
        %8315 = vst.msk [vmem:[#allocation2 + $0x8] sm:$0xff] %vm8313, %v8220
        %8316 = vst.msk [vmem:[#allocation2 + $0x10] sm:$0xff] %vm8313, %v8222
        %8317 = vst.msk [vmem:[#allocation2 + $0x18] sm:$0xff] %vm8313, %v8224
        %8318 = vst.msk [vmem:[#allocation2 + $0x20] sm:$0xff] %vm8313, %v8226
        %8319 = vst.msk [vmem:[#allocation2 + $0x28] sm:$0xff] %vm8313, %v8228
        %8320 = vst.msk [vmem:[#allocation2 + $0x30] sm:$0xff] %vm8313, %v8230
        %8321 = vst.msk [vmem:[#allocation2 + $0x38] sm:$0xff] %vm8313, %v8232
        %8322 = vst.msk [vmem:[#allocation2 + $0x40] sm:$0xff] %vm8313, %v8234
        %8323 = vst.msk [vmem:[#allocation2 + $0x48] sm:$0xff] %vm8313, %v8236
        %8324 = vst.msk [vmem:[#allocation2 + $0x50] sm:$0xff] %vm8313, %v8238
        %8325 = vst.msk [vmem:[#allocation2 + $0x58] sm:$0xff] %vm8313, %v8240
        %8326 = vst.msk [vmem:[#allocation2 + $0x60] sm:$0xff] %vm8313, %v8242
        %8327 = vst.msk [vmem:[#allocation2 + $0x68] sm:$0xff] %vm8313, %v8244
        %8328 = vst.msk [vmem:[#allocation2 + $0x70] sm:$0xff] %vm8313, %v8246
        %8329 = vst.msk [vmem:[#allocation2 + $0x78] sm:$0xff] %vm8313, %v8248
        %8330 = vst.msk [vmem:[#allocation2 + $0x80] sm:$0xff] %vm8313, %v8250
        %8331 = vst.msk [vmem:[#allocation2 + $0x88] sm:$0xff] %vm8313, %v8252
        %8332 = vst.msk [vmem:[#allocation2 + $0x90] sm:$0xff] %vm8313, %v8254
        %8333 = vst.msk [vmem:[#allocation2 + $0x98] sm:$0xff] %vm8313, %v8256
        %8334 = vst.msk [vmem:[#allocation2 + $0xa0] sm:$0xff] %vm8313, %v8258
        %8335 = vst.msk [vmem:[#allocation2 + $0xa8] sm:$0xff] %vm8313, %v8260
        %8336 = vst.msk [vmem:[#allocation2 + $0xb0] sm:$0xff] %vm8313, %v8262
        %8337 = vst.msk [vmem:[#allocation2 + $0xb8] sm:$0xff] %vm8313, %v8264
        %8338 = vst.msk [vmem:[#allocation2 + $0xc0] sm:$0xff] %vm8313, %v8266
        %8339 = vst.msk [vmem:[#allocation2 + $0xc8] sm:$0xff] %vm8313, %v8268
        %8340 = vst.msk [vmem:[#allocation2 + $0xd0] sm:$0xff] %vm8313, %v8270
        %8341 = vst.msk [vmem:[#allocation2 + $0xd8] sm:$0xff] %vm8313, %v8272
        %8342 = vst.msk [vmem:[#allocation2 + $0xe0] sm:$0xff] %vm8313, %v8274
        %8343 = vst.msk [vmem:[#allocation2 + $0xe8] sm:$0xff] %vm8313, %v8276
        %8344 = vst.msk [vmem:[#allocation2 + $0xf0] sm:$0xff] %vm8313, %v8278
        %8345 = vst.msk [vmem:[#allocation2 + $0xf8] sm:$0xff] %vm8313, %v8280
        %v8346 = vld [vmem:[#allocation2] sm:$0xff]
        %v8347 = vld [vmem:[#allocation2 + $0x8] sm:$0xff]
        %v8348 = vld [vmem:[#allocation2 + $0x10] sm:$0xff]
        %v8349 = vld [vmem:[#allocation2 + $0x18] sm:$0xff]
        %v8350 = vld [vmem:[#allocation2 + $0x20] sm:$0xff]
        %v8351 = vld [vmem:[#allocation2 + $0x28] sm:$0xff]
        %v8352 = vld [vmem:[#allocation2 + $0x30] sm:$0xff]
        %v8353 = vld [vmem:[#allocation2 + $0x38] sm:$0xff]
        %v8354 = vld [vmem:[#allocation2 + $0x40] sm:$0xff]
        %v8355 = vld [vmem:[#allocation2 + $0x48] sm:$0xff]
        %v8356 = vld [vmem:[#allocation2 + $0x50] sm:$0xff]
        %v8357 = vld [vmem:[#allocation2 + $0x58] sm:$0xff]
        %v8358 = vld [vmem:[#allocation2 + $0x60] sm:$0xff]
        %v8359 = vld [vmem:[#allocation2 + $0x68] sm:$0xff]
        %v8360 = vld [vmem:[#allocation2 + $0x70] sm:$0xff]
        %v8361 = vld [vmem:[#allocation2 + $0x78] sm:$0xff]
        %v8362 = vld [vmem:[#allocation2 + $0x80] sm:$0xff]
        %v8363 = vld [vmem:[#allocation2 + $0x88] sm:$0xff]
        %v8364 = vld [vmem:[#allocation2 + $0x90] sm:$0xff]
        %v8365 = vld [vmem:[#allocation2 + $0x98] sm:$0xff]
        %v8366 = vld [vmem:[#allocation2 + $0xa0] sm:$0xff]
        %v8367 = vld [vmem:[#allocation2 + $0xa8] sm:$0xff]
        %v8368 = vld [vmem:[#allocation2 + $0xb0] sm:$0xff]
        %v8369 = vld [vmem:[#allocation2 + $0xb8] sm:$0xff]
        %v8370 = vld [vmem:[#allocation2 + $0xc0] sm:$0xff]
        %v8371 = vld [vmem:[#allocation2 + $0xc8] sm:$0xff]
        %v8372 = vld [vmem:[#allocation2 + $0xd0] sm:$0xff]
        %v8373 = vld [vmem:[#allocation2 + $0xd8] sm:$0xff]
        %v8374 = vld [vmem:[#allocation2 + $0xe0] sm:$0xff]
        %v8375 = vld [vmem:[#allocation2 + $0xe8] sm:$0xff]
        %v8376 = vld [vmem:[#allocation2 + $0xf0] sm:$0xff]
        %v8377 = vld [vmem:[#allocation2 + $0xf8] sm:$0xff]
        %v8378 = vadd.f32 %v8346, %v589
        %v8379 = vadd.f32 %v8347, %v590
        %v8380 = vadd.f32 %v8348, %v591
        %v8381 = vadd.f32 %v8349, %v592
        %v8382 = vadd.f32 %v8350, %v593
        %v8383 = vadd.f32 %v8351, %v594
        %v8384 = vadd.f32 %v8352, %v595
        %v8385 = vadd.f32 %v8353, %v596
        %v8386 = vadd.f32 %v8354, %v597
        %v8387 = vadd.f32 %v8355, %v598
        %v8388 = vadd.f32 %v8356, %v599
        %v8389 = vadd.f32 %v8357, %v600
        %v8390 = vadd.f32 %v8358, %v601
        %v8391 = vadd.f32 %v8359, %v602
        %v8392 = vadd.f32 %v8360, %v603
        %v8393 = vadd.f32 %v8361, %v604
        %v8394 = vadd.f32 %v8362, %v605
        %v8395 = vadd.f32 %v8363, %v606
        %v8396 = vadd.f32 %v8364, %v607
        %v8397 = vadd.f32 %v8365, %v608
        %v8398 = vadd.f32 %v8366, %v609
        %v8399 = vadd.f32 %v8367, %v610
        %v8400 = vadd.f32 %v8368, %v611
        %v8401 = vadd.f32 %v8369, %v612
        %v8402 = vadd.f32 %v8370, %v613
        %v8403 = vadd.f32 %v8371, %v614
        %v8404 = vadd.f32 %v8372, %v615
        %v8405 = vadd.f32 %v8373, %v616
        %v8406 = vadd.f32 %v8374, %v617
        %v8407 = vadd.f32 %v8375, %v618
        %v8408 = vadd.f32 %v8376, %v619
        %v8409 = vadd.f32 %v8377, %v620
        %v8410 = vld [vmem:[%s7] sm:$0x1]
        %v8411 = vld [vmem:[%s8] sm:$0x1]
        %8412 = vadd.xlane.f32.xlu0 %v8378
        %v8413 = vpop.xlane.xlu0 %8412
        %8414 = vadd.xlane.f32.xlu0 %v8379
        %v8415 = vpop.xlane.xlu0 %8414
        %8416 = vadd.xlane.f32.xlu0 %v8380
        %v8417 = vpop.xlane.xlu0 %8416
        %8418 = vadd.xlane.f32.xlu0 %v8381
        %v8419 = vpop.xlane.xlu0 %8418
        %8420 = vadd.xlane.f32.xlu0 %v8382
        %v8421 = vpop.xlane.xlu0 %8420
        %8422 = vadd.xlane.f32.xlu0 %v8383
        %v8423 = vpop.xlane.xlu0 %8422
        %8424 = vadd.xlane.f32.xlu0 %v8384
        %v8425 = vpop.xlane.xlu0 %8424
        %8426 = vadd.xlane.f32.xlu0 %v8385
        %v8427 = vpop.xlane.xlu0 %8426
        %8428 = vadd.xlane.f32.xlu0 %v8386
        %v8429 = vpop.xlane.xlu0 %8428
        %8430 = vadd.xlane.f32.xlu0 %v8387
        %v8431 = vpop.xlane.xlu0 %8430
        %8432 = vadd.xlane.f32.xlu0 %v8388
        %v8433 = vpop.xlane.xlu0 %8432
        %8434 = vadd.xlane.f32.xlu0 %v8389
        %v8435 = vpop.xlane.xlu0 %8434
        %8436 = vadd.xlane.f32.xlu0 %v8390
        %v8437 = vpop.xlane.xlu0 %8436
        %8438 = vadd.xlane.f32.xlu0 %v8391
        %v8439 = vpop.xlane.xlu0 %8438
        %8440 = vadd.xlane.f32.xlu0 %v8392
        %v8441 = vpop.xlane.xlu0 %8440
        %8442 = vadd.xlane.f32.xlu0 %v8393
        %v8443 = vpop.xlane.xlu0 %8442
        %8444 = vadd.xlane.f32.xlu0 %v8394
        %v8445 = vpop.xlane.xlu0 %8444
        %8446 = vadd.xlane.f32.xlu0 %v8395
        %v8447 = vpop.xlane.xlu0 %8446
        %8448 = vadd.xlane.f32.xlu0 %v8396
        %v8449 = vpop.xlane.xlu0 %8448
        %8450 = vadd.xlane.f32.xlu0 %v8397
        %v8451 = vpop.xlane.xlu0 %8450
        %8452 = vadd.xlane.f32.xlu0 %v8398
        %v8453 = vpop.xlane.xlu0 %8452
        %8454 = vadd.xlane.f32.xlu0 %v8399
        %v8455 = vpop.xlane.xlu0 %8454
        %8456 = vadd.xlane.f32.xlu0 %v8400
        %v8457 = vpop.xlane.xlu0 %8456
        %8458 = vadd.xlane.f32.xlu0 %v8401
        %v8459 = vpop.xlane.xlu0 %8458
        %8460 = vadd.xlane.f32.xlu0 %v8402
        %v8461 = vpop.xlane.xlu0 %8460
        %8462 = vadd.xlane.f32.xlu0 %v8403
        %v8463 = vpop.xlane.xlu0 %8462
        %8464 = vadd.xlane.f32.xlu0 %v8404
        %v8465 = vpop.xlane.xlu0 %8464
        %8466 = vadd.xlane.f32.xlu0 %v8405
        %v8467 = vpop.xlane.xlu0 %8466
        %8468 = vadd.xlane.f32.xlu0 %v8406
        %v8469 = vpop.xlane.xlu0 %8468
        %8470 = vadd.xlane.f32.xlu0 %v8407
        %v8471 = vpop.xlane.xlu0 %8470
        %8472 = vadd.xlane.f32.xlu0 %v8408
        %v8473 = vpop.xlane.xlu0 %8472
        %8474 = vadd.xlane.f32.xlu0 %v8409
        %v8475 = vpop.xlane.xlu0 %8474
        %v8476 = vrcp.pop 128.0
        %v8477 = vmul.f32 %v8413, %v8476
        %v8478 = vmul.f32 %v8415, %v8476
        %v8479 = vmul.f32 %v8417, %v8476
        %v8480 = vmul.f32 %v8419, %v8476
        %v8481 = vmul.f32 %v8421, %v8476
        %v8482 = vmul.f32 %v8423, %v8476
        %v8483 = vmul.f32 %v8425, %v8476
        %v8484 = vmul.f32 %v8427, %v8476
        %v8485 = vmul.f32 %v8429, %v8476
        %v8486 = vmul.f32 %v8431, %v8476
        %v8487 = vmul.f32 %v8433, %v8476
        %v8488 = vmul.f32 %v8435, %v8476
        %v8489 = vmul.f32 %v8437, %v8476
        %v8490 = vmul.f32 %v8439, %v8476
        %v8491 = vmul.f32 %v8441, %v8476
        %v8492 = vmul.f32 %v8443, %v8476
        %v8493 = vmul.f32 %v8445, %v8476
        %v8494 = vmul.f32 %v8447, %v8476
        %v8495 = vmul.f32 %v8449, %v8476
        %v8496 = vmul.f32 %v8451, %v8476
        %v8497 = vmul.f32 %v8453, %v8476
        %v8498 = vmul.f32 %v8455, %v8476
        %v8499 = vmul.f32 %v8457, %v8476
        %v8500 = vmul.f32 %v8459, %v8476
        %v8501 = vmul.f32 %v8461, %v8476
        %v8502 = vmul.f32 %v8463, %v8476
        %v8503 = vmul.f32 %v8465, %v8476
        %v8504 = vmul.f32 %v8467, %v8476
        %v8505 = vmul.f32 %v8469, %v8476
        %v8506 = vmul.f32 %v8471, %v8476
        %v8507 = vmul.f32 %v8473, %v8476
        %v8508 = vmul.f32 %v8475, %v8476
        %v8509 = vsub.f32 %v8378, %v8477
        %v8510 = vsub.f32 %v8379, %v8478
        %v8511 = vsub.f32 %v8380, %v8479
        %v8512 = vsub.f32 %v8381, %v8480
        %v8513 = vsub.f32 %v8382, %v8481
        %v8514 = vsub.f32 %v8383, %v8482
        %v8515 = vsub.f32 %v8384, %v8483
        %v8516 = vsub.f32 %v8385, %v8484
        %v8517 = vsub.f32 %v8386, %v8485
        %v8518 = vsub.f32 %v8387, %v8486
        %v8519 = vsub.f32 %v8388, %v8487
        %v8520 = vsub.f32 %v8389, %v8488
        %v8521 = vsub.f32 %v8390, %v8489
        %v8522 = vsub.f32 %v8391, %v8490
        %v8523 = vsub.f32 %v8392, %v8491
        %v8524 = vsub.f32 %v8393, %v8492
        %v8525 = vsub.f32 %v8394, %v8493
        %v8526 = vsub.f32 %v8395, %v8494
        %v8527 = vsub.f32 %v8396, %v8495
        %v8528 = vsub.f32 %v8397, %v8496
        %v8529 = vsub.f32 %v8398, %v8497
        %v8530 = vsub.f32 %v8399, %v8498
        %v8531 = vsub.f32 %v8400, %v8499
        %v8532 = vsub.f32 %v8401, %v8500
        %v8533 = vsub.f32 %v8402, %v8501
        %v8534 = vsub.f32 %v8403, %v8502
        %v8535 = vsub.f32 %v8404, %v8503
        %v8536 = vsub.f32 %v8405, %v8504
        %v8537 = vsub.f32 %v8406, %v8505
        %v8538 = vsub.f32 %v8407, %v8506
        %v8539 = vsub.f32 %v8408, %v8507
        %v8540 = vsub.f32 %v8409, %v8508
        %v8541 = vmul.f32 %v8509, %v8509
        %v8542 = vmul.f32 %v8510, %v8510
        %v8543 = vmul.f32 %v8511, %v8511
        %v8544 = vmul.f32 %v8512, %v8512
        %v8545 = vmul.f32 %v8513, %v8513
        %v8546 = vmul.f32 %v8514, %v8514
        %v8547 = vmul.f32 %v8515, %v8515
        %v8548 = vmul.f32 %v8516, %v8516
        %v8549 = vmul.f32 %v8517, %v8517
        %v8550 = vmul.f32 %v8518, %v8518
        %v8551 = vmul.f32 %v8519, %v8519
        %v8552 = vmul.f32 %v8520, %v8520
        %v8553 = vmul.f32 %v8521, %v8521
        %v8554 = vmul.f32 %v8522, %v8522
        %v8555 = vmul.f32 %v8523, %v8523
        %v8556 = vmul.f32 %v8524, %v8524
        %v8557 = vmul.f32 %v8525, %v8525
        %v8558 = vmul.f32 %v8526, %v8526
        %v8559 = vmul.f32 %v8527, %v8527
        %v8560 = vmul.f32 %v8528, %v8528
        %v8561 = vmul.f32 %v8529, %v8529
        %v8562 = vmul.f32 %v8530, %v8530
        %v8563 = vmul.f32 %v8531, %v8531
        %v8564 = vmul.f32 %v8532, %v8532
        %v8565 = vmul.f32 %v8533, %v8533
        %v8566 = vmul.f32 %v8534, %v8534
        %v8567 = vmul.f32 %v8535, %v8535
        %v8568 = vmul.f32 %v8536, %v8536
        %v8569 = vmul.f32 %v8537, %v8537
        %v8570 = vmul.f32 %v8538, %v8538
        %v8571 = vmul.f32 %v8539, %v8539
        %v8572 = vmul.f32 %v8540, %v8540
        %8573 = vadd.xlane.f32.xlu0 %v8541
        %v8574 = vpop.xlane.xlu0 %8573
        %8575 = vadd.xlane.f32.xlu0 %v8542
        %v8576 = vpop.xlane.xlu0 %8575
        %8577 = vadd.xlane.f32.xlu0 %v8543
        %v8578 = vpop.xlane.xlu0 %8577
        %8579 = vadd.xlane.f32.xlu0 %v8544
        %v8580 = vpop.xlane.xlu0 %8579
        %8581 = vadd.xlane.f32.xlu0 %v8545
        %v8582 = vpop.xlane.xlu0 %8581
        %8583 = vadd.xlane.f32.xlu0 %v8546
        %v8584 = vpop.xlane.xlu0 %8583
        %8585 = vadd.xlane.f32.xlu0 %v8547
        %v8586 = vpop.xlane.xlu0 %8585
        %8587 = vadd.xlane.f32.xlu0 %v8548
        %v8588 = vpop.xlane.xlu0 %8587
        %8589 = vadd.xlane.f32.xlu0 %v8549
        %v8590 = vpop.xlane.xlu0 %8589
        %8591 = vadd.xlane.f32.xlu0 %v8550
        %v8592 = vpop.xlane.xlu0 %8591
        %8593 = vadd.xlane.f32.xlu0 %v8551
        %v8594 = vpop.xlane.xlu0 %8593
        %8595 = vadd.xlane.f32.xlu0 %v8552
        %v8596 = vpop.xlane.xlu0 %8595
        %8597 = vadd.xlane.f32.xlu0 %v8553
        %v8598 = vpop.xlane.xlu0 %8597
        %8599 = vadd.xlane.f32.xlu0 %v8554
        %v8600 = vpop.xlane.xlu0 %8599
        %8601 = vadd.xlane.f32.xlu0 %v8555
        %v8602 = vpop.xlane.xlu0 %8601
        %8603 = vadd.xlane.f32.xlu0 %v8556
        %v8604 = vpop.xlane.xlu0 %8603
        %8605 = vadd.xlane.f32.xlu0 %v8557
        %v8606 = vpop.xlane.xlu0 %8605
        %8607 = vadd.xlane.f32.xlu0 %v8558
        %v8608 = vpop.xlane.xlu0 %8607
        %8609 = vadd.xlane.f32.xlu0 %v8559
        %v8610 = vpop.xlane.xlu0 %8609
        %8611 = vadd.xlane.f32.xlu0 %v8560
        %v8612 = vpop.xlane.xlu0 %8611
        %8613 = vadd.xlane.f32.xlu0 %v8561
        %v8614 = vpop.xlane.xlu0 %8613
        %8615 = vadd.xlane.f32.xlu0 %v8562
        %v8616 = vpop.xlane.xlu0 %8615
        %8617 = vadd.xlane.f32.xlu0 %v8563
        %v8618 = vpop.xlane.xlu0 %8617
        %8619 = vadd.xlane.f32.xlu0 %v8564
        %v8620 = vpop.xlane.xlu0 %8619
        %8621 = vadd.xlane.f32.xlu0 %v8565
        %v8622 = vpop.xlane.xlu0 %8621
        %8623 = vadd.xlane.f32.xlu0 %v8566
        %v8624 = vpop.xlane.xlu0 %8623
        %8625 = vadd.xlane.f32.xlu0 %v8567
        %v8626 = vpop.xlane.xlu0 %8625
        %8627 = vadd.xlane.f32.xlu0 %v8568
        %v8628 = vpop.xlane.xlu0 %8627
        %8629 = vadd.xlane.f32.xlu0 %v8569
        %v8630 = vpop.xlane.xlu0 %8629
        %8631 = vadd.xlane.f32.xlu0 %v8570
        %v8632 = vpop.xlane.xlu0 %8631
        %8633 = vadd.xlane.f32.xlu0 %v8571
        %v8634 = vpop.xlane.xlu0 %8633
        %8635 = vadd.xlane.f32.xlu0 %v8572
        %v8636 = vpop.xlane.xlu0 %8635
        %v8637 = vmul.f32 %v8574, %v8476
        %v8638 = vmul.f32 %v8576, %v8476
        %v8639 = vmul.f32 %v8578, %v8476
        %v8640 = vmul.f32 %v8580, %v8476
        %v8641 = vmul.f32 %v8582, %v8476
        %v8642 = vmul.f32 %v8584, %v8476
        %v8643 = vmul.f32 %v8586, %v8476
        %v8644 = vmul.f32 %v8588, %v8476
        %v8645 = vmul.f32 %v8590, %v8476
        %v8646 = vmul.f32 %v8592, %v8476
        %v8647 = vmul.f32 %v8594, %v8476
        %v8648 = vmul.f32 %v8596, %v8476
        %v8649 = vmul.f32 %v8598, %v8476
        %v8650 = vmul.f32 %v8600, %v8476
        %v8651 = vmul.f32 %v8602, %v8476
        %v8652 = vmul.f32 %v8604, %v8476
        %v8653 = vmul.f32 %v8606, %v8476
        %v8654 = vmul.f32 %v8608, %v8476
        %v8655 = vmul.f32 %v8610, %v8476
        %v8656 = vmul.f32 %v8612, %v8476
        %v8657 = vmul.f32 %v8614, %v8476
        %v8658 = vmul.f32 %v8616, %v8476
        %v8659 = vmul.f32 %v8618, %v8476
        %v8660 = vmul.f32 %v8620, %v8476
        %v8661 = vmul.f32 %v8622, %v8476
        %v8662 = vmul.f32 %v8624, %v8476
        %v8663 = vmul.f32 %v8626, %v8476
        %v8664 = vmul.f32 %v8628, %v8476
        %v8665 = vmul.f32 %v8630, %v8476
        %v8666 = vmul.f32 %v8632, %v8476
        %v8667 = vmul.f32 %v8634, %v8476
        %v8668 = vmul.f32 %v8636, %v8476
        %v8669 = vadd.f32 %v8637, 1e-05
        %v8670 = vadd.f32 %v8638, 1e-05
        %v8671 = vadd.f32 %v8639, 1e-05
        %v8672 = vadd.f32 %v8640, 1e-05
        %v8673 = vadd.f32 %v8641, 1e-05
        %v8674 = vadd.f32 %v8642, 1e-05
        %v8675 = vadd.f32 %v8643, 1e-05
        %v8676 = vadd.f32 %v8644, 1e-05
        %v8677 = vadd.f32 %v8645, 1e-05
        %v8678 = vadd.f32 %v8646, 1e-05
        %v8679 = vadd.f32 %v8647, 1e-05
        %v8680 = vadd.f32 %v8648, 1e-05
        %v8681 = vadd.f32 %v8649, 1e-05
        %v8682 = vadd.f32 %v8650, 1e-05
        %v8683 = vadd.f32 %v8651, 1e-05
        %v8684 = vadd.f32 %v8652, 1e-05
        %v8685 = vadd.f32 %v8653, 1e-05
        %v8686 = vadd.f32 %v8654, 1e-05
        %v8687 = vadd.f32 %v8655, 1e-05
        %v8688 = vadd.f32 %v8656, 1e-05
        %v8689 = vadd.f32 %v8657, 1e-05
        %v8690 = vadd.f32 %v8658, 1e-05
        %v8691 = vadd.f32 %v8659, 1e-05
        %v8692 = vadd.f32 %v8660, 1e-05
        %v8693 = vadd.f32 %v8661, 1e-05
        %v8694 = vadd.f32 %v8662, 1e-05
        %v8695 = vadd.f32 %v8663, 1e-05
        %v8696 = vadd.f32 %v8664, 1e-05
        %v8697 = vadd.f32 %v8665, 1e-05
        %v8698 = vadd.f32 %v8666, 1e-05
        %v8699 = vadd.f32 %v8667, 1e-05
        %v8700 = vadd.f32 %v8668, 1e-05
        %v8701 = vrsqrt.pop %v8669
        %v8702 = vrsqrt.pop %v8670
        %v8703 = vrsqrt.pop %v8671
        %v8704 = vrsqrt.pop %v8672
        %v8705 = vrsqrt.pop %v8673
        %v8706 = vrsqrt.pop %v8674
        %v8707 = vrsqrt.pop %v8675
        %v8708 = vrsqrt.pop %v8676
        %v8709 = vrsqrt.pop %v8677
        %v8710 = vrsqrt.pop %v8678
        %v8711 = vrsqrt.pop %v8679
        %v8712 = vrsqrt.pop %v8680
        %v8713 = vrsqrt.pop %v8681
        %v8714 = vrsqrt.pop %v8682
        %v8715 = vrsqrt.pop %v8683
        %v8716 = vrsqrt.pop %v8684
        %v8717 = vrsqrt.pop %v8685
        %v8718 = vrsqrt.pop %v8686
        %v8719 = vrsqrt.pop %v8687
        %v8720 = vrsqrt.pop %v8688
        %v8721 = vrsqrt.pop %v8689
        %v8722 = vrsqrt.pop %v8690
        %v8723 = vrsqrt.pop %v8691
        %v8724 = vrsqrt.pop %v8692
        %v8725 = vrsqrt.pop %v8693
        %v8726 = vrsqrt.pop %v8694
        %v8727 = vrsqrt.pop %v8695
        %v8728 = vrsqrt.pop %v8696
        %v8729 = vrsqrt.pop %v8697
        %v8730 = vrsqrt.pop %v8698
        %v8731 = vrsqrt.pop %v8699
        %v8732 = vrsqrt.pop %v8700
        %v8733 = vmul.f32 %v8509, %v8701
        %v8734 = vmul.f32 %v8510, %v8702
        %v8735 = vmul.f32 %v8511, %v8703
        %v8736 = vmul.f32 %v8512, %v8704
        %v8737 = vmul.f32 %v8513, %v8705
        %v8738 = vmul.f32 %v8514, %v8706
        %v8739 = vmul.f32 %v8515, %v8707
        %v8740 = vmul.f32 %v8516, %v8708
        %v8741 = vmul.f32 %v8517, %v8709
        %v8742 = vmul.f32 %v8518, %v8710
        %v8743 = vmul.f32 %v8519, %v8711
        %v8744 = vmul.f32 %v8520, %v8712
        %v8745 = vmul.f32 %v8521, %v8713
        %v8746 = vmul.f32 %v8522, %v8714
        %v8747 = vmul.f32 %v8523, %v8715
        %v8748 = vmul.f32 %v8524, %v8716
        %v8749 = vmul.f32 %v8525, %v8717
        %v8750 = vmul.f32 %v8526, %v8718
        %v8751 = vmul.f32 %v8527, %v8719
        %v8752 = vmul.f32 %v8528, %v8720
        %v8753 = vmul.f32 %v8529, %v8721
        %v8754 = vmul.f32 %v8530, %v8722
        %v8755 = vmul.f32 %v8531, %v8723
        %v8756 = vmul.f32 %v8532, %v8724
        %v8757 = vmul.f32 %v8533, %v8725
        %v8758 = vmul.f32 %v8534, %v8726
        %v8759 = vmul.f32 %v8535, %v8727
        %v8760 = vmul.f32 %v8536, %v8728
        %v8761 = vmul.f32 %v8537, %v8729
        %v8762 = vmul.f32 %v8538, %v8730
        %v8763 = vmul.f32 %v8539, %v8731
        %v8764 = vmul.f32 %v8540, %v8732
        %v8766 = vlaneseq
        %v8767 = vshrl.u32 %v8766, 7
        %v8768 = vsub.s32 0, %v8767
        %v8769 = vrot.slane %v8410, %v8768
        %v8771 = vmul.f32 %v8733, %v8769
        %v8772 = vmul.f32 %v8734, %v8769
        %v8773 = vmul.f32 %v8735, %v8769
        %v8774 = vmul.f32 %v8736, %v8769
        %v8775 = vmul.f32 %v8737, %v8769
        %v8776 = vmul.f32 %v8738, %v8769
        %v8777 = vmul.f32 %v8739, %v8769
        %v8778 = vmul.f32 %v8740, %v8769
        %v8779 = vmul.f32 %v8741, %v8769
        %v8780 = vmul.f32 %v8742, %v8769
        %v8781 = vmul.f32 %v8743, %v8769
        %v8782 = vmul.f32 %v8744, %v8769
        %v8783 = vmul.f32 %v8745, %v8769
        %v8784 = vmul.f32 %v8746, %v8769
        %v8785 = vmul.f32 %v8747, %v8769
        %v8786 = vmul.f32 %v8748, %v8769
        %v8787 = vmul.f32 %v8749, %v8769
        %v8788 = vmul.f32 %v8750, %v8769
        %v8789 = vmul.f32 %v8751, %v8769
        %v8790 = vmul.f32 %v8752, %v8769
        %v8791 = vmul.f32 %v8753, %v8769
        %v8792 = vmul.f32 %v8754, %v8769
        %v8793 = vmul.f32 %v8755, %v8769
        %v8794 = vmul.f32 %v8756, %v8769
        %v8795 = vmul.f32 %v8757, %v8769
        %v8796 = vmul.f32 %v8758, %v8769
        %v8797 = vmul.f32 %v8759, %v8769
        %v8798 = vmul.f32 %v8760, %v8769
        %v8799 = vmul.f32 %v8761, %v8769
        %v8800 = vmul.f32 %v8762, %v8769
        %v8801 = vmul.f32 %v8763, %v8769
        %v8802 = vmul.f32 %v8764, %v8769
        %v8804 = vlaneseq
        %v8805 = vshrl.u32 %v8804, 7
        %v8806 = vsub.s32 0, %v8805
        %v8807 = vrot.slane %v8411, %v8806
        %v8809 = vadd.f32 %v8771, %v8807
        %v8810 = vadd.f32 %v8772, %v8807
        %v8811 = vadd.f32 %v8773, %v8807
        %v8812 = vadd.f32 %v8774, %v8807
        %v8813 = vadd.f32 %v8775, %v8807
        %v8814 = vadd.f32 %v8776, %v8807
        %v8815 = vadd.f32 %v8777, %v8807
        %v8816 = vadd.f32 %v8778, %v8807
        %v8817 = vadd.f32 %v8779, %v8807
        %v8818 = vadd.f32 %v8780, %v8807
        %v8819 = vadd.f32 %v8781, %v8807
        %v8820 = vadd.f32 %v8782, %v8807
        %v8821 = vadd.f32 %v8783, %v8807
        %v8822 = vadd.f32 %v8784, %v8807
        %v8823 = vadd.f32 %v8785, %v8807
        %v8824 = vadd.f32 %v8786, %v8807
        %v8825 = vadd.f32 %v8787, %v8807
        %v8826 = vadd.f32 %v8788, %v8807
        %v8827 = vadd.f32 %v8789, %v8807
        %v8828 = vadd.f32 %v8790, %v8807
        %v8829 = vadd.f32 %v8791, %v8807
        %v8830 = vadd.f32 %v8792, %v8807
        %v8831 = vadd.f32 %v8793, %v8807
        %v8832 = vadd.f32 %v8794, %v8807
        %v8833 = vadd.f32 %v8795, %v8807
        %v8834 = vadd.f32 %v8796, %v8807
        %v8835 = vadd.f32 %v8797, %v8807
        %v8836 = vadd.f32 %v8798, %v8807
        %v8837 = vadd.f32 %v8799, %v8807
        %v8838 = vadd.f32 %v8800, %v8807
        %v8839 = vadd.f32 %v8801, %v8807
        %v8840 = vadd.f32 %v8802, %v8807
        %v8841 = vld [vmem:[#allocation11] sm:$0xff]
        %v8842 = vld [vmem:[#allocation11 + $0x8] sm:$0xff]
        %v8843 = vld [vmem:[#allocation11 + $0x10] sm:$0xff]
        %v8844 = vld [vmem:[#allocation11 + $0x18] sm:$0xff]
        %v8845 = vld [vmem:[#allocation11 + $0x20] sm:$0xff]
        %v8846 = vld [vmem:[#allocation11 + $0x28] sm:$0xff]
        %v8847 = vld [vmem:[#allocation11 + $0x30] sm:$0xff]
        %v8848 = vld [vmem:[#allocation11 + $0x38] sm:$0xff]
        %v8849 = vld [vmem:[#allocation11 + $0x40] sm:$0xff]
        %v8850 = vld [vmem:[#allocation11 + $0x48] sm:$0xff]
        %v8851 = vld [vmem:[#allocation11 + $0x50] sm:$0xff]
        %v8852 = vld [vmem:[#allocation11 + $0x58] sm:$0xff]
        %v8853 = vld [vmem:[#allocation11 + $0x60] sm:$0xff]
        %v8854 = vld [vmem:[#allocation11 + $0x68] sm:$0xff]
        %v8855 = vld [vmem:[#allocation11 + $0x70] sm:$0xff]
        %v8856 = vld [vmem:[#allocation11 + $0x78] sm:$0xff]
        %v8857 = vld [vmem:[#allocation11 + $0x80] sm:$0xff]
        %v8858 = vld [vmem:[#allocation11 + $0x88] sm:$0xff]
        %v8859 = vld [vmem:[#allocation11 + $0x90] sm:$0xff]
        %v8860 = vld [vmem:[#allocation11 + $0x98] sm:$0xff]
        %v8861 = vld [vmem:[#allocation11 + $0xa0] sm:$0xff]
        %v8862 = vld [vmem:[#allocation11 + $0xa8] sm:$0xff]
        %v8863 = vld [vmem:[#allocation11 + $0xb0] sm:$0xff]
        %v8864 = vld [vmem:[#allocation11 + $0xb8] sm:$0xff]
        %v8865 = vld [vmem:[#allocation11 + $0xc0] sm:$0xff]
        %v8866 = vld [vmem:[#allocation11 + $0xc8] sm:$0xff]
        %v8867 = vld [vmem:[#allocation11 + $0xd0] sm:$0xff]
        %v8868 = vld [vmem:[#allocation11 + $0xd8] sm:$0xff]
        %v8869 = vld [vmem:[#allocation11 + $0xe0] sm:$0xff]
        %v8870 = vld [vmem:[#allocation11 + $0xe8] sm:$0xff]
        %v8871 = vld [vmem:[#allocation11 + $0xf0] sm:$0xff]
        %v8872 = vld [vmem:[#allocation11 + $0xf8] sm:$0xff]
        %v8873 = vld [vmem:[%s10] sm:$0x3]
        %v8875 = vlaneseq
        %v8876 = vshrl.u32 %v8875, 7
        %v8877 = vsub.s32 0, %v8876
        %v8878 = vrot.slane %v8873, %v8877
        %v8879 = vlaneseq
        %v8880 = vshrl.u32 %v8879, 7
        %v8881 = vsub.s32 1, %v8880
        %v8882 = vrot.slane %v8873, %v8881
        %8885 = vmatprep.subr.mxu0 %v8872
        %8886 = vmatpush1.msra.mxu0 %v8871
        %8887 = vmatprep.subr.mxu0 %v8870
        %8888 = vmatpush1.msra.mxu0 %v8869
        %8889 = vmatprep.subr.mxu0 %v8868
        %8890 = vmatpush1.msra.mxu0 %v8867
        %8891 = vmatprep.subr.mxu0 %v8866
        %8892 = vmatpush1.msra.mxu0 %v8865
        %8893 = vmatprep.subr.mxu0 %v8864
        %8894 = vmatpush1.msra.mxu0 %v8863
        %8895 = vmatprep.subr.mxu0 %v8862
        %8896 = vmatpush1.msra.mxu0 %v8861
        %8897 = vmatprep.subr.mxu0 %v8860
        %8898 = vmatpush1.msra.mxu0 %v8859
        %8899 = vmatprep.subr.mxu0 %v8858
        %8900 = vmatpush1.msra.mxu0 %v8857
        %8901 = vmatprep.subr.mxu0 %v8856
        %8902 = vmatpush1.msra.mxu0 %v8855
        %8903 = vmatprep.subr.mxu0 %v8854
        %8904 = vmatpush1.msra.mxu0 %v8853
        %8905 = vmatprep.subr.mxu0 %v8852
        %8906 = vmatpush1.msra.mxu0 %v8851
        %8907 = vmatprep.subr.mxu0 %v8850
        %8908 = vmatpush1.msra.mxu0 %v8849
        %8909 = vmatprep.subr.mxu0 %v8848
        %8910 = vmatpush1.msra.mxu0 %v8847
        %8911 = vmatprep.subr.mxu0 %v8846
        %8912 = vmatpush1.msra.mxu0 %v8845
        %8913 = vmatprep.subr.mxu0 %v8844
        %8914 = vmatpush1.msra.mxu0 %v8843
        %8915 = vmatprep.subr.mxu0 %v8842
        %8916 = vmatpush1.msra.mxu0 %v8841
        %8917 = vmatprep.subr.mxu0 0.0
        %8918 = vmatpush2.msra.mxu0 0.0
        %8919 = vmatprep.subr.mxu0 0.0
        %8920 = vmatpush2.msra.mxu0 0.0
        %8921 = vmatprep.subr.mxu0 0.0
        %8922 = vmatpush2.msra.mxu0 0.0
        %8923 = vmatprep.subr.mxu0 0.0
        %8924 = vmatpush2.msra.mxu0 0.0
        %8925 = vmatprep.subr.mxu0 0.0
        %8926 = vmatpush2.msra.mxu0 0.0
        %8927 = vmatprep.subr.mxu0 0.0
        %8928 = vmatpush2.msra.mxu0 0.0
        %8929 = vmatprep.subr.mxu0 0.0
        %8930 = vmatpush2.msra.mxu0 0.0
        %8931 = vmatprep.subr.mxu0 0.0
        %8932 = vmatpush2.msra.mxu0 0.0
        %8933 = vmatprep.subr.mxu0 0.0
        %8934 = vmatpush2.msra.mxu0 0.0
        %8935 = vmatprep.subr.mxu0 0.0
        %8936 = vmatpush2.msra.mxu0 0.0
        %8937 = vmatprep.subr.mxu0 0.0
        %8938 = vmatpush2.msra.mxu0 0.0
        %8939 = vmatprep.subr.mxu0 0.0
        %8940 = vmatpush2.msra.mxu0 0.0
        %8941 = vmatprep.subr.mxu0 0.0
        %8942 = vmatpush2.msra.mxu0 0.0
        %8943 = vmatprep.subr.mxu0 0.0
        %8944 = vmatpush2.msra.mxu0 0.0
        %8945 = vmatprep.subr.mxu0 0.0
        %8946 = vmatpush2.msra.mxu0 0.0
        %8947 = vmatprep.subr.mxu0 0.0
        %8948 = vmatpush2.msra.mxu0 0.0
        %8949 = vmatprep.mubr.f32.mxu0 0.0
        %8950 = vmatmul.mubr.f32.gmra.mxu0 %v8809
        %v8951 = vpop.f32.mrf.mxu0
        %v8952 = vadd.f32 %v8878, %v8951
        %v8953 = vpop.f32.mrf.mxu0
        %v8954 = vadd.f32 %v8882, %v8953
        %8955 = vmatprep.mubr.f32.mxu0 0.0
        %8956 = vmatmul.mubr.f32.gmra.mxu0 %v8810
        %v8957 = vpop.f32.mrf.mxu0
        %v8958 = vadd.f32 %v8878, %v8957
        %v8959 = vpop.f32.mrf.mxu0
        %v8960 = vadd.f32 %v8882, %v8959
        %8961 = vmatprep.mubr.f32.mxu0 0.0
        %8962 = vmatmul.mubr.f32.gmra.mxu0 %v8811
        %v8963 = vpop.f32.mrf.mxu0
        %v8964 = vadd.f32 %v8878, %v8963
        %v8965 = vpop.f32.mrf.mxu0
        %v8966 = vadd.f32 %v8882, %v8965
        %8967 = vmatprep.mubr.f32.mxu0 0.0
        %8968 = vmatmul.mubr.f32.gmra.mxu0 %v8812
        %v8969 = vpop.f32.mrf.mxu0
        %v8970 = vadd.f32 %v8878, %v8969
        %v8971 = vpop.f32.mrf.mxu0
        %v8972 = vadd.f32 %v8882, %v8971
        %8973 = vmatprep.mubr.f32.mxu0 0.0
        %8974 = vmatmul.mubr.f32.gmra.mxu0 %v8813
        %v8975 = vpop.f32.mrf.mxu0
        %v8976 = vadd.f32 %v8878, %v8975
        %v8977 = vpop.f32.mrf.mxu0
        %v8978 = vadd.f32 %v8882, %v8977
        %8979 = vmatprep.mubr.f32.mxu0 0.0
        %8980 = vmatmul.mubr.f32.gmra.mxu0 %v8814
        %v8981 = vpop.f32.mrf.mxu0
        %v8982 = vadd.f32 %v8878, %v8981
        %v8983 = vpop.f32.mrf.mxu0
        %v8984 = vadd.f32 %v8882, %v8983
        %8985 = vmatprep.mubr.f32.mxu0 0.0
        %8986 = vmatmul.mubr.f32.gmra.mxu0 %v8815
        %v8987 = vpop.f32.mrf.mxu0
        %v8988 = vadd.f32 %v8878, %v8987
        %v8989 = vpop.f32.mrf.mxu0
        %v8990 = vadd.f32 %v8882, %v8989
        %8991 = vmatprep.mubr.f32.mxu0 0.0
        %8992 = vmatmul.mubr.f32.gmra.mxu0 %v8816
        %v8993 = vpop.f32.mrf.mxu0
        %v8994 = vadd.f32 %v8878, %v8993
        %v8995 = vpop.f32.mrf.mxu0
        %v8996 = vadd.f32 %v8882, %v8995
        %8997 = vmatprep.mubr.f32.mxu0 0.0
        %8998 = vmatmul.mubr.f32.gmra.mxu0 %v8817
        %v8999 = vpop.f32.mrf.mxu0
        %v9000 = vadd.f32 %v8878, %v8999
        %v9001 = vpop.f32.mrf.mxu0
        %v9002 = vadd.f32 %v8882, %v9001
        %9003 = vmatprep.mubr.f32.mxu0 0.0
        %9004 = vmatmul.mubr.f32.gmra.mxu0 %v8818
        %v9005 = vpop.f32.mrf.mxu0
        %v9006 = vadd.f32 %v8878, %v9005
        %v9007 = vpop.f32.mrf.mxu0
        %v9008 = vadd.f32 %v8882, %v9007
        %9009 = vmatprep.mubr.f32.mxu0 0.0
        %9010 = vmatmul.mubr.f32.gmra.mxu0 %v8819
        %v9011 = vpop.f32.mrf.mxu0
        %v9012 = vadd.f32 %v8878, %v9011
        %v9013 = vpop.f32.mrf.mxu0
        %v9014 = vadd.f32 %v8882, %v9013
        %9015 = vmatprep.mubr.f32.mxu0 0.0
        %9016 = vmatmul.mubr.f32.gmra.mxu0 %v8820
        %v9017 = vpop.f32.mrf.mxu0
        %v9018 = vadd.f32 %v8878, %v9017
        %v9019 = vpop.f32.mrf.mxu0
        %v9020 = vadd.f32 %v8882, %v9019
        %9021 = vmatprep.mubr.f32.mxu0 0.0
        %9022 = vmatmul.mubr.f32.gmra.mxu0 %v8821
        %v9023 = vpop.f32.mrf.mxu0
        %v9024 = vadd.f32 %v8878, %v9023
        %v9025 = vpop.f32.mrf.mxu0
        %v9026 = vadd.f32 %v8882, %v9025
        %9027 = vmatprep.mubr.f32.mxu0 0.0
        %9028 = vmatmul.mubr.f32.gmra.mxu0 %v8822
        %v9029 = vpop.f32.mrf.mxu0
        %v9030 = vadd.f32 %v8878, %v9029
        %v9031 = vpop.f32.mrf.mxu0
        %v9032 = vadd.f32 %v8882, %v9031
        %9033 = vmatprep.mubr.f32.mxu0 0.0
        %9034 = vmatmul.mubr.f32.gmra.mxu0 %v8823
        %v9035 = vpop.f32.mrf.mxu0
        %v9036 = vadd.f32 %v8878, %v9035
        %v9037 = vpop.f32.mrf.mxu0
        %v9038 = vadd.f32 %v8882, %v9037
        %9039 = vmatprep.mubr.f32.mxu0 0.0
        %9040 = vmatmul.mubr.f32.gmra.mxu0 %v8824
        %v9041 = vpop.f32.mrf.mxu0
        %v9042 = vadd.f32 %v8878, %v9041
        %v9043 = vpop.f32.mrf.mxu0
        %v9044 = vadd.f32 %v8882, %v9043
        %9045 = vmatprep.mubr.f32.mxu0 0.0
        %9046 = vmatmul.mubr.f32.gmra.mxu0 %v8825
        %v9047 = vpop.f32.mrf.mxu0
        %v9048 = vadd.f32 %v8878, %v9047
        %v9049 = vpop.f32.mrf.mxu0
        %v9050 = vadd.f32 %v8882, %v9049
        %9051 = vmatprep.mubr.f32.mxu0 0.0
        %9052 = vmatmul.mubr.f32.gmra.mxu0 %v8826
        %v9053 = vpop.f32.mrf.mxu0
        %v9054 = vadd.f32 %v8878, %v9053
        %v9055 = vpop.f32.mrf.mxu0
        %v9056 = vadd.f32 %v8882, %v9055
        %9057 = vmatprep.mubr.f32.mxu0 0.0
        %9058 = vmatmul.mubr.f32.gmra.mxu0 %v8827
        %v9059 = vpop.f32.mrf.mxu0
        %v9060 = vadd.f32 %v8878, %v9059
        %v9061 = vpop.f32.mrf.mxu0
        %v9062 = vadd.f32 %v8882, %v9061
        %9063 = vmatprep.mubr.f32.mxu0 0.0
        %9064 = vmatmul.mubr.f32.gmra.mxu0 %v8828
        %v9065 = vpop.f32.mrf.mxu0
        %v9066 = vadd.f32 %v8878, %v9065
        %v9067 = vpop.f32.mrf.mxu0
        %v9068 = vadd.f32 %v8882, %v9067
        %9069 = vmatprep.mubr.f32.mxu0 0.0
        %9070 = vmatmul.mubr.f32.gmra.mxu0 %v8829
        %v9071 = vpop.f32.mrf.mxu0
        %v9072 = vadd.f32 %v8878, %v9071
        %v9073 = vpop.f32.mrf.mxu0
        %v9074 = vadd.f32 %v8882, %v9073
        %9075 = vmatprep.mubr.f32.mxu0 0.0
        %9076 = vmatmul.mubr.f32.gmra.mxu0 %v8830
        %v9077 = vpop.f32.mrf.mxu0
        %v9078 = vadd.f32 %v8878, %v9077
        %v9079 = vpop.f32.mrf.mxu0
        %v9080 = vadd.f32 %v8882, %v9079
        %9081 = vmatprep.mubr.f32.mxu0 0.0
        %9082 = vmatmul.mubr.f32.gmra.mxu0 %v8831
        %v9083 = vpop.f32.mrf.mxu0
        %v9084 = vadd.f32 %v8878, %v9083
        %v9085 = vpop.f32.mrf.mxu0
        %v9086 = vadd.f32 %v8882, %v9085
        %9087 = vmatprep.mubr.f32.mxu0 0.0
        %9088 = vmatmul.mubr.f32.gmra.mxu0 %v8832
        %v9089 = vpop.f32.mrf.mxu0
        %v9090 = vadd.f32 %v8878, %v9089
        %v9091 = vpop.f32.mrf.mxu0
        %v9092 = vadd.f32 %v8882, %v9091
        %9093 = vmatprep.mubr.f32.mxu0 0.0
        %9094 = vmatmul.mubr.f32.gmra.mxu0 %v8833
        %v9095 = vpop.f32.mrf.mxu0
        %v9096 = vadd.f32 %v8878, %v9095
        %v9097 = vpop.f32.mrf.mxu0
        %v9098 = vadd.f32 %v8882, %v9097
        %9099 = vmatprep.mubr.f32.mxu0 0.0
        %9100 = vmatmul.mubr.f32.gmra.mxu0 %v8834
        %v9101 = vpop.f32.mrf.mxu0
        %v9102 = vadd.f32 %v8878, %v9101
        %v9103 = vpop.f32.mrf.mxu0
        %v9104 = vadd.f32 %v8882, %v9103
        %9105 = vmatprep.mubr.f32.mxu0 0.0
        %9106 = vmatmul.mubr.f32.gmra.mxu0 %v8835
        %v9107 = vpop.f32.mrf.mxu0
        %v9108 = vadd.f32 %v8878, %v9107
        %v9109 = vpop.f32.mrf.mxu0
        %v9110 = vadd.f32 %v8882, %v9109
        %9111 = vmatprep.mubr.f32.mxu0 0.0
        %9112 = vmatmul.mubr.f32.gmra.mxu0 %v8836
        %v9113 = vpop.f32.mrf.mxu0
        %v9114 = vadd.f32 %v8878, %v9113
        %v9115 = vpop.f32.mrf.mxu0
        %v9116 = vadd.f32 %v8882, %v9115
        %9117 = vmatprep.mubr.f32.mxu0 0.0
        %9118 = vmatmul.mubr.f32.gmra.mxu0 %v8837
        %v9119 = vpop.f32.mrf.mxu0
        %v9120 = vadd.f32 %v8878, %v9119
        %v9121 = vpop.f32.mrf.mxu0
        %v9122 = vadd.f32 %v8882, %v9121
        %9123 = vmatprep.mubr.f32.mxu0 0.0
        %9124 = vmatmul.mubr.f32.gmra.mxu0 %v8838
        %v9125 = vpop.f32.mrf.mxu0
        %v9126 = vadd.f32 %v8878, %v9125
        %v9127 = vpop.f32.mrf.mxu0
        %v9128 = vadd.f32 %v8882, %v9127
        %9129 = vmatprep.mubr.f32.mxu0 0.0
        %9130 = vmatmul.mubr.f32.gmra.mxu0 %v8839
        %v9131 = vpop.f32.mrf.mxu0
        %v9132 = vadd.f32 %v8878, %v9131
        %v9133 = vpop.f32.mrf.mxu0
        %v9134 = vadd.f32 %v8882, %v9133
        %9135 = vmatprep.mubr.f32.mxu0 0.0
        %9136 = vmatmul.mubr.f32.gmra.mxu0 %v8840
        %v9137 = vpop.f32.mrf.mxu0
        %v9138 = vadd.f32 %v8878, %v9137
        %v9139 = vpop.f32.mrf.mxu0
        %v9140 = vadd.f32 %v8882, %v9139
        %9141 = vdwg.mxu0
        %v9142 = vmax.f32 %v8952, 0.0
        %v9143 = vmax.f32 %v8954, 0.0
        %v9144 = vmax.f32 %v8958, 0.0
        %v9145 = vmax.f32 %v8960, 0.0
        %v9146 = vmax.f32 %v8964, 0.0
        %v9147 = vmax.f32 %v8966, 0.0
        %v9148 = vmax.f32 %v8970, 0.0
        %v9149 = vmax.f32 %v8972, 0.0
        %v9150 = vmax.f32 %v8976, 0.0
        %v9151 = vmax.f32 %v8978, 0.0
        %v9152 = vmax.f32 %v8982, 0.0
        %v9153 = vmax.f32 %v8984, 0.0
        %v9154 = vmax.f32 %v8988, 0.0
        %v9155 = vmax.f32 %v8990, 0.0
        %v9156 = vmax.f32 %v8994, 0.0
        %v9157 = vmax.f32 %v8996, 0.0
        %v9158 = vmax.f32 %v9000, 0.0
        %v9159 = vmax.f32 %v9002, 0.0
        %v9160 = vmax.f32 %v9006, 0.0
        %v9161 = vmax.f32 %v9008, 0.0
        %v9162 = vmax.f32 %v9012, 0.0
        %v9163 = vmax.f32 %v9014, 0.0
        %v9164 = vmax.f32 %v9018, 0.0
        %v9165 = vmax.f32 %v9020, 0.0
        %v9166 = vmax.f32 %v9024, 0.0
        %v9167 = vmax.f32 %v9026, 0.0
        %v9168 = vmax.f32 %v9030, 0.0
        %v9169 = vmax.f32 %v9032, 0.0
        %v9170 = vmax.f32 %v9036, 0.0
        %v9171 = vmax.f32 %v9038, 0.0
        %v9172 = vmax.f32 %v9042, 0.0
        %v9173 = vmax.f32 %v9044, 0.0
        %v9174 = vmax.f32 %v9048, 0.0
        %v9175 = vmax.f32 %v9050, 0.0
        %v9176 = vmax.f32 %v9054, 0.0
        %v9177 = vmax.f32 %v9056, 0.0
        %v9178 = vmax.f32 %v9060, 0.0
        %v9179 = vmax.f32 %v9062, 0.0
        %v9180 = vmax.f32 %v9066, 0.0
        %v9181 = vmax.f32 %v9068, 0.0
        %v9182 = vmax.f32 %v9072, 0.0
        %v9183 = vmax.f32 %v9074, 0.0
        %v9184 = vmax.f32 %v9078, 0.0
        %v9185 = vmax.f32 %v9080, 0.0
        %v9186 = vmax.f32 %v9084, 0.0
        %v9187 = vmax.f32 %v9086, 0.0
        %v9188 = vmax.f32 %v9090, 0.0
        %v9189 = vmax.f32 %v9092, 0.0
        %v9190 = vmax.f32 %v9096, 0.0
        %v9191 = vmax.f32 %v9098, 0.0
        %v9192 = vmax.f32 %v9102, 0.0
        %v9193 = vmax.f32 %v9104, 0.0
        %v9194 = vmax.f32 %v9108, 0.0
        %v9195 = vmax.f32 %v9110, 0.0
        %v9196 = vmax.f32 %v9114, 0.0
        %v9197 = vmax.f32 %v9116, 0.0
        %v9198 = vmax.f32 %v9120, 0.0
        %v9199 = vmax.f32 %v9122, 0.0
        %v9200 = vmax.f32 %v9126, 0.0
        %v9201 = vmax.f32 %v9128, 0.0
        %v9202 = vmax.f32 %v9132, 0.0
        %v9203 = vmax.f32 %v9134, 0.0
        %v9204 = vmax.f32 %v9138, 0.0
        %v9205 = vmax.f32 %v9140, 0.0
        %v9206 = vld [vmem:[#allocation12] sm:$0xff]
        %v9207 = vld [vmem:[#allocation12 + $0x8] sm:$0xff]
        %v9208 = vld [vmem:[#allocation12 + $0x10] sm:$0xff]
        %v9209 = vld [vmem:[#allocation12 + $0x18] sm:$0xff]
        %v9210 = vld [vmem:[#allocation12 + $0x20] sm:$0xff]
        %v9211 = vld [vmem:[#allocation12 + $0x28] sm:$0xff]
        %v9212 = vld [vmem:[#allocation12 + $0x30] sm:$0xff]
        %v9213 = vld [vmem:[#allocation12 + $0x38] sm:$0xff]
        %v9214 = vld [vmem:[#allocation12 + $0x40] sm:$0xff]
        %v9215 = vld [vmem:[#allocation12 + $0x48] sm:$0xff]
        %v9216 = vld [vmem:[#allocation12 + $0x50] sm:$0xff]
        %v9217 = vld [vmem:[#allocation12 + $0x58] sm:$0xff]
        %v9218 = vld [vmem:[#allocation12 + $0x60] sm:$0xff]
        %v9219 = vld [vmem:[#allocation12 + $0x68] sm:$0xff]
        %v9220 = vld [vmem:[#allocation12 + $0x70] sm:$0xff]
        %v9221 = vld [vmem:[#allocation12 + $0x78] sm:$0xff]
        %v9222 = vld [vmem:[#allocation12 + $0x80] sm:$0xff]
        %v9223 = vld [vmem:[#allocation12 + $0x88] sm:$0xff]
        %v9224 = vld [vmem:[#allocation12 + $0x90] sm:$0xff]
        %v9225 = vld [vmem:[#allocation12 + $0x98] sm:$0xff]
        %v9226 = vld [vmem:[#allocation12 + $0xa0] sm:$0xff]
        %v9227 = vld [vmem:[#allocation12 + $0xa8] sm:$0xff]
        %v9228 = vld [vmem:[#allocation12 + $0xb0] sm:$0xff]
        %v9229 = vld [vmem:[#allocation12 + $0xb8] sm:$0xff]
        %v9230 = vld [vmem:[#allocation12 + $0xc0] sm:$0xff]
        %v9231 = vld [vmem:[#allocation12 + $0xc8] sm:$0xff]
        %v9232 = vld [vmem:[#allocation12 + $0xd0] sm:$0xff]
        %v9233 = vld [vmem:[#allocation12 + $0xd8] sm:$0xff]
        %v9234 = vld [vmem:[#allocation12 + $0xe0] sm:$0xff]
        %v9235 = vld [vmem:[#allocation12 + $0xe8] sm:$0xff]
        %v9236 = vld [vmem:[#allocation12 + $0xf0] sm:$0xff]
        %v9237 = vld [vmem:[#allocation12 + $0xf8] sm:$0xff]
        %v9238 = vld [vmem:[%s12] sm:$0x1]
        %v9240 = vlaneseq
        %v9241 = vshrl.u32 %v9240, 7
        %v9242 = vsub.s32 0, %v9241
        %v9243 = vrot.slane %v9238, %v9242
        %9245 = vmatprep.subr.mxu0 0.0
        %9246 = vmatpush1.msra.mxu0 %v9221
        %9247 = vmatprep.subr.mxu0 0.0
        %9248 = vmatpush1.msra.mxu0 %v9220
        %9249 = vmatprep.subr.mxu0 0.0
        %9250 = vmatpush1.msra.mxu0 %v9219
        %9251 = vmatprep.subr.mxu0 0.0
        %9252 = vmatpush1.msra.mxu0 %v9218
        %9253 = vmatprep.subr.mxu0 0.0
        %9254 = vmatpush1.msra.mxu0 %v9217
        %9255 = vmatprep.subr.mxu0 0.0
        %9256 = vmatpush1.msra.mxu0 %v9216
        %9257 = vmatprep.subr.mxu0 0.0
        %9258 = vmatpush1.msra.mxu0 %v9215
        %9259 = vmatprep.subr.mxu0 0.0
        %9260 = vmatpush1.msra.mxu0 %v9214
        %9261 = vmatprep.subr.mxu0 0.0
        %9262 = vmatpush1.msra.mxu0 %v9213
        %9263 = vmatprep.subr.mxu0 0.0
        %9264 = vmatpush1.msra.mxu0 %v9212
        %9265 = vmatprep.subr.mxu0 0.0
        %9266 = vmatpush1.msra.mxu0 %v9211
        %9267 = vmatprep.subr.mxu0 0.0
        %9268 = vmatpush1.msra.mxu0 %v9210
        %9269 = vmatprep.subr.mxu0 0.0
        %9270 = vmatpush1.msra.mxu0 %v9209
        %9271 = vmatprep.subr.mxu0 0.0
        %9272 = vmatpush1.msra.mxu0 %v9208
        %9273 = vmatprep.subr.mxu0 0.0
        %9274 = vmatpush1.msra.mxu0 %v9207
        %9275 = vmatprep.subr.mxu0 0.0
        %9276 = vmatpush1.msra.mxu0 %v9206
        %9277 = vmatprep.subr.mxu0 0.0
        %9278 = vmatpush2.msra.mxu0 %v9237
        %9279 = vmatprep.subr.mxu0 0.0
        %9280 = vmatpush2.msra.mxu0 %v9236
        %9281 = vmatprep.subr.mxu0 0.0
        %9282 = vmatpush2.msra.mxu0 %v9235
        %9283 = vmatprep.subr.mxu0 0.0
        %9284 = vmatpush2.msra.mxu0 %v9234
        %9285 = vmatprep.subr.mxu0 0.0
        %9286 = vmatpush2.msra.mxu0 %v9233
        %9287 = vmatprep.subr.mxu0 0.0
        %9288 = vmatpush2.msra.mxu0 %v9232
        %9289 = vmatprep.subr.mxu0 0.0
        %9290 = vmatpush2.msra.mxu0 %v9231
        %9291 = vmatprep.subr.mxu0 0.0
        %9292 = vmatpush2.msra.mxu0 %v9230
        %9293 = vmatprep.subr.mxu0 0.0
        %9294 = vmatpush2.msra.mxu0 %v9229
        %9295 = vmatprep.subr.mxu0 0.0
        %9296 = vmatpush2.msra.mxu0 %v9228
        %9297 = vmatprep.subr.mxu0 0.0
        %9298 = vmatpush2.msra.mxu0 %v9227
        %9299 = vmatprep.subr.mxu0 0.0
        %9300 = vmatpush2.msra.mxu0 %v9226
        %9301 = vmatprep.subr.mxu0 0.0
        %9302 = vmatpush2.msra.mxu0 %v9225
        %9303 = vmatprep.subr.mxu0 0.0
        %9304 = vmatpush2.msra.mxu0 %v9224
        %9305 = vmatprep.subr.mxu0 0.0
        %9306 = vmatpush2.msra.mxu0 %v9223
        %9307 = vmatprep.subr.mxu0 0.0
        %9308 = vmatpush2.msra.mxu0 %v9222
        %9309 = vmatprep.mubr.f32.mxu0 %v9143
        %9310 = vmatmul.mubr.f32.gmra.mxu0 %v9142
        %v9311 = vpop.f32.mrf.mxu0
        %v9312 = vadd.f32 %v9243, %v9311
        %v9313 = vpop.f32.mrf.mxu0
        %9314 = vmatprep.mubr.f32.mxu0 %v9145
        %9315 = vmatmul.mubr.f32.gmra.mxu0 %v9144
        %v9316 = vpop.f32.mrf.mxu0
        %v9317 = vadd.f32 %v9243, %v9316
        %v9318 = vpop.f32.mrf.mxu0
        %9319 = vmatprep.mubr.f32.mxu0 %v9147
        %9320 = vmatmul.mubr.f32.gmra.mxu0 %v9146
        %v9321 = vpop.f32.mrf.mxu0
        %v9322 = vadd.f32 %v9243, %v9321
        %v9323 = vpop.f32.mrf.mxu0
        %9324 = vmatprep.mubr.f32.mxu0 %v9149
        %9325 = vmatmul.mubr.f32.gmra.mxu0 %v9148
        %v9326 = vpop.f32.mrf.mxu0
        %v9327 = vadd.f32 %v9243, %v9326
        %v9328 = vpop.f32.mrf.mxu0
        %9329 = vmatprep.mubr.f32.mxu0 %v9151
        %9330 = vmatmul.mubr.f32.gmra.mxu0 %v9150
        %v9331 = vpop.f32.mrf.mxu0
        %v9332 = vadd.f32 %v9243, %v9331
        %v9333 = vpop.f32.mrf.mxu0
        %9334 = vmatprep.mubr.f32.mxu0 %v9153
        %9335 = vmatmul.mubr.f32.gmra.mxu0 %v9152
        %v9336 = vpop.f32.mrf.mxu0
        %v9337 = vadd.f32 %v9243, %v9336
        %v9338 = vpop.f32.mrf.mxu0
        %9339 = vmatprep.mubr.f32.mxu0 %v9155
        %9340 = vmatmul.mubr.f32.gmra.mxu0 %v9154
        %v9341 = vpop.f32.mrf.mxu0
        %v9342 = vadd.f32 %v9243, %v9341
        %v9343 = vpop.f32.mrf.mxu0
        %9344 = vmatprep.mubr.f32.mxu0 %v9157
        %9345 = vmatmul.mubr.f32.gmra.mxu0 %v9156
        %v9346 = vpop.f32.mrf.mxu0
        %v9347 = vadd.f32 %v9243, %v9346
        %v9348 = vpop.f32.mrf.mxu0
        %9349 = vmatprep.mubr.f32.mxu0 %v9159
        %9350 = vmatmul.mubr.f32.gmra.mxu0 %v9158
        %v9351 = vpop.f32.mrf.mxu0
        %v9352 = vadd.f32 %v9243, %v9351
        %v9353 = vpop.f32.mrf.mxu0
        %9354 = vmatprep.mubr.f32.mxu0 %v9161
        %9355 = vmatmul.mubr.f32.gmra.mxu0 %v9160
        %v9356 = vpop.f32.mrf.mxu0
        %v9357 = vadd.f32 %v9243, %v9356
        %v9358 = vpop.f32.mrf.mxu0
        %9359 = vmatprep.mubr.f32.mxu0 %v9163
        %9360 = vmatmul.mubr.f32.gmra.mxu0 %v9162
        %v9361 = vpop.f32.mrf.mxu0
        %v9362 = vadd.f32 %v9243, %v9361
        %v9363 = vpop.f32.mrf.mxu0
        %9364 = vmatprep.mubr.f32.mxu0 %v9165
        %9365 = vmatmul.mubr.f32.gmra.mxu0 %v9164
        %v9366 = vpop.f32.mrf.mxu0
        %v9367 = vadd.f32 %v9243, %v9366
        %v9368 = vpop.f32.mrf.mxu0
        %9369 = vmatprep.mubr.f32.mxu0 %v9167
        %9370 = vmatmul.mubr.f32.gmra.mxu0 %v9166
        %v9371 = vpop.f32.mrf.mxu0
        %v9372 = vadd.f32 %v9243, %v9371
        %v9373 = vpop.f32.mrf.mxu0
        %9374 = vmatprep.mubr.f32.mxu0 %v9169
        %9375 = vmatmul.mubr.f32.gmra.mxu0 %v9168
        %v9376 = vpop.f32.mrf.mxu0
        %v9377 = vadd.f32 %v9243, %v9376
        %v9378 = vpop.f32.mrf.mxu0
        %9379 = vmatprep.mubr.f32.mxu0 %v9171
        %9380 = vmatmul.mubr.f32.gmra.mxu0 %v9170
        %v9381 = vpop.f32.mrf.mxu0
        %v9382 = vadd.f32 %v9243, %v9381
        %v9383 = vpop.f32.mrf.mxu0
        %9384 = vmatprep.mubr.f32.mxu0 %v9173
        %9385 = vmatmul.mubr.f32.gmra.mxu0 %v9172
        %v9386 = vpop.f32.mrf.mxu0
        %v9387 = vadd.f32 %v9243, %v9386
        %v9388 = vpop.f32.mrf.mxu0
        %9389 = vmatprep.mubr.f32.mxu0 %v9175
        %9390 = vmatmul.mubr.f32.gmra.mxu0 %v9174
        %v9391 = vpop.f32.mrf.mxu0
        %v9392 = vadd.f32 %v9243, %v9391
        %v9393 = vpop.f32.mrf.mxu0
        %9394 = vmatprep.mubr.f32.mxu0 %v9177
        %9395 = vmatmul.mubr.f32.gmra.mxu0 %v9176
        %v9396 = vpop.f32.mrf.mxu0
        %v9397 = vadd.f32 %v9243, %v9396
        %v9398 = vpop.f32.mrf.mxu0
        %9399 = vmatprep.mubr.f32.mxu0 %v9179
        %9400 = vmatmul.mubr.f32.gmra.mxu0 %v9178
        %v9401 = vpop.f32.mrf.mxu0
        %v9402 = vadd.f32 %v9243, %v9401
        %v9403 = vpop.f32.mrf.mxu0
        %9404 = vmatprep.mubr.f32.mxu0 %v9181
        %9405 = vmatmul.mubr.f32.gmra.mxu0 %v9180
        %v9406 = vpop.f32.mrf.mxu0
        %v9407 = vadd.f32 %v9243, %v9406
        %v9408 = vpop.f32.mrf.mxu0
        %9409 = vmatprep.mubr.f32.mxu0 %v9183
        %9410 = vmatmul.mubr.f32.gmra.mxu0 %v9182
        %v9411 = vpop.f32.mrf.mxu0
        %v9412 = vadd.f32 %v9243, %v9411
        %v9413 = vpop.f32.mrf.mxu0
        %9414 = vmatprep.mubr.f32.mxu0 %v9185
        %9415 = vmatmul.mubr.f32.gmra.mxu0 %v9184
        %v9416 = vpop.f32.mrf.mxu0
        %v9417 = vadd.f32 %v9243, %v9416
        %v9418 = vpop.f32.mrf.mxu0
        %9419 = vmatprep.mubr.f32.mxu0 %v9187
        %9420 = vmatmul.mubr.f32.gmra.mxu0 %v9186
        %v9421 = vpop.f32.mrf.mxu0
        %v9422 = vadd.f32 %v9243, %v9421
        %v9423 = vpop.f32.mrf.mxu0
        %9424 = vmatprep.mubr.f32.mxu0 %v9189
        %9425 = vmatmul.mubr.f32.gmra.mxu0 %v9188
        %v9426 = vpop.f32.mrf.mxu0
        %v9427 = vadd.f32 %v9243, %v9426
        %v9428 = vpop.f32.mrf.mxu0
        %9429 = vmatprep.mubr.f32.mxu0 %v9191
        %9430 = vmatmul.mubr.f32.gmra.mxu0 %v9190
        %v9431 = vpop.f32.mrf.mxu0
        %v9432 = vadd.f32 %v9243, %v9431
        %v9433 = vpop.f32.mrf.mxu0
        %9434 = vmatprep.mubr.f32.mxu0 %v9193
        %9435 = vmatmul.mubr.f32.gmra.mxu0 %v9192
        %v9436 = vpop.f32.mrf.mxu0
        %v9437 = vadd.f32 %v9243, %v9436
        %v9438 = vpop.f32.mrf.mxu0
        %9439 = vmatprep.mubr.f32.mxu0 %v9195
        %9440 = vmatmul.mubr.f32.gmra.mxu0 %v9194
        %v9441 = vpop.f32.mrf.mxu0
        %v9442 = vadd.f32 %v9243, %v9441
        %v9443 = vpop.f32.mrf.mxu0
        %9444 = vmatprep.mubr.f32.mxu0 %v9197
        %9445 = vmatmul.mubr.f32.gmra.mxu0 %v9196
        %v9446 = vpop.f32.mrf.mxu0
        %v9447 = vadd.f32 %v9243, %v9446
        %v9448 = vpop.f32.mrf.mxu0
        %9449 = vmatprep.mubr.f32.mxu0 %v9199
        %9450 = vmatmul.mubr.f32.gmra.mxu0 %v9198
        %v9451 = vpop.f32.mrf.mxu0
        %v9452 = vadd.f32 %v9243, %v9451
        %v9453 = vpop.f32.mrf.mxu0
        %9454 = vmatprep.mubr.f32.mxu0 %v9201
        %9455 = vmatmul.mubr.f32.gmra.mxu0 %v9200
        %v9456 = vpop.f32.mrf.mxu0
        %v9457 = vadd.f32 %v9243, %v9456
        %v9458 = vpop.f32.mrf.mxu0
        %9459 = vmatprep.mubr.f32.mxu0 %v9203
        %9460 = vmatmul.mubr.f32.gmra.mxu0 %v9202
        %v9461 = vpop.f32.mrf.mxu0
        %v9462 = vadd.f32 %v9243, %v9461
        %v9463 = vpop.f32.mrf.mxu0
        %9464 = vmatprep.mubr.f32.mxu0 %v9205
        %9465 = vmatmul.mubr.f32.gmra.mxu0 %v9204
        %v9466 = vpop.f32.mrf.mxu0
        %v9467 = vadd.f32 %v9243, %v9466
        %v9468 = vpop.f32.mrf.mxu0
        %9469 = vdwg.mxu0
        %v9470 = vadd.f32 %v9312, %v8809
        %v9471 = vadd.f32 %v9317, %v8810
        %v9472 = vadd.f32 %v9322, %v8811
        %v9473 = vadd.f32 %v9327, %v8812
        %v9474 = vadd.f32 %v9332, %v8813
        %v9475 = vadd.f32 %v9337, %v8814
        %v9476 = vadd.f32 %v9342, %v8815
        %v9477 = vadd.f32 %v9347, %v8816
        %v9478 = vadd.f32 %v9352, %v8817
        %v9479 = vadd.f32 %v9357, %v8818
        %v9480 = vadd.f32 %v9362, %v8819
        %v9481 = vadd.f32 %v9367, %v8820
        %v9482 = vadd.f32 %v9372, %v8821
        %v9483 = vadd.f32 %v9377, %v8822
        %v9484 = vadd.f32 %v9382, %v8823
        %v9485 = vadd.f32 %v9387, %v8824
        %v9486 = vadd.f32 %v9392, %v8825
        %v9487 = vadd.f32 %v9397, %v8826
        %v9488 = vadd.f32 %v9402, %v8827
        %v9489 = vadd.f32 %v9407, %v8828
        %v9490 = vadd.f32 %v9412, %v8829
        %v9491 = vadd.f32 %v9417, %v8830
        %v9492 = vadd.f32 %v9422, %v8831
        %v9493 = vadd.f32 %v9427, %v8832
        %v9494 = vadd.f32 %v9432, %v8833
        %v9495 = vadd.f32 %v9437, %v8834
        %v9496 = vadd.f32 %v9442, %v8835
        %v9497 = vadd.f32 %v9447, %v8836
        %v9498 = vadd.f32 %v9452, %v8837
        %v9499 = vadd.f32 %v9457, %v8838
        %v9500 = vadd.f32 %v9462, %v8839
        %v9501 = vadd.f32 %v9467, %v8840
        %v9502 = vld [vmem:[%s13] sm:$0x1]
        %v9503 = vld [vmem:[%s14] sm:$0x1]
        %9504 = vadd.xlane.f32.xlu0 %v9470
        %v9505 = vpop.xlane.xlu0 %9504
        %9506 = vadd.xlane.f32.xlu0 %v9471
        %v9507 = vpop.xlane.xlu0 %9506
        %9508 = vadd.xlane.f32.xlu0 %v9472
        %v9509 = vpop.xlane.xlu0 %9508
        %9510 = vadd.xlane.f32.xlu0 %v9473
        %v9511 = vpop.xlane.xlu0 %9510
        %9512 = vadd.xlane.f32.xlu0 %v9474
        %v9513 = vpop.xlane.xlu0 %9512
        %9514 = vadd.xlane.f32.xlu0 %v9475
        %v9515 = vpop.xlane.xlu0 %9514
        %9516 = vadd.xlane.f32.xlu0 %v9476
        %v9517 = vpop.xlane.xlu0 %9516
        %9518 = vadd.xlane.f32.xlu0 %v9477
        %v9519 = vpop.xlane.xlu0 %9518
        %9520 = vadd.xlane.f32.xlu0 %v9478
        %v9521 = vpop.xlane.xlu0 %9520
        %9522 = vadd.xlane.f32.xlu0 %v9479
        %v9523 = vpop.xlane.xlu0 %9522
        %9524 = vadd.xlane.f32.xlu0 %v9480
        %v9525 = vpop.xlane.xlu0 %9524
        %9526 = vadd.xlane.f32.xlu0 %v9481
        %v9527 = vpop.xlane.xlu0 %9526
        %9528 = vadd.xlane.f32.xlu0 %v9482
        %v9529 = vpop.xlane.xlu0 %9528
        %9530 = vadd.xlane.f32.xlu0 %v9483
        %v9531 = vpop.xlane.xlu0 %9530
        %9532 = vadd.xlane.f32.xlu0 %v9484
        %v9533 = vpop.xlane.xlu0 %9532
        %9534 = vadd.xlane.f32.xlu0 %v9485
        %v9535 = vpop.xlane.xlu0 %9534
        %9536 = vadd.xlane.f32.xlu0 %v9486
        %v9537 = vpop.xlane.xlu0 %9536
        %9538 = vadd.xlane.f32.xlu0 %v9487
        %v9539 = vpop.xlane.xlu0 %9538
        %9540 = vadd.xlane.f32.xlu0 %v9488
        %v9541 = vpop.xlane.xlu0 %9540
        %9542 = vadd.xlane.f32.xlu0 %v9489
        %v9543 = vpop.xlane.xlu0 %9542
        %9544 = vadd.xlane.f32.xlu0 %v9490
        %v9545 = vpop.xlane.xlu0 %9544
        %9546 = vadd.xlane.f32.xlu0 %v9491
        %v9547 = vpop.xlane.xlu0 %9546
        %9548 = vadd.xlane.f32.xlu0 %v9492
        %v9549 = vpop.xlane.xlu0 %9548
        %9550 = vadd.xlane.f32.xlu0 %v9493
        %v9551 = vpop.xlane.xlu0 %9550
        %9552 = vadd.xlane.f32.xlu0 %v9494
        %v9553 = vpop.xlane.xlu0 %9552
        %9554 = vadd.xlane.f32.xlu0 %v9495
        %v9555 = vpop.xlane.xlu0 %9554
        %9556 = vadd.xlane.f32.xlu0 %v9496
        %v9557 = vpop.xlane.xlu0 %9556
        %9558 = vadd.xlane.f32.xlu0 %v9497
        %v9559 = vpop.xlane.xlu0 %9558
        %9560 = vadd.xlane.f32.xlu0 %v9498
        %v9561 = vpop.xlane.xlu0 %9560
        %9562 = vadd.xlane.f32.xlu0 %v9499
        %v9563 = vpop.xlane.xlu0 %9562
        %9564 = vadd.xlane.f32.xlu0 %v9500
        %v9565 = vpop.xlane.xlu0 %9564
        %9566 = vadd.xlane.f32.xlu0 %v9501
        %v9567 = vpop.xlane.xlu0 %9566
        %v9568 = vmul.f32 %v9505, %v8476
        %v9569 = vmul.f32 %v9507, %v8476
        %v9570 = vmul.f32 %v9509, %v8476
        %v9571 = vmul.f32 %v9511, %v8476
        %v9572 = vmul.f32 %v9513, %v8476
        %v9573 = vmul.f32 %v9515, %v8476
        %v9574 = vmul.f32 %v9517, %v8476
        %v9575 = vmul.f32 %v9519, %v8476
        %v9576 = vmul.f32 %v9521, %v8476
        %v9577 = vmul.f32 %v9523, %v8476
        %v9578 = vmul.f32 %v9525, %v8476
        %v9579 = vmul.f32 %v9527, %v8476
        %v9580 = vmul.f32 %v9529, %v8476
        %v9581 = vmul.f32 %v9531, %v8476
        %v9582 = vmul.f32 %v9533, %v8476
        %v9583 = vmul.f32 %v9535, %v8476
        %v9584 = vmul.f32 %v9537, %v8476
        %v9585 = vmul.f32 %v9539, %v8476
        %v9586 = vmul.f32 %v9541, %v8476
        %v9587 = vmul.f32 %v9543, %v8476
        %v9588 = vmul.f32 %v9545, %v8476
        %v9589 = vmul.f32 %v9547, %v8476
        %v9590 = vmul.f32 %v9549, %v8476
        %v9591 = vmul.f32 %v9551, %v8476
        %v9592 = vmul.f32 %v9553, %v8476
        %v9593 = vmul.f32 %v9555, %v8476
        %v9594 = vmul.f32 %v9557, %v8476
        %v9595 = vmul.f32 %v9559, %v8476
        %v9596 = vmul.f32 %v9561, %v8476
        %v9597 = vmul.f32 %v9563, %v8476
        %v9598 = vmul.f32 %v9565, %v8476
        %v9599 = vmul.f32 %v9567, %v8476
        %v9600 = vsub.f32 %v9470, %v9568
        %v9601 = vsub.f32 %v9471, %v9569
        %v9602 = vsub.f32 %v9472, %v9570
        %v9603 = vsub.f32 %v9473, %v9571
        %v9604 = vsub.f32 %v9474, %v9572
        %v9605 = vsub.f32 %v9475, %v9573
        %v9606 = vsub.f32 %v9476, %v9574
        %v9607 = vsub.f32 %v9477, %v9575
        %v9608 = vsub.f32 %v9478, %v9576
        %v9609 = vsub.f32 %v9479, %v9577
        %v9610 = vsub.f32 %v9480, %v9578
        %v9611 = vsub.f32 %v9481, %v9579
        %v9612 = vsub.f32 %v9482, %v9580
        %v9613 = vsub.f32 %v9483, %v9581
        %v9614 = vsub.f32 %v9484, %v9582
        %v9615 = vsub.f32 %v9485, %v9583
        %v9616 = vsub.f32 %v9486, %v9584
        %v9617 = vsub.f32 %v9487, %v9585
        %v9618 = vsub.f32 %v9488, %v9586
        %v9619 = vsub.f32 %v9489, %v9587
        %v9620 = vsub.f32 %v9490, %v9588
        %v9621 = vsub.f32 %v9491, %v9589
        %v9622 = vsub.f32 %v9492, %v9590
        %v9623 = vsub.f32 %v9493, %v9591
        %v9624 = vsub.f32 %v9494, %v9592
        %v9625 = vsub.f32 %v9495, %v9593
        %v9626 = vsub.f32 %v9496, %v9594
        %v9627 = vsub.f32 %v9497, %v9595
        %v9628 = vsub.f32 %v9498, %v9596
        %v9629 = vsub.f32 %v9499, %v9597
        %v9630 = vsub.f32 %v9500, %v9598
        %v9631 = vsub.f32 %v9501, %v9599
        %v9632 = vmul.f32 %v9600, %v9600
        %v9633 = vmul.f32 %v9601, %v9601
        %v9634 = vmul.f32 %v9602, %v9602
        %v9635 = vmul.f32 %v9603, %v9603
        %v9636 = vmul.f32 %v9604, %v9604
        %v9637 = vmul.f32 %v9605, %v9605
        %v9638 = vmul.f32 %v9606, %v9606
        %v9639 = vmul.f32 %v9607, %v9607
        %v9640 = vmul.f32 %v9608, %v9608
        %v9641 = vmul.f32 %v9609, %v9609
        %v9642 = vmul.f32 %v9610, %v9610
        %v9643 = vmul.f32 %v9611, %v9611
        %v9644 = vmul.f32 %v9612, %v9612
        %v9645 = vmul.f32 %v9613, %v9613
        %v9646 = vmul.f32 %v9614, %v9614
        %v9647 = vmul.f32 %v9615, %v9615
        %v9648 = vmul.f32 %v9616, %v9616
        %v9649 = vmul.f32 %v9617, %v9617
        %v9650 = vmul.f32 %v9618, %v9618
        %v9651 = vmul.f32 %v9619, %v9619
        %v9652 = vmul.f32 %v9620, %v9620
        %v9653 = vmul.f32 %v9621, %v9621
        %v9654 = vmul.f32 %v9622, %v9622
        %v9655 = vmul.f32 %v9623, %v9623
        %v9656 = vmul.f32 %v9624, %v9624
        %v9657 = vmul.f32 %v9625, %v9625
        %v9658 = vmul.f32 %v9626, %v9626
        %v9659 = vmul.f32 %v9627, %v9627
        %v9660 = vmul.f32 %v9628, %v9628
        %v9661 = vmul.f32 %v9629, %v9629
        %v9662 = vmul.f32 %v9630, %v9630
        %v9663 = vmul.f32 %v9631, %v9631
        %9664 = vadd.xlane.f32.xlu0 %v9632
        %v9665 = vpop.xlane.xlu0 %9664
        %9666 = vadd.xlane.f32.xlu0 %v9633
        %v9667 = vpop.xlane.xlu0 %9666
        %9668 = vadd.xlane.f32.xlu0 %v9634
        %v9669 = vpop.xlane.xlu0 %9668
        %9670 = vadd.xlane.f32.xlu0 %v9635
        %v9671 = vpop.xlane.xlu0 %9670
        %9672 = vadd.xlane.f32.xlu0 %v9636
        %v9673 = vpop.xlane.xlu0 %9672
        %9674 = vadd.xlane.f32.xlu0 %v9637
        %v9675 = vpop.xlane.xlu0 %9674
        %9676 = vadd.xlane.f32.xlu0 %v9638
        %v9677 = vpop.xlane.xlu0 %9676
        %9678 = vadd.xlane.f32.xlu0 %v9639
        %v9679 = vpop.xlane.xlu0 %9678
        %9680 = vadd.xlane.f32.xlu0 %v9640
        %v9681 = vpop.xlane.xlu0 %9680
        %9682 = vadd.xlane.f32.xlu0 %v9641
        %v9683 = vpop.xlane.xlu0 %9682
        %9684 = vadd.xlane.f32.xlu0 %v9642
        %v9685 = vpop.xlane.xlu0 %9684
        %9686 = vadd.xlane.f32.xlu0 %v9643
        %v9687 = vpop.xlane.xlu0 %9686
        %9688 = vadd.xlane.f32.xlu0 %v9644
        %v9689 = vpop.xlane.xlu0 %9688
        %9690 = vadd.xlane.f32.xlu0 %v9645
        %v9691 = vpop.xlane.xlu0 %9690
        %9692 = vadd.xlane.f32.xlu0 %v9646
        %v9693 = vpop.xlane.xlu0 %9692
        %9694 = vadd.xlane.f32.xlu0 %v9647
        %v9695 = vpop.xlane.xlu0 %9694
        %9696 = vadd.xlane.f32.xlu0 %v9648
        %v9697 = vpop.xlane.xlu0 %9696
        %9698 = vadd.xlane.f32.xlu0 %v9649
        %v9699 = vpop.xlane.xlu0 %9698
        %9700 = vadd.xlane.f32.xlu0 %v9650
        %v9701 = vpop.xlane.xlu0 %9700
        %9702 = vadd.xlane.f32.xlu0 %v9651
        %v9703 = vpop.xlane.xlu0 %9702
        %9704 = vadd.xlane.f32.xlu0 %v9652
        %v9705 = vpop.xlane.xlu0 %9704
        %9706 = vadd.xlane.f32.xlu0 %v9653
        %v9707 = vpop.xlane.xlu0 %9706
        %9708 = vadd.xlane.f32.xlu0 %v9654
        %v9709 = vpop.xlane.xlu0 %9708
        %9710 = vadd.xlane.f32.xlu0 %v9655
        %v9711 = vpop.xlane.xlu0 %9710
        %9712 = vadd.xlane.f32.xlu0 %v9656
        %v9713 = vpop.xlane.xlu0 %9712
        %9714 = vadd.xlane.f32.xlu0 %v9657
        %v9715 = vpop.xlane.xlu0 %9714
        %9716 = vadd.xlane.f32.xlu0 %v9658
        %v9717 = vpop.xlane.xlu0 %9716
        %9718 = vadd.xlane.f32.xlu0 %v9659
        %v9719 = vpop.xlane.xlu0 %9718
        %9720 = vadd.xlane.f32.xlu0 %v9660
        %v9721 = vpop.xlane.xlu0 %9720
        %9722 = vadd.xlane.f32.xlu0 %v9661
        %v9723 = vpop.xlane.xlu0 %9722
        %9724 = vadd.xlane.f32.xlu0 %v9662
        %v9725 = vpop.xlane.xlu0 %9724
        %9726 = vadd.xlane.f32.xlu0 %v9663
        %v9727 = vpop.xlane.xlu0 %9726
        %v9728 = vmul.f32 %v9665, %v8476
        %v9729 = vmul.f32 %v9667, %v8476
        %v9730 = vmul.f32 %v9669, %v8476
        %v9731 = vmul.f32 %v9671, %v8476
        %v9732 = vmul.f32 %v9673, %v8476
        %v9733 = vmul.f32 %v9675, %v8476
        %v9734 = vmul.f32 %v9677, %v8476
        %v9735 = vmul.f32 %v9679, %v8476
        %v9736 = vmul.f32 %v9681, %v8476
        %v9737 = vmul.f32 %v9683, %v8476
        %v9738 = vmul.f32 %v9685, %v8476
        %v9739 = vmul.f32 %v9687, %v8476
        %v9740 = vmul.f32 %v9689, %v8476
        %v9741 = vmul.f32 %v9691, %v8476
        %v9742 = vmul.f32 %v9693, %v8476
        %v9743 = vmul.f32 %v9695, %v8476
        %v9744 = vmul.f32 %v9697, %v8476
        %v9745 = vmul.f32 %v9699, %v8476
        %v9746 = vmul.f32 %v9701, %v8476
        %v9747 = vmul.f32 %v9703, %v8476
        %v9748 = vmul.f32 %v9705, %v8476
        %v9749 = vmul.f32 %v9707, %v8476
        %v9750 = vmul.f32 %v9709, %v8476
        %v9751 = vmul.f32 %v9711, %v8476
        %v9752 = vmul.f32 %v9713, %v8476
        %v9753 = vmul.f32 %v9715, %v8476
        %v9754 = vmul.f32 %v9717, %v8476
        %v9755 = vmul.f32 %v9719, %v8476
        %v9756 = vmul.f32 %v9721, %v8476
        %v9757 = vmul.f32 %v9723, %v8476
        %v9758 = vmul.f32 %v9725, %v8476
        %v9759 = vmul.f32 %v9727, %v8476
        %v9760 = vadd.f32 %v9728, 1e-05
        %v9761 = vadd.f32 %v9729, 1e-05
        %v9762 = vadd.f32 %v9730, 1e-05
        %v9763 = vadd.f32 %v9731, 1e-05
        %v9764 = vadd.f32 %v9732, 1e-05
        %v9765 = vadd.f32 %v9733, 1e-05
        %v9766 = vadd.f32 %v9734, 1e-05
        %v9767 = vadd.f32 %v9735, 1e-05
        %v9768 = vadd.f32 %v9736, 1e-05
        %v9769 = vadd.f32 %v9737, 1e-05
        %v9770 = vadd.f32 %v9738, 1e-05
        %v9771 = vadd.f32 %v9739, 1e-05
        %v9772 = vadd.f32 %v9740, 1e-05
        %v9773 = vadd.f32 %v9741, 1e-05
        %v9774 = vadd.f32 %v9742, 1e-05
        %v9775 = vadd.f32 %v9743, 1e-05
        %v9776 = vadd.f32 %v9744, 1e-05
        %v9777 = vadd.f32 %v9745, 1e-05
        %v9778 = vadd.f32 %v9746, 1e-05
        %v9779 = vadd.f32 %v9747, 1e-05
        %v9780 = vadd.f32 %v9748, 1e-05
        %v9781 = vadd.f32 %v9749, 1e-05
        %v9782 = vadd.f32 %v9750, 1e-05
        %v9783 = vadd.f32 %v9751, 1e-05
        %v9784 = vadd.f32 %v9752, 1e-05
        %v9785 = vadd.f32 %v9753, 1e-05
        %v9786 = vadd.f32 %v9754, 1e-05
        %v9787 = vadd.f32 %v9755, 1e-05
        %v9788 = vadd.f32 %v9756, 1e-05
        %v9789 = vadd.f32 %v9757, 1e-05
        %v9790 = vadd.f32 %v9758, 1e-05
        %v9791 = vadd.f32 %v9759, 1e-05
        %v9792 = vrsqrt.pop %v9760
        %v9793 = vrsqrt.pop %v9761
        %v9794 = vrsqrt.pop %v9762
        %v9795 = vrsqrt.pop %v9763
        %v9796 = vrsqrt.pop %v9764
        %v9797 = vrsqrt.pop %v9765
        %v9798 = vrsqrt.pop %v9766
        %v9799 = vrsqrt.pop %v9767
        %v9800 = vrsqrt.pop %v9768
        %v9801 = vrsqrt.pop %v9769
        %v9802 = vrsqrt.pop %v9770
        %v9803 = vrsqrt.pop %v9771
        %v9804 = vrsqrt.pop %v9772
        %v9805 = vrsqrt.pop %v9773
        %v9806 = vrsqrt.pop %v9774
        %v9807 = vrsqrt.pop %v9775
        %v9808 = vrsqrt.pop %v9776
        %v9809 = vrsqrt.pop %v9777
        %v9810 = vrsqrt.pop %v9778
        %v9811 = vrsqrt.pop %v9779
        %v9812 = vrsqrt.pop %v9780
        %v9813 = vrsqrt.pop %v9781
        %v9814 = vrsqrt.pop %v9782
        %v9815 = vrsqrt.pop %v9783
        %v9816 = vrsqrt.pop %v9784
        %v9817 = vrsqrt.pop %v9785
        %v9818 = vrsqrt.pop %v9786
        %v9819 = vrsqrt.pop %v9787
        %v9820 = vrsqrt.pop %v9788
        %v9821 = vrsqrt.pop %v9789
        %v9822 = vrsqrt.pop %v9790
        %v9823 = vrsqrt.pop %v9791
        %v9824 = vmul.f32 %v9600, %v9792
        %v9825 = vmul.f32 %v9601, %v9793
        %v9826 = vmul.f32 %v9602, %v9794
        %v9827 = vmul.f32 %v9603, %v9795
        %v9828 = vmul.f32 %v9604, %v9796
        %v9829 = vmul.f32 %v9605, %v9797
        %v9830 = vmul.f32 %v9606, %v9798
        %v9831 = vmul.f32 %v9607, %v9799
        %v9832 = vmul.f32 %v9608, %v9800
        %v9833 = vmul.f32 %v9609, %v9801
        %v9834 = vmul.f32 %v9610, %v9802
        %v9835 = vmul.f32 %v9611, %v9803
        %v9836 = vmul.f32 %v9612, %v9804
        %v9837 = vmul.f32 %v9613, %v9805
        %v9838 = vmul.f32 %v9614, %v9806
        %v9839 = vmul.f32 %v9615, %v9807
        %v9840 = vmul.f32 %v9616, %v9808
        %v9841 = vmul.f32 %v9617, %v9809
        %v9842 = vmul.f32 %v9618, %v9810
        %v9843 = vmul.f32 %v9619, %v9811
        %v9844 = vmul.f32 %v9620, %v9812
        %v9845 = vmul.f32 %v9621, %v9813
        %v9846 = vmul.f32 %v9622, %v9814
        %v9847 = vmul.f32 %v9623, %v9815
        %v9848 = vmul.f32 %v9624, %v9816
        %v9849 = vmul.f32 %v9625, %v9817
        %v9850 = vmul.f32 %v9626, %v9818
        %v9851 = vmul.f32 %v9627, %v9819
        %v9852 = vmul.f32 %v9628, %v9820
        %v9853 = vmul.f32 %v9629, %v9821
        %v9854 = vmul.f32 %v9630, %v9822
        %v9855 = vmul.f32 %v9631, %v9823
        %v9857 = vlaneseq
        %v9858 = vshrl.u32 %v9857, 7
        %v9859 = vsub.s32 0, %v9858
        %v9860 = vrot.slane %v9502, %v9859
        %v9862 = vmul.f32 %v9824, %v9860
        %v9863 = vmul.f32 %v9825, %v9860
        %v9864 = vmul.f32 %v9826, %v9860
        %v9865 = vmul.f32 %v9827, %v9860
        %v9866 = vmul.f32 %v9828, %v9860
        %v9867 = vmul.f32 %v9829, %v9860
        %v9868 = vmul.f32 %v9830, %v9860
        %v9869 = vmul.f32 %v9831, %v9860
        %v9870 = vmul.f32 %v9832, %v9860
        %v9871 = vmul.f32 %v9833, %v9860
        %v9872 = vmul.f32 %v9834, %v9860
        %v9873 = vmul.f32 %v9835, %v9860
        %v9874 = vmul.f32 %v9836, %v9860
        %v9875 = vmul.f32 %v9837, %v9860
        %v9876 = vmul.f32 %v9838, %v9860
        %v9877 = vmul.f32 %v9839, %v9860
        %v9878 = vmul.f32 %v9840, %v9860
        %v9879 = vmul.f32 %v9841, %v9860
        %v9880 = vmul.f32 %v9842, %v9860
        %v9881 = vmul.f32 %v9843, %v9860
        %v9882 = vmul.f32 %v9844, %v9860
        %v9883 = vmul.f32 %v9845, %v9860
        %v9884 = vmul.f32 %v9846, %v9860
        %v9885 = vmul.f32 %v9847, %v9860
        %v9886 = vmul.f32 %v9848, %v9860
        %v9887 = vmul.f32 %v9849, %v9860
        %v9888 = vmul.f32 %v9850, %v9860
        %v9889 = vmul.f32 %v9851, %v9860
        %v9890 = vmul.f32 %v9852, %v9860
        %v9891 = vmul.f32 %v9853, %v9860
        %v9892 = vmul.f32 %v9854, %v9860
        %v9893 = vmul.f32 %v9855, %v9860
        %v9895 = vlaneseq
        %v9896 = vshrl.u32 %v9895, 7
        %v9897 = vsub.s32 0, %v9896
        %v9898 = vrot.slane %v9503, %v9897
        %v9900 = vadd.f32 %v9862, %v9898
        %v9901 = vadd.f32 %v9863, %v9898
        %v9902 = vadd.f32 %v9864, %v9898
        %v9903 = vadd.f32 %v9865, %v9898
        %v9904 = vadd.f32 %v9866, %v9898
        %v9905 = vadd.f32 %v9867, %v9898
        %v9906 = vadd.f32 %v9868, %v9898
        %v9907 = vadd.f32 %v9869, %v9898
        %v9908 = vadd.f32 %v9870, %v9898
        %v9909 = vadd.f32 %v9871, %v9898
        %v9910 = vadd.f32 %v9872, %v9898
        %v9911 = vadd.f32 %v9873, %v9898
        %v9912 = vadd.f32 %v9874, %v9898
        %v9913 = vadd.f32 %v9875, %v9898
        %v9914 = vadd.f32 %v9876, %v9898
        %v9915 = vadd.f32 %v9877, %v9898
        %v9916 = vadd.f32 %v9878, %v9898
        %v9917 = vadd.f32 %v9879, %v9898
        %v9918 = vadd.f32 %v9880, %v9898
        %v9919 = vadd.f32 %v9881, %v9898
        %v9920 = vadd.f32 %v9882, %v9898
        %v9921 = vadd.f32 %v9883, %v9898
        %v9922 = vadd.f32 %v9884, %v9898
        %v9923 = vadd.f32 %v9885, %v9898
        %v9924 = vadd.f32 %v9886, %v9898
        %v9925 = vadd.f32 %v9887, %v9898
        %v9926 = vadd.f32 %v9888, %v9898
        %v9927 = vadd.f32 %v9889, %v9898
        %v9928 = vadd.f32 %v9890, %v9898
        %v9929 = vadd.f32 %v9891, %v9898
        %v9930 = vadd.f32 %v9892, %v9898
        %v9931 = vadd.f32 %v9893, %v9898
        %9932 = vst [vmem:[%s586] sm:$0xff] %v9900
        %9933 = vst [vmem:[%s586 + $0x8] sm:$0xff] %v9901
        %9934 = vst [vmem:[%s586 + $0x10] sm:$0xff] %v9902
        %9935 = vst [vmem:[%s586 + $0x18] sm:$0xff] %v9903
        %9936 = vst [vmem:[%s586 + $0x20] sm:$0xff] %v9904
        %9937 = vst [vmem:[%s586 + $0x28] sm:$0xff] %v9905
        %9938 = vst [vmem:[%s586 + $0x30] sm:$0xff] %v9906
        %9939 = vst [vmem:[%s586 + $0x38] sm:$0xff] %v9907
        %9940 = vst [vmem:[%s586 + $0x40] sm:$0xff] %v9908
        %9941 = vst [vmem:[%s586 + $0x48] sm:$0xff] %v9909
        %9942 = vst [vmem:[%s586 + $0x50] sm:$0xff] %v9910
        %9943 = vst [vmem:[%s586 + $0x58] sm:$0xff] %v9911
        %9944 = vst [vmem:[%s586 + $0x60] sm:$0xff] %v9912
        %9945 = vst [vmem:[%s586 + $0x68] sm:$0xff] %v9913
        %9946 = vst [vmem:[%s586 + $0x70] sm:$0xff] %v9914
        %9947 = vst [vmem:[%s586 + $0x78] sm:$0xff] %v9915
        %9948 = vst [vmem:[%s586 + $0x80] sm:$0xff] %v9916
        %9949 = vst [vmem:[%s586 + $0x88] sm:$0xff] %v9917
        %9950 = vst [vmem:[%s586 + $0x90] sm:$0xff] %v9918
        %9951 = vst [vmem:[%s586 + $0x98] sm:$0xff] %v9919
        %9952 = vst [vmem:[%s586 + $0xa0] sm:$0xff] %v9920
        %9953 = vst [vmem:[%s586 + $0xa8] sm:$0xff] %v9921
        %9954 = vst [vmem:[%s586 + $0xb0] sm:$0xff] %v9922
        %9955 = vst [vmem:[%s586 + $0xb8] sm:$0xff] %v9923
        %9956 = vst [vmem:[%s586 + $0xc0] sm:$0xff] %v9924
        %9957 = vst [vmem:[%s586 + $0xc8] sm:$0xff] %v9925
        %9958 = vst [vmem:[%s586 + $0xd0] sm:$0xff] %v9926
        %9959 = vst [vmem:[%s586 + $0xd8] sm:$0xff] %v9927
        %9960 = vst [vmem:[%s586 + $0xe0] sm:$0xff] %v9928
        %9961 = vst [vmem:[%s586 + $0xe8] sm:$0xff] %v9929
        %9962 = vst [vmem:[%s586 + $0xf0] sm:$0xff] %v9930
        %9963 = vst [vmem:[%s586 + $0xf8] sm:$0xff] %v9931
        %s9964 = sand.u32 %s363, 1
        %s9965 = scalar_lea.sflag [#allocation5], %s9964
        %s9966 = sand.u32 %s363, 1
        %s9967 = smul.addr %s9966, 256
        %s9968 = scalar_lea.vmem [#allocation14], %s9967
        // Predicated region
        $region105: #{tpu_custom_call.1} parent=79 // pred_check
          %p9969 = pneg %p373
        $region106: #{tpu_custom_call.1} parent=79 // pred_check_branch
          %9971 = sbr.rel (%p9969) target = $region108
        $region107: #{tpu_custom_call.1} parent=79 // pred_region
          %s9972 = smul.u32 4, %s35
          %s9974 = ssub.s32 4096, 4096
          %9975 = vsyncadd %s9965, %s9974
          %s9976 = smul.addr %s9972, 8
          %s9977 = smul.addr %s9976, 128
          %s9978 = scalar_lea.hbm %s15, %s9977
          %s9979 = sshll.u32 %s9968, 4
          %s9980 = int_to_ptr.vmem [resolvable:$true] %s9979
          %9985 = dma.vmem_to_hbm [thread:$0]  %s9980, 4096, %s9978, %s9965, 128, 128, 8
        $region108: #{tpu_custom_call.1} parent=79 // pred_fallthru
          _
      $region80: #{tpu_custom_call.1} parent=5 // pred_fallthru
        _
      %p9986 = scmp.le.s32.totalorder 2, %s30
      // Predicated region
      $region109: #{tpu_custom_call.1} parent=5 // pred_check
        %p9987 = pneg %p9986
      $region110: #{tpu_custom_call.1} parent=5 // pred_check_branch
        %9989 = sbr.rel (%p9987) target = $region112
      $region111: #{tpu_custom_call.1} parent=5 // pred_region
        %s9990 = ssub.s32 %s30, 2
        // Predicated region
        $region113: #{tpu_custom_call.1} parent=111 // pred_check
          %p9991 = pneg %p379
        $region114: #{tpu_custom_call.1} parent=111 // pred_check_branch
          %9993 = sbr.rel (%p9991) target = $region116
        $region115: #{tpu_custom_call.1} parent=111 // pred_region
          %s9994 = sand.u32 %s364, 1
          %s9995 = scalar_lea.sflag [#allocation5], %s9994
          %s9996 = sand.u32 %s364, 1
          %s9997 = smul.addr %s9996, 256
          %s9998 = scalar_lea.vmem [#allocation14], %s9997
          %9999 = dma.done %s9995, 4096
        $region116: #{tpu_custom_call.1} parent=111 // pred_fallthru
          _
      $region112: #{tpu_custom_call.1} parent=5 // pred_fallthru
        _
    $region6: #{tpu_custom_call.1} parent=1 // loop_footer
      %s34 = sadd.s32 1, %s30
    $region7: #{tpu_custom_call.1} parent=1 // loop_footer_branch
      %29 = sbr.rel target = $region3
    $region8: #{tpu_custom_call.1} parent=1 // loop_exit
      _
    %10000 = vsyncpa [#allocation4], 1
    %s10001 = scalar_lea.sflag [#allocation4], 1
    %10002 = vsyncpa %s10001, 1
    %10003 = vsyncpa [#allocation7], 1
    %10004 = vsyncpa [#allocation10], 1
    %10005 = vsyncpa [#allocation13], 1
    %10006 = vsyncpa [#allocation5], 1
    %s10007 = scalar_lea.sflag [#allocation5], 1
    %10008 = vsyncpa %s10007, 1

</llo_original>
